<compile_context>
chip_gen: v5e
topology: v5e:2x2
jax: 0.10.0
libtpu: 0.0.40
codegen_flags: <defaults>
</compile_context>

<pallas_src>
import functools

import numpy as np

import jax
import jax.numpy as jnp
from jax import lax
from jax.experimental import pallas as pl
from jax.experimental.pallas import tpu as pltpu


_MAX_ACC_ROWS = 256   # <= 32 f32 vregs per (rows, C<=128) accumulator value


def _build_selectors(R, wo, astride, ostride, out_len, mg):
    """0/1 pool selectors, one per 2x2-window offset {0, 1, s, s+1}.

    S[a, q, p] = 1 picks conv position p = 2j*astride + 2i + off_a into output
    row q = j*ostride + i.  Output rows with i >= wo stay all-zero, so the
    padded gap / never-read columns of the destination buffer receive exact 0.
    """
    sel = np.zeros((4, out_len, mg), np.float32)
    for a, off in enumerate((0, 1, astride, astride + 1)):
        for j in range(R):
            for i in range(wo):
                p = 2 * j * astride + 2 * i + off
                assert 0 <= p < mg, "selector tap out of accumulator bounds"
                sel[a, j * ostride + i, p] = 1.0
    return jnp.asarray(sel, jnp.bfloat16)


def _make_fold_writer(dst_ref, *, k_next, wp_next, pad_next, rows_per_group):
    """Writes a pooled group (already in the next layer's padded flat-row
    layout) k_next times, shifted by kw, into the KW-folded scratch buffer."""
    def write(g, pooled):                         # pooled: (out_len, C) f32
        c = pooled.shape[1]
        row0 = pad_next + g * rows_per_group
        for kw in range(k_next):
            dst = row0 * wp_next + pad_next - kw
            dst_ref[pl.ds(dst, pooled.shape[0]), pl.ds(kw * c, c)] = pooled
    return write


def _make_out_writer(o_ref, *, rows_per_group):
    def write(g, pooled):                         # pooled: (R*wo, C) f32
        wo = pooled.shape[0] // rows_per_group
        for j in range(rows_per_group):
            o_ref[0, g * rows_per_group + j] = pooled[j * wo:(j + 1) * wo, :]
    return write


def _conv_pool_layer(in_view, w_ref, b_ref, sel_ref, geom, write_group):
    """conv(stride=1) + bias + 2x2/2 max-pool + ReLU for one whole layer.

    in_view : (rows, K) flat LHS.  Layer 1: full im2col (bf16, gapless rows of
              width wc).  Layers 2-4: KW-folded padded activation (f32, rows
              of width wp holding k*cin channels).
    w_ref   : (n_taps, K, Cout) bf16 -- one tap per KH offset (1 tap for L1).
    b_ref   : (1, Cout) f32.
    sel_ref : (4, out_len, Mg) bf16 0/1 pool selectors (host-built constants).
    """
    bias = b_ref[...]                               # hoisted out of the loops
    taps, mg = geom['taps'], geom['mg']
    for g in range(geom['n_groups']):               # static, tiny trip count
        base = g * geom['group_base_stride']
        off0, widx0 = taps[0]
        acc = jnp.dot(in_view[pl.ds(base + off0, mg), :].astype(jnp.bfloat16),
                      w_ref[widx0], preferred_element_type=jnp.float32)
        for off, widx in taps[1:]:                  # KW-folded: <= k-1 extras
            acc = acc + jnp.dot(
                in_view[pl.ds(base + off, mg), :].astype(jnp.bfloat16),
                w_ref[widx], preferred_element_type=jnp.float32)
        # Bias commutes with max-pool; adding it pre-pool keeps the selector's
        # all-zero gap rows at exactly 0 (the padding value) after ReLU.
        acc = (acc + bias).astype(jnp.bfloat16)
        m = jnp.dot(sel_ref[0], acc, preferred_element_type=jnp.float32)
        for a in range(1, 4):
            m = jnp.maximum(
                m, jnp.dot(sel_ref[a], acc, preferred_element_type=jnp.float32))
        write_group(g, jnp.maximum(m, 0.0))         # ReLU (gap rows stay 0)


def _cnn_fused_kernel(x_ref, w1, b1, s1, w2, b2, s2, w3, b3, s3, w4, b4, s4,
                      o_ref, act2, act3, act4, *, geoms, fold_cfgs, out_cfg):
    """All four conv+pool+ReLU layers for one batch element, resident in VMEM."""
    # Zero the KW-folded activation buffers.  Only the padding border and the
    # never-read tail columns strictly need it, but a full zero is a few dozen
    # vector stores at this size and stays correct when the "parallel" batch
    # axis is sharded across TensorCores (each core re-zeroes its own scratch).
    for act in (act2, act3, act4):
        act[...] = jnp.zeros(act.shape, act.dtype)

    writers = (
        _make_fold_writer(act2, **fold_cfgs[0]),
        _make_fold_writer(act3, **fold_cfgs[1]),
        _make_fold_writer(act4, **fold_cfgs[2]),
        _make_out_writer(o_ref, **out_cfg),
    )
    ins = (x_ref.at[0], act2, act3, act4)
    wts = (w1, w2, w3, w4)
    bss = (b1, b2, b3, b4)
    sels = (s1, s2, s3, s4)
    for layer in range(4):
        _conv_pool_layer(ins[layer], wts[layer], bss[layer], sels[layer],
                         geoms[layer], writers[layer])


def make_cnn_forward(params):
    """Builds a jitted NCHW forward of CNN_net using one fused Pallas kernel."""
    params = [(jnp.asarray(w), jnp.asarray(b), int(k), int(p))
              for (w, b, k, p) in params]

    @jax.jit
    def forward(x_nchw):
        n, _, hh, ww = x_nchw.shape
        x = jnp.transpose(x_nchw, (0, 2, 3, 1)).astype(jnp.float32)   # NHWC

        # ---- static per-layer geometry ------------------------------------
        stats = []
        h, w = hh, ww
        for (wgt, b, k, pad) in params:
            cin, cout = int(wgt.shape[2]), int(wgt.shape[3])
            hp, wp = h + 2 * pad, w + 2 * pad
            hc, wc = hp - k + 1, wp - k + 1
            ho, wo = hc // 2, wc // 2           # MaxPool2d(2,2) floors
            assert ho >= 1 and wo >= 1, "obs_shape too small for four 2x2 pools"
            stats.append(dict(k=k, pad=pad, cin=cin, cout=cout, hp=hp, wp=wp,
                              hc=hc, wc=wc, ho=ho, wo=wo))
            h, w = ho, wo
        s1_, s4_ = stats[0], stats[3]

        # ---- layer-1 host prep: full kxk im2col (K = k*k*cin), bf16 --------
        w1, b1_, k1, p1 = params[0]
        xp = jnp.pad(x, ((0, 0), (p1, p1), (p1, p1), (0, 0)))
        cols = [xp[:, kh:kh + s1_['hc'], kw:kw + s1_['wc'], :]
                for kh in range(k1) for kw in range(k1)]
        x_l1 = jnp.concatenate(cols, axis=-1).reshape(
            n, s1_['hc'] * s1_['wc'], k1 * k1 * s1_['cin']).astype(jnp.bfloat16)

        # ---- weights / biases in kernel layouts (bf16 MXU operands) --------
        wfs = [w1.reshape(1, k1 * k1 * s1_['cin'], s1_['cout']).astype(jnp.bfloat16)]
        bfs = [b1_.reshape(1, -1).astype(jnp.float32)]
        for (wgt, b, k, pad), s in zip(params[1:], stats[1:]):
            # (kh, kw, cin, cout) -> (kh, kw*cin, cout): matches the KW-folded
            # activation column layout (slot kw holds channels of x[.., w+kw]).
            wfs.append(wgt.reshape(k, k * s['cin'], s['cout']).astype(jnp.bfloat16))
            bfs.append(b.reshape(1, -1).astype(jnp.float32))

        # ---- static group geometry, pool selectors, writer configs ---------
        geoms, sels, fold_cfgs = [], [], []
        out_cfg = None
        for li, s in enumerate(stats):
            # flat stride between consecutive conv rows in the LHS buffer
            astride = s['wc'] if li == 0 else s['wp']
            # largest divisor R of ho whose accumulator fits the row cap
            R = 1
            for d in range(s['ho'], 0, -1):
                if s['ho'] % d == 0 and (2 * d - 1) * astride + s['wc'] <= _MAX_ACC_ROWS:
                    R = d
                    break
            mg = (2 * R - 1) * astride + s['wc']
            n_groups = s['ho'] // R
            taps = (((0, 0),) if li == 0
                    else tuple((kh * astride, kh) for kh in range(s['k'])))
            # Pooled rows are emitted directly in the NEXT layer's padded
            # flat-row layout (ostride = wp_next); the last layer is gapless.
            ostride = stats[li + 1]['wp'] if li < 3 else s['wo']
            out_len = (R - 1) * ostride + s['wo']

            # -- static bounds checks (no silent OOB VMEM access) ------------
            in_rows = s['hc'] * s['wc'] if li == 0 else s['hp'] * s['wp']
            max_off = max(off for off, _ in taps)
            assert (n_groups - 1) * 2 * R * astride + max_off + mg <= in_rows, (
                "conv LHS slice would read out of bounds")
            assert (2 * R - 1) * astride + 2 * s['wo'] - 1 < mg, (
                "pool selector tap out of accumulator bounds")

            geoms.append(dict(n_groups=n_groups, group_base_stride=2 * R * astride,
                              mg=mg, taps=taps))
            sels.append(_build_selectors(R, s['wo'], astride, ostride, out_len, mg))

            if li < 3:
                nxt = stats[li + 1]
                assert nxt['cin'] == s['cout']
                lo = nxt['pad'] * nxt['wp'] + nxt['pad'] - (nxt['k'] - 1)
                hi = (nxt['pad'] + s['ho'] - R) * nxt['wp'] + nxt['pad'] + out_len
                assert lo >= 0 and hi <= nxt['hp'] * nxt['wp'], (
                    "folded-activation store would go out of bounds")
                fold_cfgs.append(dict(k_next=nxt['k'], wp_next=nxt['wp'],
                                      pad_next=nxt['pad'], rows_per_group=R))
            else:
                out_cfg = dict(rows_per_group=R)

        kernel = functools.partial(_cnn_fused_kernel, geoms=tuple(geoms),
                                   fold_cfgs=tuple(fold_cfgs), out_cfg=out_cfg)

        # ---- pallas_call ----------------------------------------------------
        const_inputs, const_specs = [], []
        for wf, bf, sl in zip(wfs, bfs, sels):
            const_inputs += [wf, bf, sl]
            const_specs += [pl.BlockSpec(wf.shape, lambda i: (0, 0, 0)),
                            pl.BlockSpec(bf.shape, lambda i: (0, 0)),
                            pl.BlockSpec(sl.shape, lambda i: (0, 0, 0))]

        grid_spec = pltpu.PrefetchScalarGridSpec(
            num_scalar_prefetch=0,
            grid=(n,),
            in_specs=[pl.BlockSpec((1,) + x_l1.shape[1:], lambda i: (i, 0, 0))]
                     + const_specs,
            out_specs=pl.BlockSpec((1, s4_['ho'], s4_['wo'], s4_['cout']),
                                   lambda i: (i, 0, 0, 0)),
            scratch_shapes=[
                # KW-folded padded activations for layers 2-4 (f32: their
                # kw-shifted loads/stores are sublane-unaligned; see header).
                pltpu.VMEM((st['hp'] * st['wp'], st['k'] * st['cin']), jnp.float32)
                for st in stats[1:]
            ],
        )

        out = pl.pallas_call(
            kernel,
            out_shape=jax.ShapeDtypeStruct(
                (n, s4_['ho'], s4_['wo'], s4_['cout']), jnp.float32),
            grid_spec=grid_spec,
            compiler_params=pltpu.CompilerParams(
                # v7x: the two TensorCores split the batch (needs n >= 2).
                dimension_semantics=("parallel",)),
        )(x_l1, *const_inputs)

        # PyTorch's x.view(N, -1) flattens in NCHW order.
        out = jnp.transpose(out, (0, 3, 1, 2))
        return out.reshape(n, -1)

    return forward


def init_params(key, in_channels):
    """Deterministic synthetic init (the PyTorch module re-inits via weights_init)."""
    cfgs = [(in_channels, 32, 5, 2), (32, 32, 5, 1), (32, 64, 4, 1), (64, 64, 3, 1)]
    gain = 2.0 ** 0.5                    # nn.init.calculate_gain('relu')
    params = []
    for cin, cout, k, pad in cfgs:
        key, kw_, kb_ = jax.random.split(key, 3)
        fan_in = cin * k * k
        w = jax.random.normal(kw_, (k, k, cin, cout), jnp.float32) * (gain / (fan_in ** 0.5))
        b = jax.random.uniform(kb_, (cout,), jnp.float32, -0.05, 0.05)
        params.append((w, b, k, pad))
    return params, key


def reference_forward(x_nchw, params):
    """Pure-JAX reference mirroring the PyTorch forward (f32, HIGHEST precision)."""
    x = x_nchw
    for (w, b, k, pad) in params:
        y = lax.conv_general_dilated(
            x, w, window_strides=(1, 1),
            padding=[(pad, pad), (pad, pad)],
            dimension_numbers=("NCHW", "HWIO", "NCHW"),
            precision=lax.Precision.HIGHEST)
        y = y + b.reshape(1, -1, 1, 1)
        y = lax.reduce_window(y, -jnp.inf, lax.max,
                              (1, 1, 2, 2), (1, 1, 2, 2), "VALID")
        x = jnp.maximum(y, 0.0)
    return x.reshape(x.shape[0], -1)


if __name__ == "__main__":
    # obs_shape must survive four 2x2 pools: 32 -> 16 -> 7 -> 3 -> 1
    # (16 would collapse to 0 at the last pool), batch = stack_frames = 2.
    obs_shape = (4, 32, 32)
    stack_frames = 2

    key = jax.random.PRNGKey(0)
    params, key = init_params(key, obs_shape[0])
    key, kx = jax.random.split(key)
    x = jax.random.uniform(kx, (stack_frames,) + obs_shape, jnp.float32)

    cnn_forward = make_cnn_forward(params)
    out = jax.block_until_ready(cnn_forward(x))

    ref = reference_forward(x, params)
    assert out.shape == (stack_frames, 64), out.shape
    # Tolerance reflects bf16 MXU operands (f32 accumulation) vs the f32
    # HIGHEST-precision reference.
    if not jnp.allclose(out, ref, rtol=5e-2, atol=5e-2):
        max_err = float(jnp.max(jnp.abs(out - ref)))
        raise AssertionError(f"Pallas output mismatch vs reference, max_err={max_err}")

    print("KERNEL_OK")
</pallas_src>

<mosaic_0001>
module attributes {stable_mosaic.version = 11 : i64} {
  func.func @_cnn_fused_kernel(%arg0: i32, %arg1: memref<1x1024x100xbf16, #tpu.memory_space<vmem>>, %arg2: memref<1x100x32xbf16, #tpu.memory_space<vmem>>, %arg3: memref<1x32xf32, #tpu.memory_space<vmem>>, %arg4: memref<4x70x256xbf16, #tpu.memory_space<vmem>>, %arg5: memref<5x160x32xbf16, #tpu.memory_space<vmem>>, %arg6: memref<1x32xf32, #tpu.memory_space<vmem>>, %arg7: memref<4x61x248xbf16, #tpu.memory_space<vmem>>, %arg8: memref<4x128x64xbf16, #tpu.memory_space<vmem>>, %arg9: memref<1x64xf32, #tpu.memory_space<vmem>>, %arg10: memref<4x13x51xbf16, #tpu.memory_space<vmem>>, %arg11: memref<3x192x64xbf16, #tpu.memory_space<vmem>>, %arg12: memref<1x64xf32, #tpu.memory_space<vmem>>, %arg13: memref<4x1x8xbf16, #tpu.memory_space<vmem>>, %arg14: memref<1x1x1x64xf32, #tpu.memory_space<vmem>>, %arg15: memref<324x160xf32, #tpu.memory_space<vmem>>, %arg16: memref<81x128xf32, #tpu.memory_space<vmem>>, %arg17: memref<25x192xf32, #tpu.memory_space<vmem>>) attributes {dimension_semantics = [#tpu.dimension_semantics<parallel>], iteration_bounds = array<i64: 2>, scalar_prefetch = 0 : i64, scratch_operands = 3 : i64, tpu.core_type = #tpu.core_type<tc>, window_params = [{transform_indices = @transform_0, window_bounds = array<i64: 1, 1024, 100>}, {pipeline_mode = #tpu.pipeline_mode<synchronous>, transform_indices = @transform_1, window_bounds = array<i64: 1, 100, 32>}, {pipeline_mode = #tpu.pipeline_mode<synchronous>, transform_indices = @transform_2, window_bounds = array<i64: 1, 32>}, {pipeline_mode = #tpu.pipeline_mode<synchronous>, transform_indices = @transform_3, window_bounds = array<i64: 4, 70, 256>}, {pipeline_mode = #tpu.pipeline_mode<synchronous>, transform_indices = @transform_4, window_bounds = array<i64: 5, 160, 32>}, {pipeline_mode = #tpu.pipeline_mode<synchronous>, transform_indices = @transform_5, window_bounds = array<i64: 1, 32>}, {pipeline_mode = #tpu.pipeline_mode<synchronous>, transform_indices = @transform_6, window_bounds = array<i64: 4, 61, 248>}, {pipeline_mode = #tpu.pipeline_mode<synchronous>, transform_indices = @transform_7, window_bounds = array<i64: 4, 128, 64>}, {pipeline_mode = #tpu.pipeline_mode<synchronous>, transform_indices = @transform_8, window_bounds = array<i64: 1, 64>}, {pipeline_mode = #tpu.pipeline_mode<synchronous>, transform_indices = @transform_9, window_bounds = array<i64: 4, 13, 51>}, {pipeline_mode = #tpu.pipeline_mode<synchronous>, transform_indices = @transform_10, window_bounds = array<i64: 3, 192, 64>}, {pipeline_mode = #tpu.pipeline_mode<synchronous>, transform_indices = @transform_11, window_bounds = array<i64: 1, 64>}, {pipeline_mode = #tpu.pipeline_mode<synchronous>, transform_indices = @transform_12, window_bounds = array<i64: 4, 1, 8>}, {transform_indices = @transform_13, window_bounds = array<i64: 1, 1, 1, 64>}]} {
    %cst = arith.constant 0.000000e+00 : f32
    %0 = vector.broadcast %cst : f32 to vector<324x160xf32>
    %c0 = arith.constant 0 : index
    %c0_0 = arith.constant 0 : index
    %1 = vector.load %arg15[%c0, %c0_0] : memref<324x160xf32, #tpu.memory_space<vmem>>, vector<324x160xf32>
    tpu.vector_store %arg15[%c0, %c0_0], %0 {strides = array<i32>} : memref<324x160xf32, #tpu.memory_space<vmem>>, vector<324x160xf32>,
    %cst_1 = arith.constant 0.000000e+00 : f32
    %2 = vector.broadcast %cst_1 : f32 to vector<81x128xf32>
    %c0_2 = arith.constant 0 : index
    %c0_3 = arith.constant 0 : index
    %3 = vector.load %arg16[%c0_2, %c0_3] : memref<81x128xf32, #tpu.memory_space<vmem>>, vector<81x128xf32>
    tpu.vector_store %arg16[%c0_2, %c0_3], %2 {strides = array<i32>} : memref<81x128xf32, #tpu.memory_space<vmem>>, vector<81x128xf32>,
    %cst_4 = arith.constant 0.000000e+00 : f32
    %4 = vector.broadcast %cst_4 : f32 to vector<25x192xf32>
    %c0_5 = arith.constant 0 : index
    %c0_6 = arith.constant 0 : index
    %5 = vector.load %arg17[%c0_5, %c0_6] : memref<25x192xf32, #tpu.memory_space<vmem>>, vector<25x192xf32>
    tpu.vector_store %arg17[%c0_5, %c0_6], %4 {strides = array<i32>} : memref<25x192xf32, #tpu.memory_space<vmem>>, vector<25x192xf32>,
    %c0_7 = arith.constant 0 : index
    %c0_8 = arith.constant 0 : index
    %6 = vector.load %arg3[%c0_7, %c0_8] : memref<1x32xf32, #tpu.memory_space<vmem>>, vector<1x32xf32>
    %c0_i32 = arith.constant 0 : i32
    %c0_i32_9 = arith.constant 0 : i32
    %c0_i32_10 = arith.constant 0 : i32
    %7 = tpu.memref_slice %arg1[%c0_i32, %c0_i32_9, %c0_i32_10] : memref<1x1024x100xbf16, #tpu.memory_space<vmem>> -> memref<1x1024x100xbf16, #tpu.memory_space<vmem>>
    %8 = tpu.memref_squeeze %7 : memref<1x1024x100xbf16, #tpu.memory_space<vmem>> -> memref<1024x100xbf16, #tpu.memory_space<vmem>>
    %c0_11 = arith.constant 0 : index
    %c0_12 = arith.constant 0 : index
    %9 = vector.load %8[%c0_11, %c0_12] : memref<1024x100xbf16, #tpu.memory_space<vmem>>, vector<256x100xbf16>
    %c0_13 = arith.constant 0 : index
    %c0_14 = arith.constant 0 : index
    %c0_15 = arith.constant 0 : index
    %10 = vector.load %arg2[%c0_13, %c0_14, %c0_15] : memref<1x100x32xbf16, #tpu.memory_space<vmem>>, vector<1x100x32xbf16>
    %11 = vector.shape_cast %10 : vector<1x100x32xbf16> to vector<100x32xbf16>
    %cst_16 = arith.constant dense<0.000000e+00> : vector<256x32xf32>
    %12 = tpu.matmul %9, %11, %cst_16 {dimension_numbers = #tpu.dot_dimension_numbers<[1], [0], [0], [1], [0, 0, 1, 1], [], []>} : vector<256x100xbf16>, vector<100x32xbf16>, vector<256x32xf32> -> vector<256x32xf32>
    %13 = vector.broadcast %6 : vector<1x32xf32> to vector<256x32xf32>
    %14 = arith.addf %12, %13 : vector<256x32xf32>
    %15 = arith.truncf %14 : vector<256x32xf32> to vector<256x32xbf16>
    %c0_17 = arith.constant 0 : index
    %c0_18 = arith.constant 0 : index
    %c0_19 = arith.constant 0 : index
    %16 = vector.load %arg4[%c0_17, %c0_18, %c0_19] : memref<4x70x256xbf16, #tpu.memory_space<vmem>>, vector<1x70x256xbf16>
    %17 = vector.shape_cast %16 : vector<1x70x256xbf16> to vector<70x256xbf16>
    %cst_20 = arith.constant dense<0.000000e+00> : vector<70x32xf32>
    %18 = tpu.matmul %17, %15, %cst_20 {dimension_numbers = #tpu.dot_dimension_numbers<[1], [0], [0], [1], [0, 0, 1, 1], [], []>} : vector<70x256xbf16>, vector<256x32xbf16>, vector<70x32xf32> -> vector<70x32xf32>
    %c1 = arith.constant 1 : index
    %c0_21 = arith.constant 0 : index
    %c0_22 = arith.constant 0 : index
    %19 = vector.load %arg4[%c1, %c0_21, %c0_22] : memref<4x70x256xbf16, #tpu.memory_space<vmem>>, vector<1x70x256xbf16>
    %20 = vector.shape_cast %19 : vector<1x70x256xbf16> to vector<70x256xbf16>
    %cst_23 = arith.constant dense<0.000000e+00> : vector<70x32xf32>
    %21 = tpu.matmul %20, %15, %cst_23 {dimension_numbers = #tpu.dot_dimension_numbers<[1], [0], [0], [1], [0, 0, 1, 1], [], []>} : vector<70x256xbf16>, vector<256x32xbf16>, vector<70x32xf32> -> vector<70x32xf32>
    %22 = arith.maximumf %18, %21 : vector<70x32xf32>
    %c2 = arith.constant 2 : index
    %c0_24 = arith.constant 0 : index
    %c0_25 = arith.constant 0 : index
    %23 = vector.load %arg4[%c2, %c0_24, %c0_25] : memref<4x70x256xbf16, #tpu.memory_space<vmem>>, vector<1x70x256xbf16>
    %24 = vector.shape_cast %23 : vector<1x70x256xbf16> to vector<70x256xbf16>
    %cst_26 = arith.constant dense<0.000000e+00> : vector<70x32xf32>
    %25 = tpu.matmul %24, %15, %cst_26 {dimension_numbers = #tpu.dot_dimension_numbers<[1], [0], [0], [1], [0, 0, 1, 1], [], []>} : vector<70x256xbf16>, vector<256x32xbf16>, vector<70x32xf32> -> vector<70x32xf32>
    %26 = arith.maximumf %22, %25 : vector<70x32xf32>
    %c3 = arith.constant 3 : index
    %c0_27 = arith.constant 0 : index
    %c0_28 = arith.constant 0 : index
    %27 = vector.load %arg4[%c3, %c0_27, %c0_28] : memref<4x70x256xbf16, #tpu.memory_space<vmem>>, vector<1x70x256xbf16>
    %28 = vector.shape_cast %27 : vector<1x70x256xbf16> to vector<70x256xbf16>
    %cst_29 = arith.constant dense<0.000000e+00> : vector<70x32xf32>
    %29 = tpu.matmul %28, %15, %cst_29 {dimension_numbers = #tpu.dot_dimension_numbers<[1], [0], [0], [1], [0, 0, 1, 1], [], []>} : vector<70x256xbf16>, vector<256x32xbf16>, vector<70x32xf32> -> vector<70x32xf32>
    %30 = arith.maximumf %26, %29 : vector<70x32xf32>
    %cst_30 = arith.constant 0.000000e+00 : f32
    %31 = vector.broadcast %cst_30 : f32 to vector<70x32xf32>
    %32 = arith.maximumf %30, %31 : vector<70x32xf32>
    %c19 = arith.constant 19 : index
    %c0_31 = arith.constant 0 : index
    %33 = vector.load %arg15[%c19, %c0_31] : memref<324x160xf32, #tpu.memory_space<vmem>>, vector<70x32xf32>
    tpu.vector_store %arg15[%c19, %c0_31], %32 {strides = array<i32>} : memref<324x160xf32, #tpu.memory_space<vmem>>, vector<70x32xf32>,
    %c18 = arith.constant 18 : index
    %c32 = arith.constant 32 : index
    %34 = vector.load %arg15[%c18, %c32] : memref<324x160xf32, #tpu.memory_space<vmem>>, vector<70x32xf32>
    tpu.vector_store %arg15[%c18, %c32], %32 {strides = array<i32>} : memref<324x160xf32, #tpu.memory_space<vmem>>, vector<70x32xf32>,
    %c17 = arith.constant 17 : index
    %c64 = arith.constant 64 : index
    %35 = vector.load %arg15[%c17, %c64] : memref<324x160xf32, #tpu.memory_space<vmem>>, vector<70x32xf32>
    tpu.vector_store %arg15[%c17, %c64], %32 {strides = array<i32>} : memref<324x160xf32, #tpu.memory_space<vmem>>, vector<70x32xf32>,
    %c16 = arith.constant 16 : index
    %c96 = arith.constant 96 : index
    %36 = vector.load %arg15[%c16, %c96] : memref<324x160xf32, #tpu.memory_space<vmem>>, vector<70x32xf32>
    tpu.vector_store %arg15[%c16, %c96], %32 {strides = array<i32>} : memref<324x160xf32, #tpu.memory_space<vmem>>, vector<70x32xf32>,
    %c15 = arith.constant 15 : index
    %c128 = arith.constant 128 : index
    %37 = vector.load %arg15[%c15, %c128] : memref<324x160xf32, #tpu.memory_space<vmem>>, vector<70x32xf32>
    tpu.vector_store %arg15[%c15, %c128], %32 {strides = array<i32>} : memref<324x160xf32, #tpu.memory_space<vmem>>, vector<70x32xf32>,
    %c0_i32_32 = arith.constant 0 : i32
    %c0_i32_33 = arith.constant 0 : i32
    %c0_i32_34 = arith.constant 0 : i32
    %38 = tpu.memref_slice %arg1[%c0_i32_32, %c0_i32_33, %c0_i32_34] : memref<1x1024x100xbf16, #tpu.memory_space<vmem>> -> memref<1x1024x100xbf16, #tpu.memory_space<vmem>>
    %39 = tpu.memref_squeeze %38 : memref<1x1024x100xbf16, #tpu.memory_space<vmem>> -> memref<1024x100xbf16, #tpu.memory_space<vmem>>
    %c256 = arith.constant 256 : index
    %c0_35 = arith.constant 0 : index
    %40 = vector.load %39[%c256, %c0_35] : memref<1024x100xbf16, #tpu.memory_space<vmem>>, vector<256x100xbf16>
    %c0_36 = arith.constant 0 : index
    %c0_37 = arith.constant 0 : index
    %c0_38 = arith.constant 0 : index
    %41 = vector.load %arg2[%c0_36, %c0_37, %c0_38] : memref<1x100x32xbf16, #tpu.memory_space<vmem>>, vector<1x100x32xbf16>
    %42 = vector.shape_cast %41 : vector<1x100x32xbf16> to vector<100x32xbf16>
    %cst_39 = arith.constant dense<0.000000e+00> : vector<256x32xf32>
    %43 = tpu.matmul %40, %42, %cst_39 {dimension_numbers = #tpu.dot_dimension_numbers<[1], [0], [0], [1], [0, 0, 1, 1], [], []>} : vector<256x100xbf16>, vector<100x32xbf16>, vector<256x32xf32> -> vector<256x32xf32>
    %44 = vector.broadcast %6 : vector<1x32xf32> to vector<256x32xf32>
    %45 = arith.addf %43, %44 : vector<256x32xf32>
    %46 = arith.truncf %45 : vector<256x32xf32> to vector<256x32xbf16>
    %c0_40 = arith.constant 0 : index
    %c0_41 = arith.constant 0 : index
    %c0_42 = arith.constant 0 : index
    %47 = vector.load %arg4[%c0_40, %c0_41, %c0_42] : memref<4x70x256xbf16, #tpu.memory_space<vmem>>, vector<1x70x256xbf16>
    %48 = vector.shape_cast %47 : vector<1x70x256xbf16> to vector<70x256xbf16>
    %cst_43 = arith.constant dense<0.000000e+00> : vector<70x32xf32>
    %49 = tpu.matmul %48, %46, %cst_43 {dimension_numbers = #tpu.dot_dimension_numbers<[1], [0], [0], [1], [0, 0, 1, 1], [], []>} : vector<70x256xbf16>, vector<256x32xbf16>, vector<70x32xf32> -> vector<70x32xf32>
    %c1_44 = arith.constant 1 : index
    %c0_45 = arith.constant 0 : index
    %c0_46 = arith.constant 0 : index
    %50 = vector.load %arg4[%c1_44, %c0_45, %c0_46] : memref<4x70x256xbf16, #tpu.memory_space<vmem>>, vector<1x70x256xbf16>
    %51 = vector.shape_cast %50 : vector<1x70x256xbf16> to vector<70x256xbf16>
    %cst_47 = arith.constant dense<0.000000e+00> : vector<70x32xf32>
    %52 = tpu.matmul %51, %46, %cst_47 {dimension_numbers = #tpu.dot_dimension_numbers<[1], [0], [0], [1], [0, 0, 1, 1], [], []>} : vector<70x256xbf16>, vector<256x32xbf16>, vector<70x32xf32> -> vector<70x32xf32>
    %53 = arith.maximumf %49, %52 : vector<70x32xf32>
    %c2_48 = arith.constant 2 : index
    %c0_49 = arith.constant 0 : index
    %c0_50 = arith.constant 0 : index
    %54 = vector.load %arg4[%c2_48, %c0_49, %c0_50] : memref<4x70x256xbf16, #tpu.memory_space<vmem>>, vector<1x70x256xbf16>
    %55 = vector.shape_cast %54 : vector<1x70x256xbf16> to vector<70x256xbf16>
    %cst_51 = arith.constant dense<0.000000e+00> : vector<70x32xf32>
    %56 = tpu.matmul %55, %46, %cst_51 {dimension_numbers = #tpu.dot_dimension_numbers<[1], [0], [0], [1], [0, 0, 1, 1], [], []>} : vector<70x256xbf16>, vector<256x32xbf16>, vector<70x32xf32> -> vector<70x32xf32>
    %57 = arith.maximumf %53, %56 : vector<70x32xf32>
    %c3_52 = arith.constant 3 : index
    %c0_53 = arith.constant 0 : index
    %c0_54 = arith.constant 0 : index
    %58 = vector.load %arg4[%c3_52, %c0_53, %c0_54] : memref<4x70x256xbf16, #tpu.memory_space<vmem>>, vector<1x70x256xbf16>
    %59 = vector.shape_cast %58 : vector<1x70x256xbf16> to vector<70x256xbf16>
    %cst_55 = arith.constant dense<0.000000e+00> : vector<70x32xf32>
    %60 = tpu.matmul %59, %46, %cst_55 {dimension_numbers = #tpu.dot_dimension_numbers<[1], [0], [0], [1], [0, 0, 1, 1], [], []>} : vector<70x256xbf16>, vector<256x32xbf16>, vector<70x32xf32> -> vector<70x32xf32>
    %61 = arith.maximumf %57, %60 : vector<70x32xf32>
    %cst_56 = arith.constant 0.000000e+00 : f32
    %62 = vector.broadcast %cst_56 : f32 to vector<70x32xf32>
    %63 = arith.maximumf %61, %62 : vector<70x32xf32>
    %c91 = arith.constant 91 : index
    %c0_57 = arith.constant 0 : index
    %64 = vector.load %arg15[%c91, %c0_57] : memref<324x160xf32, #tpu.memory_space<vmem>>, vector<70x32xf32>
    tpu.vector_store %arg15[%c91, %c0_57], %63 {strides = array<i32>} : memref<324x160xf32, #tpu.memory_space<vmem>>, vector<70x32xf32>,
    %c90 = arith.constant 90 : index
    %c32_58 = arith.constant 32 : index
    %65 = vector.load %arg15[%c90, %c32_58] : memref<324x160xf32, #tpu.memory_space<vmem>>, vector<70x32xf32>
    tpu.vector_store %arg15[%c90, %c32_58], %63 {strides = array<i32>} : memref<324x160xf32, #tpu.memory_space<vmem>>, vector<70x32xf32>,
    %c89 = arith.constant 89 : index
    %c64_59 = arith.constant 64 : index
    %66 = vector.load %arg15[%c89, %c64_59] : memref<324x160xf32, #tpu.memory_space<vmem>>, vector<70x32xf32>
    tpu.vector_store %arg15[%c89, %c64_59], %63 {strides = array<i32>} : memref<324x160xf32, #tpu.memory_space<vmem>>, vector<70x32xf32>,
    %c88 = arith.constant 88 : index
    %c96_60 = arith.constant 96 : index
    %67 = vector.load %arg15[%c88, %c96_60] : memref<324x160xf32, #tpu.memory_space<vmem>>, vector<70x32xf32>
    tpu.vector_store %arg15[%c88, %c96_60], %63 {strides = array<i32>} : memref<324x160xf32, #tpu.memory_space<vmem>>, vector<70x32xf32>,
    %c87 = arith.constant 87 : index
    %c128_61 = arith.constant 128 : index
    %68 = vector.load %arg15[%c87, %c128_61] : memref<324x160xf32, #tpu.memory_space<vmem>>, vector<70x32xf32>
    tpu.vector_store %arg15[%c87, %c128_61], %63 {strides = array<i32>} : memref<324x160xf32, #tpu.memory_space<vmem>>, vector<70x32xf32>,
    %c0_i32_62 = arith.constant 0 : i32
    %c0_i32_63 = arith.constant 0 : i32
    %c0_i32_64 = arith.constant 0 : i32
    %69 = tpu.memref_slice %arg1[%c0_i32_62, %c0_i32_63, %c0_i32_64] : memref<1x1024x100xbf16, #tpu.memory_space<vmem>> -> memref<1x1024x100xbf16, #tpu.memory_space<vmem>>
    %70 = tpu.memref_squeeze %69 : memref<1x1024x100xbf16, #tpu.memory_space<vmem>> -> memref<1024x100xbf16, #tpu.memory_space<vmem>>
    %c512 = arith.constant 512 : index
    %c0_65 = arith.constant 0 : index
    %71 = vector.load %70[%c512, %c0_65] : memref<1024x100xbf16, #tpu.memory_space<vmem>>, vector<256x100xbf16>
    %c0_66 = arith.constant 0 : index
    %c0_67 = arith.constant 0 : index
    %c0_68 = arith.constant 0 : index
    %72 = vector.load %arg2[%c0_66, %c0_67, %c0_68] : memref<1x100x32xbf16, #tpu.memory_space<vmem>>, vector<1x100x32xbf16>
    %73 = vector.shape_cast %72 : vector<1x100x32xbf16> to vector<100x32xbf16>
    %cst_69 = arith.constant dense<0.000000e+00> : vector<256x32xf32>
    %74 = tpu.matmul %71, %73, %cst_69 {dimension_numbers = #tpu.dot_dimension_numbers<[1], [0], [0], [1], [0, 0, 1, 1], [], []>} : vector<256x100xbf16>, vector<100x32xbf16>, vector<256x32xf32> -> vector<256x32xf32>
    %75 = vector.broadcast %6 : vector<1x32xf32> to vector<256x32xf32>
    %76 = arith.addf %74, %75 : vector<256x32xf32>
    %77 = arith.truncf %76 : vector<256x32xf32> to vector<256x32xbf16>
    %c0_70 = arith.constant 0 : index
    %c0_71 = arith.constant 0 : index
    %c0_72 = arith.constant 0 : index
    %78 = vector.load %arg4[%c0_70, %c0_71, %c0_72] : memref<4x70x256xbf16, #tpu.memory_space<vmem>>, vector<1x70x256xbf16>
    %79 = vector.shape_cast %78 : vector<1x70x256xbf16> to vector<70x256xbf16>
    %cst_73 = arith.constant dense<0.000000e+00> : vector<70x32xf32>
    %80 = tpu.matmul %79, %77, %cst_73 {dimension_numbers = #tpu.dot_dimension_numbers<[1], [0], [0], [1], [0, 0, 1, 1], [], []>} : vector<70x256xbf16>, vector<256x32xbf16>, vector<70x32xf32> -> vector<70x32xf32>
    %c1_74 = arith.constant 1 : index
    %c0_75 = arith.constant 0 : index
    %c0_76 = arith.constant 0 : index
    %81 = vector.load %arg4[%c1_74, %c0_75, %c0_76] : memref<4x70x256xbf16, #tpu.memory_space<vmem>>, vector<1x70x256xbf16>
    %82 = vector.shape_cast %81 : vector<1x70x256xbf16> to vector<70x256xbf16>
    %cst_77 = arith.constant dense<0.000000e+00> : vector<70x32xf32>
    %83 = tpu.matmul %82, %77, %cst_77 {dimension_numbers = #tpu.dot_dimension_numbers<[1], [0], [0], [1], [0, 0, 1, 1], [], []>} : vector<70x256xbf16>, vector<256x32xbf16>, vector<70x32xf32> -> vector<70x32xf32>
    %84 = arith.maximumf %80, %83 : vector<70x32xf32>
    %c2_78 = arith.constant 2 : index
    %c0_79 = arith.constant 0 : index
    %c0_80 = arith.constant 0 : index
    %85 = vector.load %arg4[%c2_78, %c0_79, %c0_80] : memref<4x70x256xbf16, #tpu.memory_space<vmem>>, vector<1x70x256xbf16>
    %86 = vector.shape_cast %85 : vector<1x70x256xbf16> to vector<70x256xbf16>
    %cst_81 = arith.constant dense<0.000000e+00> : vector<70x32xf32>
    %87 = tpu.matmul %86, %77, %cst_81 {dimension_numbers = #tpu.dot_dimension_numbers<[1], [0], [0], [1], [0, 0, 1, 1], [], []>} : vector<70x256xbf16>, vector<256x32xbf16>, vector<70x32xf32> -> vector<70x32xf32>
    %88 = arith.maximumf %84, %87 : vector<70x32xf32>
    %c3_82 = arith.constant 3 : index
    %c0_83 = arith.constant 0 : index
    %c0_84 = arith.constant 0 : index
    %89 = vector.load %arg4[%c3_82, %c0_83, %c0_84] : memref<4x70x256xbf16, #tpu.memory_space<vmem>>, vector<1x70x256xbf16>
    %90 = vector.shape_cast %89 : vector<1x70x256xbf16> to vector<70x256xbf16>
    %cst_85 = arith.constant dense<0.000000e+00> : vector<70x32xf32>
    %91 = tpu.matmul %90, %77, %cst_85 {dimension_numbers = #tpu.dot_dimension_numbers<[1], [0], [0], [1], [0, 0, 1, 1], [], []>} : vector<70x256xbf16>, vector<256x32xbf16>, vector<70x32xf32> -> vector<70x32xf32>
    %92 = arith.maximumf %88, %91 : vector<70x32xf32>
    %cst_86 = arith.constant 0.000000e+00 : f32
    %93 = vector.broadcast %cst_86 : f32 to vector<70x32xf32>
    %94 = arith.maximumf %92, %93 : vector<70x32xf32>
    %c163 = arith.constant 163 : index
    %c0_87 = arith.constant 0 : index
    %95 = vector.load %arg15[%c163, %c0_87] : memref<324x160xf32, #tpu.memory_space<vmem>>, vector<70x32xf32>
    tpu.vector_store %arg15[%c163, %c0_87], %94 {strides = array<i32>} : memref<324x160xf32, #tpu.memory_space<vmem>>, vector<70x32xf32>,
    %c162 = arith.constant 162 : index
    %c32_88 = arith.constant 32 : index
    %96 = vector.load %arg15[%c162, %c32_88] : memref<324x160xf32, #tpu.memory_space<vmem>>, vector<70x32xf32>
    tpu.vector_store %arg15[%c162, %c32_88], %94 {strides = array<i32>} : memref<324x160xf32, #tpu.memory_space<vmem>>, vector<70x32xf32>,
    %c161 = arith.constant 161 : index
    %c64_89 = arith.constant 64 : index
    %97 = vector.load %arg15[%c161, %c64_89] : memref<324x160xf32, #tpu.memory_space<vmem>>, vector<70x32xf32>
    tpu.vector_store %arg15[%c161, %c64_89], %94 {strides = array<i32>} : memref<324x160xf32, #tpu.memory_space<vmem>>, vector<70x32xf32>,
    %c160 = arith.constant 160 : index
    %c96_90 = arith.constant 96 : index
    %98 = vector.load %arg15[%c160, %c96_90] : memref<324x160xf32, #tpu.memory_space<vmem>>, vector<70x32xf32>
    tpu.vector_store %arg15[%c160, %c96_90], %94 {strides = array<i32>} : memref<324x160xf32, #tpu.memory_space<vmem>>, vector<70x32xf32>,
    %c159 = arith.constant 159 : index
    %c128_91 = arith.constant 128 : index
    %99 = vector.load %arg15[%c159, %c128_91] : memref<324x160xf32, #tpu.memory_space<vmem>>, vector<70x32xf32>
    tpu.vector_store %arg15[%c159, %c128_91], %94 {strides = array<i32>} : memref<324x160xf32, #tpu.memory_space<vmem>>, vector<70x32xf32>,
    %c0_i32_92 = arith.constant 0 : i32
    %c0_i32_93 = arith.constant 0 : i32
    %c0_i32_94 = arith.constant 0 : i32
    %100 = tpu.memref_slice %arg1[%c0_i32_92, %c0_i32_93, %c0_i32_94] : memref<1x1024x100xbf16, #tpu.memory_space<vmem>> -> memref<1x1024x100xbf16, #tpu.memory_space<vmem>>
    %101 = tpu.memref_squeeze %100 : memref<1x1024x100xbf16, #tpu.memory_space<vmem>> -> memref<1024x100xbf16, #tpu.memory_space<vmem>>
    %c768 = arith.constant 768 : index
    %c0_95 = arith.constant 0 : index
    %102 = vector.load %101[%c768, %c0_95] : memref<1024x100xbf16, #tpu.memory_space<vmem>>, vector<256x100xbf16>
    %c0_96 = arith.constant 0 : index
    %c0_97 = arith.constant 0 : index
    %c0_98 = arith.constant 0 : index
    %103 = vector.load %arg2[%c0_96, %c0_97, %c0_98] : memref<1x100x32xbf16, #tpu.memory_space<vmem>>, vector<1x100x32xbf16>
    %104 = vector.shape_cast %103 : vector<1x100x32xbf16> to vector<100x32xbf16>
    %cst_99 = arith.constant dense<0.000000e+00> : vector<256x32xf32>
    %105 = tpu.matmul %102, %104, %cst_99 {dimension_numbers = #tpu.dot_dimension_numbers<[1], [0], [0], [1], [0, 0, 1, 1], [], []>} : vector<256x100xbf16>, vector<100x32xbf16>, vector<256x32xf32> -> vector<256x32xf32>
    %106 = vector.broadcast %6 : vector<1x32xf32> to vector<256x32xf32>
    %107 = arith.addf %105, %106 : vector<256x32xf32>
    %108 = arith.truncf %107 : vector<256x32xf32> to vector<256x32xbf16>
    %c0_100 = arith.constant 0 : index
    %c0_101 = arith.constant 0 : index
    %c0_102 = arith.constant 0 : index
    %109 = vector.load %arg4[%c0_100, %c0_101, %c0_102] : memref<4x70x256xbf16, #tpu.memory_space<vmem>>, vector<1x70x256xbf16>
    %110 = vector.shape_cast %109 : vector<1x70x256xbf16> to vector<70x256xbf16>
    %cst_103 = arith.constant dense<0.000000e+00> : vector<70x32xf32>
    %111 = tpu.matmul %110, %108, %cst_103 {dimension_numbers = #tpu.dot_dimension_numbers<[1], [0], [0], [1], [0, 0, 1, 1], [], []>} : vector<70x256xbf16>, vector<256x32xbf16>, vector<70x32xf32> -> vector<70x32xf32>
    %c1_104 = arith.constant 1 : index
    %c0_105 = arith.constant 0 : index
    %c0_106 = arith.constant 0 : index
    %112 = vector.load %arg4[%c1_104, %c0_105, %c0_106] : memref<4x70x256xbf16, #tpu.memory_space<vmem>>, vector<1x70x256xbf16>
    %113 = vector.shape_cast %112 : vector<1x70x256xbf16> to vector<70x256xbf16>
    %cst_107 = arith.constant dense<0.000000e+00> : vector<70x32xf32>
    %114 = tpu.matmul %113, %108, %cst_107 {dimension_numbers = #tpu.dot_dimension_numbers<[1], [0], [0], [1], [0, 0, 1, 1], [], []>} : vector<70x256xbf16>, vector<256x32xbf16>, vector<70x32xf32> -> vector<70x32xf32>
    %115 = arith.maximumf %111, %114 : vector<70x32xf32>
    %c2_108 = arith.constant 2 : index
    %c0_109 = arith.constant 0 : index
    %c0_110 = arith.constant 0 : index
    %116 = vector.load %arg4[%c2_108, %c0_109, %c0_110] : memref<4x70x256xbf16, #tpu.memory_space<vmem>>, vector<1x70x256xbf16>
    %117 = vector.shape_cast %116 : vector<1x70x256xbf16> to vector<70x256xbf16>
    %cst_111 = arith.constant dense<0.000000e+00> : vector<70x32xf32>
    %118 = tpu.matmul %117, %108, %cst_111 {dimension_numbers = #tpu.dot_dimension_numbers<[1], [0], [0], [1], [0, 0, 1, 1], [], []>} : vector<70x256xbf16>, vector<256x32xbf16>, vector<70x32xf32> -> vector<70x32xf32>
    %119 = arith.maximumf %115, %118 : vector<70x32xf32>
    %c3_112 = arith.constant 3 : index
    %c0_113 = arith.constant 0 : index
    %c0_114 = arith.constant 0 : index
    %120 = vector.load %arg4[%c3_112, %c0_113, %c0_114] : memref<4x70x256xbf16, #tpu.memory_space<vmem>>, vector<1x70x256xbf16>
    %121 = vector.shape_cast %120 : vector<1x70x256xbf16> to vector<70x256xbf16>
    %cst_115 = arith.constant dense<0.000000e+00> : vector<70x32xf32>
    %122 = tpu.matmul %121, %108, %cst_115 {dimension_numbers = #tpu.dot_dimension_numbers<[1], [0], [0], [1], [0, 0, 1, 1], [], []>} : vector<70x256xbf16>, vector<256x32xbf16>, vector<70x32xf32> -> vector<70x32xf32>
    %123 = arith.maximumf %119, %122 : vector<70x32xf32>
    %cst_116 = arith.constant 0.000000e+00 : f32
    %124 = vector.broadcast %cst_116 : f32 to vector<70x32xf32>
    %125 = arith.maximumf %123, %124 : vector<70x32xf32>
    %c235 = arith.constant 235 : index
    %c0_117 = arith.constant 0 : index
    %126 = vector.load %arg15[%c235, %c0_117] : memref<324x160xf32, #tpu.memory_space<vmem>>, vector<70x32xf32>
    tpu.vector_store %arg15[%c235, %c0_117], %125 {strides = array<i32>} : memref<324x160xf32, #tpu.memory_space<vmem>>, vector<70x32xf32>,
    %c234 = arith.constant 234 : index
    %c32_118 = arith.constant 32 : index
    %127 = vector.load %arg15[%c234, %c32_118] : memref<324x160xf32, #tpu.memory_space<vmem>>, vector<70x32xf32>
    tpu.vector_store %arg15[%c234, %c32_118], %125 {strides = array<i32>} : memref<324x160xf32, #tpu.memory_space<vmem>>, vector<70x32xf32>,
    %c233 = arith.constant 233 : index
    %c64_119 = arith.constant 64 : index
    %128 = vector.load %arg15[%c233, %c64_119] : memref<324x160xf32, #tpu.memory_space<vmem>>, vector<70x32xf32>
    tpu.vector_store %arg15[%c233, %c64_119], %125 {strides = array<i32>} : memref<324x160xf32, #tpu.memory_space<vmem>>, vector<70x32xf32>,
    %c232 = arith.constant 232 : index
    %c96_120 = arith.constant 96 : index
    %129 = vector.load %arg15[%c232, %c96_120] : memref<324x160xf32, #tpu.memory_space<vmem>>, vector<70x32xf32>
    tpu.vector_store %arg15[%c232, %c96_120], %125 {strides = array<i32>} : memref<324x160xf32, #tpu.memory_space<vmem>>, vector<70x32xf32>,
    %c231 = arith.constant 231 : index
    %c128_121 = arith.constant 128 : index
    %130 = vector.load %arg15[%c231, %c128_121] : memref<324x160xf32, #tpu.memory_space<vmem>>, vector<70x32xf32>
    tpu.vector_store %arg15[%c231, %c128_121], %125 {strides = array<i32>} : memref<324x160xf32, #tpu.memory_space<vmem>>, vector<70x32xf32>,
    %c0_122 = arith.constant 0 : index
    %c0_123 = arith.constant 0 : index
    %131 = vector.load %arg6[%c0_122, %c0_123] : memref<1x32xf32, #tpu.memory_space<vmem>>, vector<1x32xf32>
    %c0_124 = arith.constant 0 : index
    %c0_125 = arith.constant 0 : index
    %132 = vector.load %arg15[%c0_124, %c0_125] : memref<324x160xf32, #tpu.memory_space<vmem>>, vector<248x160xf32>
    %133 = arith.truncf %132 : vector<248x160xf32> to vector<248x160xbf16>
    %c0_126 = arith.constant 0 : index
    %c0_127 = arith.constant 0 : index
    %c0_128 = arith.constant 0 : index
    %134 = vector.load %arg5[%c0_126, %c0_127, %c0_128] : memref<5x160x32xbf16, #tpu.memory_space<vmem>>, vector<1x160x32xbf16>
    %135 = vector.shape_cast %134 : vector<1x160x32xbf16> to vector<160x32xbf16>
    %cst_129 = arith.constant dense<0.000000e+00> : vector<248x32xf32>
    %136 = tpu.matmul %133, %135, %cst_129 {dimension_numbers = #tpu.dot_dimension_numbers<[1], [0], [0], [1], [0, 0, 1, 1], [], []>} : vector<248x160xbf16>, vector<160x32xbf16>, vector<248x32xf32> -> vector<248x32xf32>
    %c18_130 = arith.constant 18 : index
    %c0_131 = arith.constant 0 : index
    %137 = vector.load %arg15[%c18_130, %c0_131] : memref<324x160xf32, #tpu.memory_space<vmem>>, vector<248x160xf32>
    %138 = arith.truncf %137 : vector<248x160xf32> to vector<248x160xbf16>
    %c1_132 = arith.constant 1 : index
    %c0_133 = arith.constant 0 : index
    %c0_134 = arith.constant 0 : index
    %139 = vector.load %arg5[%c1_132, %c0_133, %c0_134] : memref<5x160x32xbf16, #tpu.memory_space<vmem>>, vector<1x160x32xbf16>
    %140 = vector.shape_cast %139 : vector<1x160x32xbf16> to vector<160x32xbf16>
    %cst_135 = arith.constant dense<0.000000e+00> : vector<248x32xf32>
    %141 = tpu.matmul %138, %140, %cst_135 {dimension_numbers = #tpu.dot_dimension_numbers<[1], [0], [0], [1], [0, 0, 1, 1], [], []>} : vector<248x160xbf16>, vector<160x32xbf16>, vector<248x32xf32> -> vector<248x32xf32>
    %142 = arith.addf %136, %141 : vector<248x32xf32>
    %c36 = arith.constant 36 : index
    %c0_136 = arith.constant 0 : index
    %143 = vector.load %arg15[%c36, %c0_136] : memref<324x160xf32, #tpu.memory_space<vmem>>, vector<248x160xf32>
    %144 = arith.truncf %143 : vector<248x160xf32> to vector<248x160xbf16>
    %c2_137 = arith.constant 2 : index
    %c0_138 = arith.constant 0 : index
    %c0_139 = arith.constant 0 : index
    %145 = vector.load %arg5[%c2_137, %c0_138, %c0_139] : memref<5x160x32xbf16, #tpu.memory_space<vmem>>, vector<1x160x32xbf16>
    %146 = vector.shape_cast %145 : vector<1x160x32xbf16> to vector<160x32xbf16>
    %cst_140 = arith.constant dense<0.000000e+00> : vector<248x32xf32>
    %147 = tpu.matmul %144, %146, %cst_140 {dimension_numbers = #tpu.dot_dimension_numbers<[1], [0], [0], [1], [0, 0, 1, 1], [], []>} : vector<248x160xbf16>, vector<160x32xbf16>, vector<248x32xf32> -> vector<248x32xf32>
    %148 = arith.addf %142, %147 : vector<248x32xf32>
    %c54 = arith.constant 54 : index
    %c0_141 = arith.constant 0 : index
    %149 = vector.load %arg15[%c54, %c0_141] : memref<324x160xf32, #tpu.memory_space<vmem>>, vector<248x160xf32>
    %150 = arith.truncf %149 : vector<248x160xf32> to vector<248x160xbf16>
    %c3_142 = arith.constant 3 : index
    %c0_143 = arith.constant 0 : index
    %c0_144 = arith.constant 0 : index
    %151 = vector.load %arg5[%c3_142, %c0_143, %c0_144] : memref<5x160x32xbf16, #tpu.memory_space<vmem>>, vector<1x160x32xbf16>
    %152 = vector.shape_cast %151 : vector<1x160x32xbf16> to vector<160x32xbf16>
    %cst_145 = arith.constant dense<0.000000e+00> : vector<248x32xf32>
    %153 = tpu.matmul %150, %152, %cst_145 {dimension_numbers = #tpu.dot_dimension_numbers<[1], [0], [0], [1], [0, 0, 1, 1], [], []>} : vector<248x160xbf16>, vector<160x32xbf16>, vector<248x32xf32> -> vector<248x32xf32>
    %154 = arith.addf %148, %153 : vector<248x32xf32>
    %c72 = arith.constant 72 : index
    %c0_146 = arith.constant 0 : index
    %155 = vector.load %arg15[%c72, %c0_146] : memref<324x160xf32, #tpu.memory_space<vmem>>, vector<248x160xf32>
    %156 = arith.truncf %155 : vector<248x160xf32> to vector<248x160xbf16>
    %c4 = arith.constant 4 : index
    %c0_147 = arith.constant 0 : index
    %c0_148 = arith.constant 0 : index
    %157 = vector.load %arg5[%c4, %c0_147, %c0_148] : memref<5x160x32xbf16, #tpu.memory_space<vmem>>, vector<1x160x32xbf16>
    %158 = vector.shape_cast %157 : vector<1x160x32xbf16> to vector<160x32xbf16>
    %cst_149 = arith.constant dense<0.000000e+00> : vector<248x32xf32>
    %159 = tpu.matmul %156, %158, %cst_149 {dimension_numbers = #tpu.dot_dimension_numbers<[1], [0], [0], [1], [0, 0, 1, 1], [], []>} : vector<248x160xbf16>, vector<160x32xbf16>, vector<248x32xf32> -> vector<248x32xf32>
    %160 = arith.addf %154, %159 : vector<248x32xf32>
    %161 = vector.broadcast %131 : vector<1x32xf32> to vector<248x32xf32>
    %162 = arith.addf %160, %161 : vector<248x32xf32>
    %163 = arith.truncf %162 : vector<248x32xf32> to vector<248x32xbf16>
    %c0_150 = arith.constant 0 : index
    %c0_151 = arith.constant 0 : index
    %c0_152 = arith.constant 0 : index
    %164 = vector.load %arg7[%c0_150, %c0_151, %c0_152] : memref<4x61x248xbf16, #tpu.memory_space<vmem>>, vector<1x61x248xbf16>
    %165 = vector.shape_cast %164 : vector<1x61x248xbf16> to vector<61x248xbf16>
    %cst_153 = arith.constant dense<0.000000e+00> : vector<61x32xf32>
    %166 = tpu.matmul %165, %163, %cst_153 {dimension_numbers = #tpu.dot_dimension_numbers<[1], [0], [0], [1], [0, 0, 1, 1], [], []>} : vector<61x248xbf16>, vector<248x32xbf16>, vector<61x32xf32> -> vector<61x32xf32>
    %c1_154 = arith.constant 1 : index
    %c0_155 = arith.constant 0 : index
    %c0_156 = arith.constant 0 : index
    %167 = vector.load %arg7[%c1_154, %c0_155, %c0_156] : memref<4x61x248xbf16, #tpu.memory_space<vmem>>, vector<1x61x248xbf16>
    %168 = vector.shape_cast %167 : vector<1x61x248xbf16> to vector<61x248xbf16>
    %cst_157 = arith.constant dense<0.000000e+00> : vector<61x32xf32>
    %169 = tpu.matmul %168, %163, %cst_157 {dimension_numbers = #tpu.dot_dimension_numbers<[1], [0], [0], [1], [0, 0, 1, 1], [], []>} : vector<61x248xbf16>, vector<248x32xbf16>, vector<61x32xf32> -> vector<61x32xf32>
    %170 = arith.maximumf %166, %169 : vector<61x32xf32>
    %c2_158 = arith.constant 2 : index
    %c0_159 = arith.constant 0 : index
    %c0_160 = arith.constant 0 : index
    %171 = vector.load %arg7[%c2_158, %c0_159, %c0_160] : memref<4x61x248xbf16, #tpu.memory_space<vmem>>, vector<1x61x248xbf16>
    %172 = vector.shape_cast %171 : vector<1x61x248xbf16> to vector<61x248xbf16>
    %cst_161 = arith.constant dense<0.000000e+00> : vector<61x32xf32>
    %173 = tpu.matmul %172, %163, %cst_161 {dimension_numbers = #tpu.dot_dimension_numbers<[1], [0], [0], [1], [0, 0, 1, 1], [], []>} : vector<61x248xbf16>, vector<248x32xbf16>, vector<61x32xf32> -> vector<61x32xf32>
    %174 = arith.maximumf %170, %173 : vector<61x32xf32>
    %c3_162 = arith.constant 3 : index
    %c0_163 = arith.constant 0 : index
    %c0_164 = arith.constant 0 : index
    %175 = vector.load %arg7[%c3_162, %c0_163, %c0_164] : memref<4x61x248xbf16, #tpu.memory_space<vmem>>, vector<1x61x248xbf16>
    %176 = vector.shape_cast %175 : vector<1x61x248xbf16> to vector<61x248xbf16>
    %cst_165 = arith.constant dense<0.000000e+00> : vector<61x32xf32>
    %177 = tpu.matmul %176, %163, %cst_165 {dimension_numbers = #tpu.dot_dimension_numbers<[1], [0], [0], [1], [0, 0, 1, 1], [], []>} : vector<61x248xbf16>, vector<248x32xbf16>, vector<61x32xf32> -> vector<61x32xf32>
    %178 = arith.maximumf %174, %177 : vector<61x32xf32>
    %cst_166 = arith.constant 0.000000e+00 : f32
    %179 = vector.broadcast %cst_166 : f32 to vector<61x32xf32>
    %180 = arith.maximumf %178, %179 : vector<61x32xf32>
    %c10 = arith.constant 10 : index
    %c0_167 = arith.constant 0 : index
    %181 = vector.load %arg16[%c10, %c0_167] : memref<81x128xf32, #tpu.memory_space<vmem>>, vector<61x32xf32>
    tpu.vector_store %arg16[%c10, %c0_167], %180 {strides = array<i32>} : memref<81x128xf32, #tpu.memory_space<vmem>>, vector<61x32xf32>,
    %c9 = arith.constant 9 : index
    %c32_168 = arith.constant 32 : index
    %182 = vector.load %arg16[%c9, %c32_168] : memref<81x128xf32, #tpu.memory_space<vmem>>, vector<61x32xf32>
    tpu.vector_store %arg16[%c9, %c32_168], %180 {strides = array<i32>} : memref<81x128xf32, #tpu.memory_space<vmem>>, vector<61x32xf32>,
    %c8 = arith.constant 8 : index
    %c64_169 = arith.constant 64 : index
    %183 = vector.load %arg16[%c8, %c64_169] : memref<81x128xf32, #tpu.memory_space<vmem>>, vector<61x32xf32>
    tpu.vector_store %arg16[%c8, %c64_169], %180 {strides = array<i32>} : memref<81x128xf32, #tpu.memory_space<vmem>>, vector<61x32xf32>,
    %c7 = arith.constant 7 : index
    %c96_170 = arith.constant 96 : index
    %184 = vector.load %arg16[%c7, %c96_170] : memref<81x128xf32, #tpu.memory_space<vmem>>, vector<61x32xf32>
    tpu.vector_store %arg16[%c7, %c96_170], %180 {strides = array<i32>} : memref<81x128xf32, #tpu.memory_space<vmem>>, vector<61x32xf32>,
    %c0_171 = arith.constant 0 : index
    %c0_172 = arith.constant 0 : index
    %185 = vector.load %arg9[%c0_171, %c0_172] : memref<1x64xf32, #tpu.memory_space<vmem>>, vector<1x64xf32>
    %c0_173 = arith.constant 0 : index
    %c0_174 = arith.constant 0 : index
    %186 = vector.load %arg16[%c0_173, %c0_174] : memref<81x128xf32, #tpu.memory_space<vmem>>, vector<51x128xf32>
    %187 = arith.truncf %186 : vector<51x128xf32> to vector<51x128xbf16>
    %c0_175 = arith.constant 0 : index
    %c0_176 = arith.constant 0 : index
    %c0_177 = arith.constant 0 : index
    %188 = vector.load %arg8[%c0_175, %c0_176, %c0_177] : memref<4x128x64xbf16, #tpu.memory_space<vmem>>, vector<1x128x64xbf16>
    %189 = vector.shape_cast %188 : vector<1x128x64xbf16> to vector<128x64xbf16>
    %cst_178 = arith.constant dense<0.000000e+00> : vector<51x64xf32>
    %190 = tpu.matmul %187, %189, %cst_178 {dimension_numbers = #tpu.dot_dimension_numbers<[1], [0], [0], [1], [0, 0, 1, 1], [], []>} : vector<51x128xbf16>, vector<128x64xbf16>, vector<51x64xf32> -> vector<51x64xf32>
    %c9_179 = arith.constant 9 : index
    %c0_180 = arith.constant 0 : index
    %191 = vector.load %arg16[%c9_179, %c0_180] : memref<81x128xf32, #tpu.memory_space<vmem>>, vector<51x128xf32>
    %192 = arith.truncf %191 : vector<51x128xf32> to vector<51x128xbf16>
    %c1_181 = arith.constant 1 : index
    %c0_182 = arith.constant 0 : index
    %c0_183 = arith.constant 0 : index
    %193 = vector.load %arg8[%c1_181, %c0_182, %c0_183] : memref<4x128x64xbf16, #tpu.memory_space<vmem>>, vector<1x128x64xbf16>
    %194 = vector.shape_cast %193 : vector<1x128x64xbf16> to vector<128x64xbf16>
    %cst_184 = arith.constant dense<0.000000e+00> : vector<51x64xf32>
    %195 = tpu.matmul %192, %194, %cst_184 {dimension_numbers = #tpu.dot_dimension_numbers<[1], [0], [0], [1], [0, 0, 1, 1], [], []>} : vector<51x128xbf16>, vector<128x64xbf16>, vector<51x64xf32> -> vector<51x64xf32>
    %196 = arith.addf %190, %195 : vector<51x64xf32>
    %c18_185 = arith.constant 18 : index
    %c0_186 = arith.constant 0 : index
    %197 = vector.load %arg16[%c18_185, %c0_186] : memref<81x128xf32, #tpu.memory_space<vmem>>, vector<51x128xf32>
    %198 = arith.truncf %197 : vector<51x128xf32> to vector<51x128xbf16>
    %c2_187 = arith.constant 2 : index
    %c0_188 = arith.constant 0 : index
    %c0_189 = arith.constant 0 : index
    %199 = vector.load %arg8[%c2_187, %c0_188, %c0_189] : memref<4x128x64xbf16, #tpu.memory_space<vmem>>, vector<1x128x64xbf16>
    %200 = vector.shape_cast %199 : vector<1x128x64xbf16> to vector<128x64xbf16>
    %cst_190 = arith.constant dense<0.000000e+00> : vector<51x64xf32>
    %201 = tpu.matmul %198, %200, %cst_190 {dimension_numbers = #tpu.dot_dimension_numbers<[1], [0], [0], [1], [0, 0, 1, 1], [], []>} : vector<51x128xbf16>, vector<128x64xbf16>, vector<51x64xf32> -> vector<51x64xf32>
    %202 = arith.addf %196, %201 : vector<51x64xf32>
    %c27 = arith.constant 27 : index
    %c0_191 = arith.constant 0 : index
    %203 = vector.load %arg16[%c27, %c0_191] : memref<81x128xf32, #tpu.memory_space<vmem>>, vector<51x128xf32>
    %204 = arith.truncf %203 : vector<51x128xf32> to vector<51x128xbf16>
    %c3_192 = arith.constant 3 : index
    %c0_193 = arith.constant 0 : index
    %c0_194 = arith.constant 0 : index
    %205 = vector.load %arg8[%c3_192, %c0_193, %c0_194] : memref<4x128x64xbf16, #tpu.memory_space<vmem>>, vector<1x128x64xbf16>
    %206 = vector.shape_cast %205 : vector<1x128x64xbf16> to vector<128x64xbf16>
    %cst_195 = arith.constant dense<0.000000e+00> : vector<51x64xf32>
    %207 = tpu.matmul %204, %206, %cst_195 {dimension_numbers = #tpu.dot_dimension_numbers<[1], [0], [0], [1], [0, 0, 1, 1], [], []>} : vector<51x128xbf16>, vector<128x64xbf16>, vector<51x64xf32> -> vector<51x64xf32>
    %208 = arith.addf %202, %207 : vector<51x64xf32>
    %209 = vector.broadcast %185 : vector<1x64xf32> to vector<51x64xf32>
    %210 = arith.addf %208, %209 : vector<51x64xf32>
    %211 = arith.truncf %210 : vector<51x64xf32> to vector<51x64xbf16>
    %c0_196 = arith.constant 0 : index
    %c0_197 = arith.constant 0 : index
    %c0_198 = arith.constant 0 : index
    %212 = vector.load %arg10[%c0_196, %c0_197, %c0_198] : memref<4x13x51xbf16, #tpu.memory_space<vmem>>, vector<1x13x51xbf16>
    %213 = vector.shape_cast %212 : vector<1x13x51xbf16> to vector<13x51xbf16>
    %cst_199 = arith.constant dense<0.000000e+00> : vector<13x64xf32>
    %214 = tpu.matmul %213, %211, %cst_199 {dimension_numbers = #tpu.dot_dimension_numbers<[1], [0], [0], [1], [0, 0, 1, 1], [], []>} : vector<13x51xbf16>, vector<51x64xbf16>, vector<13x64xf32> -> vector<13x64xf32>
    %c1_200 = arith.constant 1 : index
    %c0_201 = arith.constant 0 : index
    %c0_202 = arith.constant 0 : index
    %215 = vector.load %arg10[%c1_200, %c0_201, %c0_202] : memref<4x13x51xbf16, #tpu.memory_space<vmem>>, vector<1x13x51xbf16>
    %216 = vector.shape_cast %215 : vector<1x13x51xbf16> to vector<13x51xbf16>
    %cst_203 = arith.constant dense<0.000000e+00> : vector<13x64xf32>
    %217 = tpu.matmul %216, %211, %cst_203 {dimension_numbers = #tpu.dot_dimension_numbers<[1], [0], [0], [1], [0, 0, 1, 1], [], []>} : vector<13x51xbf16>, vector<51x64xbf16>, vector<13x64xf32> -> vector<13x64xf32>
    %218 = arith.maximumf %214, %217 : vector<13x64xf32>
    %c2_204 = arith.constant 2 : index
    %c0_205 = arith.constant 0 : index
    %c0_206 = arith.constant 0 : index
    %219 = vector.load %arg10[%c2_204, %c0_205, %c0_206] : memref<4x13x51xbf16, #tpu.memory_space<vmem>>, vector<1x13x51xbf16>
    %220 = vector.shape_cast %219 : vector<1x13x51xbf16> to vector<13x51xbf16>
    %cst_207 = arith.constant dense<0.000000e+00> : vector<13x64xf32>
    %221 = tpu.matmul %220, %211, %cst_207 {dimension_numbers = #tpu.dot_dimension_numbers<[1], [0], [0], [1], [0, 0, 1, 1], [], []>} : vector<13x51xbf16>, vector<51x64xbf16>, vector<13x64xf32> -> vector<13x64xf32>
    %222 = arith.maximumf %218, %221 : vector<13x64xf32>
    %c3_208 = arith.constant 3 : index
    %c0_209 = arith.constant 0 : index
    %c0_210 = arith.constant 0 : index
    %223 = vector.load %arg10[%c3_208, %c0_209, %c0_210] : memref<4x13x51xbf16, #tpu.memory_space<vmem>>, vector<1x13x51xbf16>
    %224 = vector.shape_cast %223 : vector<1x13x51xbf16> to vector<13x51xbf16>
    %cst_211 = arith.constant dense<0.000000e+00> : vector<13x64xf32>
    %225 = tpu.matmul %224, %211, %cst_211 {dimension_numbers = #tpu.dot_dimension_numbers<[1], [0], [0], [1], [0, 0, 1, 1], [], []>} : vector<13x51xbf16>, vector<51x64xbf16>, vector<13x64xf32> -> vector<13x64xf32>
    %226 = arith.maximumf %222, %225 : vector<13x64xf32>
    %cst_212 = arith.constant 0.000000e+00 : f32
    %227 = vector.broadcast %cst_212 : f32 to vector<13x64xf32>
    %228 = arith.maximumf %226, %227 : vector<13x64xf32>
    %c6 = arith.constant 6 : index
    %c0_213 = arith.constant 0 : index
    %229 = vector.load %arg17[%c6, %c0_213] : memref<25x192xf32, #tpu.memory_space<vmem>>, vector<13x64xf32>
    tpu.vector_store %arg17[%c6, %c0_213], %228 {strides = array<i32>} : memref<25x192xf32, #tpu.memory_space<vmem>>, vector<13x64xf32>,
    %c5 = arith.constant 5 : index
    %c64_214 = arith.constant 64 : index
    %230 = vector.load %arg17[%c5, %c64_214] : memref<25x192xf32, #tpu.memory_space<vmem>>, vector<13x64xf32>
    tpu.vector_store %arg17[%c5, %c64_214], %228 {strides = array<i32>} : memref<25x192xf32, #tpu.memory_space<vmem>>, vector<13x64xf32>,
    %c4_215 = arith.constant 4 : index
    %c128_216 = arith.constant 128 : index
    %231 = vector.load %arg17[%c4_215, %c128_216] : memref<25x192xf32, #tpu.memory_space<vmem>>, vector<13x64xf32>
    tpu.vector_store %arg17[%c4_215, %c128_216], %228 {strides = array<i32>} : memref<25x192xf32, #tpu.memory_space<vmem>>, vector<13x64xf32>,
    %c0_217 = arith.constant 0 : index
    %c0_218 = arith.constant 0 : index
    %232 = vector.load %arg12[%c0_217, %c0_218] : memref<1x64xf32, #tpu.memory_space<vmem>>, vector<1x64xf32>
    %c0_219 = arith.constant 0 : index
    %c0_220 = arith.constant 0 : index
    %233 = vector.load %arg17[%c0_219, %c0_220] : memref<25x192xf32, #tpu.memory_space<vmem>>, vector<8x192xf32>
    %234 = arith.truncf %233 : vector<8x192xf32> to vector<8x192xbf16>
    %c0_221 = arith.constant 0 : index
    %c0_222 = arith.constant 0 : index
    %c0_223 = arith.constant 0 : index
    %235 = vector.load %arg11[%c0_221, %c0_222, %c0_223] : memref<3x192x64xbf16, #tpu.memory_space<vmem>>, vector<1x192x64xbf16>
    %236 = vector.shape_cast %235 : vector<1x192x64xbf16> to vector<192x64xbf16>
    %cst_224 = arith.constant dense<0.000000e+00> : vector<8x64xf32>
    %237 = tpu.matmul %234, %236, %cst_224 {dimension_numbers = #tpu.dot_dimension_numbers<[1], [0], [0], [1], [0, 0, 1, 1], [], []>} : vector<8x192xbf16>, vector<192x64xbf16>, vector<8x64xf32> -> vector<8x64xf32>
    %c5_225 = arith.constant 5 : index
    %c0_226 = arith.constant 0 : index
    %238 = vector.load %arg17[%c5_225, %c0_226] : memref<25x192xf32, #tpu.memory_space<vmem>>, vector<8x192xf32>
    %239 = arith.truncf %238 : vector<8x192xf32> to vector<8x192xbf16>
    %c1_227 = arith.constant 1 : index
    %c0_228 = arith.constant 0 : index
    %c0_229 = arith.constant 0 : index
    %240 = vector.load %arg11[%c1_227, %c0_228, %c0_229] : memref<3x192x64xbf16, #tpu.memory_space<vmem>>, vector<1x192x64xbf16>
    %241 = vector.shape_cast %240 : vector<1x192x64xbf16> to vector<192x64xbf16>
    %cst_230 = arith.constant dense<0.000000e+00> : vector<8x64xf32>
    %242 = tpu.matmul %239, %241, %cst_230 {dimension_numbers = #tpu.dot_dimension_numbers<[1], [0], [0], [1], [0, 0, 1, 1], [], []>} : vector<8x192xbf16>, vector<192x64xbf16>, vector<8x64xf32> -> vector<8x64xf32>
    %243 = arith.addf %237, %242 : vector<8x64xf32>
    %c10_231 = arith.constant 10 : index
    %c0_232 = arith.constant 0 : index
    %244 = vector.load %arg17[%c10_231, %c0_232] : memref<25x192xf32, #tpu.memory_space<vmem>>, vector<8x192xf32>
    %245 = arith.truncf %244 : vector<8x192xf32> to vector<8x192xbf16>
    %c2_233 = arith.constant 2 : index
    %c0_234 = arith.constant 0 : index
    %c0_235 = arith.constant 0 : index
    %246 = vector.load %arg11[%c2_233, %c0_234, %c0_235] : memref<3x192x64xbf16, #tpu.memory_space<vmem>>, vector<1x192x64xbf16>
    %247 = vector.shape_cast %246 : vector<1x192x64xbf16> to vector<192x64xbf16>
    %cst_236 = arith.constant dense<0.000000e+00> : vector<8x64xf32>
    %248 = tpu.matmul %245, %247, %cst_236 {dimension_numbers = #tpu.dot_dimension_numbers<[1], [0], [0], [1], [0, 0, 1, 1], [], []>} : vector<8x192xbf16>, vector<192x64xbf16>, vector<8x64xf32> -> vector<8x64xf32>
    %249 = arith.addf %243, %248 : vector<8x64xf32>
    %250 = vector.broadcast %232 : vector<1x64xf32> to vector<8x64xf32>
    %251 = arith.addf %249, %250 : vector<8x64xf32>
    %252 = arith.truncf %251 : vector<8x64xf32> to vector<8x64xbf16>
    %c0_237 = arith.constant 0 : index
    %c0_238 = arith.constant 0 : index
    %c0_239 = arith.constant 0 : index
    %253 = vector.load %arg13[%c0_237, %c0_238, %c0_239] : memref<4x1x8xbf16, #tpu.memory_space<vmem>>, vector<1x1x8xbf16>
    %254 = vector.shape_cast %253 : vector<1x1x8xbf16> to vector<1x8xbf16>
    %cst_240 = arith.constant dense<0.000000e+00> : vector<1x64xf32>
    %255 = tpu.matmul %254, %252, %cst_240 {dimension_numbers = #tpu.dot_dimension_numbers<[1], [0], [0], [1], [0, 0, 1, 1], [], []>} : vector<1x8xbf16>, vector<8x64xbf16>, vector<1x64xf32> -> vector<1x64xf32>
    %c1_241 = arith.constant 1 : index
    %c0_242 = arith.constant 0 : index
    %c0_243 = arith.constant 0 : index
    %256 = vector.load %arg13[%c1_241, %c0_242, %c0_243] : memref<4x1x8xbf16, #tpu.memory_space<vmem>>, vector<1x1x8xbf16>
    %257 = vector.shape_cast %256 : vector<1x1x8xbf16> to vector<1x8xbf16>
    %cst_244 = arith.constant dense<0.000000e+00> : vector<1x64xf32>
    %258 = tpu.matmul %257, %252, %cst_244 {dimension_numbers = #tpu.dot_dimension_numbers<[1], [0], [0], [1], [0, 0, 1, 1], [], []>} : vector<1x8xbf16>, vector<8x64xbf16>, vector<1x64xf32> -> vector<1x64xf32>
    %259 = arith.maximumf %255, %258 : vector<1x64xf32>
    %c2_245 = arith.constant 2 : index
    %c0_246 = arith.constant 0 : index
    %c0_247 = arith.constant 0 : index
    %260 = vector.load %arg13[%c2_245, %c0_246, %c0_247] : memref<4x1x8xbf16, #tpu.memory_space<vmem>>, vector<1x1x8xbf16>
    %261 = vector.shape_cast %260 : vector<1x1x8xbf16> to vector<1x8xbf16>
    %cst_248 = arith.constant dense<0.000000e+00> : vector<1x64xf32>
    %262 = tpu.matmul %261, %252, %cst_248 {dimension_numbers = #tpu.dot_dimension_numbers<[1], [0], [0], [1], [0, 0, 1, 1], [], []>} : vector<1x8xbf16>, vector<8x64xbf16>, vector<1x64xf32> -> vector<1x64xf32>
    %263 = arith.maximumf %259, %262 : vector<1x64xf32>
    %c3_249 = arith.constant 3 : index
    %c0_250 = arith.constant 0 : index
    %c0_251 = arith.constant 0 : index
    %264 = vector.load %arg13[%c3_249, %c0_250, %c0_251] : memref<4x1x8xbf16, #tpu.memory_space<vmem>>, vector<1x1x8xbf16>
    %265 = vector.shape_cast %264 : vector<1x1x8xbf16> to vector<1x8xbf16>
    %cst_252 = arith.constant dense<0.000000e+00> : vector<1x64xf32>
    %266 = tpu.matmul %265, %252, %cst_252 {dimension_numbers = #tpu.dot_dimension_numbers<[1], [0], [0], [1], [0, 0, 1, 1], [], []>} : vector<1x8xbf16>, vector<8x64xbf16>, vector<1x64xf32> -> vector<1x64xf32>
    %267 = arith.maximumf %263, %266 : vector<1x64xf32>
    %cst_253 = arith.constant 0.000000e+00 : f32
    %268 = vector.broadcast %cst_253 : f32 to vector<1x64xf32>
    %269 = arith.maximumf %267, %268 : vector<1x64xf32>
    %c0_254 = arith.constant 0 : index
    %c0_255 = arith.constant 0 : index
    %c0_256 = arith.constant 0 : index
    %c0_257 = arith.constant 0 : index
    %270 = vector.load %arg14[%c0_254, %c0_255, %c0_256, %c0_257] : memref<1x1x1x64xf32, #tpu.memory_space<vmem>>, vector<1x1x1x64xf32>
    %271 = vector.shape_cast %270 : vector<1x1x1x64xf32> to vector<1x64xf32>
    %272 = vector.shape_cast %269 : vector<1x64xf32> to vector<1x1x1x64xf32>
    tpu.vector_store %arg14[%c0_254, %c0_255, %c0_256, %c0_257], %272 {strides = array<i32>} : memref<1x1x1x64xf32, #tpu.memory_space<vmem>>, vector<1x1x1x64xf32>,
    return
  }
  func.func @transform_0(%arg0: i32) -> (i32, i32, i32) {
    %c0_i32 = arith.constant 0 : i32
    %c0_i32_0 = arith.constant 0 : i32
    %c0_i32_1 = arith.constant 0 : i32
    return %arg0, %c0_i32, %c0_i32_0 : i32, i32, i32
  }
  func.func @transform_1(%arg0: i32) -> (i32, i32, i32) {
    %c0_i32 = arith.constant 0 : i32
    %c0_i32_0 = arith.constant 0 : i32
    %c0_i32_1 = arith.constant 0 : i32
    %c0_i32_2 = arith.constant 0 : i32
    return %c0_i32, %c0_i32_0, %c0_i32_1 : i32, i32, i32
  }
  func.func @transform_2(%arg0: i32) -> (i32, i32) {
    %c0_i32 = arith.constant 0 : i32
    %c0_i32_0 = arith.constant 0 : i32
    %c0_i32_1 = arith.constant 0 : i32
    return %c0_i32, %c0_i32_0 : i32, i32
  }
  func.func @transform_3(%arg0: i32) -> (i32, i32, i32) {
    %c0_i32 = arith.constant 0 : i32
    %c0_i32_0 = arith.constant 0 : i32
    %c0_i32_1 = arith.constant 0 : i32
    %c0_i32_2 = arith.constant 0 : i32
    return %c0_i32, %c0_i32_0, %c0_i32_1 : i32, i32, i32
  }
  func.func @transform_4(%arg0: i32) -> (i32, i32, i32) {
    %c0_i32 = arith.constant 0 : i32
    %c0_i32_0 = arith.constant 0 : i32
    %c0_i32_1 = arith.constant 0 : i32
    %c0_i32_2 = arith.constant 0 : i32
    return %c0_i32, %c0_i32_0, %c0_i32_1 : i32, i32, i32
  }
  func.func @transform_5(%arg0: i32) -> (i32, i32) {
    %c0_i32 = arith.constant 0 : i32
    %c0_i32_0 = arith.constant 0 : i32
    %c0_i32_1 = arith.constant 0 : i32
    return %c0_i32, %c0_i32_0 : i32, i32
  }
  func.func @transform_6(%arg0: i32) -> (i32, i32, i32) {
    %c0_i32 = arith.constant 0 : i32
    %c0_i32_0 = arith.constant 0 : i32
    %c0_i32_1 = arith.constant 0 : i32
    %c0_i32_2 = arith.constant 0 : i32
    return %c0_i32, %c0_i32_0, %c0_i32_1 : i32, i32, i32
  }
  func.func @transform_7(%arg0: i32) -> (i32, i32, i32) {
    %c0_i32 = arith.constant 0 : i32
    %c0_i32_0 = arith.constant 0 : i32
    %c0_i32_1 = arith.constant 0 : i32
    %c0_i32_2 = arith.constant 0 : i32
    return %c0_i32, %c0_i32_0, %c0_i32_1 : i32, i32, i32
  }
  func.func @transform_8(%arg0: i32) -> (i32, i32) {
    %c0_i32 = arith.constant 0 : i32
    %c0_i32_0 = arith.constant 0 : i32
    %c0_i32_1 = arith.constant 0 : i32
    return %c0_i32, %c0_i32_0 : i32, i32
  }
  func.func @transform_9(%arg0: i32) -> (i32, i32, i32) {
    %c0_i32 = arith.constant 0 : i32
    %c0_i32_0 = arith.constant 0 : i32
    %c0_i32_1 = arith.constant 0 : i32
    %c0_i32_2 = arith.constant 0 : i32
    return %c0_i32, %c0_i32_0, %c0_i32_1 : i32, i32, i32
  }
  func.func @transform_10(%arg0: i32) -> (i32, i32, i32) {
    %c0_i32 = arith.constant 0 : i32
    %c0_i32_0 = arith.constant 0 : i32
    %c0_i32_1 = arith.constant 0 : i32
    %c0_i32_2 = arith.constant 0 : i32
    return %c0_i32, %c0_i32_0, %c0_i32_1 : i32, i32, i32
  }
  func.func @transform_11(%arg0: i32) -> (i32, i32) {
    %c0_i32 = arith.constant 0 : i32
    %c0_i32_0 = arith.constant 0 : i32
    %c0_i32_1 = arith.constant 0 : i32
    return %c0_i32, %c0_i32_0 : i32, i32
  }
  func.func @transform_12(%arg0: i32) -> (i32, i32, i32) {
    %c0_i32 = arith.constant 0 : i32
    %c0_i32_0 = arith.constant 0 : i32
    %c0_i32_1 = arith.constant 0 : i32
    %c0_i32_2 = arith.constant 0 : i32
    return %c0_i32, %c0_i32_0, %c0_i32_1 : i32, i32, i32
  }
  func.func @transform_13(%arg0: i32) -> (i32, i32, i32, i32) {
    %c0_i32 = arith.constant 0 : i32
    %c0_i32_0 = arith.constant 0 : i32
    %c0_i32_1 = arith.constant 0 : i32
    %c0_i32_2 = arith.constant 0 : i32
    return %arg0, %c0_i32, %c0_i32_0, %c0_i32_1 : i32, i32, i32, i32
  }
}

</mosaic_0001>

<llo_original>
// kernel: forward.1
$region0: #{forward.1}
  #allocation0 [shape = 'u32[]', space=smem, size = 0x4, offset = 0x4, fixed_abs, tag = 'smem constant byte address 0x4 - core index']
  #allocation1 [shape = 'u32[72,128]{1,0:T(1,128)}', space=vmem, size = 0x9000, scoped, tag = 'internal scratch']
  #allocation2 [shape = 'f32[324,160]{1,0:T(8,128)}', space=vmem, size = 0x52000, scoped, tag = 'scratch operand']
  #allocation3 [shape = 'f32[81,128]{1,0:T(8,128)}', space=vmem, size = 0xb000, scoped, tag = 'scratch operand']
  #allocation4 [shape = 'f32[25,192]{1,0:T(8,128)}', space=vmem, size = 0x8000, scoped, tag = 'scratch operand']
  %s0 = inlined_call_operand.vmem [shape: bf16[2,1024,100], index: 0, kind: input, shape index: {}]
  %s1 = inlined_call_operand.vmem [shape: bf16[1,100,32], index: 1, kind: input, shape index: {}]
  %s2 = inlined_call_operand.vmem [shape: f32[1,32], index: 2, kind: input, shape index: {}]
  %s3 = inlined_call_operand.vmem [shape: bf16[4,70,256], index: 3, kind: input, shape index: {}]
  %s4 = inlined_call_operand.vmem [shape: bf16[5,160,32], index: 4, kind: input, shape index: {}]
  %s5 = inlined_call_operand.vmem [shape: f32[1,32], index: 5, kind: input, shape index: {}]
  %s6 = inlined_call_operand.vmem [shape: bf16[4,61,248], index: 6, kind: input, shape index: {}]
  %s7 = inlined_call_operand.vmem [shape: bf16[4,128,64], index: 7, kind: input, shape index: {}]
  %s8 = inlined_call_operand.vmem [shape: f32[1,64], index: 8, kind: input, shape index: {}]
  %s9 = inlined_call_operand.vmem [shape: bf16[4,13,51], index: 9, kind: input, shape index: {}]
  %s10 = inlined_call_operand.vmem [shape: bf16[3,192,64], index: 10, kind: input, shape index: {}]
  %s11 = inlined_call_operand.vmem [shape: f32[1,64], index: 11, kind: input, shape index: {}]
  %s12 = inlined_call_operand.vmem [shape: bf16[4,1,8], index: 12, kind: input, shape index: {}]
  %s13 = inlined_call_operand.hbm [shape: f32[2,1,1,64], index: 13, kind: output, shape index: {}]
  %s14 = sld [smem:[#allocation0]]
  $region85: #{forward.1} parent=0
    _
  %s16 = ssub.s32 1, %s14
  %s17 = scalar_select 0, %s16, %s14
  $region1: #{forward.1} parent=0
    #allocation5 [shape = 'u8[1024]{0}', space=vmem, size = 0x400, scoped, tag = 'output window, operand 0']
    #allocation6 [shape = 's32[2]{0}', space=sflag, size = 0x8, scoped, tag = 'scoped memory for forward.1']
    %18 = vsyncpa [#allocation6], 0
    %s19 = scalar_lea.sflag [#allocation6], 1
    %20 = vsyncpa %s19, 0
    loop: start=0, step=1, limit=4
    $region2: #{forward.1} parent=1 // loop_pre_header
      _
    $region3: #{forward.1} parent=1 // loop_header
      %s22 = sphi 0, %s26
      %p23 = scmp.ge.s32.totalorder %s22, 4
      %s32 = sphi 0, %s34
      %s35 = sphi 0, %s32
      %s36 = sphi 0, %s35
      %s52 = sphi 0, %s36
      %s56 = sphi 0, %s56
      %s58 = sphi 0, %s56
      %s59 = sphi 0, %s58
      %s73 = sphi 0, %s59
      %s77 = sphi 0, %s77
      %s79 = sphi 0, %s77
      %s80 = sphi 0, %s79
      %s94 = sphi 0, %s80
      %s98 = sphi 0, %s98
      %s100 = sphi 0, %s98
      %s101 = sphi 0, %s100
      %s115 = sphi 0, %s101
      %s119 = sphi 0, %s119
      %s121 = sphi 0, %s119
      %s122 = sphi 0, %s121
      %s136 = sphi 0, %s122
      %s140 = sphi 0, %s140
      %s142 = sphi 0, %s140
      %s143 = sphi 0, %s142
      %s157 = sphi 0, %s143
      %s161 = sphi 0, %s161
      %s163 = sphi 0, %s161
      %s164 = sphi 0, %s163
      %s178 = sphi 0, %s164
      %s182 = sphi 0, %s182
      %s184 = sphi 0, %s182
      %s185 = sphi 0, %s184
      %s199 = sphi 0, %s185
      %s203 = sphi 0, %s203
      %s205 = sphi 0, %s203
      %s206 = sphi 0, %s205
      %s220 = sphi 0, %s206
      %s224 = sphi 0, %s224
      %s226 = sphi 0, %s224
      %s227 = sphi 0, %s226
      %s241 = sphi 0, %s227
      %s245 = sphi 0, %s245
      %s247 = sphi 0, %s245
      %s248 = sphi 0, %s247
      %s262 = sphi 0, %s248
      %s266 = sphi 0, %s266
      %s268 = sphi 0, %s266
      %s269 = sphi 0, %s268
      %s283 = sphi 0, %s269
      %s287 = sphi 0, %s287
      %s289 = sphi 0, %s287
      %s290 = sphi 0, %s289
      %s304 = sphi 0, %s290
      %s310 = sphi 0, %s312
      %s313 = sphi 0, %s310
      %s314 = sphi 0, %s313
      %s330 = sphi 0, %s314
    $region4: #{forward.1} parent=1 // loop_header_branch
      %25 = sbr.rel (%p23) target = $region8
    $region5: #{forward.1} parent=1 // loop_body
      %s27 = ssub.s32 %s22, 1
      %s28 = ssub.s32 %s22, 2
      %s29 = sadd.s32 %s22, 1
      %s30 = ssub.s32 %s22, %s29
      %p31 = scmp.eq.s32.totalorder %s30, 0
      %s33 = sadd.s32 %s32, 1
      %s34 = scalar_select %p31, %s32, %s33
      %p37 = pneg %p31
      %p38 = scmp.eq.s32.totalorder %s22, 1
      %p39 = por %p37, %p38
      %p40 = scmp.ne.s32.totalorder %s32, %s35
      %p41 = scmp.eq.s32.totalorder %s22, 0
      %p42 = por %p40, %p41
      %p43 = scmp.ne.s32.totalorder %s32, %s35
      %p44 = scmp.eq.s32.totalorder %s27, 1
      %p45 = por %p43, %p44
      %p46 = scmp.ne.s32.totalorder %s35, %s36
      %p47 = scmp.eq.s32.totalorder %s27, 0
      %p48 = por %p46, %p47
      %p49 = scmp.ne.s32.totalorder %s35, %s36
      %p50 = scmp.eq.s32.totalorder %s28, 1
      %p51 = por %p49, %p50
      %p53 = scmp.ne.s32.totalorder %s36, %s52
      %p54 = scmp.eq.s32.totalorder %s28, 0
      %p55 = por %p53, %p54
      %s57 = sadd.s32 %s56, 1
      %p60 = scmp.eq.s32.totalorder %s22, 1
      %p61 = scmp.ne.s32.totalorder %s56, %s58
      %p62 = scmp.eq.s32.totalorder %s22, 0
      %p63 = por %p61, %p62
      %p64 = scmp.ne.s32.totalorder %s56, %s58
      %p65 = scmp.eq.s32.totalorder %s27, 1
      %p66 = por %p64, %p65
      %p67 = scmp.ne.s32.totalorder %s58, %s59
      %p68 = scmp.eq.s32.totalorder %s27, 0
      %p69 = por %p67, %p68
      %p70 = scmp.ne.s32.totalorder %s58, %s59
      %p71 = scmp.eq.s32.totalorder %s28, 1
      %p72 = por %p70, %p71
      %p74 = scmp.ne.s32.totalorder %s59, %s73
      %p75 = scmp.eq.s32.totalorder %s28, 0
      %p76 = por %p74, %p75
      %s78 = sadd.s32 %s77, 1
      %p81 = scmp.eq.s32.totalorder %s22, 1
      %p82 = scmp.ne.s32.totalorder %s77, %s79
      %p83 = scmp.eq.s32.totalorder %s22, 0
      %p84 = por %p82, %p83
      %p85 = scmp.ne.s32.totalorder %s77, %s79
      %p86 = scmp.eq.s32.totalorder %s27, 1
      %p87 = por %p85, %p86
      %p88 = scmp.ne.s32.totalorder %s79, %s80
      %p89 = scmp.eq.s32.totalorder %s27, 0
      %p90 = por %p88, %p89
      %p91 = scmp.ne.s32.totalorder %s79, %s80
      %p92 = scmp.eq.s32.totalorder %s28, 1
      %p93 = por %p91, %p92
      %p95 = scmp.ne.s32.totalorder %s80, %s94
      %p96 = scmp.eq.s32.totalorder %s28, 0
      %p97 = por %p95, %p96
      %s99 = sadd.s32 %s98, 1
      %p102 = scmp.eq.s32.totalorder %s22, 1
      %p103 = scmp.ne.s32.totalorder %s98, %s100
      %p104 = scmp.eq.s32.totalorder %s22, 0
      %p105 = por %p103, %p104
      %p106 = scmp.ne.s32.totalorder %s98, %s100
      %p107 = scmp.eq.s32.totalorder %s27, 1
      %p108 = por %p106, %p107
      %p109 = scmp.ne.s32.totalorder %s100, %s101
      %p110 = scmp.eq.s32.totalorder %s27, 0
      %p111 = por %p109, %p110
      %p112 = scmp.ne.s32.totalorder %s100, %s101
      %p113 = scmp.eq.s32.totalorder %s28, 1
      %p114 = por %p112, %p113
      %p116 = scmp.ne.s32.totalorder %s101, %s115
      %p117 = scmp.eq.s32.totalorder %s28, 0
      %p118 = por %p116, %p117
      %s120 = sadd.s32 %s119, 1
      %p123 = scmp.eq.s32.totalorder %s22, 1
      %p124 = scmp.ne.s32.totalorder %s119, %s121
      %p125 = scmp.eq.s32.totalorder %s22, 0
      %p126 = por %p124, %p125
      %p127 = scmp.ne.s32.totalorder %s119, %s121
      %p128 = scmp.eq.s32.totalorder %s27, 1
      %p129 = por %p127, %p128
      %p130 = scmp.ne.s32.totalorder %s121, %s122
      %p131 = scmp.eq.s32.totalorder %s27, 0
      %p132 = por %p130, %p131
      %p133 = scmp.ne.s32.totalorder %s121, %s122
      %p134 = scmp.eq.s32.totalorder %s28, 1
      %p135 = por %p133, %p134
      %p137 = scmp.ne.s32.totalorder %s122, %s136
      %p138 = scmp.eq.s32.totalorder %s28, 0
      %p139 = por %p137, %p138
      %s141 = sadd.s32 %s140, 1
      %p144 = scmp.eq.s32.totalorder %s22, 1
      %p145 = scmp.ne.s32.totalorder %s140, %s142
      %p146 = scmp.eq.s32.totalorder %s22, 0
      %p147 = por %p145, %p146
      %p148 = scmp.ne.s32.totalorder %s140, %s142
      %p149 = scmp.eq.s32.totalorder %s27, 1
      %p150 = por %p148, %p149
      %p151 = scmp.ne.s32.totalorder %s142, %s143
      %p152 = scmp.eq.s32.totalorder %s27, 0
      %p153 = por %p151, %p152
      %p154 = scmp.ne.s32.totalorder %s142, %s143
      %p155 = scmp.eq.s32.totalorder %s28, 1
      %p156 = por %p154, %p155
      %p158 = scmp.ne.s32.totalorder %s143, %s157
      %p159 = scmp.eq.s32.totalorder %s28, 0
      %p160 = por %p158, %p159
      %s162 = sadd.s32 %s161, 1
      %p165 = scmp.eq.s32.totalorder %s22, 1
      %p166 = scmp.ne.s32.totalorder %s161, %s163
      %p167 = scmp.eq.s32.totalorder %s22, 0
      %p168 = por %p166, %p167
      %p169 = scmp.ne.s32.totalorder %s161, %s163
      %p170 = scmp.eq.s32.totalorder %s27, 1
      %p171 = por %p169, %p170
      %p172 = scmp.ne.s32.totalorder %s163, %s164
      %p173 = scmp.eq.s32.totalorder %s27, 0
      %p174 = por %p172, %p173
      %p175 = scmp.ne.s32.totalorder %s163, %s164
      %p176 = scmp.eq.s32.totalorder %s28, 1
      %p177 = por %p175, %p176
      %p179 = scmp.ne.s32.totalorder %s164, %s178
      %p180 = scmp.eq.s32.totalorder %s28, 0
      %p181 = por %p179, %p180
      %s183 = sadd.s32 %s182, 1
      %p186 = scmp.eq.s32.totalorder %s22, 1
      %p187 = scmp.ne.s32.totalorder %s182, %s184
      %p188 = scmp.eq.s32.totalorder %s22, 0
      %p189 = por %p187, %p188
      %p190 = scmp.ne.s32.totalorder %s182, %s184
      %p191 = scmp.eq.s32.totalorder %s27, 1
      %p192 = por %p190, %p191
      %p193 = scmp.ne.s32.totalorder %s184, %s185
      %p194 = scmp.eq.s32.totalorder %s27, 0
      %p195 = por %p193, %p194
      %p196 = scmp.ne.s32.totalorder %s184, %s185
      %p197 = scmp.eq.s32.totalorder %s28, 1
      %p198 = por %p196, %p197
      %p200 = scmp.ne.s32.totalorder %s185, %s199
      %p201 = scmp.eq.s32.totalorder %s28, 0
      %p202 = por %p200, %p201
      %s204 = sadd.s32 %s203, 1
      %p207 = scmp.eq.s32.totalorder %s22, 1
      %p208 = scmp.ne.s32.totalorder %s203, %s205
      %p209 = scmp.eq.s32.totalorder %s22, 0
      %p210 = por %p208, %p209
      %p211 = scmp.ne.s32.totalorder %s203, %s205
      %p212 = scmp.eq.s32.totalorder %s27, 1
      %p213 = por %p211, %p212
      %p214 = scmp.ne.s32.totalorder %s205, %s206
      %p215 = scmp.eq.s32.totalorder %s27, 0
      %p216 = por %p214, %p215
      %p217 = scmp.ne.s32.totalorder %s205, %s206
      %p218 = scmp.eq.s32.totalorder %s28, 1
      %p219 = por %p217, %p218
      %p221 = scmp.ne.s32.totalorder %s206, %s220
      %p222 = scmp.eq.s32.totalorder %s28, 0
      %p223 = por %p221, %p222
      %s225 = sadd.s32 %s224, 1
      %p228 = scmp.eq.s32.totalorder %s22, 1
      %p229 = scmp.ne.s32.totalorder %s224, %s226
      %p230 = scmp.eq.s32.totalorder %s22, 0
      %p231 = por %p229, %p230
      %p232 = scmp.ne.s32.totalorder %s224, %s226
      %p233 = scmp.eq.s32.totalorder %s27, 1
      %p234 = por %p232, %p233
      %p235 = scmp.ne.s32.totalorder %s226, %s227
      %p236 = scmp.eq.s32.totalorder %s27, 0
      %p237 = por %p235, %p236
      %p238 = scmp.ne.s32.totalorder %s226, %s227
      %p239 = scmp.eq.s32.totalorder %s28, 1
      %p240 = por %p238, %p239
      %p242 = scmp.ne.s32.totalorder %s227, %s241
      %p243 = scmp.eq.s32.totalorder %s28, 0
      %p244 = por %p242, %p243
      %s246 = sadd.s32 %s245, 1
      %p249 = scmp.eq.s32.totalorder %s22, 1
      %p250 = scmp.ne.s32.totalorder %s245, %s247
      %p251 = scmp.eq.s32.totalorder %s22, 0
      %p252 = por %p250, %p251
      %p253 = scmp.ne.s32.totalorder %s245, %s247
      %p254 = scmp.eq.s32.totalorder %s27, 1
      %p255 = por %p253, %p254
      %p256 = scmp.ne.s32.totalorder %s247, %s248
      %p257 = scmp.eq.s32.totalorder %s27, 0
      %p258 = por %p256, %p257
      %p259 = scmp.ne.s32.totalorder %s247, %s248
      %p260 = scmp.eq.s32.totalorder %s28, 1
      %p261 = por %p259, %p260
      %p263 = scmp.ne.s32.totalorder %s248, %s262
      %p264 = scmp.eq.s32.totalorder %s28, 0
      %p265 = por %p263, %p264
      %s267 = sadd.s32 %s266, 1
      %p270 = scmp.eq.s32.totalorder %s22, 1
      %p271 = scmp.ne.s32.totalorder %s266, %s268
      %p272 = scmp.eq.s32.totalorder %s22, 0
      %p273 = por %p271, %p272
      %p274 = scmp.ne.s32.totalorder %s266, %s268
      %p275 = scmp.eq.s32.totalorder %s27, 1
      %p276 = por %p274, %p275
      %p277 = scmp.ne.s32.totalorder %s268, %s269
      %p278 = scmp.eq.s32.totalorder %s27, 0
      %p279 = por %p277, %p278
      %p280 = scmp.ne.s32.totalorder %s268, %s269
      %p281 = scmp.eq.s32.totalorder %s28, 1
      %p282 = por %p280, %p281
      %p284 = scmp.ne.s32.totalorder %s269, %s283
      %p285 = scmp.eq.s32.totalorder %s28, 0
      %p286 = por %p284, %p285
      %s288 = sadd.s32 %s287, 1
      %p291 = scmp.eq.s32.totalorder %s22, 1
      %p292 = scmp.ne.s32.totalorder %s287, %s289
      %p293 = scmp.eq.s32.totalorder %s22, 0
      %p294 = por %p292, %p293
      %p295 = scmp.ne.s32.totalorder %s287, %s289
      %p296 = scmp.eq.s32.totalorder %s27, 1
      %p297 = por %p295, %p296
      %p298 = scmp.ne.s32.totalorder %s289, %s290
      %p299 = scmp.eq.s32.totalorder %s27, 0
      %p300 = por %p298, %p299
      %p301 = scmp.ne.s32.totalorder %s289, %s290
      %p302 = scmp.eq.s32.totalorder %s28, 1
      %p303 = por %p301, %p302
      %p305 = scmp.ne.s32.totalorder %s290, %s304
      %p306 = scmp.eq.s32.totalorder %s28, 0
      %p307 = por %p305, %p306
      %s308 = ssub.s32 %s22, %s29
      %p309 = scmp.eq.s32.totalorder %s308, 0
      %s311 = sadd.s32 %s310, 1
      %s312 = scalar_select %p309, %s310, %s311
      %p315 = pneg %p309
      %p316 = scmp.eq.s32.totalorder %s22, 1
      %p317 = por %p315, %p316
      %p318 = scmp.ne.s32.totalorder %s310, %s313
      %p319 = scmp.eq.s32.totalorder %s22, 0
      %p320 = por %p318, %p319
      %p321 = scmp.ne.s32.totalorder %s310, %s313
      %p322 = scmp.eq.s32.totalorder %s27, 1
      %p323 = por %p321, %p322
      %p324 = scmp.ne.s32.totalorder %s313, %s314
      %p325 = scmp.eq.s32.totalorder %s27, 0
      %p326 = por %p324, %p325
      %p327 = scmp.ne.s32.totalorder %s313, %s314
      %p328 = scmp.eq.s32.totalorder %s28, 1
      %p329 = por %p327, %p328
      %p331 = scmp.ne.s32.totalorder %s314, %s330
      %p332 = scmp.eq.s32.totalorder %s28, 0
      %p333 = por %p331, %p332
      %p334 = scmp.le.s32.totalorder 1, %s22
      %p335 = scmp.lt.s32.totalorder %s22, 3
      %p336 = pnand %p334, %p335
      %p337 = pneg %p336
      // Predicated region
      $region9: #{forward.1} parent=5 // pred_check
        _
      $region10: #{forward.1} parent=5 // pred_check_branch
        %339 = sbr.rel (%p336) target = $region12
      $region11: #{forward.1} parent=5 // pred_region
        %s340 = ssub.s32 %s22, 1
        // Predicated region
        $region13: #{forward.1} parent=11 // pred_check
          %p341 = pneg %p69
        $region14: #{forward.1} parent=11 // pred_check_branch
          %343 = sbr.rel (%p341) target = $region16
        $region15: #{forward.1} parent=11 // pred_region
          _
        $region16: #{forward.1} parent=11 // pred_fallthru
          _
        // Predicated region
        $region17: #{forward.1} parent=11 // pred_check
          %p344 = pneg %p90
        $region18: #{forward.1} parent=11 // pred_check_branch
          %346 = sbr.rel (%p344) target = $region20
        $region19: #{forward.1} parent=11 // pred_region
          _
        $region20: #{forward.1} parent=11 // pred_fallthru
          _
        // Predicated region
        $region21: #{forward.1} parent=11 // pred_check
          %p347 = pneg %p111
        $region22: #{forward.1} parent=11 // pred_check_branch
          %349 = sbr.rel (%p347) target = $region24
        $region23: #{forward.1} parent=11 // pred_region
          _
        $region24: #{forward.1} parent=11 // pred_fallthru
          _
        // Predicated region
        $region25: #{forward.1} parent=11 // pred_check
          %p350 = pneg %p132
        $region26: #{forward.1} parent=11 // pred_check_branch
          %352 = sbr.rel (%p350) target = $region28
        $region27: #{forward.1} parent=11 // pred_region
          _
        $region28: #{forward.1} parent=11 // pred_fallthru
          _
        // Predicated region
        $region29: #{forward.1} parent=11 // pred_check
          %p353 = pneg %p153
        $region30: #{forward.1} parent=11 // pred_check_branch
          %355 = sbr.rel (%p353) target = $region32
        $region31: #{forward.1} parent=11 // pred_region
          _
        $region32: #{forward.1} parent=11 // pred_fallthru
          _
        // Predicated region
        $region33: #{forward.1} parent=11 // pred_check
          %p356 = pneg %p174
        $region34: #{forward.1} parent=11 // pred_check_branch
          %358 = sbr.rel (%p356) target = $region36
        $region35: #{forward.1} parent=11 // pred_region
          _
        $region36: #{forward.1} parent=11 // pred_fallthru
          _
        // Predicated region
        $region37: #{forward.1} parent=11 // pred_check
          %p359 = pneg %p195
        $region38: #{forward.1} parent=11 // pred_check_branch
          %361 = sbr.rel (%p359) target = $region40
        $region39: #{forward.1} parent=11 // pred_region
          _
        $region40: #{forward.1} parent=11 // pred_fallthru
          _
        // Predicated region
        $region41: #{forward.1} parent=11 // pred_check
          %p362 = pneg %p216
        $region42: #{forward.1} parent=11 // pred_check_branch
          %364 = sbr.rel (%p362) target = $region44
        $region43: #{forward.1} parent=11 // pred_region
          _
        $region44: #{forward.1} parent=11 // pred_fallthru
          _
        // Predicated region
        $region45: #{forward.1} parent=11 // pred_check
          %p365 = pneg %p237
        $region46: #{forward.1} parent=11 // pred_check_branch
          %367 = sbr.rel (%p365) target = $region48
        $region47: #{forward.1} parent=11 // pred_region
          _
        $region48: #{forward.1} parent=11 // pred_fallthru
          _
        // Predicated region
        $region49: #{forward.1} parent=11 // pred_check
          %p368 = pneg %p258
        $region50: #{forward.1} parent=11 // pred_check_branch
          %370 = sbr.rel (%p368) target = $region52
        $region51: #{forward.1} parent=11 // pred_region
          _
        $region52: #{forward.1} parent=11 // pred_fallthru
          _
        // Predicated region
        $region53: #{forward.1} parent=11 // pred_check
          %p371 = pneg %p279
        $region54: #{forward.1} parent=11 // pred_check_branch
          %373 = sbr.rel (%p371) target = $region56
        $region55: #{forward.1} parent=11 // pred_region
          _
        $region56: #{forward.1} parent=11 // pred_fallthru
          _
        // Predicated region
        $region57: #{forward.1} parent=11 // pred_check
          %p374 = pneg %p300
        $region58: #{forward.1} parent=11 // pred_check_branch
          %376 = sbr.rel (%p374) target = $region60
        $region59: #{forward.1} parent=11 // pred_region
          _
        $region60: #{forward.1} parent=11 // pred_fallthru
          _
      $region12: #{forward.1} parent=5 // pred_fallthru
        _
      %p377 = scmp.lt.s32.totalorder %s22, 2
      // Predicated region
      $region61: #{forward.1} parent=5 // pred_check
        %p378 = pneg %p377
      $region62: #{forward.1} parent=5 // pred_check_branch
        %380 = sbr.rel (%p378) target = $region64
      $region63: #{forward.1} parent=5 // pred_region
        // Predicated region
        $region65: #{forward.1} parent=63 // pred_check
          %p381 = pneg %p42
        $region66: #{forward.1} parent=63 // pred_check_branch
          %383 = sbr.rel (%p381) target = $region68
        $region67: #{forward.1} parent=63 // pred_region
          %p384 = scmp.lt.s32.totalorder %s22, 1
          %s385 = scalar_select %p384, %s22, 1
          %s386 = smul.addr %s385, 128
          %s387 = smul.addr %s386, 4
          %s388 = scalar_lea.vmem %s0, %s387
        $region68: #{forward.1} parent=63 // pred_fallthru
          _
      $region64: #{forward.1} parent=5 // pred_fallthru
        _
      %p389 = scmp.le.s32.totalorder 1, %s22
      %p390 = scmp.lt.s32.totalorder %s22, 3
      %p391 = pnand %p389, %p390
      %p392 = pneg %p391
      // Predicated region
      $region69: #{forward.1} parent=5 // pred_check
        _
      $region70: #{forward.1} parent=5 // pred_check_branch
        %394 = sbr.rel (%p391) target = $region72
      $region71: #{forward.1} parent=5 // pred_region
        %s395 = ssub.s32 %s22, 1
        %p396 = scmp.lt.s32.totalorder %s27, 1
        %s397 = scalar_select %p396, %s27, 1
        %s398 = smul.addr %s397, 128
        %s399 = smul.addr %s398, 4
        %s400 = scalar_lea.vmem %s0, %s399
        %p401 = pneg %p48
        %p402 = pneg %p45
        %p403 = pneg %p69
        %p404 = pneg %p66
        %p405 = pneg %p90
        %p406 = pneg %p87
        %p407 = pneg %p111
        %p408 = pneg %p108
        %p409 = pneg %p132
        %p410 = pneg %p129
        %p411 = pneg %p153
        %p412 = pneg %p150
        %p413 = pneg %p174
        %p414 = pneg %p171
        %p415 = pneg %p195
        %p416 = pneg %p192
        %p417 = pneg %p216
        %p418 = pneg %p213
        %p419 = pneg %p237
        %p420 = pneg %p234
        %p421 = pneg %p258
        %p422 = pneg %p255
        %p423 = pneg %p279
        %p424 = pneg %p276
        %p425 = pneg %p300
        %p426 = pneg %p297
        %p427 = pneg %p326
        %p428 = pneg %p323
        %s429 = sand.u32 %s313, 1
        %s430 = scalar_lea.sflag [#allocation6], %s429
        %s431 = sand.u32 %s313, 1
        %s432 = scalar_lea.vmem [#allocation5], %s431
        %p433 = scmp.lt.s32.totalorder %s27, 1
        %s434 = scalar_select %p433, %s27, 1
        %s435 = smul.addr %s434, 128
        %s436 = smul.addr %s435, 4
        %s437 = scalar_lea.vmem %s0, %s436
        %439 = vst [vmem:[#allocation2] sm:$0xff] 0.0
        %vm440 = vcmask 261120
        %441 = vst.msk [vmem:[#allocation2 + $0x8] sm:$0xff] %vm440, 0.0
        %442 = vst [vmem:[#allocation2 + $0x10] sm:$0xff] 0.0
        %443 = vst.msk [vmem:[#allocation2 + $0x18] sm:$0xff] %vm440, 0.0
        %444 = vst [vmem:[#allocation2 + $0x20] sm:$0xff] 0.0
        %445 = vst.msk [vmem:[#allocation2 + $0x28] sm:$0xff] %vm440, 0.0
        %446 = vst [vmem:[#allocation2 + $0x30] sm:$0xff] 0.0
        %447 = vst.msk [vmem:[#allocation2 + $0x38] sm:$0xff] %vm440, 0.0
        %448 = vst [vmem:[#allocation2 + $0x40] sm:$0xff] 0.0
        %449 = vst.msk [vmem:[#allocation2 + $0x48] sm:$0xff] %vm440, 0.0
        %450 = vst [vmem:[#allocation2 + $0x50] sm:$0xff] 0.0
        %451 = vst.msk [vmem:[#allocation2 + $0x58] sm:$0xff] %vm440, 0.0
        %452 = vst [vmem:[#allocation2 + $0x60] sm:$0xff] 0.0
        %453 = vst.msk [vmem:[#allocation2 + $0x68] sm:$0xff] %vm440, 0.0
        %454 = vst [vmem:[#allocation2 + $0x70] sm:$0xff] 0.0
        %455 = vst.msk [vmem:[#allocation2 + $0x78] sm:$0xff] %vm440, 0.0
        %456 = vst [vmem:[#allocation2 + $0x80] sm:$0xff] 0.0
        %457 = vst.msk [vmem:[#allocation2 + $0x88] sm:$0xff] %vm440, 0.0
        %458 = vst [vmem:[#allocation2 + $0x90] sm:$0xff] 0.0
        %459 = vst.msk [vmem:[#allocation2 + $0x98] sm:$0xff] %vm440, 0.0
        %460 = vst [vmem:[#allocation2 + $0xa0] sm:$0xff] 0.0
        %461 = vst.msk [vmem:[#allocation2 + $0xa8] sm:$0xff] %vm440, 0.0
        %462 = vst [vmem:[#allocation2 + $0xb0] sm:$0xff] 0.0
        %463 = vst.msk [vmem:[#allocation2 + $0xb8] sm:$0xff] %vm440, 0.0
        %464 = vst [vmem:[#allocation2 + $0xc0] sm:$0xff] 0.0
        %465 = vst.msk [vmem:[#allocation2 + $0xc8] sm:$0xff] %vm440, 0.0
        %466 = vst [vmem:[#allocation2 + $0xd0] sm:$0xff] 0.0
        %467 = vst.msk [vmem:[#allocation2 + $0xd8] sm:$0xff] %vm440, 0.0
        %468 = vst [vmem:[#allocation2 + $0xe0] sm:$0xff] 0.0
        %469 = vst.msk [vmem:[#allocation2 + $0xe8] sm:$0xff] %vm440, 0.0
        %470 = vst [vmem:[#allocation2 + $0xf0] sm:$0xff] 0.0
        %471 = vst.msk [vmem:[#allocation2 + $0xf8] sm:$0xff] %vm440, 0.0
        %472 = vst [vmem:[#allocation2 + $0x100] sm:$0xff] 0.0
        %473 = vst.msk [vmem:[#allocation2 + $0x108] sm:$0xff] %vm440, 0.0
        %474 = vst [vmem:[#allocation2 + $0x110] sm:$0xff] 0.0
        %475 = vst.msk [vmem:[#allocation2 + $0x118] sm:$0xff] %vm440, 0.0
        %476 = vst [vmem:[#allocation2 + $0x120] sm:$0xff] 0.0
        %477 = vst.msk [vmem:[#allocation2 + $0x128] sm:$0xff] %vm440, 0.0
        %478 = vst [vmem:[#allocation2 + $0x130] sm:$0xff] 0.0
        %479 = vst.msk [vmem:[#allocation2 + $0x138] sm:$0xff] %vm440, 0.0
        %480 = vst [vmem:[#allocation2 + $0x140] sm:$0xff] 0.0
        %481 = vst.msk [vmem:[#allocation2 + $0x148] sm:$0xff] %vm440, 0.0
        %482 = vst [vmem:[#allocation2 + $0x150] sm:$0xff] 0.0
        %483 = vst.msk [vmem:[#allocation2 + $0x158] sm:$0xff] %vm440, 0.0
        %484 = vst [vmem:[#allocation2 + $0x160] sm:$0xff] 0.0
        %485 = vst.msk [vmem:[#allocation2 + $0x168] sm:$0xff] %vm440, 0.0
        %486 = vst [vmem:[#allocation2 + $0x170] sm:$0xff] 0.0
        %487 = vst.msk [vmem:[#allocation2 + $0x178] sm:$0xff] %vm440, 0.0
        %488 = vst [vmem:[#allocation2 + $0x180] sm:$0xff] 0.0
        %489 = vst.msk [vmem:[#allocation2 + $0x188] sm:$0xff] %vm440, 0.0
        %490 = vst [vmem:[#allocation2 + $0x190] sm:$0xff] 0.0
        %491 = vst.msk [vmem:[#allocation2 + $0x198] sm:$0xff] %vm440, 0.0
        %492 = vst [vmem:[#allocation2 + $0x1a0] sm:$0xff] 0.0
        %493 = vst.msk [vmem:[#allocation2 + $0x1a8] sm:$0xff] %vm440, 0.0
        %494 = vst [vmem:[#allocation2 + $0x1b0] sm:$0xff] 0.0
        %495 = vst.msk [vmem:[#allocation2 + $0x1b8] sm:$0xff] %vm440, 0.0
        %496 = vst [vmem:[#allocation2 + $0x1c0] sm:$0xff] 0.0
        %497 = vst.msk [vmem:[#allocation2 + $0x1c8] sm:$0xff] %vm440, 0.0
        %498 = vst [vmem:[#allocation2 + $0x1d0] sm:$0xff] 0.0
        %499 = vst.msk [vmem:[#allocation2 + $0x1d8] sm:$0xff] %vm440, 0.0
        %500 = vst [vmem:[#allocation2 + $0x1e0] sm:$0xff] 0.0
        %501 = vst.msk [vmem:[#allocation2 + $0x1e8] sm:$0xff] %vm440, 0.0
        %502 = vst [vmem:[#allocation2 + $0x1f0] sm:$0xff] 0.0
        %503 = vst.msk [vmem:[#allocation2 + $0x1f8] sm:$0xff] %vm440, 0.0
        %504 = vst [vmem:[#allocation2 + $0x200] sm:$0xff] 0.0
        %505 = vst.msk [vmem:[#allocation2 + $0x208] sm:$0xff] %vm440, 0.0
        %506 = vst [vmem:[#allocation2 + $0x210] sm:$0xff] 0.0
        %507 = vst.msk [vmem:[#allocation2 + $0x218] sm:$0xff] %vm440, 0.0
        %508 = vst [vmem:[#allocation2 + $0x220] sm:$0xff] 0.0
        %509 = vst.msk [vmem:[#allocation2 + $0x228] sm:$0xff] %vm440, 0.0
        %510 = vst [vmem:[#allocation2 + $0x230] sm:$0xff] 0.0
        %511 = vst.msk [vmem:[#allocation2 + $0x238] sm:$0xff] %vm440, 0.0
        %512 = vst [vmem:[#allocation2 + $0x240] sm:$0xff] 0.0
        %513 = vst.msk [vmem:[#allocation2 + $0x248] sm:$0xff] %vm440, 0.0
        %514 = vst [vmem:[#allocation2 + $0x250] sm:$0xff] 0.0
        %515 = vst.msk [vmem:[#allocation2 + $0x258] sm:$0xff] %vm440, 0.0
        %516 = vst [vmem:[#allocation2 + $0x260] sm:$0xff] 0.0
        %517 = vst.msk [vmem:[#allocation2 + $0x268] sm:$0xff] %vm440, 0.0
        %518 = vst [vmem:[#allocation2 + $0x270] sm:$0xff] 0.0
        %519 = vst.msk [vmem:[#allocation2 + $0x278] sm:$0xff] %vm440, 0.0
        %520 = vst [vmem:[#allocation2 + $0x280] sm:$0xf] 0.0
        %vm521 = vcmask 257024
        %522 = vst.msk [vmem:[#allocation2 + $0x288] sm:$0xf] %vm521, 0.0
        %523 = vst [vmem:[#allocation3] sm:$0xff] 0.0
        %524 = vst [vmem:[#allocation3 + $0x8] sm:$0xff] 0.0
        %525 = vst [vmem:[#allocation3 + $0x10] sm:$0xff] 0.0
        %526 = vst [vmem:[#allocation3 + $0x18] sm:$0xff] 0.0
        %527 = vst [vmem:[#allocation3 + $0x20] sm:$0xff] 0.0
        %528 = vst [vmem:[#allocation3 + $0x28] sm:$0xff] 0.0
        %529 = vst [vmem:[#allocation3 + $0x30] sm:$0xff] 0.0
        %530 = vst [vmem:[#allocation3 + $0x38] sm:$0xff] 0.0
        %531 = vst [vmem:[#allocation3 + $0x40] sm:$0xff] 0.0
        %532 = vst [vmem:[#allocation3 + $0x48] sm:$0xff] 0.0
        %533 = vst [vmem:[#allocation3 + $0x50] sm:$0x1] 0.0
        %534 = vst [vmem:[#allocation4] sm:$0xff] 0.0
        %vm535 = vcmask 523264
        %536 = vst.msk [vmem:[#allocation4 + $0x8] sm:$0xff] %vm535, 0.0
        %537 = vst [vmem:[#allocation4 + $0x10] sm:$0xff] 0.0
        %538 = vst.msk [vmem:[#allocation4 + $0x18] sm:$0xff] %vm535, 0.0
        %539 = vst [vmem:[#allocation4 + $0x20] sm:$0xff] 0.0
        %540 = vst.msk [vmem:[#allocation4 + $0x28] sm:$0xff] %vm535, 0.0
        %541 = vst [vmem:[#allocation4 + $0x30] sm:$0x1] 0.0
        %vm542 = vcmask 516096
        %543 = vst.msk [vmem:[#allocation4 + $0x38] sm:$0x1] %vm542, 0.0
        %v544 = vld [vmem:[%s2] sm:$0x1]
        %v545 = vld [vmem:[%s437] sm:$0xf]
        %v546 = vld [vmem:[%s437 + $0x4] sm:$0xf]
        %v547 = vld [vmem:[%s437 + $0x8] sm:$0xf]
        %v548 = vld [vmem:[%s437 + $0xc] sm:$0xf]
        %v549 = vld [vmem:[%s437 + $0x10] sm:$0xf]
        %v550 = vld [vmem:[%s437 + $0x14] sm:$0xf]
        %v551 = vld [vmem:[%s437 + $0x18] sm:$0xf]
        %v552 = vld [vmem:[%s437 + $0x1c] sm:$0xf]
        %v553 = vld [vmem:[%s437 + $0x20] sm:$0xf]
        %v554 = vld [vmem:[%s437 + $0x24] sm:$0xf]
        %v555 = vld [vmem:[%s437 + $0x28] sm:$0xf]
        %v556 = vld [vmem:[%s437 + $0x2c] sm:$0xf]
        %v557 = vld [vmem:[%s437 + $0x30] sm:$0xf]
        %v558 = vld [vmem:[%s437 + $0x34] sm:$0xf]
        %v559 = vld [vmem:[%s437 + $0x38] sm:$0xf]
        %v560 = vld [vmem:[%s437 + $0x3c] sm:$0xf]
        %v561 = vld [vmem:[%s437 + $0x40] sm:$0xf]
        %v562 = vld [vmem:[%s437 + $0x44] sm:$0xf]
        %v563 = vld [vmem:[%s437 + $0x48] sm:$0xf]
        %v564 = vld [vmem:[%s437 + $0x4c] sm:$0xf]
        %v565 = vld [vmem:[%s437 + $0x50] sm:$0xf]
        %v566 = vld [vmem:[%s437 + $0x54] sm:$0xf]
        %v567 = vld [vmem:[%s437 + $0x58] sm:$0xf]
        %v568 = vld [vmem:[%s437 + $0x5c] sm:$0xf]
        %v569 = vld [vmem:[%s437 + $0x60] sm:$0xf]
        %v570 = vld [vmem:[%s437 + $0x64] sm:$0xf]
        %v571 = vld [vmem:[%s437 + $0x68] sm:$0xf]
        %v572 = vld [vmem:[%s437 + $0x6c] sm:$0xf]
        %v573 = vld [vmem:[%s437 + $0x70] sm:$0xf]
        %v574 = vld [vmem:[%s437 + $0x74] sm:$0xf]
        %v575 = vld [vmem:[%s437 + $0x78] sm:$0xf]
        %v576 = vld [vmem:[%s437 + $0x7c] sm:$0xf]
        %v577 = vld [vmem:[%s1] sm:$0xf]
        %v578 = vld [vmem:[%s1 + $0x4] sm:$0xf]
        %v579 = vld [vmem:[%s1 + $0x8] sm:$0xf]
        %v580 = vld [vmem:[%s1 + $0xc] sm:$0xf]
        %v581 = vld [vmem:[%s1 + $0x10] sm:$0xf]
        %v582 = vld [vmem:[%s1 + $0x14] sm:$0xf]
        %v583 = vld [vmem:[%s1 + $0x18] sm:$0xf]
        %v584 = vld [vmem:[%s1 + $0x1c] sm:$0xf]
        %v585 = vld [vmem:[%s1 + $0x20] sm:$0xf]
        %v586 = vld [vmem:[%s1 + $0x24] sm:$0xf]
        %v587 = vld [vmem:[%s1 + $0x28] sm:$0xf]
        %v588 = vld [vmem:[%s1 + $0x2c] sm:$0xf]
        %v589 = vld [vmem:[%s1 + $0x30] sm:$0x3]
        %v591 = vperm.slane %v544, 0
        %v625 = vunpack.c.l.b16 %v545
        %v626 = vunpack.c.l.b16 %v546
        %v627 = vunpack.c.l.b16 %v547
        %v628 = vunpack.c.l.b16 %v548
        %v629 = vunpack.c.l.b16 %v549
        %v630 = vunpack.c.l.b16 %v550
        %v631 = vunpack.c.l.b16 %v551
        %v632 = vunpack.c.l.b16 %v552
        %v633 = vunpack.c.l.b16 %v553
        %v634 = vunpack.c.l.b16 %v554
        %v635 = vunpack.c.l.b16 %v555
        %v636 = vunpack.c.l.b16 %v556
        %v637 = vunpack.c.l.b16 %v557
        %v638 = vunpack.c.l.b16 %v558
        %v639 = vunpack.c.l.b16 %v559
        %v640 = vunpack.c.l.b16 %v560
        %v641 = vunpack.c.l.b16 %v561
        %v642 = vunpack.c.l.b16 %v562
        %v643 = vunpack.c.l.b16 %v563
        %v644 = vunpack.c.l.b16 %v564
        %v645 = vunpack.c.l.b16 %v565
        %v646 = vunpack.c.l.b16 %v566
        %v647 = vunpack.c.l.b16 %v567
        %v648 = vunpack.c.l.b16 %v568
        %v649 = vunpack.c.l.b16 %v569
        %v650 = vunpack.c.l.b16 %v570
        %v651 = vunpack.c.l.b16 %v571
        %v652 = vunpack.c.l.b16 %v572
        %v653 = vunpack.c.l.b16 %v573
        %v654 = vunpack.c.l.b16 %v574
        %v655 = vunpack.c.l.b16 %v575
        %v656 = vunpack.c.l.b16 %v576
        %v657 = vpack.c.b16 %v626, %v625
        %v658 = vpack.c.b16 %v628, %v627
        %v659 = vpack.c.b16 %v630, %v629
        %v660 = vpack.c.b16 %v632, %v631
        %v661 = vpack.c.b16 %v634, %v633
        %v662 = vpack.c.b16 %v636, %v635
        %v663 = vpack.c.b16 %v638, %v637
        %v664 = vpack.c.b16 %v640, %v639
        %v665 = vpack.c.b16 %v642, %v641
        %v666 = vpack.c.b16 %v644, %v643
        %v667 = vpack.c.b16 %v646, %v645
        %v668 = vpack.c.b16 %v648, %v647
        %v669 = vpack.c.b16 %v650, %v649
        %v670 = vpack.c.b16 %v652, %v651
        %v671 = vpack.c.b16 %v654, %v653
        %v672 = vpack.c.b16 %v656, %v655
        %v686 = vunpack.c.l.b16 %v577
        %v687 = vunpack.c.l.b16 %v578
        %v688 = vunpack.c.l.b16 %v579
        %v689 = vunpack.c.l.b16 %v580
        %v690 = vunpack.c.l.b16 %v581
        %v691 = vunpack.c.l.b16 %v582
        %v692 = vunpack.c.l.b16 %v583
        %v693 = vunpack.c.l.b16 %v584
        %v694 = vunpack.c.l.b16 %v585
        %v695 = vunpack.c.l.b16 %v586
        %v696 = vunpack.c.l.b16 %v587
        %v697 = vunpack.c.l.b16 %v588
        %v698 = vunpack.c.l.b16 %v589
        %v699 = vpack.c.b16 %v687, %v686
        %v700 = vpack.c.b16 %v689, %v688
        %v701 = vpack.c.b16 %v691, %v690
        %v702 = vpack.c.b16 %v693, %v692
        %v703 = vpack.c.b16 %v695, %v694
        %v704 = vpack.c.b16 %v697, %v696
        %v705 = vpack.c.b16 %v698, %v698
        %vm712 = vcmask 818176
        %v714 = vsel %vm712, %v657, 0
        %v717 = vsel %vm712, %v658, 0
        %v720 = vsel %vm712, %v659, 0
        %v723 = vsel %vm712, %v660, 0
        %v726 = vsel %vm712, %v661, 0
        %v729 = vsel %vm712, %v662, 0
        %v732 = vsel %vm712, %v663, 0
        %v735 = vsel %vm712, %v664, 0
        %v738 = vsel %vm712, %v665, 0
        %v741 = vsel %vm712, %v666, 0
        %v744 = vsel %vm712, %v667, 0
        %v747 = vsel %vm712, %v668, 0
        %v750 = vsel %vm712, %v669, 0
        %v753 = vsel %vm712, %v670, 0
        %v756 = vsel %vm712, %v671, 0
        %v759 = vsel %vm712, %v672, 0
        %vm761 = vcmask 1041408
        %v763 = vsel %vm761, %v705, 0
        %765 = vmatpush.bf16.msra.mxu0 0
        %766 = vmatpush.bf16.msra.mxu0 %v763
        %767 = vmatpush.bf16.msra.mxu0 %v704
        %768 = vmatpush.bf16.msra.mxu0 %v703
        %769 = vmatpush.bf16.msra.mxu0 %v702
        %770 = vmatpush.bf16.msra.mxu0 %v701
        %771 = vmatpush.bf16.msra.mxu0 %v700
        %772 = vmatpush.bf16.msra.mxu0 %v699
        %773 = vmatmul.bf16.gmra.mxu0 %v714
        %v774 = vpop.f32.mrf.mxu0
        %v775 = vadd.f32 %v591, %v774
        %v776 = vpop.f32.mrf.mxu0
        %v777 = vadd.f32 %v591, %v776
        %778 = vmatmul.bf16.gmra.mxu0 %v717
        %v779 = vpop.f32.mrf.mxu0
        %v780 = vadd.f32 %v591, %v779
        %v781 = vpop.f32.mrf.mxu0
        %v782 = vadd.f32 %v591, %v781
        %783 = vmatmul.bf16.gmra.mxu0 %v720
        %v784 = vpop.f32.mrf.mxu0
        %v785 = vadd.f32 %v591, %v784
        %v786 = vpop.f32.mrf.mxu0
        %v787 = vadd.f32 %v591, %v786
        %788 = vmatmul.bf16.gmra.mxu0 %v723
        %v789 = vpop.f32.mrf.mxu0
        %v790 = vadd.f32 %v591, %v789
        %v791 = vpop.f32.mrf.mxu0
        %v792 = vadd.f32 %v591, %v791
        %793 = vmatmul.bf16.gmra.mxu0 %v726
        %v794 = vpop.f32.mrf.mxu0
        %v795 = vadd.f32 %v591, %v794
        %v796 = vpop.f32.mrf.mxu0
        %v797 = vadd.f32 %v591, %v796
        %798 = vmatmul.bf16.gmra.mxu0 %v729
        %v799 = vpop.f32.mrf.mxu0
        %v800 = vadd.f32 %v591, %v799
        %v801 = vpop.f32.mrf.mxu0
        %v802 = vadd.f32 %v591, %v801
        %803 = vmatmul.bf16.gmra.mxu0 %v732
        %v804 = vpop.f32.mrf.mxu0
        %v805 = vadd.f32 %v591, %v804
        %v806 = vpop.f32.mrf.mxu0
        %v807 = vadd.f32 %v591, %v806
        %808 = vmatmul.bf16.gmra.mxu0 %v735
        %v809 = vpop.f32.mrf.mxu0
        %v810 = vadd.f32 %v591, %v809
        %v811 = vpop.f32.mrf.mxu0
        %v812 = vadd.f32 %v591, %v811
        %813 = vmatmul.bf16.gmra.mxu0 %v738
        %v814 = vpop.f32.mrf.mxu0
        %v815 = vadd.f32 %v591, %v814
        %v816 = vpop.f32.mrf.mxu0
        %v817 = vadd.f32 %v591, %v816
        %818 = vmatmul.bf16.gmra.mxu0 %v741
        %v819 = vpop.f32.mrf.mxu0
        %v820 = vadd.f32 %v591, %v819
        %v821 = vpop.f32.mrf.mxu0
        %v822 = vadd.f32 %v591, %v821
        %823 = vmatmul.bf16.gmra.mxu0 %v744
        %v824 = vpop.f32.mrf.mxu0
        %v825 = vadd.f32 %v591, %v824
        %v826 = vpop.f32.mrf.mxu0
        %v827 = vadd.f32 %v591, %v826
        %828 = vmatmul.bf16.gmra.mxu0 %v747
        %v829 = vpop.f32.mrf.mxu0
        %v830 = vadd.f32 %v591, %v829
        %v831 = vpop.f32.mrf.mxu0
        %v832 = vadd.f32 %v591, %v831
        %833 = vmatmul.bf16.gmra.mxu0 %v750
        %v834 = vpop.f32.mrf.mxu0
        %v835 = vadd.f32 %v591, %v834
        %v836 = vpop.f32.mrf.mxu0
        %v837 = vadd.f32 %v591, %v836
        %838 = vmatmul.bf16.gmra.mxu0 %v753
        %v839 = vpop.f32.mrf.mxu0
        %v840 = vadd.f32 %v591, %v839
        %v841 = vpop.f32.mrf.mxu0
        %v842 = vadd.f32 %v591, %v841
        %843 = vmatmul.bf16.gmra.mxu0 %v756
        %v844 = vpop.f32.mrf.mxu0
        %v845 = vadd.f32 %v591, %v844
        %v846 = vpop.f32.mrf.mxu0
        %v847 = vadd.f32 %v591, %v846
        %848 = vmatmul.bf16.gmra.mxu0 %v759
        %v849 = vpop.f32.mrf.mxu0
        %v850 = vadd.f32 %v591, %v849
        %v851 = vpop.f32.mrf.mxu0
        %v852 = vadd.f32 %v591, %v851
        %853 = vdwg.mxu0
        %v854 = vpack.c.bf16 %v777, %v775
        %v855 = vpack.c.bf16 %v782, %v780
        %v856 = vpack.c.bf16 %v787, %v785
        %v857 = vpack.c.bf16 %v792, %v790
        %v858 = vpack.c.bf16 %v797, %v795
        %v859 = vpack.c.bf16 %v802, %v800
        %v860 = vpack.c.bf16 %v807, %v805
        %v861 = vpack.c.bf16 %v812, %v810
        %v862 = vpack.c.bf16 %v817, %v815
        %v863 = vpack.c.bf16 %v822, %v820
        %v864 = vpack.c.bf16 %v827, %v825
        %v865 = vpack.c.bf16 %v832, %v830
        %v866 = vpack.c.bf16 %v837, %v835
        %v867 = vpack.c.bf16 %v842, %v840
        %v868 = vpack.c.bf16 %v847, %v845
        %v869 = vpack.c.bf16 %v852, %v850
        %v870 = vld [vmem:[%s3] sm:$0xff]
        %v871 = vld [vmem:[%s3 + $0x8] sm:$0xff]
        %v872 = vld [vmem:[%s3 + $0x10] sm:$0xff]
        %v873 = vld [vmem:[%s3 + $0x18] sm:$0xff]
        %v874 = vld [vmem:[%s3 + $0x20] sm:$0xff]
        %v875 = vld [vmem:[%s3 + $0x28] sm:$0xff]
        %v876 = vld [vmem:[%s3 + $0x30] sm:$0xff]
        %v877 = vld [vmem:[%s3 + $0x38] sm:$0xff]
        %v878 = vld [vmem:[%s3 + $0x40] sm:$0x77]
        %v888 = vunpack.c.l.b16 %v870
        %v889 = vunpack.c.h.b16 %v870
        %v890 = vunpack.c.l.b16 %v871
        %v891 = vunpack.c.h.b16 %v871
        %v892 = vunpack.c.l.b16 %v872
        %v893 = vunpack.c.h.b16 %v872
        %v894 = vunpack.c.l.b16 %v873
        %v895 = vunpack.c.h.b16 %v873
        %v896 = vunpack.c.l.b16 %v874
        %v897 = vunpack.c.h.b16 %v874
        %v898 = vunpack.c.l.b16 %v875
        %v899 = vunpack.c.h.b16 %v875
        %v900 = vunpack.c.l.b16 %v876
        %v901 = vunpack.c.h.b16 %v876
        %v902 = vunpack.c.l.b16 %v877
        %v903 = vunpack.c.h.b16 %v877
        %v904 = vunpack.c.l.b16 %v878
        %v905 = vunpack.c.h.b16 %v878
        %v906 = vpack.c.b16 %v890, %v888
        %v907 = vpack.c.b16 %v891, %v889
        %v908 = vpack.c.b16 %v894, %v892
        %v909 = vpack.c.b16 %v895, %v893
        %v910 = vpack.c.b16 %v898, %v896
        %v911 = vpack.c.b16 %v899, %v897
        %v912 = vpack.c.b16 %v902, %v900
        %v913 = vpack.c.b16 %v903, %v901
        %v914 = vpack.c.b16 %v904, %v904
        %v915 = vpack.c.b16 %v905, %v905
        %926 = vmatpush.bf16.msra.mxu0 %v861
        %927 = vmatpush.bf16.msra.mxu0 %v860
        %928 = vmatpush.bf16.msra.mxu0 %v859
        %929 = vmatpush.bf16.msra.mxu0 %v858
        %930 = vmatpush.bf16.msra.mxu0 %v857
        %931 = vmatpush.bf16.msra.mxu0 %v856
        %932 = vmatpush.bf16.msra.mxu0 %v855
        %933 = vmatpush.bf16.msra.mxu0 %v854
        %934 = vmatmul.bf16.gmra.mxu0 %v906
        %v935 = vpop.f32.mrf.mxu0
        %v936 = vadd.f32 0.0, %v935
        %v937 = vpop.f32.mrf.mxu0
        %v938 = vadd.f32 0.0, %v937
        %939 = vmatmul.bf16.gmra.mxu0 %v908
        %v940 = vpop.f32.mrf.mxu0
        %v941 = vadd.f32 0.0, %v940
        %v942 = vpop.f32.mrf.mxu0
        %v943 = vadd.f32 0.0, %v942
        %944 = vmatmul.bf16.gmra.mxu0 %v910
        %v945 = vpop.f32.mrf.mxu0
        %v946 = vadd.f32 0.0, %v945
        %v947 = vpop.f32.mrf.mxu0
        %v948 = vadd.f32 0.0, %v947
        %949 = vmatmul.bf16.gmra.mxu0 %v912
        %v950 = vpop.f32.mrf.mxu0
        %v951 = vadd.f32 0.0, %v950
        %v952 = vpop.f32.mrf.mxu0
        %v953 = vadd.f32 0.0, %v952
        %954 = vmatmul.bf16.gmra.mxu0 %v914
        %v955 = vpop.f32.mrf.mxu0
        %v956 = vadd.f32 0.0, %v955
        %v957 = vpop.f32.mrf.mxu0
        %958 = vdwg.mxu0
        %959 = vmatpush.bf16.msra.mxu0 %v869
        %960 = vmatpush.bf16.msra.mxu0 %v868
        %961 = vmatpush.bf16.msra.mxu0 %v867
        %962 = vmatpush.bf16.msra.mxu0 %v866
        %963 = vmatpush.bf16.msra.mxu0 %v865
        %964 = vmatpush.bf16.msra.mxu0 %v864
        %965 = vmatpush.bf16.msra.mxu0 %v863
        %966 = vmatpush.bf16.msra.mxu0 %v862
        %967 = vmatmul.bf16.gmra.mxu0 %v907
        %v968 = vpop.f32.mrf.mxu0
        %v969 = vadd.f32 %v936, %v968
        %v970 = vpop.f32.mrf.mxu0
        %v971 = vadd.f32 %v938, %v970
        %972 = vmatmul.bf16.gmra.mxu0 %v909
        %v973 = vpop.f32.mrf.mxu0
        %v974 = vadd.f32 %v941, %v973
        %v975 = vpop.f32.mrf.mxu0
        %v976 = vadd.f32 %v943, %v975
        %977 = vmatmul.bf16.gmra.mxu0 %v911
        %v978 = vpop.f32.mrf.mxu0
        %v979 = vadd.f32 %v946, %v978
        %v980 = vpop.f32.mrf.mxu0
        %v981 = vadd.f32 %v948, %v980
        %982 = vmatmul.bf16.gmra.mxu0 %v913
        %v983 = vpop.f32.mrf.mxu0
        %v984 = vadd.f32 %v951, %v983
        %v985 = vpop.f32.mrf.mxu0
        %v986 = vadd.f32 %v953, %v985
        %987 = vmatmul.bf16.gmra.mxu0 %v915
        %v988 = vpop.f32.mrf.mxu0
        %v989 = vadd.f32 %v956, %v988
        %v990 = vpop.f32.mrf.mxu0
        %991 = vdwg.mxu0
        %s992 = scalar_lea.vmem %s3, 72
        %v993 = vld [vmem:[%s992] sm:$0xff]
        %v994 = vld [vmem:[%s992 + $0x8] sm:$0xff]
        %v995 = vld [vmem:[%s992 + $0x10] sm:$0xff]
        %v996 = vld [vmem:[%s992 + $0x18] sm:$0xff]
        %v997 = vld [vmem:[%s992 + $0x20] sm:$0xff]
        %v998 = vld [vmem:[%s992 + $0x28] sm:$0xff]
        %v999 = vld [vmem:[%s992 + $0x30] sm:$0xff]
        %v1000 = vld [vmem:[%s992 + $0x38] sm:$0xff]
        %v1001 = vld [vmem:[%s992 + $0x40] sm:$0x77]
        %v1011 = vunpack.c.l.b16 %v993
        %v1012 = vunpack.c.h.b16 %v993
        %v1013 = vunpack.c.l.b16 %v994
        %v1014 = vunpack.c.h.b16 %v994
        %v1015 = vunpack.c.l.b16 %v995
        %v1016 = vunpack.c.h.b16 %v995
        %v1017 = vunpack.c.l.b16 %v996
        %v1018 = vunpack.c.h.b16 %v996
        %v1019 = vunpack.c.l.b16 %v997
        %v1020 = vunpack.c.h.b16 %v997
        %v1021 = vunpack.c.l.b16 %v998
        %v1022 = vunpack.c.h.b16 %v998
        %v1023 = vunpack.c.l.b16 %v999
        %v1024 = vunpack.c.h.b16 %v999
        %v1025 = vunpack.c.l.b16 %v1000
        %v1026 = vunpack.c.h.b16 %v1000
        %v1027 = vunpack.c.l.b16 %v1001
        %v1028 = vunpack.c.h.b16 %v1001
        %v1029 = vpack.c.b16 %v1013, %v1011
        %v1030 = vpack.c.b16 %v1014, %v1012
        %v1031 = vpack.c.b16 %v1017, %v1015
        %v1032 = vpack.c.b16 %v1018, %v1016
        %v1033 = vpack.c.b16 %v1021, %v1019
        %v1034 = vpack.c.b16 %v1022, %v1020
        %v1035 = vpack.c.b16 %v1025, %v1023
        %v1036 = vpack.c.b16 %v1026, %v1024
        %v1037 = vpack.c.b16 %v1027, %v1027
        %v1038 = vpack.c.b16 %v1028, %v1028
        %1049 = vmatpush.bf16.msra.mxu0 %v861
        %1050 = vmatpush.bf16.msra.mxu0 %v860
        %1051 = vmatpush.bf16.msra.mxu0 %v859
        %1052 = vmatpush.bf16.msra.mxu0 %v858
        %1053 = vmatpush.bf16.msra.mxu0 %v857
        %1054 = vmatpush.bf16.msra.mxu0 %v856
        %1055 = vmatpush.bf16.msra.mxu0 %v855
        %1056 = vmatpush.bf16.msra.mxu0 %v854
        %1057 = vmatmul.bf16.gmra.mxu0 %v1029
        %v1058 = vpop.f32.mrf.mxu0
        %v1059 = vadd.f32 0.0, %v1058
        %v1060 = vpop.f32.mrf.mxu0
        %v1061 = vadd.f32 0.0, %v1060
        %1062 = vmatmul.bf16.gmra.mxu0 %v1031
        %v1063 = vpop.f32.mrf.mxu0
        %v1064 = vadd.f32 0.0, %v1063
        %v1065 = vpop.f32.mrf.mxu0
        %v1066 = vadd.f32 0.0, %v1065
        %1067 = vmatmul.bf16.gmra.mxu0 %v1033
        %v1068 = vpop.f32.mrf.mxu0
        %v1069 = vadd.f32 0.0, %v1068
        %v1070 = vpop.f32.mrf.mxu0
        %v1071 = vadd.f32 0.0, %v1070
        %1072 = vmatmul.bf16.gmra.mxu0 %v1035
        %v1073 = vpop.f32.mrf.mxu0
        %v1074 = vadd.f32 0.0, %v1073
        %v1075 = vpop.f32.mrf.mxu0
        %v1076 = vadd.f32 0.0, %v1075
        %1077 = vmatmul.bf16.gmra.mxu0 %v1037
        %v1078 = vpop.f32.mrf.mxu0
        %v1079 = vadd.f32 0.0, %v1078
        %v1080 = vpop.f32.mrf.mxu0
        %1081 = vdwg.mxu0
        %1082 = vmatpush.bf16.msra.mxu0 %v869
        %1083 = vmatpush.bf16.msra.mxu0 %v868
        %1084 = vmatpush.bf16.msra.mxu0 %v867
        %1085 = vmatpush.bf16.msra.mxu0 %v866
        %1086 = vmatpush.bf16.msra.mxu0 %v865
        %1087 = vmatpush.bf16.msra.mxu0 %v864
        %1088 = vmatpush.bf16.msra.mxu0 %v863
        %1089 = vmatpush.bf16.msra.mxu0 %v862
        %1090 = vmatmul.bf16.gmra.mxu0 %v1030
        %v1091 = vpop.f32.mrf.mxu0
        %v1092 = vadd.f32 %v1059, %v1091
        %v1093 = vpop.f32.mrf.mxu0
        %v1094 = vadd.f32 %v1061, %v1093
        %1095 = vmatmul.bf16.gmra.mxu0 %v1032
        %v1096 = vpop.f32.mrf.mxu0
        %v1097 = vadd.f32 %v1064, %v1096
        %v1098 = vpop.f32.mrf.mxu0
        %v1099 = vadd.f32 %v1066, %v1098
        %1100 = vmatmul.bf16.gmra.mxu0 %v1034
        %v1101 = vpop.f32.mrf.mxu0
        %v1102 = vadd.f32 %v1069, %v1101
        %v1103 = vpop.f32.mrf.mxu0
        %v1104 = vadd.f32 %v1071, %v1103
        %1105 = vmatmul.bf16.gmra.mxu0 %v1036
        %v1106 = vpop.f32.mrf.mxu0
        %v1107 = vadd.f32 %v1074, %v1106
        %v1108 = vpop.f32.mrf.mxu0
        %v1109 = vadd.f32 %v1076, %v1108
        %1110 = vmatmul.bf16.gmra.mxu0 %v1038
        %v1111 = vpop.f32.mrf.mxu0
        %v1112 = vadd.f32 %v1079, %v1111
        %v1113 = vpop.f32.mrf.mxu0
        %1114 = vdwg.mxu0
        %v1115 = vmax.f32 %v969, %v1092
        %v1116 = vmax.f32 %v971, %v1094
        %v1117 = vmax.f32 %v974, %v1097
        %v1118 = vmax.f32 %v976, %v1099
        %v1119 = vmax.f32 %v979, %v1102
        %v1120 = vmax.f32 %v981, %v1104
        %v1121 = vmax.f32 %v984, %v1107
        %v1122 = vmax.f32 %v986, %v1109
        %v1123 = vmax.f32 %v989, %v1112
        %s1124 = scalar_lea.vmem %s3, 144
        %v1125 = vld [vmem:[%s1124] sm:$0xff]
        %v1126 = vld [vmem:[%s1124 + $0x8] sm:$0xff]
        %v1127 = vld [vmem:[%s1124 + $0x10] sm:$0xff]
        %v1128 = vld [vmem:[%s1124 + $0x18] sm:$0xff]
        %v1129 = vld [vmem:[%s1124 + $0x20] sm:$0xff]
        %v1130 = vld [vmem:[%s1124 + $0x28] sm:$0xff]
        %v1131 = vld [vmem:[%s1124 + $0x30] sm:$0xff]
        %v1132 = vld [vmem:[%s1124 + $0x38] sm:$0xff]
        %v1133 = vld [vmem:[%s1124 + $0x40] sm:$0x77]
        %v1143 = vunpack.c.l.b16 %v1125
        %v1144 = vunpack.c.h.b16 %v1125
        %v1145 = vunpack.c.l.b16 %v1126
        %v1146 = vunpack.c.h.b16 %v1126
        %v1147 = vunpack.c.l.b16 %v1127
        %v1148 = vunpack.c.h.b16 %v1127
        %v1149 = vunpack.c.l.b16 %v1128
        %v1150 = vunpack.c.h.b16 %v1128
        %v1151 = vunpack.c.l.b16 %v1129
        %v1152 = vunpack.c.h.b16 %v1129
        %v1153 = vunpack.c.l.b16 %v1130
        %v1154 = vunpack.c.h.b16 %v1130
        %v1155 = vunpack.c.l.b16 %v1131
        %v1156 = vunpack.c.h.b16 %v1131
        %v1157 = vunpack.c.l.b16 %v1132
        %v1158 = vunpack.c.h.b16 %v1132
        %v1159 = vunpack.c.l.b16 %v1133
        %v1160 = vunpack.c.h.b16 %v1133
        %v1161 = vpack.c.b16 %v1145, %v1143
        %v1162 = vpack.c.b16 %v1146, %v1144
        %v1163 = vpack.c.b16 %v1149, %v1147
        %v1164 = vpack.c.b16 %v1150, %v1148
        %v1165 = vpack.c.b16 %v1153, %v1151
        %v1166 = vpack.c.b16 %v1154, %v1152
        %v1167 = vpack.c.b16 %v1157, %v1155
        %v1168 = vpack.c.b16 %v1158, %v1156
        %v1169 = vpack.c.b16 %v1159, %v1159
        %v1170 = vpack.c.b16 %v1160, %v1160
        %1181 = vmatpush.bf16.msra.mxu0 %v861
        %1182 = vmatpush.bf16.msra.mxu0 %v860
        %1183 = vmatpush.bf16.msra.mxu0 %v859
        %1184 = vmatpush.bf16.msra.mxu0 %v858
        %1185 = vmatpush.bf16.msra.mxu0 %v857
        %1186 = vmatpush.bf16.msra.mxu0 %v856
        %1187 = vmatpush.bf16.msra.mxu0 %v855
        %1188 = vmatpush.bf16.msra.mxu0 %v854
        %1189 = vmatmul.bf16.gmra.mxu0 %v1161
        %v1190 = vpop.f32.mrf.mxu0
        %v1191 = vadd.f32 0.0, %v1190
        %v1192 = vpop.f32.mrf.mxu0
        %v1193 = vadd.f32 0.0, %v1192
        %1194 = vmatmul.bf16.gmra.mxu0 %v1163
        %v1195 = vpop.f32.mrf.mxu0
        %v1196 = vadd.f32 0.0, %v1195
        %v1197 = vpop.f32.mrf.mxu0
        %v1198 = vadd.f32 0.0, %v1197
        %1199 = vmatmul.bf16.gmra.mxu0 %v1165
        %v1200 = vpop.f32.mrf.mxu0
        %v1201 = vadd.f32 0.0, %v1200
        %v1202 = vpop.f32.mrf.mxu0
        %v1203 = vadd.f32 0.0, %v1202
        %1204 = vmatmul.bf16.gmra.mxu0 %v1167
        %v1205 = vpop.f32.mrf.mxu0
        %v1206 = vadd.f32 0.0, %v1205
        %v1207 = vpop.f32.mrf.mxu0
        %v1208 = vadd.f32 0.0, %v1207
        %1209 = vmatmul.bf16.gmra.mxu0 %v1169
        %v1210 = vpop.f32.mrf.mxu0
        %v1211 = vadd.f32 0.0, %v1210
        %v1212 = vpop.f32.mrf.mxu0
        %1213 = vdwg.mxu0
        %1214 = vmatpush.bf16.msra.mxu0 %v869
        %1215 = vmatpush.bf16.msra.mxu0 %v868
        %1216 = vmatpush.bf16.msra.mxu0 %v867
        %1217 = vmatpush.bf16.msra.mxu0 %v866
        %1218 = vmatpush.bf16.msra.mxu0 %v865
        %1219 = vmatpush.bf16.msra.mxu0 %v864
        %1220 = vmatpush.bf16.msra.mxu0 %v863
        %1221 = vmatpush.bf16.msra.mxu0 %v862
        %1222 = vmatmul.bf16.gmra.mxu0 %v1162
        %v1223 = vpop.f32.mrf.mxu0
        %v1224 = vadd.f32 %v1191, %v1223
        %v1225 = vpop.f32.mrf.mxu0
        %v1226 = vadd.f32 %v1193, %v1225
        %1227 = vmatmul.bf16.gmra.mxu0 %v1164
        %v1228 = vpop.f32.mrf.mxu0
        %v1229 = vadd.f32 %v1196, %v1228
        %v1230 = vpop.f32.mrf.mxu0
        %v1231 = vadd.f32 %v1198, %v1230
        %1232 = vmatmul.bf16.gmra.mxu0 %v1166
        %v1233 = vpop.f32.mrf.mxu0
        %v1234 = vadd.f32 %v1201, %v1233
        %v1235 = vpop.f32.mrf.mxu0
        %v1236 = vadd.f32 %v1203, %v1235
        %1237 = vmatmul.bf16.gmra.mxu0 %v1168
        %v1238 = vpop.f32.mrf.mxu0
        %v1239 = vadd.f32 %v1206, %v1238
        %v1240 = vpop.f32.mrf.mxu0
        %v1241 = vadd.f32 %v1208, %v1240
        %1242 = vmatmul.bf16.gmra.mxu0 %v1170
        %v1243 = vpop.f32.mrf.mxu0
        %v1244 = vadd.f32 %v1211, %v1243
        %v1245 = vpop.f32.mrf.mxu0
        %1246 = vdwg.mxu0
        %v1247 = vmax.f32 %v1115, %v1224
        %v1248 = vmax.f32 %v1116, %v1226
        %v1249 = vmax.f32 %v1117, %v1229
        %v1250 = vmax.f32 %v1118, %v1231
        %v1251 = vmax.f32 %v1119, %v1234
        %v1252 = vmax.f32 %v1120, %v1236
        %v1253 = vmax.f32 %v1121, %v1239
        %v1254 = vmax.f32 %v1122, %v1241
        %v1255 = vmax.f32 %v1123, %v1244
        %s1256 = scalar_lea.vmem %s3, 216
        %v1257 = vld [vmem:[%s1256] sm:$0xff]
        %v1258 = vld [vmem:[%s1256 + $0x8] sm:$0xff]
        %v1259 = vld [vmem:[%s1256 + $0x10] sm:$0xff]
        %v1260 = vld [vmem:[%s1256 + $0x18] sm:$0xff]
        %v1261 = vld [vmem:[%s1256 + $0x20] sm:$0xff]
        %v1262 = vld [vmem:[%s1256 + $0x28] sm:$0xff]
        %v1263 = vld [vmem:[%s1256 + $0x30] sm:$0xff]
        %v1264 = vld [vmem:[%s1256 + $0x38] sm:$0xff]
        %v1265 = vld [vmem:[%s1256 + $0x40] sm:$0x77]
        %v1275 = vunpack.c.l.b16 %v1257
        %v1276 = vunpack.c.h.b16 %v1257
        %v1277 = vunpack.c.l.b16 %v1258
        %v1278 = vunpack.c.h.b16 %v1258
        %v1279 = vunpack.c.l.b16 %v1259
        %v1280 = vunpack.c.h.b16 %v1259
        %v1281 = vunpack.c.l.b16 %v1260
        %v1282 = vunpack.c.h.b16 %v1260
        %v1283 = vunpack.c.l.b16 %v1261
        %v1284 = vunpack.c.h.b16 %v1261
        %v1285 = vunpack.c.l.b16 %v1262
        %v1286 = vunpack.c.h.b16 %v1262
        %v1287 = vunpack.c.l.b16 %v1263
        %v1288 = vunpack.c.h.b16 %v1263
        %v1289 = vunpack.c.l.b16 %v1264
        %v1290 = vunpack.c.h.b16 %v1264
        %v1291 = vunpack.c.l.b16 %v1265
        %v1292 = vunpack.c.h.b16 %v1265
        %v1293 = vpack.c.b16 %v1277, %v1275
        %v1294 = vpack.c.b16 %v1278, %v1276
        %v1295 = vpack.c.b16 %v1281, %v1279
        %v1296 = vpack.c.b16 %v1282, %v1280
        %v1297 = vpack.c.b16 %v1285, %v1283
        %v1298 = vpack.c.b16 %v1286, %v1284
        %v1299 = vpack.c.b16 %v1289, %v1287
        %v1300 = vpack.c.b16 %v1290, %v1288
        %v1301 = vpack.c.b16 %v1291, %v1291
        %v1302 = vpack.c.b16 %v1292, %v1292
        %1313 = vmatpush.bf16.msra.mxu0 %v861
        %1314 = vmatpush.bf16.msra.mxu0 %v860
        %1315 = vmatpush.bf16.msra.mxu0 %v859
        %1316 = vmatpush.bf16.msra.mxu0 %v858
        %1317 = vmatpush.bf16.msra.mxu0 %v857
        %1318 = vmatpush.bf16.msra.mxu0 %v856
        %1319 = vmatpush.bf16.msra.mxu0 %v855
        %1320 = vmatpush.bf16.msra.mxu0 %v854
        %1321 = vmatmul.bf16.gmra.mxu0 %v1293
        %v1322 = vpop.f32.mrf.mxu0
        %v1323 = vadd.f32 0.0, %v1322
        %v1324 = vpop.f32.mrf.mxu0
        %v1325 = vadd.f32 0.0, %v1324
        %1326 = vmatmul.bf16.gmra.mxu0 %v1295
        %v1327 = vpop.f32.mrf.mxu0
        %v1328 = vadd.f32 0.0, %v1327
        %v1329 = vpop.f32.mrf.mxu0
        %v1330 = vadd.f32 0.0, %v1329
        %1331 = vmatmul.bf16.gmra.mxu0 %v1297
        %v1332 = vpop.f32.mrf.mxu0
        %v1333 = vadd.f32 0.0, %v1332
        %v1334 = vpop.f32.mrf.mxu0
        %v1335 = vadd.f32 0.0, %v1334
        %1336 = vmatmul.bf16.gmra.mxu0 %v1299
        %v1337 = vpop.f32.mrf.mxu0
        %v1338 = vadd.f32 0.0, %v1337
        %v1339 = vpop.f32.mrf.mxu0
        %v1340 = vadd.f32 0.0, %v1339
        %1341 = vmatmul.bf16.gmra.mxu0 %v1301
        %v1342 = vpop.f32.mrf.mxu0
        %v1343 = vadd.f32 0.0, %v1342
        %v1344 = vpop.f32.mrf.mxu0
        %1345 = vdwg.mxu0
        %1346 = vmatpush.bf16.msra.mxu0 %v869
        %1347 = vmatpush.bf16.msra.mxu0 %v868
        %1348 = vmatpush.bf16.msra.mxu0 %v867
        %1349 = vmatpush.bf16.msra.mxu0 %v866
        %1350 = vmatpush.bf16.msra.mxu0 %v865
        %1351 = vmatpush.bf16.msra.mxu0 %v864
        %1352 = vmatpush.bf16.msra.mxu0 %v863
        %1353 = vmatpush.bf16.msra.mxu0 %v862
        %1354 = vmatmul.bf16.gmra.mxu0 %v1294
        %v1355 = vpop.f32.mrf.mxu0
        %v1356 = vadd.f32 %v1323, %v1355
        %v1357 = vpop.f32.mrf.mxu0
        %v1358 = vadd.f32 %v1325, %v1357
        %1359 = vmatmul.bf16.gmra.mxu0 %v1296
        %v1360 = vpop.f32.mrf.mxu0
        %v1361 = vadd.f32 %v1328, %v1360
        %v1362 = vpop.f32.mrf.mxu0
        %v1363 = vadd.f32 %v1330, %v1362
        %1364 = vmatmul.bf16.gmra.mxu0 %v1298
        %v1365 = vpop.f32.mrf.mxu0
        %v1366 = vadd.f32 %v1333, %v1365
        %v1367 = vpop.f32.mrf.mxu0
        %v1368 = vadd.f32 %v1335, %v1367
        %1369 = vmatmul.bf16.gmra.mxu0 %v1300
        %v1370 = vpop.f32.mrf.mxu0
        %v1371 = vadd.f32 %v1338, %v1370
        %v1372 = vpop.f32.mrf.mxu0
        %v1373 = vadd.f32 %v1340, %v1372
        %1374 = vmatmul.bf16.gmra.mxu0 %v1302
        %v1375 = vpop.f32.mrf.mxu0
        %v1376 = vadd.f32 %v1343, %v1375
        %v1377 = vpop.f32.mrf.mxu0
        %1378 = vdwg.mxu0
        %v1379 = vmax.f32 %v1247, %v1356
        %v1380 = vmax.f32 %v1248, %v1358
        %v1381 = vmax.f32 %v1249, %v1361
        %v1382 = vmax.f32 %v1250, %v1363
        %v1383 = vmax.f32 %v1251, %v1366
        %v1384 = vmax.f32 %v1252, %v1368
        %v1385 = vmax.f32 %v1253, %v1371
        %v1386 = vmax.f32 %v1254, %v1373
        %v1387 = vmax.f32 %v1255, %v1376
        %v1388 = vmax.f32 %v1379, 0.0
        %v1389 = vmax.f32 %v1380, 0.0
        %v1390 = vmax.f32 %v1381, 0.0
        %v1391 = vmax.f32 %v1382, 0.0
        %v1392 = vmax.f32 %v1383, 0.0
        %v1393 = vmax.f32 %v1384, 0.0
        %v1394 = vmax.f32 %v1385, 0.0
        %v1395 = vmax.f32 %v1386, 0.0
        %v1396 = vmax.f32 %v1387, 0.0
        %vm1406 = vcmask 1042432
        %v1407 = vrot.slane %v1388, 5
        %v1408 = vrot.slane %v1389, 5
        %v1409 = vsel %vm1406, %v1407, %v1408
        %v1410 = vrot.slane %v1390, 5
        %v1411 = vsel %vm1406, %v1408, %v1410
        %v1412 = vrot.slane %v1391, 5
        %v1413 = vsel %vm1406, %v1410, %v1412
        %v1414 = vrot.slane %v1392, 5
        %v1415 = vsel %vm1406, %v1412, %v1414
        %v1416 = vrot.slane %v1393, 5
        %v1417 = vsel %vm1406, %v1414, %v1416
        %v1418 = vrot.slane %v1394, 5
        %v1419 = vsel %vm1406, %v1416, %v1418
        %v1420 = vrot.slane %v1395, 5
        %v1421 = vsel %vm1406, %v1418, %v1420
        %v1422 = vrot.slane %v1396, 5
        %v1423 = vsel %vm1406, %v1420, %v1422
        %vm1434 = vcmask 261123
        %1435 = vst.msk [vmem:[#allocation2 + $0x20] sm:$0xf8] %vm1434, %v1407
        %1436 = vst.msk [vmem:[#allocation2 + $0x30] sm:$0xff] %vm440, %v1409
        %1437 = vst.msk [vmem:[#allocation2 + $0x40] sm:$0xff] %vm440, %v1411
        %1438 = vst.msk [vmem:[#allocation2 + $0x50] sm:$0xff] %vm440, %v1413
        %1439 = vst.msk [vmem:[#allocation2 + $0x60] sm:$0xff] %vm440, %v1415
        %1440 = vst.msk [vmem:[#allocation2 + $0x70] sm:$0xff] %vm440, %v1417
        %1441 = vst.msk [vmem:[#allocation2 + $0x80] sm:$0xff] %vm440, %v1419
        %1442 = vst.msk [vmem:[#allocation2 + $0x90] sm:$0xff] %vm440, %v1421
        %1443 = vst.msk [vmem:[#allocation2 + $0xa0] sm:$0xff] %vm440, %v1423
        %vm1444 = vcmask 253952
        %1445 = vst.msk [vmem:[#allocation2 + $0xb0] sm:$0x1] %vm1444, %v1422
        %v1446 = vrot.slane %v1388, 6
        %v1447 = vrot.slane %v1389, 6
        %v1448 = vsel %vm761, %v1446, %v1447
        %v1449 = vrot.slane %v1390, 6
        %v1450 = vsel %vm761, %v1447, %v1449
        %v1451 = vrot.slane %v1391, 6
        %v1452 = vsel %vm761, %v1449, %v1451
        %v1453 = vrot.slane %v1392, 6
        %v1454 = vsel %vm761, %v1451, %v1453
        %v1455 = vrot.slane %v1393, 6
        %v1456 = vsel %vm761, %v1453, %v1455
        %v1457 = vrot.slane %v1394, 6
        %v1458 = vsel %vm761, %v1455, %v1457
        %v1459 = vrot.slane %v1395, 6
        %v1460 = vsel %vm761, %v1457, %v1459
        %v1461 = vrot.slane %v1396, 6
        %v1462 = vsel %vm761, %v1459, %v1461
        %1463 = vrot.lane.b32.xlu0 %v1446, 32
        %v1464 = vpop.permute.xlu0 %1463
        %1465 = vrot.lane.b32.xlu0 %v1448, 32
        %v1466 = vpop.permute.xlu0 %1465
        %1467 = vrot.lane.b32.xlu0 %v1450, 32
        %v1468 = vpop.permute.xlu0 %1467
        %1469 = vrot.lane.b32.xlu0 %v1452, 32
        %v1470 = vpop.permute.xlu0 %1469
        %1471 = vrot.lane.b32.xlu0 %v1454, 32
        %v1472 = vpop.permute.xlu0 %1471
        %1473 = vrot.lane.b32.xlu0 %v1456, 32
        %v1474 = vpop.permute.xlu0 %1473
        %1475 = vrot.lane.b32.xlu0 %v1458, 32
        %v1476 = vpop.permute.xlu0 %1475
        %1477 = vrot.lane.b32.xlu0 %v1460, 32
        %v1478 = vpop.permute.xlu0 %1477
        %1479 = vrot.lane.b32.xlu0 %v1462, 32
        %v1480 = vpop.permute.xlu0 %1479
        %vm1490 = vcmask 523522
        %1491 = vst.msk [vmem:[#allocation2 + $0x20] sm:$0xfc] %vm1490, %v1464
        %vm1492 = vcmask 523520
        %1493 = vst.msk [vmem:[#allocation2 + $0x30] sm:$0xff] %vm1492, %v1466
        %1494 = vst.msk [vmem:[#allocation2 + $0x40] sm:$0xff] %vm1492, %v1468
        %1495 = vst.msk [vmem:[#allocation2 + $0x50] sm:$0xff] %vm1492, %v1470
        %1496 = vst.msk [vmem:[#allocation2 + $0x60] sm:$0xff] %vm1492, %v1472
        %1497 = vst.msk [vmem:[#allocation2 + $0x70] sm:$0xff] %vm1492, %v1474
        %1498 = vst.msk [vmem:[#allocation2 + $0x80] sm:$0xff] %vm1492, %v1476
        %1499 = vst.msk [vmem:[#allocation2 + $0x90] sm:$0xff] %vm1492, %v1478
        %1500 = vst.msk [vmem:[#allocation2 + $0xa0] sm:$0xff] %vm1492, %v1480
        %vm1501 = vcmask 1040384
        %v1502 = vrot.slane %v1388, 7
        %v1503 = vrot.slane %v1389, 7
        %v1504 = vsel %vm1501, %v1502, %v1503
        %v1505 = vrot.slane %v1390, 7
        %v1506 = vsel %vm1501, %v1503, %v1505
        %v1507 = vrot.slane %v1391, 7
        %v1508 = vsel %vm1501, %v1505, %v1507
        %v1509 = vrot.slane %v1392, 7
        %v1510 = vsel %vm1501, %v1507, %v1509
        %v1511 = vrot.slane %v1393, 7
        %v1512 = vsel %vm1501, %v1509, %v1511
        %v1513 = vrot.slane %v1394, 7
        %v1514 = vsel %vm1501, %v1511, %v1513
        %v1515 = vrot.slane %v1395, 7
        %v1516 = vsel %vm1501, %v1513, %v1515
        %v1517 = vrot.slane %v1396, 7
        %v1518 = vsel %vm1501, %v1515, %v1517
        %1519 = vrot.lane.b32.xlu0 %v1502, 64
        %v1520 = vpop.permute.xlu0 %1519
        %1521 = vrot.lane.b32.xlu0 %v1504, 64
        %v1522 = vpop.permute.xlu0 %1521
        %1523 = vrot.lane.b32.xlu0 %v1506, 64
        %v1524 = vpop.permute.xlu0 %1523
        %1525 = vrot.lane.b32.xlu0 %v1508, 64
        %v1526 = vpop.permute.xlu0 %1525
        %1527 = vrot.lane.b32.xlu0 %v1510, 64
        %v1528 = vpop.permute.xlu0 %1527
        %1529 = vrot.lane.b32.xlu0 %v1512, 64
        %v1530 = vpop.permute.xlu0 %1529
        %1531 = vrot.lane.b32.xlu0 %v1514, 64
        %v1532 = vpop.permute.xlu0 %1531
        %1533 = vrot.lane.b32.xlu0 %v1516, 64
        %v1534 = vpop.permute.xlu0 %1533
        %1535 = vrot.lane.b32.xlu0 %v1518, 64
        %v1536 = vpop.permute.xlu0 %1535
        %vm1546 = vcmask 785921
        %1547 = vst.msk [vmem:[#allocation2 + $0x20] sm:$0xfe] %vm1546, %v1520
        %vm1548 = vcmask 785920
        %1549 = vst.msk [vmem:[#allocation2 + $0x30] sm:$0xff] %vm1548, %v1522
        %1550 = vst.msk [vmem:[#allocation2 + $0x40] sm:$0xff] %vm1548, %v1524
        %1551 = vst.msk [vmem:[#allocation2 + $0x50] sm:$0xff] %vm1548, %v1526
        %1552 = vst.msk [vmem:[#allocation2 + $0x60] sm:$0xff] %vm1548, %v1528
        %1553 = vst.msk [vmem:[#allocation2 + $0x70] sm:$0xff] %vm1548, %v1530
        %1554 = vst.msk [vmem:[#allocation2 + $0x80] sm:$0xff] %vm1548, %v1532
        %1555 = vst.msk [vmem:[#allocation2 + $0x90] sm:$0xff] %vm1548, %v1534
        %vm1556 = vcmask 784896
        %1557 = vst.msk [vmem:[#allocation2 + $0xa0] sm:$0x7f] %vm1556, %v1536
        %1558 = vrot.lane.b32.xlu0 %v1388, 96
        %v1559 = vpop.permute.xlu0 %1558
        %1560 = vrot.lane.b32.xlu0 %v1389, 96
        %v1561 = vpop.permute.xlu0 %1560
        %1562 = vrot.lane.b32.xlu0 %v1390, 96
        %v1563 = vpop.permute.xlu0 %1562
        %1564 = vrot.lane.b32.xlu0 %v1391, 96
        %v1565 = vpop.permute.xlu0 %1564
        %1566 = vrot.lane.b32.xlu0 %v1392, 96
        %v1567 = vpop.permute.xlu0 %1566
        %1568 = vrot.lane.b32.xlu0 %v1393, 96
        %v1569 = vpop.permute.xlu0 %1568
        %1570 = vrot.lane.b32.xlu0 %v1394, 96
        %v1571 = vpop.permute.xlu0 %1570
        %1572 = vrot.lane.b32.xlu0 %v1395, 96
        %v1573 = vpop.permute.xlu0 %1572
        %1574 = vrot.lane.b32.xlu0 %v1396, 96
        %v1575 = vpop.permute.xlu0 %1574
        %vm1585 = vcmask 1048320
        %1586 = vst.msk [vmem:[#allocation2 + $0x20] sm:$0xff] %vm1585, %v1559
        %1587 = vst.msk [vmem:[#allocation2 + $0x30] sm:$0xff] %vm1585, %v1561
        %1588 = vst.msk [vmem:[#allocation2 + $0x40] sm:$0xff] %vm1585, %v1563
        %1589 = vst.msk [vmem:[#allocation2 + $0x50] sm:$0xff] %vm1585, %v1565
        %1590 = vst.msk [vmem:[#allocation2 + $0x60] sm:$0xff] %vm1585, %v1567
        %1591 = vst.msk [vmem:[#allocation2 + $0x70] sm:$0xff] %vm1585, %v1569
        %1592 = vst.msk [vmem:[#allocation2 + $0x80] sm:$0xff] %vm1585, %v1571
        %1593 = vst.msk [vmem:[#allocation2 + $0x90] sm:$0xff] %vm1585, %v1573
        %vm1594 = vcmask 1046272
        %1595 = vst.msk [vmem:[#allocation2 + $0xa0] sm:$0x3f] %vm1594, %v1575
        %vm1596 = vcmask 1046528
        %v1597 = vrot.slane %v1388, 1
        %v1598 = vrot.slane %v1389, 1
        %v1599 = vsel %vm1596, %v1597, %v1598
        %v1600 = vrot.slane %v1390, 1
        %v1601 = vsel %vm1596, %v1598, %v1600
        %v1602 = vrot.slane %v1391, 1
        %v1603 = vsel %vm1596, %v1600, %v1602
        %v1604 = vrot.slane %v1392, 1
        %v1605 = vsel %vm1596, %v1602, %v1604
        %v1606 = vrot.slane %v1393, 1
        %v1607 = vsel %vm1596, %v1604, %v1606
        %v1608 = vrot.slane %v1394, 1
        %v1609 = vsel %vm1596, %v1606, %v1608
        %v1610 = vrot.slane %v1395, 1
        %v1611 = vsel %vm1596, %v1608, %v1610
        %v1612 = vrot.slane %v1396, 1
        %v1613 = vsel %vm1596, %v1610, %v1612
        %vm1624 = vcmask 261127
        %1625 = vst.msk [vmem:[#allocation2 + $0x18] sm:$0x80] %vm1624, %v1597
        %1626 = vst.msk [vmem:[#allocation2 + $0x28] sm:$0xff] %vm440, %v1599
        %1627 = vst.msk [vmem:[#allocation2 + $0x38] sm:$0xff] %vm440, %v1601
        %1628 = vst.msk [vmem:[#allocation2 + $0x48] sm:$0xff] %vm440, %v1603
        %1629 = vst.msk [vmem:[#allocation2 + $0x58] sm:$0xff] %vm440, %v1605
        %1630 = vst.msk [vmem:[#allocation2 + $0x68] sm:$0xff] %vm440, %v1607
        %1631 = vst.msk [vmem:[#allocation2 + $0x78] sm:$0xff] %vm440, %v1609
        %1632 = vst.msk [vmem:[#allocation2 + $0x88] sm:$0xff] %vm440, %v1611
        %1633 = vst.msk [vmem:[#allocation2 + $0x98] sm:$0xff] %vm440, %v1613
        %vm1634 = vcmask 258048
        %1635 = vst.msk [vmem:[#allocation2 + $0xa8] sm:$0x1f] %vm1634, %v1612
        %v1636 = vld [vmem:[%s437 + $0x80] sm:$0xf]
        %v1637 = vld [vmem:[%s437 + $0x84] sm:$0xf]
        %v1638 = vld [vmem:[%s437 + $0x88] sm:$0xf]
        %v1639 = vld [vmem:[%s437 + $0x8c] sm:$0xf]
        %v1640 = vld [vmem:[%s437 + $0x90] sm:$0xf]
        %v1641 = vld [vmem:[%s437 + $0x94] sm:$0xf]
        %v1642 = vld [vmem:[%s437 + $0x98] sm:$0xf]
        %v1643 = vld [vmem:[%s437 + $0x9c] sm:$0xf]
        %v1644 = vld [vmem:[%s437 + $0xa0] sm:$0xf]
        %v1645 = vld [vmem:[%s437 + $0xa4] sm:$0xf]
        %v1646 = vld [vmem:[%s437 + $0xa8] sm:$0xf]
        %v1647 = vld [vmem:[%s437 + $0xac] sm:$0xf]
        %v1648 = vld [vmem:[%s437 + $0xb0] sm:$0xf]
        %v1649 = vld [vmem:[%s437 + $0xb4] sm:$0xf]
        %v1650 = vld [vmem:[%s437 + $0xb8] sm:$0xf]
        %v1651 = vld [vmem:[%s437 + $0xbc] sm:$0xf]
        %v1652 = vld [vmem:[%s437 + $0xc0] sm:$0xf]
        %v1653 = vld [vmem:[%s437 + $0xc4] sm:$0xf]
        %v1654 = vld [vmem:[%s437 + $0xc8] sm:$0xf]
        %v1655 = vld [vmem:[%s437 + $0xcc] sm:$0xf]
        %v1656 = vld [vmem:[%s437 + $0xd0] sm:$0xf]
        %v1657 = vld [vmem:[%s437 + $0xd4] sm:$0xf]
        %v1658 = vld [vmem:[%s437 + $0xd8] sm:$0xf]
        %v1659 = vld [vmem:[%s437 + $0xdc] sm:$0xf]
        %v1660 = vld [vmem:[%s437 + $0xe0] sm:$0xf]
        %v1661 = vld [vmem:[%s437 + $0xe4] sm:$0xf]
        %v1662 = vld [vmem:[%s437 + $0xe8] sm:$0xf]
        %v1663 = vld [vmem:[%s437 + $0xec] sm:$0xf]
        %v1664 = vld [vmem:[%s437 + $0xf0] sm:$0xf]
        %v1665 = vld [vmem:[%s437 + $0xf4] sm:$0xf]
        %v1666 = vld [vmem:[%s437 + $0xf8] sm:$0xf]
        %v1667 = vld [vmem:[%s437 + $0xfc] sm:$0xf]
        %v1668 = vld [vmem:[%s1] sm:$0xf]
        %v1669 = vld [vmem:[%s1 + $0x4] sm:$0xf]
        %v1670 = vld [vmem:[%s1 + $0x8] sm:$0xf]
        %v1671 = vld [vmem:[%s1 + $0xc] sm:$0xf]
        %v1672 = vld [vmem:[%s1 + $0x10] sm:$0xf]
        %v1673 = vld [vmem:[%s1 + $0x14] sm:$0xf]
        %v1674 = vld [vmem:[%s1 + $0x18] sm:$0xf]
        %v1675 = vld [vmem:[%s1 + $0x1c] sm:$0xf]
        %v1676 = vld [vmem:[%s1 + $0x20] sm:$0xf]
        %v1677 = vld [vmem:[%s1 + $0x24] sm:$0xf]
        %v1678 = vld [vmem:[%s1 + $0x28] sm:$0xf]
        %v1679 = vld [vmem:[%s1 + $0x2c] sm:$0xf]
        %v1680 = vld [vmem:[%s1 + $0x30] sm:$0x3]
        %v1713 = vunpack.c.l.b16 %v1636
        %v1714 = vunpack.c.l.b16 %v1637
        %v1715 = vunpack.c.l.b16 %v1638
        %v1716 = vunpack.c.l.b16 %v1639
        %v1717 = vunpack.c.l.b16 %v1640
        %v1718 = vunpack.c.l.b16 %v1641
        %v1719 = vunpack.c.l.b16 %v1642
        %v1720 = vunpack.c.l.b16 %v1643
        %v1721 = vunpack.c.l.b16 %v1644
        %v1722 = vunpack.c.l.b16 %v1645
        %v1723 = vunpack.c.l.b16 %v1646
        %v1724 = vunpack.c.l.b16 %v1647
        %v1725 = vunpack.c.l.b16 %v1648
        %v1726 = vunpack.c.l.b16 %v1649
        %v1727 = vunpack.c.l.b16 %v1650
        %v1728 = vunpack.c.l.b16 %v1651
        %v1729 = vunpack.c.l.b16 %v1652
        %v1730 = vunpack.c.l.b16 %v1653
        %v1731 = vunpack.c.l.b16 %v1654
        %v1732 = vunpack.c.l.b16 %v1655
        %v1733 = vunpack.c.l.b16 %v1656
        %v1734 = vunpack.c.l.b16 %v1657
        %v1735 = vunpack.c.l.b16 %v1658
        %v1736 = vunpack.c.l.b16 %v1659
        %v1737 = vunpack.c.l.b16 %v1660
        %v1738 = vunpack.c.l.b16 %v1661
        %v1739 = vunpack.c.l.b16 %v1662
        %v1740 = vunpack.c.l.b16 %v1663
        %v1741 = vunpack.c.l.b16 %v1664
        %v1742 = vunpack.c.l.b16 %v1665
        %v1743 = vunpack.c.l.b16 %v1666
        %v1744 = vunpack.c.l.b16 %v1667
        %v1745 = vpack.c.b16 %v1714, %v1713
        %v1746 = vpack.c.b16 %v1716, %v1715
        %v1747 = vpack.c.b16 %v1718, %v1717
        %v1748 = vpack.c.b16 %v1720, %v1719
        %v1749 = vpack.c.b16 %v1722, %v1721
        %v1750 = vpack.c.b16 %v1724, %v1723
        %v1751 = vpack.c.b16 %v1726, %v1725
        %v1752 = vpack.c.b16 %v1728, %v1727
        %v1753 = vpack.c.b16 %v1730, %v1729
        %v1754 = vpack.c.b16 %v1732, %v1731
        %v1755 = vpack.c.b16 %v1734, %v1733
        %v1756 = vpack.c.b16 %v1736, %v1735
        %v1757 = vpack.c.b16 %v1738, %v1737
        %v1758 = vpack.c.b16 %v1740, %v1739
        %v1759 = vpack.c.b16 %v1742, %v1741
        %v1760 = vpack.c.b16 %v1744, %v1743
        %v1774 = vunpack.c.l.b16 %v1668
        %v1775 = vunpack.c.l.b16 %v1669
        %v1776 = vunpack.c.l.b16 %v1670
        %v1777 = vunpack.c.l.b16 %v1671
        %v1778 = vunpack.c.l.b16 %v1672
        %v1779 = vunpack.c.l.b16 %v1673
        %v1780 = vunpack.c.l.b16 %v1674
        %v1781 = vunpack.c.l.b16 %v1675
        %v1782 = vunpack.c.l.b16 %v1676
        %v1783 = vunpack.c.l.b16 %v1677
        %v1784 = vunpack.c.l.b16 %v1678
        %v1785 = vunpack.c.l.b16 %v1679
        %v1786 = vunpack.c.l.b16 %v1680
        %v1787 = vpack.c.b16 %v1775, %v1774
        %v1788 = vpack.c.b16 %v1777, %v1776
        %v1789 = vpack.c.b16 %v1779, %v1778
        %v1790 = vpack.c.b16 %v1781, %v1780
        %v1791 = vpack.c.b16 %v1783, %v1782
        %v1792 = vpack.c.b16 %v1785, %v1784
        %v1793 = vpack.c.b16 %v1786, %v1786
        %v1801 = vsel %vm712, %v1745, 0
        %v1804 = vsel %vm712, %v1746, 0
        %v1807 = vsel %vm712, %v1747, 0
        %v1810 = vsel %vm712, %v1748, 0
        %v1813 = vsel %vm712, %v1749, 0
        %v1816 = vsel %vm712, %v1750, 0
        %v1819 = vsel %vm712, %v1751, 0
        %v1822 = vsel %vm712, %v1752, 0
        %v1825 = vsel %vm712, %v1753, 0
        %v1828 = vsel %vm712, %v1754, 0
        %v1831 = vsel %vm712, %v1755, 0
        %v1834 = vsel %vm712, %v1756, 0
        %v1837 = vsel %vm712, %v1757, 0
        %v1840 = vsel %vm712, %v1758, 0
        %v1843 = vsel %vm712, %v1759, 0
        %v1846 = vsel %vm712, %v1760, 0
        %v1849 = vsel %vm761, %v1793, 0
        %1851 = vmatpush.bf16.msra.mxu0 0
        %1852 = vmatpush.bf16.msra.mxu0 %v1849
        %1853 = vmatpush.bf16.msra.mxu0 %v1792
        %1854 = vmatpush.bf16.msra.mxu0 %v1791
        %1855 = vmatpush.bf16.msra.mxu0 %v1790
        %1856 = vmatpush.bf16.msra.mxu0 %v1789
        %1857 = vmatpush.bf16.msra.mxu0 %v1788
        %1858 = vmatpush.bf16.msra.mxu0 %v1787
        %1859 = vmatmul.bf16.gmra.mxu0 %v1801
        %v1860 = vpop.f32.mrf.mxu0
        %v1861 = vadd.f32 %v591, %v1860
        %v1862 = vpop.f32.mrf.mxu0
        %v1863 = vadd.f32 %v591, %v1862
        %1864 = vmatmul.bf16.gmra.mxu0 %v1804
        %v1865 = vpop.f32.mrf.mxu0
        %v1866 = vadd.f32 %v591, %v1865
        %v1867 = vpop.f32.mrf.mxu0
        %v1868 = vadd.f32 %v591, %v1867
        %1869 = vmatmul.bf16.gmra.mxu0 %v1807
        %v1870 = vpop.f32.mrf.mxu0
        %v1871 = vadd.f32 %v591, %v1870
        %v1872 = vpop.f32.mrf.mxu0
        %v1873 = vadd.f32 %v591, %v1872
        %1874 = vmatmul.bf16.gmra.mxu0 %v1810
        %v1875 = vpop.f32.mrf.mxu0
        %v1876 = vadd.f32 %v591, %v1875
        %v1877 = vpop.f32.mrf.mxu0
        %v1878 = vadd.f32 %v591, %v1877
        %1879 = vmatmul.bf16.gmra.mxu0 %v1813
        %v1880 = vpop.f32.mrf.mxu0
        %v1881 = vadd.f32 %v591, %v1880
        %v1882 = vpop.f32.mrf.mxu0
        %v1883 = vadd.f32 %v591, %v1882
        %1884 = vmatmul.bf16.gmra.mxu0 %v1816
        %v1885 = vpop.f32.mrf.mxu0
        %v1886 = vadd.f32 %v591, %v1885
        %v1887 = vpop.f32.mrf.mxu0
        %v1888 = vadd.f32 %v591, %v1887
        %1889 = vmatmul.bf16.gmra.mxu0 %v1819
        %v1890 = vpop.f32.mrf.mxu0
        %v1891 = vadd.f32 %v591, %v1890
        %v1892 = vpop.f32.mrf.mxu0
        %v1893 = vadd.f32 %v591, %v1892
        %1894 = vmatmul.bf16.gmra.mxu0 %v1822
        %v1895 = vpop.f32.mrf.mxu0
        %v1896 = vadd.f32 %v591, %v1895
        %v1897 = vpop.f32.mrf.mxu0
        %v1898 = vadd.f32 %v591, %v1897
        %1899 = vmatmul.bf16.gmra.mxu0 %v1825
        %v1900 = vpop.f32.mrf.mxu0
        %v1901 = vadd.f32 %v591, %v1900
        %v1902 = vpop.f32.mrf.mxu0
        %v1903 = vadd.f32 %v591, %v1902
        %1904 = vmatmul.bf16.gmra.mxu0 %v1828
        %v1905 = vpop.f32.mrf.mxu0
        %v1906 = vadd.f32 %v591, %v1905
        %v1907 = vpop.f32.mrf.mxu0
        %v1908 = vadd.f32 %v591, %v1907
        %1909 = vmatmul.bf16.gmra.mxu0 %v1831
        %v1910 = vpop.f32.mrf.mxu0
        %v1911 = vadd.f32 %v591, %v1910
        %v1912 = vpop.f32.mrf.mxu0
        %v1913 = vadd.f32 %v591, %v1912
        %1914 = vmatmul.bf16.gmra.mxu0 %v1834
        %v1915 = vpop.f32.mrf.mxu0
        %v1916 = vadd.f32 %v591, %v1915
        %v1917 = vpop.f32.mrf.mxu0
        %v1918 = vadd.f32 %v591, %v1917
        %1919 = vmatmul.bf16.gmra.mxu0 %v1837
        %v1920 = vpop.f32.mrf.mxu0
        %v1921 = vadd.f32 %v591, %v1920
        %v1922 = vpop.f32.mrf.mxu0
        %v1923 = vadd.f32 %v591, %v1922
        %1924 = vmatmul.bf16.gmra.mxu0 %v1840
        %v1925 = vpop.f32.mrf.mxu0
        %v1926 = vadd.f32 %v591, %v1925
        %v1927 = vpop.f32.mrf.mxu0
        %v1928 = vadd.f32 %v591, %v1927
        %1929 = vmatmul.bf16.gmra.mxu0 %v1843
        %v1930 = vpop.f32.mrf.mxu0
        %v1931 = vadd.f32 %v591, %v1930
        %v1932 = vpop.f32.mrf.mxu0
        %v1933 = vadd.f32 %v591, %v1932
        %1934 = vmatmul.bf16.gmra.mxu0 %v1846
        %v1935 = vpop.f32.mrf.mxu0
        %v1936 = vadd.f32 %v591, %v1935
        %v1937 = vpop.f32.mrf.mxu0
        %v1938 = vadd.f32 %v591, %v1937
        %1939 = vdwg.mxu0
        %v1940 = vpack.c.bf16 %v1863, %v1861
        %v1941 = vpack.c.bf16 %v1868, %v1866
        %v1942 = vpack.c.bf16 %v1873, %v1871
        %v1943 = vpack.c.bf16 %v1878, %v1876
        %v1944 = vpack.c.bf16 %v1883, %v1881
        %v1945 = vpack.c.bf16 %v1888, %v1886
        %v1946 = vpack.c.bf16 %v1893, %v1891
        %v1947 = vpack.c.bf16 %v1898, %v1896
        %v1948 = vpack.c.bf16 %v1903, %v1901
        %v1949 = vpack.c.bf16 %v1908, %v1906
        %v1950 = vpack.c.bf16 %v1913, %v1911
        %v1951 = vpack.c.bf16 %v1918, %v1916
        %v1952 = vpack.c.bf16 %v1923, %v1921
        %v1953 = vpack.c.bf16 %v1928, %v1926
        %v1954 = vpack.c.bf16 %v1933, %v1931
        %v1955 = vpack.c.bf16 %v1938, %v1936
        %v1956 = vld [vmem:[%s3] sm:$0xff]
        %v1957 = vld [vmem:[%s3 + $0x8] sm:$0xff]
        %v1958 = vld [vmem:[%s3 + $0x10] sm:$0xff]
        %v1959 = vld [vmem:[%s3 + $0x18] sm:$0xff]
        %v1960 = vld [vmem:[%s3 + $0x20] sm:$0xff]
        %v1961 = vld [vmem:[%s3 + $0x28] sm:$0xff]
        %v1962 = vld [vmem:[%s3 + $0x30] sm:$0xff]
        %v1963 = vld [vmem:[%s3 + $0x38] sm:$0xff]
        %v1964 = vld [vmem:[%s3 + $0x40] sm:$0x77]
        %v1974 = vunpack.c.l.b16 %v1956
        %v1975 = vunpack.c.h.b16 %v1956
        %v1976 = vunpack.c.l.b16 %v1957
        %v1977 = vunpack.c.h.b16 %v1957
        %v1978 = vunpack.c.l.b16 %v1958
        %v1979 = vunpack.c.h.b16 %v1958
        %v1980 = vunpack.c.l.b16 %v1959
        %v1981 = vunpack.c.h.b16 %v1959
        %v1982 = vunpack.c.l.b16 %v1960
        %v1983 = vunpack.c.h.b16 %v1960
        %v1984 = vunpack.c.l.b16 %v1961
        %v1985 = vunpack.c.h.b16 %v1961
        %v1986 = vunpack.c.l.b16 %v1962
        %v1987 = vunpack.c.h.b16 %v1962
        %v1988 = vunpack.c.l.b16 %v1963
        %v1989 = vunpack.c.h.b16 %v1963
        %v1990 = vunpack.c.l.b16 %v1964
        %v1991 = vunpack.c.h.b16 %v1964
        %v1992 = vpack.c.b16 %v1976, %v1974
        %v1993 = vpack.c.b16 %v1977, %v1975
        %v1994 = vpack.c.b16 %v1980, %v1978
        %v1995 = vpack.c.b16 %v1981, %v1979
        %v1996 = vpack.c.b16 %v1984, %v1982
        %v1997 = vpack.c.b16 %v1985, %v1983
        %v1998 = vpack.c.b16 %v1988, %v1986
        %v1999 = vpack.c.b16 %v1989, %v1987
        %v2000 = vpack.c.b16 %v1990, %v1990
        %v2001 = vpack.c.b16 %v1991, %v1991
        %2012 = vmatpush.bf16.msra.mxu0 %v1947
        %2013 = vmatpush.bf16.msra.mxu0 %v1946
        %2014 = vmatpush.bf16.msra.mxu0 %v1945
        %2015 = vmatpush.bf16.msra.mxu0 %v1944
        %2016 = vmatpush.bf16.msra.mxu0 %v1943
        %2017 = vmatpush.bf16.msra.mxu0 %v1942
        %2018 = vmatpush.bf16.msra.mxu0 %v1941
        %2019 = vmatpush.bf16.msra.mxu0 %v1940
        %2020 = vmatmul.bf16.gmra.mxu0 %v1992
        %v2021 = vpop.f32.mrf.mxu0
        %v2022 = vadd.f32 0.0, %v2021
        %v2023 = vpop.f32.mrf.mxu0
        %v2024 = vadd.f32 0.0, %v2023
        %2025 = vmatmul.bf16.gmra.mxu0 %v1994
        %v2026 = vpop.f32.mrf.mxu0
        %v2027 = vadd.f32 0.0, %v2026
        %v2028 = vpop.f32.mrf.mxu0
        %v2029 = vadd.f32 0.0, %v2028
        %2030 = vmatmul.bf16.gmra.mxu0 %v1996
        %v2031 = vpop.f32.mrf.mxu0
        %v2032 = vadd.f32 0.0, %v2031
        %v2033 = vpop.f32.mrf.mxu0
        %v2034 = vadd.f32 0.0, %v2033
        %2035 = vmatmul.bf16.gmra.mxu0 %v1998
        %v2036 = vpop.f32.mrf.mxu0
        %v2037 = vadd.f32 0.0, %v2036
        %v2038 = vpop.f32.mrf.mxu0
        %v2039 = vadd.f32 0.0, %v2038
        %2040 = vmatmul.bf16.gmra.mxu0 %v2000
        %v2041 = vpop.f32.mrf.mxu0
        %v2042 = vadd.f32 0.0, %v2041
        %v2043 = vpop.f32.mrf.mxu0
        %2044 = vdwg.mxu0
        %2045 = vmatpush.bf16.msra.mxu0 %v1955
        %2046 = vmatpush.bf16.msra.mxu0 %v1954
        %2047 = vmatpush.bf16.msra.mxu0 %v1953
        %2048 = vmatpush.bf16.msra.mxu0 %v1952
        %2049 = vmatpush.bf16.msra.mxu0 %v1951
        %2050 = vmatpush.bf16.msra.mxu0 %v1950
        %2051 = vmatpush.bf16.msra.mxu0 %v1949
        %2052 = vmatpush.bf16.msra.mxu0 %v1948
        %2053 = vmatmul.bf16.gmra.mxu0 %v1993
        %v2054 = vpop.f32.mrf.mxu0
        %v2055 = vadd.f32 %v2022, %v2054
        %v2056 = vpop.f32.mrf.mxu0
        %v2057 = vadd.f32 %v2024, %v2056
        %2058 = vmatmul.bf16.gmra.mxu0 %v1995
        %v2059 = vpop.f32.mrf.mxu0
        %v2060 = vadd.f32 %v2027, %v2059
        %v2061 = vpop.f32.mrf.mxu0
        %v2062 = vadd.f32 %v2029, %v2061
        %2063 = vmatmul.bf16.gmra.mxu0 %v1997
        %v2064 = vpop.f32.mrf.mxu0
        %v2065 = vadd.f32 %v2032, %v2064
        %v2066 = vpop.f32.mrf.mxu0
        %v2067 = vadd.f32 %v2034, %v2066
        %2068 = vmatmul.bf16.gmra.mxu0 %v1999
        %v2069 = vpop.f32.mrf.mxu0
        %v2070 = vadd.f32 %v2037, %v2069
        %v2071 = vpop.f32.mrf.mxu0
        %v2072 = vadd.f32 %v2039, %v2071
        %2073 = vmatmul.bf16.gmra.mxu0 %v2001
        %v2074 = vpop.f32.mrf.mxu0
        %v2075 = vadd.f32 %v2042, %v2074
        %v2076 = vpop.f32.mrf.mxu0
        %2077 = vdwg.mxu0
        %v2078 = vld [vmem:[%s992] sm:$0xff]
        %v2079 = vld [vmem:[%s992 + $0x8] sm:$0xff]
        %v2080 = vld [vmem:[%s992 + $0x10] sm:$0xff]
        %v2081 = vld [vmem:[%s992 + $0x18] sm:$0xff]
        %v2082 = vld [vmem:[%s992 + $0x20] sm:$0xff]
        %v2083 = vld [vmem:[%s992 + $0x28] sm:$0xff]
        %v2084 = vld [vmem:[%s992 + $0x30] sm:$0xff]
        %v2085 = vld [vmem:[%s992 + $0x38] sm:$0xff]
        %v2086 = vld [vmem:[%s992 + $0x40] sm:$0x77]
        %v2096 = vunpack.c.l.b16 %v2078
        %v2097 = vunpack.c.h.b16 %v2078
        %v2098 = vunpack.c.l.b16 %v2079
        %v2099 = vunpack.c.h.b16 %v2079
        %v2100 = vunpack.c.l.b16 %v2080
        %v2101 = vunpack.c.h.b16 %v2080
        %v2102 = vunpack.c.l.b16 %v2081
        %v2103 = vunpack.c.h.b16 %v2081
        %v2104 = vunpack.c.l.b16 %v2082
        %v2105 = vunpack.c.h.b16 %v2082
        %v2106 = vunpack.c.l.b16 %v2083
        %v2107 = vunpack.c.h.b16 %v2083
        %v2108 = vunpack.c.l.b16 %v2084
        %v2109 = vunpack.c.h.b16 %v2084
        %v2110 = vunpack.c.l.b16 %v2085
        %v2111 = vunpack.c.h.b16 %v2085
        %v2112 = vunpack.c.l.b16 %v2086
        %v2113 = vunpack.c.h.b16 %v2086
        %v2114 = vpack.c.b16 %v2098, %v2096
        %v2115 = vpack.c.b16 %v2099, %v2097
        %v2116 = vpack.c.b16 %v2102, %v2100
        %v2117 = vpack.c.b16 %v2103, %v2101
        %v2118 = vpack.c.b16 %v2106, %v2104
        %v2119 = vpack.c.b16 %v2107, %v2105
        %v2120 = vpack.c.b16 %v2110, %v2108
        %v2121 = vpack.c.b16 %v2111, %v2109
        %v2122 = vpack.c.b16 %v2112, %v2112
        %v2123 = vpack.c.b16 %v2113, %v2113
        %2134 = vmatpush.bf16.msra.mxu0 %v1947
        %2135 = vmatpush.bf16.msra.mxu0 %v1946
        %2136 = vmatpush.bf16.msra.mxu0 %v1945
        %2137 = vmatpush.bf16.msra.mxu0 %v1944
        %2138 = vmatpush.bf16.msra.mxu0 %v1943
        %2139 = vmatpush.bf16.msra.mxu0 %v1942
        %2140 = vmatpush.bf16.msra.mxu0 %v1941
        %2141 = vmatpush.bf16.msra.mxu0 %v1940
        %2142 = vmatmul.bf16.gmra.mxu0 %v2114
        %v2143 = vpop.f32.mrf.mxu0
        %v2144 = vadd.f32 0.0, %v2143
        %v2145 = vpop.f32.mrf.mxu0
        %v2146 = vadd.f32 0.0, %v2145
        %2147 = vmatmul.bf16.gmra.mxu0 %v2116
        %v2148 = vpop.f32.mrf.mxu0
        %v2149 = vadd.f32 0.0, %v2148
        %v2150 = vpop.f32.mrf.mxu0
        %v2151 = vadd.f32 0.0, %v2150
        %2152 = vmatmul.bf16.gmra.mxu0 %v2118
        %v2153 = vpop.f32.mrf.mxu0
        %v2154 = vadd.f32 0.0, %v2153
        %v2155 = vpop.f32.mrf.mxu0
        %v2156 = vadd.f32 0.0, %v2155
        %2157 = vmatmul.bf16.gmra.mxu0 %v2120
        %v2158 = vpop.f32.mrf.mxu0
        %v2159 = vadd.f32 0.0, %v2158
        %v2160 = vpop.f32.mrf.mxu0
        %v2161 = vadd.f32 0.0, %v2160
        %2162 = vmatmul.bf16.gmra.mxu0 %v2122
        %v2163 = vpop.f32.mrf.mxu0
        %v2164 = vadd.f32 0.0, %v2163
        %v2165 = vpop.f32.mrf.mxu0
        %2166 = vdwg.mxu0
        %2167 = vmatpush.bf16.msra.mxu0 %v1955
        %2168 = vmatpush.bf16.msra.mxu0 %v1954
        %2169 = vmatpush.bf16.msra.mxu0 %v1953
        %2170 = vmatpush.bf16.msra.mxu0 %v1952
        %2171 = vmatpush.bf16.msra.mxu0 %v1951
        %2172 = vmatpush.bf16.msra.mxu0 %v1950
        %2173 = vmatpush.bf16.msra.mxu0 %v1949
        %2174 = vmatpush.bf16.msra.mxu0 %v1948
        %2175 = vmatmul.bf16.gmra.mxu0 %v2115
        %v2176 = vpop.f32.mrf.mxu0
        %v2177 = vadd.f32 %v2144, %v2176
        %v2178 = vpop.f32.mrf.mxu0
        %v2179 = vadd.f32 %v2146, %v2178
        %2180 = vmatmul.bf16.gmra.mxu0 %v2117
        %v2181 = vpop.f32.mrf.mxu0
        %v2182 = vadd.f32 %v2149, %v2181
        %v2183 = vpop.f32.mrf.mxu0
        %v2184 = vadd.f32 %v2151, %v2183
        %2185 = vmatmul.bf16.gmra.mxu0 %v2119
        %v2186 = vpop.f32.mrf.mxu0
        %v2187 = vadd.f32 %v2154, %v2186
        %v2188 = vpop.f32.mrf.mxu0
        %v2189 = vadd.f32 %v2156, %v2188
        %2190 = vmatmul.bf16.gmra.mxu0 %v2121
        %v2191 = vpop.f32.mrf.mxu0
        %v2192 = vadd.f32 %v2159, %v2191
        %v2193 = vpop.f32.mrf.mxu0
        %v2194 = vadd.f32 %v2161, %v2193
        %2195 = vmatmul.bf16.gmra.mxu0 %v2123
        %v2196 = vpop.f32.mrf.mxu0
        %v2197 = vadd.f32 %v2164, %v2196
        %v2198 = vpop.f32.mrf.mxu0
        %2199 = vdwg.mxu0
        %v2200 = vmax.f32 %v2055, %v2177
        %v2201 = vmax.f32 %v2057, %v2179
        %v2202 = vmax.f32 %v2060, %v2182
        %v2203 = vmax.f32 %v2062, %v2184
        %v2204 = vmax.f32 %v2065, %v2187
        %v2205 = vmax.f32 %v2067, %v2189
        %v2206 = vmax.f32 %v2070, %v2192
        %v2207 = vmax.f32 %v2072, %v2194
        %v2208 = vmax.f32 %v2075, %v2197
        %v2209 = vld [vmem:[%s1124] sm:$0xff]
        %v2210 = vld [vmem:[%s1124 + $0x8] sm:$0xff]
        %v2211 = vld [vmem:[%s1124 + $0x10] sm:$0xff]
        %v2212 = vld [vmem:[%s1124 + $0x18] sm:$0xff]
        %v2213 = vld [vmem:[%s1124 + $0x20] sm:$0xff]
        %v2214 = vld [vmem:[%s1124 + $0x28] sm:$0xff]
        %v2215 = vld [vmem:[%s1124 + $0x30] sm:$0xff]
        %v2216 = vld [vmem:[%s1124 + $0x38] sm:$0xff]
        %v2217 = vld [vmem:[%s1124 + $0x40] sm:$0x77]
        %v2227 = vunpack.c.l.b16 %v2209
        %v2228 = vunpack.c.h.b16 %v2209
        %v2229 = vunpack.c.l.b16 %v2210
        %v2230 = vunpack.c.h.b16 %v2210
        %v2231 = vunpack.c.l.b16 %v2211
        %v2232 = vunpack.c.h.b16 %v2211
        %v2233 = vunpack.c.l.b16 %v2212
        %v2234 = vunpack.c.h.b16 %v2212
        %v2235 = vunpack.c.l.b16 %v2213
        %v2236 = vunpack.c.h.b16 %v2213
        %v2237 = vunpack.c.l.b16 %v2214
        %v2238 = vunpack.c.h.b16 %v2214
        %v2239 = vunpack.c.l.b16 %v2215
        %v2240 = vunpack.c.h.b16 %v2215
        %v2241 = vunpack.c.l.b16 %v2216
        %v2242 = vunpack.c.h.b16 %v2216
        %v2243 = vunpack.c.l.b16 %v2217
        %v2244 = vunpack.c.h.b16 %v2217
        %v2245 = vpack.c.b16 %v2229, %v2227
        %v2246 = vpack.c.b16 %v2230, %v2228
        %v2247 = vpack.c.b16 %v2233, %v2231
        %v2248 = vpack.c.b16 %v2234, %v2232
        %v2249 = vpack.c.b16 %v2237, %v2235
        %v2250 = vpack.c.b16 %v2238, %v2236
        %v2251 = vpack.c.b16 %v2241, %v2239
        %v2252 = vpack.c.b16 %v2242, %v2240
        %v2253 = vpack.c.b16 %v2243, %v2243
        %v2254 = vpack.c.b16 %v2244, %v2244
        %2265 = vmatpush.bf16.msra.mxu0 %v1947
        %2266 = vmatpush.bf16.msra.mxu0 %v1946
        %2267 = vmatpush.bf16.msra.mxu0 %v1945
        %2268 = vmatpush.bf16.msra.mxu0 %v1944
        %2269 = vmatpush.bf16.msra.mxu0 %v1943
        %2270 = vmatpush.bf16.msra.mxu0 %v1942
        %2271 = vmatpush.bf16.msra.mxu0 %v1941
        %2272 = vmatpush.bf16.msra.mxu0 %v1940
        %2273 = vmatmul.bf16.gmra.mxu0 %v2245
        %v2274 = vpop.f32.mrf.mxu0
        %v2275 = vadd.f32 0.0, %v2274
        %v2276 = vpop.f32.mrf.mxu0
        %v2277 = vadd.f32 0.0, %v2276
        %2278 = vmatmul.bf16.gmra.mxu0 %v2247
        %v2279 = vpop.f32.mrf.mxu0
        %v2280 = vadd.f32 0.0, %v2279
        %v2281 = vpop.f32.mrf.mxu0
        %v2282 = vadd.f32 0.0, %v2281
        %2283 = vmatmul.bf16.gmra.mxu0 %v2249
        %v2284 = vpop.f32.mrf.mxu0
        %v2285 = vadd.f32 0.0, %v2284
        %v2286 = vpop.f32.mrf.mxu0
        %v2287 = vadd.f32 0.0, %v2286
        %2288 = vmatmul.bf16.gmra.mxu0 %v2251
        %v2289 = vpop.f32.mrf.mxu0
        %v2290 = vadd.f32 0.0, %v2289
        %v2291 = vpop.f32.mrf.mxu0
        %v2292 = vadd.f32 0.0, %v2291
        %2293 = vmatmul.bf16.gmra.mxu0 %v2253
        %v2294 = vpop.f32.mrf.mxu0
        %v2295 = vadd.f32 0.0, %v2294
        %v2296 = vpop.f32.mrf.mxu0
        %2297 = vdwg.mxu0
        %2298 = vmatpush.bf16.msra.mxu0 %v1955
        %2299 = vmatpush.bf16.msra.mxu0 %v1954
        %2300 = vmatpush.bf16.msra.mxu0 %v1953
        %2301 = vmatpush.bf16.msra.mxu0 %v1952
        %2302 = vmatpush.bf16.msra.mxu0 %v1951
        %2303 = vmatpush.bf16.msra.mxu0 %v1950
        %2304 = vmatpush.bf16.msra.mxu0 %v1949
        %2305 = vmatpush.bf16.msra.mxu0 %v1948
        %2306 = vmatmul.bf16.gmra.mxu0 %v2246
        %v2307 = vpop.f32.mrf.mxu0
        %v2308 = vadd.f32 %v2275, %v2307
        %v2309 = vpop.f32.mrf.mxu0
        %v2310 = vadd.f32 %v2277, %v2309
        %2311 = vmatmul.bf16.gmra.mxu0 %v2248
        %v2312 = vpop.f32.mrf.mxu0
        %v2313 = vadd.f32 %v2280, %v2312
        %v2314 = vpop.f32.mrf.mxu0
        %v2315 = vadd.f32 %v2282, %v2314
        %2316 = vmatmul.bf16.gmra.mxu0 %v2250
        %v2317 = vpop.f32.mrf.mxu0
        %v2318 = vadd.f32 %v2285, %v2317
        %v2319 = vpop.f32.mrf.mxu0
        %v2320 = vadd.f32 %v2287, %v2319
        %2321 = vmatmul.bf16.gmra.mxu0 %v2252
        %v2322 = vpop.f32.mrf.mxu0
        %v2323 = vadd.f32 %v2290, %v2322
        %v2324 = vpop.f32.mrf.mxu0
        %v2325 = vadd.f32 %v2292, %v2324
        %2326 = vmatmul.bf16.gmra.mxu0 %v2254
        %v2327 = vpop.f32.mrf.mxu0
        %v2328 = vadd.f32 %v2295, %v2327
        %v2329 = vpop.f32.mrf.mxu0
        %2330 = vdwg.mxu0
        %v2331 = vmax.f32 %v2200, %v2308
        %v2332 = vmax.f32 %v2201, %v2310
        %v2333 = vmax.f32 %v2202, %v2313
        %v2334 = vmax.f32 %v2203, %v2315
        %v2335 = vmax.f32 %v2204, %v2318
        %v2336 = vmax.f32 %v2205, %v2320
        %v2337 = vmax.f32 %v2206, %v2323
        %v2338 = vmax.f32 %v2207, %v2325
        %v2339 = vmax.f32 %v2208, %v2328
        %v2340 = vld [vmem:[%s1256] sm:$0xff]
        %v2341 = vld [vmem:[%s1256 + $0x8] sm:$0xff]
        %v2342 = vld [vmem:[%s1256 + $0x10] sm:$0xff]
        %v2343 = vld [vmem:[%s1256 + $0x18] sm:$0xff]
        %v2344 = vld [vmem:[%s1256 + $0x20] sm:$0xff]
        %v2345 = vld [vmem:[%s1256 + $0x28] sm:$0xff]
        %v2346 = vld [vmem:[%s1256 + $0x30] sm:$0xff]
        %v2347 = vld [vmem:[%s1256 + $0x38] sm:$0xff]
        %v2348 = vld [vmem:[%s1256 + $0x40] sm:$0x77]
        %v2358 = vunpack.c.l.b16 %v2340
        %v2359 = vunpack.c.h.b16 %v2340
        %v2360 = vunpack.c.l.b16 %v2341
        %v2361 = vunpack.c.h.b16 %v2341
        %v2362 = vunpack.c.l.b16 %v2342
        %v2363 = vunpack.c.h.b16 %v2342
        %v2364 = vunpack.c.l.b16 %v2343
        %v2365 = vunpack.c.h.b16 %v2343
        %v2366 = vunpack.c.l.b16 %v2344
        %v2367 = vunpack.c.h.b16 %v2344
        %v2368 = vunpack.c.l.b16 %v2345
        %v2369 = vunpack.c.h.b16 %v2345
        %v2370 = vunpack.c.l.b16 %v2346
        %v2371 = vunpack.c.h.b16 %v2346
        %v2372 = vunpack.c.l.b16 %v2347
        %v2373 = vunpack.c.h.b16 %v2347
        %v2374 = vunpack.c.l.b16 %v2348
        %v2375 = vunpack.c.h.b16 %v2348
        %v2376 = vpack.c.b16 %v2360, %v2358
        %v2377 = vpack.c.b16 %v2361, %v2359
        %v2378 = vpack.c.b16 %v2364, %v2362
        %v2379 = vpack.c.b16 %v2365, %v2363
        %v2380 = vpack.c.b16 %v2368, %v2366
        %v2381 = vpack.c.b16 %v2369, %v2367
        %v2382 = vpack.c.b16 %v2372, %v2370
        %v2383 = vpack.c.b16 %v2373, %v2371
        %v2384 = vpack.c.b16 %v2374, %v2374
        %v2385 = vpack.c.b16 %v2375, %v2375
        %2396 = vmatpush.bf16.msra.mxu0 %v1947
        %2397 = vmatpush.bf16.msra.mxu0 %v1946
        %2398 = vmatpush.bf16.msra.mxu0 %v1945
        %2399 = vmatpush.bf16.msra.mxu0 %v1944
        %2400 = vmatpush.bf16.msra.mxu0 %v1943
        %2401 = vmatpush.bf16.msra.mxu0 %v1942
        %2402 = vmatpush.bf16.msra.mxu0 %v1941
        %2403 = vmatpush.bf16.msra.mxu0 %v1940
        %2404 = vmatmul.bf16.gmra.mxu0 %v2376
        %v2405 = vpop.f32.mrf.mxu0
        %v2406 = vadd.f32 0.0, %v2405
        %v2407 = vpop.f32.mrf.mxu0
        %v2408 = vadd.f32 0.0, %v2407
        %2409 = vmatmul.bf16.gmra.mxu0 %v2378
        %v2410 = vpop.f32.mrf.mxu0
        %v2411 = vadd.f32 0.0, %v2410
        %v2412 = vpop.f32.mrf.mxu0
        %v2413 = vadd.f32 0.0, %v2412
        %2414 = vmatmul.bf16.gmra.mxu0 %v2380
        %v2415 = vpop.f32.mrf.mxu0
        %v2416 = vadd.f32 0.0, %v2415
        %v2417 = vpop.f32.mrf.mxu0
        %v2418 = vadd.f32 0.0, %v2417
        %2419 = vmatmul.bf16.gmra.mxu0 %v2382
        %v2420 = vpop.f32.mrf.mxu0
        %v2421 = vadd.f32 0.0, %v2420
        %v2422 = vpop.f32.mrf.mxu0
        %v2423 = vadd.f32 0.0, %v2422
        %2424 = vmatmul.bf16.gmra.mxu0 %v2384
        %v2425 = vpop.f32.mrf.mxu0
        %v2426 = vadd.f32 0.0, %v2425
        %v2427 = vpop.f32.mrf.mxu0
        %2428 = vdwg.mxu0
        %2429 = vmatpush.bf16.msra.mxu0 %v1955
        %2430 = vmatpush.bf16.msra.mxu0 %v1954
        %2431 = vmatpush.bf16.msra.mxu0 %v1953
        %2432 = vmatpush.bf16.msra.mxu0 %v1952
        %2433 = vmatpush.bf16.msra.mxu0 %v1951
        %2434 = vmatpush.bf16.msra.mxu0 %v1950
        %2435 = vmatpush.bf16.msra.mxu0 %v1949
        %2436 = vmatpush.bf16.msra.mxu0 %v1948
        %2437 = vmatmul.bf16.gmra.mxu0 %v2377
        %v2438 = vpop.f32.mrf.mxu0
        %v2439 = vadd.f32 %v2406, %v2438
        %v2440 = vpop.f32.mrf.mxu0
        %v2441 = vadd.f32 %v2408, %v2440
        %2442 = vmatmul.bf16.gmra.mxu0 %v2379
        %v2443 = vpop.f32.mrf.mxu0
        %v2444 = vadd.f32 %v2411, %v2443
        %v2445 = vpop.f32.mrf.mxu0
        %v2446 = vadd.f32 %v2413, %v2445
        %2447 = vmatmul.bf16.gmra.mxu0 %v2381
        %v2448 = vpop.f32.mrf.mxu0
        %v2449 = vadd.f32 %v2416, %v2448
        %v2450 = vpop.f32.mrf.mxu0
        %v2451 = vadd.f32 %v2418, %v2450
        %2452 = vmatmul.bf16.gmra.mxu0 %v2383
        %v2453 = vpop.f32.mrf.mxu0
        %v2454 = vadd.f32 %v2421, %v2453
        %v2455 = vpop.f32.mrf.mxu0
        %v2456 = vadd.f32 %v2423, %v2455
        %2457 = vmatmul.bf16.gmra.mxu0 %v2385
        %v2458 = vpop.f32.mrf.mxu0
        %v2459 = vadd.f32 %v2426, %v2458
        %v2460 = vpop.f32.mrf.mxu0
        %2461 = vdwg.mxu0
        %v2462 = vmax.f32 %v2331, %v2439
        %v2463 = vmax.f32 %v2332, %v2441
        %v2464 = vmax.f32 %v2333, %v2444
        %v2465 = vmax.f32 %v2334, %v2446
        %v2466 = vmax.f32 %v2335, %v2449
        %v2467 = vmax.f32 %v2336, %v2451
        %v2468 = vmax.f32 %v2337, %v2454
        %v2469 = vmax.f32 %v2338, %v2456
        %v2470 = vmax.f32 %v2339, %v2459
        %v2471 = vmax.f32 %v2462, 0.0
        %v2472 = vmax.f32 %v2463, 0.0
        %v2473 = vmax.f32 %v2464, 0.0
        %v2474 = vmax.f32 %v2465, 0.0
        %v2475 = vmax.f32 %v2466, 0.0
        %v2476 = vmax.f32 %v2467, 0.0
        %v2477 = vmax.f32 %v2468, 0.0
        %v2478 = vmax.f32 %v2469, 0.0
        %v2479 = vmax.f32 %v2470, 0.0
        %v2489 = vrot.slane %v2471, 5
        %v2490 = vrot.slane %v2472, 5
        %v2491 = vsel %vm1406, %v2489, %v2490
        %v2492 = vrot.slane %v2473, 5
        %v2493 = vsel %vm1406, %v2490, %v2492
        %v2494 = vrot.slane %v2474, 5
        %v2495 = vsel %vm1406, %v2492, %v2494
        %v2496 = vrot.slane %v2475, 5
        %v2497 = vsel %vm1406, %v2494, %v2496
        %v2498 = vrot.slane %v2476, 5
        %v2499 = vsel %vm1406, %v2496, %v2498
        %v2500 = vrot.slane %v2477, 5
        %v2501 = vsel %vm1406, %v2498, %v2500
        %v2502 = vrot.slane %v2478, 5
        %v2503 = vsel %vm1406, %v2500, %v2502
        %v2504 = vrot.slane %v2479, 5
        %v2505 = vsel %vm1406, %v2502, %v2504
        %2516 = vst.msk [vmem:[#allocation2 + $0xb0] sm:$0xf8] %vm1434, %v2489
        %2517 = vst.msk [vmem:[#allocation2 + $0xc0] sm:$0xff] %vm440, %v2491
        %2518 = vst.msk [vmem:[#allocation2 + $0xd0] sm:$0xff] %vm440, %v2493
        %2519 = vst.msk [vmem:[#allocation2 + $0xe0] sm:$0xff] %vm440, %v2495
        %2520 = vst.msk [vmem:[#allocation2 + $0xf0] sm:$0xff] %vm440, %v2497
        %2521 = vst.msk [vmem:[#allocation2 + $0x100] sm:$0xff] %vm440, %v2499
        %2522 = vst.msk [vmem:[#allocation2 + $0x110] sm:$0xff] %vm440, %v2501
        %2523 = vst.msk [vmem:[#allocation2 + $0x120] sm:$0xff] %vm440, %v2503
        %2524 = vst.msk [vmem:[#allocation2 + $0x130] sm:$0xff] %vm440, %v2505
        %2525 = vst.msk [vmem:[#allocation2 + $0x140] sm:$0x1] %vm1444, %v2504
        %v2526 = vrot.slane %v2471, 6
        %v2527 = vrot.slane %v2472, 6
        %v2528 = vsel %vm761, %v2526, %v2527
        %v2529 = vrot.slane %v2473, 6
        %v2530 = vsel %vm761, %v2527, %v2529
        %v2531 = vrot.slane %v2474, 6
        %v2532 = vsel %vm761, %v2529, %v2531
        %v2533 = vrot.slane %v2475, 6
        %v2534 = vsel %vm761, %v2531, %v2533
        %v2535 = vrot.slane %v2476, 6
        %v2536 = vsel %vm761, %v2533, %v2535
        %v2537 = vrot.slane %v2477, 6
        %v2538 = vsel %vm761, %v2535, %v2537
        %v2539 = vrot.slane %v2478, 6
        %v2540 = vsel %vm761, %v2537, %v2539
        %v2541 = vrot.slane %v2479, 6
        %v2542 = vsel %vm761, %v2539, %v2541
        %2543 = vrot.lane.b32.xlu0 %v2526, 32
        %v2544 = vpop.permute.xlu0 %2543
        %2545 = vrot.lane.b32.xlu0 %v2528, 32
        %v2546 = vpop.permute.xlu0 %2545
        %2547 = vrot.lane.b32.xlu0 %v2530, 32
        %v2548 = vpop.permute.xlu0 %2547
        %2549 = vrot.lane.b32.xlu0 %v2532, 32
        %v2550 = vpop.permute.xlu0 %2549
        %2551 = vrot.lane.b32.xlu0 %v2534, 32
        %v2552 = vpop.permute.xlu0 %2551
        %2553 = vrot.lane.b32.xlu0 %v2536, 32
        %v2554 = vpop.permute.xlu0 %2553
        %2555 = vrot.lane.b32.xlu0 %v2538, 32
        %v2556 = vpop.permute.xlu0 %2555
        %2557 = vrot.lane.b32.xlu0 %v2540, 32
        %v2558 = vpop.permute.xlu0 %2557
        %2559 = vrot.lane.b32.xlu0 %v2542, 32
        %v2560 = vpop.permute.xlu0 %2559
        %2570 = vst.msk [vmem:[#allocation2 + $0xb0] sm:$0xfc] %vm1490, %v2544
        %2571 = vst.msk [vmem:[#allocation2 + $0xc0] sm:$0xff] %vm1492, %v2546
        %2572 = vst.msk [vmem:[#allocation2 + $0xd0] sm:$0xff] %vm1492, %v2548
        %2573 = vst.msk [vmem:[#allocation2 + $0xe0] sm:$0xff] %vm1492, %v2550
        %2574 = vst.msk [vmem:[#allocation2 + $0xf0] sm:$0xff] %vm1492, %v2552
        %2575 = vst.msk [vmem:[#allocation2 + $0x100] sm:$0xff] %vm1492, %v2554
        %2576 = vst.msk [vmem:[#allocation2 + $0x110] sm:$0xff] %vm1492, %v2556
        %2577 = vst.msk [vmem:[#allocation2 + $0x120] sm:$0xff] %vm1492, %v2558
        %2578 = vst.msk [vmem:[#allocation2 + $0x130] sm:$0xff] %vm1492, %v2560
        %v2579 = vrot.slane %v2471, 7
        %v2580 = vrot.slane %v2472, 7
        %v2581 = vsel %vm1501, %v2579, %v2580
        %v2582 = vrot.slane %v2473, 7
        %v2583 = vsel %vm1501, %v2580, %v2582
        %v2584 = vrot.slane %v2474, 7
        %v2585 = vsel %vm1501, %v2582, %v2584
        %v2586 = vrot.slane %v2475, 7
        %v2587 = vsel %vm1501, %v2584, %v2586
        %v2588 = vrot.slane %v2476, 7
        %v2589 = vsel %vm1501, %v2586, %v2588
        %v2590 = vrot.slane %v2477, 7
        %v2591 = vsel %vm1501, %v2588, %v2590
        %v2592 = vrot.slane %v2478, 7
        %v2593 = vsel %vm1501, %v2590, %v2592
        %v2594 = vrot.slane %v2479, 7
        %v2595 = vsel %vm1501, %v2592, %v2594
        %2596 = vrot.lane.b32.xlu0 %v2579, 64
        %v2597 = vpop.permute.xlu0 %2596
        %2598 = vrot.lane.b32.xlu0 %v2581, 64
        %v2599 = vpop.permute.xlu0 %2598
        %2600 = vrot.lane.b32.xlu0 %v2583, 64
        %v2601 = vpop.permute.xlu0 %2600
        %2602 = vrot.lane.b32.xlu0 %v2585, 64
        %v2603 = vpop.permute.xlu0 %2602
        %2604 = vrot.lane.b32.xlu0 %v2587, 64
        %v2605 = vpop.permute.xlu0 %2604
        %2606 = vrot.lane.b32.xlu0 %v2589, 64
        %v2607 = vpop.permute.xlu0 %2606
        %2608 = vrot.lane.b32.xlu0 %v2591, 64
        %v2609 = vpop.permute.xlu0 %2608
        %2610 = vrot.lane.b32.xlu0 %v2593, 64
        %v2611 = vpop.permute.xlu0 %2610
        %2612 = vrot.lane.b32.xlu0 %v2595, 64
        %v2613 = vpop.permute.xlu0 %2612
        %2623 = vst.msk [vmem:[#allocation2 + $0xb0] sm:$0xfe] %vm1546, %v2597
        %2624 = vst.msk [vmem:[#allocation2 + $0xc0] sm:$0xff] %vm1548, %v2599
        %2625 = vst.msk [vmem:[#allocation2 + $0xd0] sm:$0xff] %vm1548, %v2601
        %2626 = vst.msk [vmem:[#allocation2 + $0xe0] sm:$0xff] %vm1548, %v2603
        %2627 = vst.msk [vmem:[#allocation2 + $0xf0] sm:$0xff] %vm1548, %v2605
        %2628 = vst.msk [vmem:[#allocation2 + $0x100] sm:$0xff] %vm1548, %v2607
        %2629 = vst.msk [vmem:[#allocation2 + $0x110] sm:$0xff] %vm1548, %v2609
        %2630 = vst.msk [vmem:[#allocation2 + $0x120] sm:$0xff] %vm1548, %v2611
        %2631 = vst.msk [vmem:[#allocation2 + $0x130] sm:$0x7f] %vm1556, %v2613
        %2632 = vrot.lane.b32.xlu0 %v2471, 96
        %v2633 = vpop.permute.xlu0 %2632
        %2634 = vrot.lane.b32.xlu0 %v2472, 96
        %v2635 = vpop.permute.xlu0 %2634
        %2636 = vrot.lane.b32.xlu0 %v2473, 96
        %v2637 = vpop.permute.xlu0 %2636
        %2638 = vrot.lane.b32.xlu0 %v2474, 96
        %v2639 = vpop.permute.xlu0 %2638
        %2640 = vrot.lane.b32.xlu0 %v2475, 96
        %v2641 = vpop.permute.xlu0 %2640
        %2642 = vrot.lane.b32.xlu0 %v2476, 96
        %v2643 = vpop.permute.xlu0 %2642
        %2644 = vrot.lane.b32.xlu0 %v2477, 96
        %v2645 = vpop.permute.xlu0 %2644
        %2646 = vrot.lane.b32.xlu0 %v2478, 96
        %v2647 = vpop.permute.xlu0 %2646
        %2648 = vrot.lane.b32.xlu0 %v2479, 96
        %v2649 = vpop.permute.xlu0 %2648
        %2659 = vst.msk [vmem:[#allocation2 + $0xb0] sm:$0xff] %vm1585, %v2633
        %2660 = vst.msk [vmem:[#allocation2 + $0xc0] sm:$0xff] %vm1585, %v2635
        %2661 = vst.msk [vmem:[#allocation2 + $0xd0] sm:$0xff] %vm1585, %v2637
        %2662 = vst.msk [vmem:[#allocation2 + $0xe0] sm:$0xff] %vm1585, %v2639
        %2663 = vst.msk [vmem:[#allocation2 + $0xf0] sm:$0xff] %vm1585, %v2641
        %2664 = vst.msk [vmem:[#allocation2 + $0x100] sm:$0xff] %vm1585, %v2643
        %2665 = vst.msk [vmem:[#allocation2 + $0x110] sm:$0xff] %vm1585, %v2645
        %2666 = vst.msk [vmem:[#allocation2 + $0x120] sm:$0xff] %vm1585, %v2647
        %2667 = vst.msk [vmem:[#allocation2 + $0x130] sm:$0x3f] %vm1594, %v2649
        %v2668 = vrot.slane %v2471, 1
        %v2669 = vrot.slane %v2472, 1
        %v2670 = vsel %vm1596, %v2668, %v2669
        %v2671 = vrot.slane %v2473, 1
        %v2672 = vsel %vm1596, %v2669, %v2671
        %v2673 = vrot.slane %v2474, 1
        %v2674 = vsel %vm1596, %v2671, %v2673
        %v2675 = vrot.slane %v2475, 1
        %v2676 = vsel %vm1596, %v2673, %v2675
        %v2677 = vrot.slane %v2476, 1
        %v2678 = vsel %vm1596, %v2675, %v2677
        %v2679 = vrot.slane %v2477, 1
        %v2680 = vsel %vm1596, %v2677, %v2679
        %v2681 = vrot.slane %v2478, 1
        %v2682 = vsel %vm1596, %v2679, %v2681
        %v2683 = vrot.slane %v2479, 1
        %v2684 = vsel %vm1596, %v2681, %v2683
        %2695 = vst.msk [vmem:[#allocation2 + $0xa8] sm:$0x80] %vm1624, %v2668
        %2696 = vst.msk [vmem:[#allocation2 + $0xb8] sm:$0xff] %vm440, %v2670
        %2697 = vst.msk [vmem:[#allocation2 + $0xc8] sm:$0xff] %vm440, %v2672
        %2698 = vst.msk [vmem:[#allocation2 + $0xd8] sm:$0xff] %vm440, %v2674
        %2699 = vst.msk [vmem:[#allocation2 + $0xe8] sm:$0xff] %vm440, %v2676
        %2700 = vst.msk [vmem:[#allocation2 + $0xf8] sm:$0xff] %vm440, %v2678
        %2701 = vst.msk [vmem:[#allocation2 + $0x108] sm:$0xff] %vm440, %v2680
        %2702 = vst.msk [vmem:[#allocation2 + $0x118] sm:$0xff] %vm440, %v2682
        %2703 = vst.msk [vmem:[#allocation2 + $0x128] sm:$0xff] %vm440, %v2684
        %2704 = vst.msk [vmem:[#allocation2 + $0x138] sm:$0x1f] %vm1634, %v2683
        %v2705 = vld [vmem:[%s437 + $0x100] sm:$0xf]
        %v2706 = vld [vmem:[%s437 + $0x104] sm:$0xf]
        %v2707 = vld [vmem:[%s437 + $0x108] sm:$0xf]
        %v2708 = vld [vmem:[%s437 + $0x10c] sm:$0xf]
        %v2709 = vld [vmem:[%s437 + $0x110] sm:$0xf]
        %v2710 = vld [vmem:[%s437 + $0x114] sm:$0xf]
        %v2711 = vld [vmem:[%s437 + $0x118] sm:$0xf]
        %v2712 = vld [vmem:[%s437 + $0x11c] sm:$0xf]
        %v2713 = vld [vmem:[%s437 + $0x120] sm:$0xf]
        %v2714 = vld [vmem:[%s437 + $0x124] sm:$0xf]
        %v2715 = vld [vmem:[%s437 + $0x128] sm:$0xf]
        %v2716 = vld [vmem:[%s437 + $0x12c] sm:$0xf]
        %v2717 = vld [vmem:[%s437 + $0x130] sm:$0xf]
        %v2718 = vld [vmem:[%s437 + $0x134] sm:$0xf]
        %v2719 = vld [vmem:[%s437 + $0x138] sm:$0xf]
        %v2720 = vld [vmem:[%s437 + $0x13c] sm:$0xf]
        %v2721 = vld [vmem:[%s437 + $0x140] sm:$0xf]
        %v2722 = vld [vmem:[%s437 + $0x144] sm:$0xf]
        %v2723 = vld [vmem:[%s437 + $0x148] sm:$0xf]
        %v2724 = vld [vmem:[%s437 + $0x14c] sm:$0xf]
        %v2725 = vld [vmem:[%s437 + $0x150] sm:$0xf]
        %v2726 = vld [vmem:[%s437 + $0x154] sm:$0xf]
        %v2727 = vld [vmem:[%s437 + $0x158] sm:$0xf]
        %v2728 = vld [vmem:[%s437 + $0x15c] sm:$0xf]
        %v2729 = vld [vmem:[%s437 + $0x160] sm:$0xf]
        %v2730 = vld [vmem:[%s437 + $0x164] sm:$0xf]
        %v2731 = vld [vmem:[%s437 + $0x168] sm:$0xf]
        %v2732 = vld [vmem:[%s437 + $0x16c] sm:$0xf]
        %v2733 = vld [vmem:[%s437 + $0x170] sm:$0xf]
        %v2734 = vld [vmem:[%s437 + $0x174] sm:$0xf]
        %v2735 = vld [vmem:[%s437 + $0x178] sm:$0xf]
        %v2736 = vld [vmem:[%s437 + $0x17c] sm:$0xf]
        %v2737 = vld [vmem:[%s1] sm:$0xf]
        %v2738 = vld [vmem:[%s1 + $0x4] sm:$0xf]
        %v2739 = vld [vmem:[%s1 + $0x8] sm:$0xf]
        %v2740 = vld [vmem:[%s1 + $0xc] sm:$0xf]
        %v2741 = vld [vmem:[%s1 + $0x10] sm:$0xf]
        %v2742 = vld [vmem:[%s1 + $0x14] sm:$0xf]
        %v2743 = vld [vmem:[%s1 + $0x18] sm:$0xf]
        %v2744 = vld [vmem:[%s1 + $0x1c] sm:$0xf]
        %v2745 = vld [vmem:[%s1 + $0x20] sm:$0xf]
        %v2746 = vld [vmem:[%s1 + $0x24] sm:$0xf]
        %v2747 = vld [vmem:[%s1 + $0x28] sm:$0xf]
        %v2748 = vld [vmem:[%s1 + $0x2c] sm:$0xf]
        %v2749 = vld [vmem:[%s1 + $0x30] sm:$0x3]
        %v2782 = vunpack.c.l.b16 %v2705
        %v2783 = vunpack.c.l.b16 %v2706
        %v2784 = vunpack.c.l.b16 %v2707
        %v2785 = vunpack.c.l.b16 %v2708
        %v2786 = vunpack.c.l.b16 %v2709
        %v2787 = vunpack.c.l.b16 %v2710
        %v2788 = vunpack.c.l.b16 %v2711
        %v2789 = vunpack.c.l.b16 %v2712
        %v2790 = vunpack.c.l.b16 %v2713
        %v2791 = vunpack.c.l.b16 %v2714
        %v2792 = vunpack.c.l.b16 %v2715
        %v2793 = vunpack.c.l.b16 %v2716
        %v2794 = vunpack.c.l.b16 %v2717
        %v2795 = vunpack.c.l.b16 %v2718
        %v2796 = vunpack.c.l.b16 %v2719
        %v2797 = vunpack.c.l.b16 %v2720
        %v2798 = vunpack.c.l.b16 %v2721
        %v2799 = vunpack.c.l.b16 %v2722
        %v2800 = vunpack.c.l.b16 %v2723
        %v2801 = vunpack.c.l.b16 %v2724
        %v2802 = vunpack.c.l.b16 %v2725
        %v2803 = vunpack.c.l.b16 %v2726
        %v2804 = vunpack.c.l.b16 %v2727
        %v2805 = vunpack.c.l.b16 %v2728
        %v2806 = vunpack.c.l.b16 %v2729
        %v2807 = vunpack.c.l.b16 %v2730
        %v2808 = vunpack.c.l.b16 %v2731
        %v2809 = vunpack.c.l.b16 %v2732
        %v2810 = vunpack.c.l.b16 %v2733
        %v2811 = vunpack.c.l.b16 %v2734
        %v2812 = vunpack.c.l.b16 %v2735
        %v2813 = vunpack.c.l.b16 %v2736
        %v2814 = vpack.c.b16 %v2783, %v2782
        %v2815 = vpack.c.b16 %v2785, %v2784
        %v2816 = vpack.c.b16 %v2787, %v2786
        %v2817 = vpack.c.b16 %v2789, %v2788
        %v2818 = vpack.c.b16 %v2791, %v2790
        %v2819 = vpack.c.b16 %v2793, %v2792
        %v2820 = vpack.c.b16 %v2795, %v2794
        %v2821 = vpack.c.b16 %v2797, %v2796
        %v2822 = vpack.c.b16 %v2799, %v2798
        %v2823 = vpack.c.b16 %v2801, %v2800
        %v2824 = vpack.c.b16 %v2803, %v2802
        %v2825 = vpack.c.b16 %v2805, %v2804
        %v2826 = vpack.c.b16 %v2807, %v2806
        %v2827 = vpack.c.b16 %v2809, %v2808
        %v2828 = vpack.c.b16 %v2811, %v2810
        %v2829 = vpack.c.b16 %v2813, %v2812
        %v2843 = vunpack.c.l.b16 %v2737
        %v2844 = vunpack.c.l.b16 %v2738
        %v2845 = vunpack.c.l.b16 %v2739
        %v2846 = vunpack.c.l.b16 %v2740
        %v2847 = vunpack.c.l.b16 %v2741
        %v2848 = vunpack.c.l.b16 %v2742
        %v2849 = vunpack.c.l.b16 %v2743
        %v2850 = vunpack.c.l.b16 %v2744
        %v2851 = vunpack.c.l.b16 %v2745
        %v2852 = vunpack.c.l.b16 %v2746
        %v2853 = vunpack.c.l.b16 %v2747
        %v2854 = vunpack.c.l.b16 %v2748
        %v2855 = vunpack.c.l.b16 %v2749
        %v2856 = vpack.c.b16 %v2844, %v2843
        %v2857 = vpack.c.b16 %v2846, %v2845
        %v2858 = vpack.c.b16 %v2848, %v2847
        %v2859 = vpack.c.b16 %v2850, %v2849
        %v2860 = vpack.c.b16 %v2852, %v2851
        %v2861 = vpack.c.b16 %v2854, %v2853
        %v2862 = vpack.c.b16 %v2855, %v2855
        %v2870 = vsel %vm712, %v2814, 0
        %v2873 = vsel %vm712, %v2815, 0
        %v2876 = vsel %vm712, %v2816, 0
        %v2879 = vsel %vm712, %v2817, 0
        %v2882 = vsel %vm712, %v2818, 0
        %v2885 = vsel %vm712, %v2819, 0
        %v2888 = vsel %vm712, %v2820, 0
        %v2891 = vsel %vm712, %v2821, 0
        %v2894 = vsel %vm712, %v2822, 0
        %v2897 = vsel %vm712, %v2823, 0
        %v2900 = vsel %vm712, %v2824, 0
        %v2903 = vsel %vm712, %v2825, 0
        %v2906 = vsel %vm712, %v2826, 0
        %v2909 = vsel %vm712, %v2827, 0
        %v2912 = vsel %vm712, %v2828, 0
        %v2915 = vsel %vm712, %v2829, 0
        %v2918 = vsel %vm761, %v2862, 0
        %2920 = vmatpush.bf16.msra.mxu0 0
        %2921 = vmatpush.bf16.msra.mxu0 %v2918
        %2922 = vmatpush.bf16.msra.mxu0 %v2861
        %2923 = vmatpush.bf16.msra.mxu0 %v2860
        %2924 = vmatpush.bf16.msra.mxu0 %v2859
        %2925 = vmatpush.bf16.msra.mxu0 %v2858
        %2926 = vmatpush.bf16.msra.mxu0 %v2857
        %2927 = vmatpush.bf16.msra.mxu0 %v2856
        %2928 = vmatmul.bf16.gmra.mxu0 %v2870
        %v2929 = vpop.f32.mrf.mxu0
        %v2930 = vadd.f32 %v591, %v2929
        %v2931 = vpop.f32.mrf.mxu0
        %v2932 = vadd.f32 %v591, %v2931
        %2933 = vmatmul.bf16.gmra.mxu0 %v2873
        %v2934 = vpop.f32.mrf.mxu0
        %v2935 = vadd.f32 %v591, %v2934
        %v2936 = vpop.f32.mrf.mxu0
        %v2937 = vadd.f32 %v591, %v2936
        %2938 = vmatmul.bf16.gmra.mxu0 %v2876
        %v2939 = vpop.f32.mrf.mxu0
        %v2940 = vadd.f32 %v591, %v2939
        %v2941 = vpop.f32.mrf.mxu0
        %v2942 = vadd.f32 %v591, %v2941
        %2943 = vmatmul.bf16.gmra.mxu0 %v2879
        %v2944 = vpop.f32.mrf.mxu0
        %v2945 = vadd.f32 %v591, %v2944
        %v2946 = vpop.f32.mrf.mxu0
        %v2947 = vadd.f32 %v591, %v2946
        %2948 = vmatmul.bf16.gmra.mxu0 %v2882
        %v2949 = vpop.f32.mrf.mxu0
        %v2950 = vadd.f32 %v591, %v2949
        %v2951 = vpop.f32.mrf.mxu0
        %v2952 = vadd.f32 %v591, %v2951
        %2953 = vmatmul.bf16.gmra.mxu0 %v2885
        %v2954 = vpop.f32.mrf.mxu0
        %v2955 = vadd.f32 %v591, %v2954
        %v2956 = vpop.f32.mrf.mxu0
        %v2957 = vadd.f32 %v591, %v2956
        %2958 = vmatmul.bf16.gmra.mxu0 %v2888
        %v2959 = vpop.f32.mrf.mxu0
        %v2960 = vadd.f32 %v591, %v2959
        %v2961 = vpop.f32.mrf.mxu0
        %v2962 = vadd.f32 %v591, %v2961
        %2963 = vmatmul.bf16.gmra.mxu0 %v2891
        %v2964 = vpop.f32.mrf.mxu0
        %v2965 = vadd.f32 %v591, %v2964
        %v2966 = vpop.f32.mrf.mxu0
        %v2967 = vadd.f32 %v591, %v2966
        %2968 = vmatmul.bf16.gmra.mxu0 %v2894
        %v2969 = vpop.f32.mrf.mxu0
        %v2970 = vadd.f32 %v591, %v2969
        %v2971 = vpop.f32.mrf.mxu0
        %v2972 = vadd.f32 %v591, %v2971
        %2973 = vmatmul.bf16.gmra.mxu0 %v2897
        %v2974 = vpop.f32.mrf.mxu0
        %v2975 = vadd.f32 %v591, %v2974
        %v2976 = vpop.f32.mrf.mxu0
        %v2977 = vadd.f32 %v591, %v2976
        %2978 = vmatmul.bf16.gmra.mxu0 %v2900
        %v2979 = vpop.f32.mrf.mxu0
        %v2980 = vadd.f32 %v591, %v2979
        %v2981 = vpop.f32.mrf.mxu0
        %v2982 = vadd.f32 %v591, %v2981
        %2983 = vmatmul.bf16.gmra.mxu0 %v2903
        %v2984 = vpop.f32.mrf.mxu0
        %v2985 = vadd.f32 %v591, %v2984
        %v2986 = vpop.f32.mrf.mxu0
        %v2987 = vadd.f32 %v591, %v2986
        %2988 = vmatmul.bf16.gmra.mxu0 %v2906
        %v2989 = vpop.f32.mrf.mxu0
        %v2990 = vadd.f32 %v591, %v2989
        %v2991 = vpop.f32.mrf.mxu0
        %v2992 = vadd.f32 %v591, %v2991
        %2993 = vmatmul.bf16.gmra.mxu0 %v2909
        %v2994 = vpop.f32.mrf.mxu0
        %v2995 = vadd.f32 %v591, %v2994
        %v2996 = vpop.f32.mrf.mxu0
        %v2997 = vadd.f32 %v591, %v2996
        %2998 = vmatmul.bf16.gmra.mxu0 %v2912
        %v2999 = vpop.f32.mrf.mxu0
        %v3000 = vadd.f32 %v591, %v2999
        %v3001 = vpop.f32.mrf.mxu0
        %v3002 = vadd.f32 %v591, %v3001
        %3003 = vmatmul.bf16.gmra.mxu0 %v2915
        %v3004 = vpop.f32.mrf.mxu0
        %v3005 = vadd.f32 %v591, %v3004
        %v3006 = vpop.f32.mrf.mxu0
        %v3007 = vadd.f32 %v591, %v3006
        %3008 = vdwg.mxu0
        %v3009 = vpack.c.bf16 %v2932, %v2930
        %v3010 = vpack.c.bf16 %v2937, %v2935
        %v3011 = vpack.c.bf16 %v2942, %v2940
        %v3012 = vpack.c.bf16 %v2947, %v2945
        %v3013 = vpack.c.bf16 %v2952, %v2950
        %v3014 = vpack.c.bf16 %v2957, %v2955
        %v3015 = vpack.c.bf16 %v2962, %v2960
        %v3016 = vpack.c.bf16 %v2967, %v2965
        %v3017 = vpack.c.bf16 %v2972, %v2970
        %v3018 = vpack.c.bf16 %v2977, %v2975
        %v3019 = vpack.c.bf16 %v2982, %v2980
        %v3020 = vpack.c.bf16 %v2987, %v2985
        %v3021 = vpack.c.bf16 %v2992, %v2990
        %v3022 = vpack.c.bf16 %v2997, %v2995
        %v3023 = vpack.c.bf16 %v3002, %v3000
        %v3024 = vpack.c.bf16 %v3007, %v3005
        %v3025 = vld [vmem:[%s3] sm:$0xff]
        %v3026 = vld [vmem:[%s3 + $0x8] sm:$0xff]
        %v3027 = vld [vmem:[%s3 + $0x10] sm:$0xff]
        %v3028 = vld [vmem:[%s3 + $0x18] sm:$0xff]
        %v3029 = vld [vmem:[%s3 + $0x20] sm:$0xff]
        %v3030 = vld [vmem:[%s3 + $0x28] sm:$0xff]
        %v3031 = vld [vmem:[%s3 + $0x30] sm:$0xff]
        %v3032 = vld [vmem:[%s3 + $0x38] sm:$0xff]
        %v3033 = vld [vmem:[%s3 + $0x40] sm:$0x77]
        %v3043 = vunpack.c.l.b16 %v3025
        %v3044 = vunpack.c.h.b16 %v3025
        %v3045 = vunpack.c.l.b16 %v3026
        %v3046 = vunpack.c.h.b16 %v3026
        %v3047 = vunpack.c.l.b16 %v3027
        %v3048 = vunpack.c.h.b16 %v3027
        %v3049 = vunpack.c.l.b16 %v3028
        %v3050 = vunpack.c.h.b16 %v3028
        %v3051 = vunpack.c.l.b16 %v3029
        %v3052 = vunpack.c.h.b16 %v3029
        %v3053 = vunpack.c.l.b16 %v3030
        %v3054 = vunpack.c.h.b16 %v3030
        %v3055 = vunpack.c.l.b16 %v3031
        %v3056 = vunpack.c.h.b16 %v3031
        %v3057 = vunpack.c.l.b16 %v3032
        %v3058 = vunpack.c.h.b16 %v3032
        %v3059 = vunpack.c.l.b16 %v3033
        %v3060 = vunpack.c.h.b16 %v3033
        %v3061 = vpack.c.b16 %v3045, %v3043
        %v3062 = vpack.c.b16 %v3046, %v3044
        %v3063 = vpack.c.b16 %v3049, %v3047
        %v3064 = vpack.c.b16 %v3050, %v3048
        %v3065 = vpack.c.b16 %v3053, %v3051
        %v3066 = vpack.c.b16 %v3054, %v3052
        %v3067 = vpack.c.b16 %v3057, %v3055
        %v3068 = vpack.c.b16 %v3058, %v3056
        %v3069 = vpack.c.b16 %v3059, %v3059
        %v3070 = vpack.c.b16 %v3060, %v3060
        %3081 = vmatpush.bf16.msra.mxu0 %v3016
        %3082 = vmatpush.bf16.msra.mxu0 %v3015
        %3083 = vmatpush.bf16.msra.mxu0 %v3014
        %3084 = vmatpush.bf16.msra.mxu0 %v3013
        %3085 = vmatpush.bf16.msra.mxu0 %v3012
        %3086 = vmatpush.bf16.msra.mxu0 %v3011
        %3087 = vmatpush.bf16.msra.mxu0 %v3010
        %3088 = vmatpush.bf16.msra.mxu0 %v3009
        %3089 = vmatmul.bf16.gmra.mxu0 %v3061
        %v3090 = vpop.f32.mrf.mxu0
        %v3091 = vadd.f32 0.0, %v3090
        %v3092 = vpop.f32.mrf.mxu0
        %v3093 = vadd.f32 0.0, %v3092
        %3094 = vmatmul.bf16.gmra.mxu0 %v3063
        %v3095 = vpop.f32.mrf.mxu0
        %v3096 = vadd.f32 0.0, %v3095
        %v3097 = vpop.f32.mrf.mxu0
        %v3098 = vadd.f32 0.0, %v3097
        %3099 = vmatmul.bf16.gmra.mxu0 %v3065
        %v3100 = vpop.f32.mrf.mxu0
        %v3101 = vadd.f32 0.0, %v3100
        %v3102 = vpop.f32.mrf.mxu0
        %v3103 = vadd.f32 0.0, %v3102
        %3104 = vmatmul.bf16.gmra.mxu0 %v3067
        %v3105 = vpop.f32.mrf.mxu0
        %v3106 = vadd.f32 0.0, %v3105
        %v3107 = vpop.f32.mrf.mxu0
        %v3108 = vadd.f32 0.0, %v3107
        %3109 = vmatmul.bf16.gmra.mxu0 %v3069
        %v3110 = vpop.f32.mrf.mxu0
        %v3111 = vadd.f32 0.0, %v3110
        %v3112 = vpop.f32.mrf.mxu0
        %3113 = vdwg.mxu0
        %3114 = vmatpush.bf16.msra.mxu0 %v3024
        %3115 = vmatpush.bf16.msra.mxu0 %v3023
        %3116 = vmatpush.bf16.msra.mxu0 %v3022
        %3117 = vmatpush.bf16.msra.mxu0 %v3021
        %3118 = vmatpush.bf16.msra.mxu0 %v3020
        %3119 = vmatpush.bf16.msra.mxu0 %v3019
        %3120 = vmatpush.bf16.msra.mxu0 %v3018
        %3121 = vmatpush.bf16.msra.mxu0 %v3017
        %3122 = vmatmul.bf16.gmra.mxu0 %v3062
        %v3123 = vpop.f32.mrf.mxu0
        %v3124 = vadd.f32 %v3091, %v3123
        %v3125 = vpop.f32.mrf.mxu0
        %v3126 = vadd.f32 %v3093, %v3125
        %3127 = vmatmul.bf16.gmra.mxu0 %v3064
        %v3128 = vpop.f32.mrf.mxu0
        %v3129 = vadd.f32 %v3096, %v3128
        %v3130 = vpop.f32.mrf.mxu0
        %v3131 = vadd.f32 %v3098, %v3130
        %3132 = vmatmul.bf16.gmra.mxu0 %v3066
        %v3133 = vpop.f32.mrf.mxu0
        %v3134 = vadd.f32 %v3101, %v3133
        %v3135 = vpop.f32.mrf.mxu0
        %v3136 = vadd.f32 %v3103, %v3135
        %3137 = vmatmul.bf16.gmra.mxu0 %v3068
        %v3138 = vpop.f32.mrf.mxu0
        %v3139 = vadd.f32 %v3106, %v3138
        %v3140 = vpop.f32.mrf.mxu0
        %v3141 = vadd.f32 %v3108, %v3140
        %3142 = vmatmul.bf16.gmra.mxu0 %v3070
        %v3143 = vpop.f32.mrf.mxu0
        %v3144 = vadd.f32 %v3111, %v3143
        %v3145 = vpop.f32.mrf.mxu0
        %3146 = vdwg.mxu0
        %v3147 = vld [vmem:[%s992] sm:$0xff]
        %v3148 = vld [vmem:[%s992 + $0x8] sm:$0xff]
        %v3149 = vld [vmem:[%s992 + $0x10] sm:$0xff]
        %v3150 = vld [vmem:[%s992 + $0x18] sm:$0xff]
        %v3151 = vld [vmem:[%s992 + $0x20] sm:$0xff]
        %v3152 = vld [vmem:[%s992 + $0x28] sm:$0xff]
        %v3153 = vld [vmem:[%s992 + $0x30] sm:$0xff]
        %v3154 = vld [vmem:[%s992 + $0x38] sm:$0xff]
        %v3155 = vld [vmem:[%s992 + $0x40] sm:$0x77]
        %v3165 = vunpack.c.l.b16 %v3147
        %v3166 = vunpack.c.h.b16 %v3147
        %v3167 = vunpack.c.l.b16 %v3148
        %v3168 = vunpack.c.h.b16 %v3148
        %v3169 = vunpack.c.l.b16 %v3149
        %v3170 = vunpack.c.h.b16 %v3149
        %v3171 = vunpack.c.l.b16 %v3150
        %v3172 = vunpack.c.h.b16 %v3150
        %v3173 = vunpack.c.l.b16 %v3151
        %v3174 = vunpack.c.h.b16 %v3151
        %v3175 = vunpack.c.l.b16 %v3152
        %v3176 = vunpack.c.h.b16 %v3152
        %v3177 = vunpack.c.l.b16 %v3153
        %v3178 = vunpack.c.h.b16 %v3153
        %v3179 = vunpack.c.l.b16 %v3154
        %v3180 = vunpack.c.h.b16 %v3154
        %v3181 = vunpack.c.l.b16 %v3155
        %v3182 = vunpack.c.h.b16 %v3155
        %v3183 = vpack.c.b16 %v3167, %v3165
        %v3184 = vpack.c.b16 %v3168, %v3166
        %v3185 = vpack.c.b16 %v3171, %v3169
        %v3186 = vpack.c.b16 %v3172, %v3170
        %v3187 = vpack.c.b16 %v3175, %v3173
        %v3188 = vpack.c.b16 %v3176, %v3174
        %v3189 = vpack.c.b16 %v3179, %v3177
        %v3190 = vpack.c.b16 %v3180, %v3178
        %v3191 = vpack.c.b16 %v3181, %v3181
        %v3192 = vpack.c.b16 %v3182, %v3182
        %3203 = vmatpush.bf16.msra.mxu0 %v3016
        %3204 = vmatpush.bf16.msra.mxu0 %v3015
        %3205 = vmatpush.bf16.msra.mxu0 %v3014
        %3206 = vmatpush.bf16.msra.mxu0 %v3013
        %3207 = vmatpush.bf16.msra.mxu0 %v3012
        %3208 = vmatpush.bf16.msra.mxu0 %v3011
        %3209 = vmatpush.bf16.msra.mxu0 %v3010
        %3210 = vmatpush.bf16.msra.mxu0 %v3009
        %3211 = vmatmul.bf16.gmra.mxu0 %v3183
        %v3212 = vpop.f32.mrf.mxu0
        %v3213 = vadd.f32 0.0, %v3212
        %v3214 = vpop.f32.mrf.mxu0
        %v3215 = vadd.f32 0.0, %v3214
        %3216 = vmatmul.bf16.gmra.mxu0 %v3185
        %v3217 = vpop.f32.mrf.mxu0
        %v3218 = vadd.f32 0.0, %v3217
        %v3219 = vpop.f32.mrf.mxu0
        %v3220 = vadd.f32 0.0, %v3219
        %3221 = vmatmul.bf16.gmra.mxu0 %v3187
        %v3222 = vpop.f32.mrf.mxu0
        %v3223 = vadd.f32 0.0, %v3222
        %v3224 = vpop.f32.mrf.mxu0
        %v3225 = vadd.f32 0.0, %v3224
        %3226 = vmatmul.bf16.gmra.mxu0 %v3189
        %v3227 = vpop.f32.mrf.mxu0
        %v3228 = vadd.f32 0.0, %v3227
        %v3229 = vpop.f32.mrf.mxu0
        %v3230 = vadd.f32 0.0, %v3229
        %3231 = vmatmul.bf16.gmra.mxu0 %v3191
        %v3232 = vpop.f32.mrf.mxu0
        %v3233 = vadd.f32 0.0, %v3232
        %v3234 = vpop.f32.mrf.mxu0
        %3235 = vdwg.mxu0
        %3236 = vmatpush.bf16.msra.mxu0 %v3024
        %3237 = vmatpush.bf16.msra.mxu0 %v3023
        %3238 = vmatpush.bf16.msra.mxu0 %v3022
        %3239 = vmatpush.bf16.msra.mxu0 %v3021
        %3240 = vmatpush.bf16.msra.mxu0 %v3020
        %3241 = vmatpush.bf16.msra.mxu0 %v3019
        %3242 = vmatpush.bf16.msra.mxu0 %v3018
        %3243 = vmatpush.bf16.msra.mxu0 %v3017
        %3244 = vmatmul.bf16.gmra.mxu0 %v3184
        %v3245 = vpop.f32.mrf.mxu0
        %v3246 = vadd.f32 %v3213, %v3245
        %v3247 = vpop.f32.mrf.mxu0
        %v3248 = vadd.f32 %v3215, %v3247
        %3249 = vmatmul.bf16.gmra.mxu0 %v3186
        %v3250 = vpop.f32.mrf.mxu0
        %v3251 = vadd.f32 %v3218, %v3250
        %v3252 = vpop.f32.mrf.mxu0
        %v3253 = vadd.f32 %v3220, %v3252
        %3254 = vmatmul.bf16.gmra.mxu0 %v3188
        %v3255 = vpop.f32.mrf.mxu0
        %v3256 = vadd.f32 %v3223, %v3255
        %v3257 = vpop.f32.mrf.mxu0
        %v3258 = vadd.f32 %v3225, %v3257
        %3259 = vmatmul.bf16.gmra.mxu0 %v3190
        %v3260 = vpop.f32.mrf.mxu0
        %v3261 = vadd.f32 %v3228, %v3260
        %v3262 = vpop.f32.mrf.mxu0
        %v3263 = vadd.f32 %v3230, %v3262
        %3264 = vmatmul.bf16.gmra.mxu0 %v3192
        %v3265 = vpop.f32.mrf.mxu0
        %v3266 = vadd.f32 %v3233, %v3265
        %v3267 = vpop.f32.mrf.mxu0
        %3268 = vdwg.mxu0
        %v3269 = vmax.f32 %v3124, %v3246
        %v3270 = vmax.f32 %v3126, %v3248
        %v3271 = vmax.f32 %v3129, %v3251
        %v3272 = vmax.f32 %v3131, %v3253
        %v3273 = vmax.f32 %v3134, %v3256
        %v3274 = vmax.f32 %v3136, %v3258
        %v3275 = vmax.f32 %v3139, %v3261
        %v3276 = vmax.f32 %v3141, %v3263
        %v3277 = vmax.f32 %v3144, %v3266
        %v3278 = vld [vmem:[%s1124] sm:$0xff]
        %v3279 = vld [vmem:[%s1124 + $0x8] sm:$0xff]
        %v3280 = vld [vmem:[%s1124 + $0x10] sm:$0xff]
        %v3281 = vld [vmem:[%s1124 + $0x18] sm:$0xff]
        %v3282 = vld [vmem:[%s1124 + $0x20] sm:$0xff]
        %v3283 = vld [vmem:[%s1124 + $0x28] sm:$0xff]
        %v3284 = vld [vmem:[%s1124 + $0x30] sm:$0xff]
        %v3285 = vld [vmem:[%s1124 + $0x38] sm:$0xff]
        %v3286 = vld [vmem:[%s1124 + $0x40] sm:$0x77]
        %v3296 = vunpack.c.l.b16 %v3278
        %v3297 = vunpack.c.h.b16 %v3278
        %v3298 = vunpack.c.l.b16 %v3279
        %v3299 = vunpack.c.h.b16 %v3279
        %v3300 = vunpack.c.l.b16 %v3280
        %v3301 = vunpack.c.h.b16 %v3280
        %v3302 = vunpack.c.l.b16 %v3281
        %v3303 = vunpack.c.h.b16 %v3281
        %v3304 = vunpack.c.l.b16 %v3282
        %v3305 = vunpack.c.h.b16 %v3282
        %v3306 = vunpack.c.l.b16 %v3283
        %v3307 = vunpack.c.h.b16 %v3283
        %v3308 = vunpack.c.l.b16 %v3284
        %v3309 = vunpack.c.h.b16 %v3284
        %v3310 = vunpack.c.l.b16 %v3285
        %v3311 = vunpack.c.h.b16 %v3285
        %v3312 = vunpack.c.l.b16 %v3286
        %v3313 = vunpack.c.h.b16 %v3286
        %v3314 = vpack.c.b16 %v3298, %v3296
        %v3315 = vpack.c.b16 %v3299, %v3297
        %v3316 = vpack.c.b16 %v3302, %v3300
        %v3317 = vpack.c.b16 %v3303, %v3301
        %v3318 = vpack.c.b16 %v3306, %v3304
        %v3319 = vpack.c.b16 %v3307, %v3305
        %v3320 = vpack.c.b16 %v3310, %v3308
        %v3321 = vpack.c.b16 %v3311, %v3309
        %v3322 = vpack.c.b16 %v3312, %v3312
        %v3323 = vpack.c.b16 %v3313, %v3313
        %3334 = vmatpush.bf16.msra.mxu0 %v3016
        %3335 = vmatpush.bf16.msra.mxu0 %v3015
        %3336 = vmatpush.bf16.msra.mxu0 %v3014
        %3337 = vmatpush.bf16.msra.mxu0 %v3013
        %3338 = vmatpush.bf16.msra.mxu0 %v3012
        %3339 = vmatpush.bf16.msra.mxu0 %v3011
        %3340 = vmatpush.bf16.msra.mxu0 %v3010
        %3341 = vmatpush.bf16.msra.mxu0 %v3009
        %3342 = vmatmul.bf16.gmra.mxu0 %v3314
        %v3343 = vpop.f32.mrf.mxu0
        %v3344 = vadd.f32 0.0, %v3343
        %v3345 = vpop.f32.mrf.mxu0
        %v3346 = vadd.f32 0.0, %v3345
        %3347 = vmatmul.bf16.gmra.mxu0 %v3316
        %v3348 = vpop.f32.mrf.mxu0
        %v3349 = vadd.f32 0.0, %v3348
        %v3350 = vpop.f32.mrf.mxu0
        %v3351 = vadd.f32 0.0, %v3350
        %3352 = vmatmul.bf16.gmra.mxu0 %v3318
        %v3353 = vpop.f32.mrf.mxu0
        %v3354 = vadd.f32 0.0, %v3353
        %v3355 = vpop.f32.mrf.mxu0
        %v3356 = vadd.f32 0.0, %v3355
        %3357 = vmatmul.bf16.gmra.mxu0 %v3320
        %v3358 = vpop.f32.mrf.mxu0
        %v3359 = vadd.f32 0.0, %v3358
        %v3360 = vpop.f32.mrf.mxu0
        %v3361 = vadd.f32 0.0, %v3360
        %3362 = vmatmul.bf16.gmra.mxu0 %v3322
        %v3363 = vpop.f32.mrf.mxu0
        %v3364 = vadd.f32 0.0, %v3363
        %v3365 = vpop.f32.mrf.mxu0
        %3366 = vdwg.mxu0
        %3367 = vmatpush.bf16.msra.mxu0 %v3024
        %3368 = vmatpush.bf16.msra.mxu0 %v3023
        %3369 = vmatpush.bf16.msra.mxu0 %v3022
        %3370 = vmatpush.bf16.msra.mxu0 %v3021
        %3371 = vmatpush.bf16.msra.mxu0 %v3020
        %3372 = vmatpush.bf16.msra.mxu0 %v3019
        %3373 = vmatpush.bf16.msra.mxu0 %v3018
        %3374 = vmatpush.bf16.msra.mxu0 %v3017
        %3375 = vmatmul.bf16.gmra.mxu0 %v3315
        %v3376 = vpop.f32.mrf.mxu0
        %v3377 = vadd.f32 %v3344, %v3376
        %v3378 = vpop.f32.mrf.mxu0
        %v3379 = vadd.f32 %v3346, %v3378
        %3380 = vmatmul.bf16.gmra.mxu0 %v3317
        %v3381 = vpop.f32.mrf.mxu0
        %v3382 = vadd.f32 %v3349, %v3381
        %v3383 = vpop.f32.mrf.mxu0
        %v3384 = vadd.f32 %v3351, %v3383
        %3385 = vmatmul.bf16.gmra.mxu0 %v3319
        %v3386 = vpop.f32.mrf.mxu0
        %v3387 = vadd.f32 %v3354, %v3386
        %v3388 = vpop.f32.mrf.mxu0
        %v3389 = vadd.f32 %v3356, %v3388
        %3390 = vmatmul.bf16.gmra.mxu0 %v3321
        %v3391 = vpop.f32.mrf.mxu0
        %v3392 = vadd.f32 %v3359, %v3391
        %v3393 = vpop.f32.mrf.mxu0
        %v3394 = vadd.f32 %v3361, %v3393
        %3395 = vmatmul.bf16.gmra.mxu0 %v3323
        %v3396 = vpop.f32.mrf.mxu0
        %v3397 = vadd.f32 %v3364, %v3396
        %v3398 = vpop.f32.mrf.mxu0
        %3399 = vdwg.mxu0
        %v3400 = vmax.f32 %v3269, %v3377
        %v3401 = vmax.f32 %v3270, %v3379
        %v3402 = vmax.f32 %v3271, %v3382
        %v3403 = vmax.f32 %v3272, %v3384
        %v3404 = vmax.f32 %v3273, %v3387
        %v3405 = vmax.f32 %v3274, %v3389
        %v3406 = vmax.f32 %v3275, %v3392
        %v3407 = vmax.f32 %v3276, %v3394
        %v3408 = vmax.f32 %v3277, %v3397
        %v3409 = vld [vmem:[%s1256] sm:$0xff]
        %v3410 = vld [vmem:[%s1256 + $0x8] sm:$0xff]
        %v3411 = vld [vmem:[%s1256 + $0x10] sm:$0xff]
        %v3412 = vld [vmem:[%s1256 + $0x18] sm:$0xff]
        %v3413 = vld [vmem:[%s1256 + $0x20] sm:$0xff]
        %v3414 = vld [vmem:[%s1256 + $0x28] sm:$0xff]
        %v3415 = vld [vmem:[%s1256 + $0x30] sm:$0xff]
        %v3416 = vld [vmem:[%s1256 + $0x38] sm:$0xff]
        %v3417 = vld [vmem:[%s1256 + $0x40] sm:$0x77]
        %v3427 = vunpack.c.l.b16 %v3409
        %v3428 = vunpack.c.h.b16 %v3409
        %v3429 = vunpack.c.l.b16 %v3410
        %v3430 = vunpack.c.h.b16 %v3410
        %v3431 = vunpack.c.l.b16 %v3411
        %v3432 = vunpack.c.h.b16 %v3411
        %v3433 = vunpack.c.l.b16 %v3412
        %v3434 = vunpack.c.h.b16 %v3412
        %v3435 = vunpack.c.l.b16 %v3413
        %v3436 = vunpack.c.h.b16 %v3413
        %v3437 = vunpack.c.l.b16 %v3414
        %v3438 = vunpack.c.h.b16 %v3414
        %v3439 = vunpack.c.l.b16 %v3415
        %v3440 = vunpack.c.h.b16 %v3415
        %v3441 = vunpack.c.l.b16 %v3416
        %v3442 = vunpack.c.h.b16 %v3416
        %v3443 = vunpack.c.l.b16 %v3417
        %v3444 = vunpack.c.h.b16 %v3417
        %v3445 = vpack.c.b16 %v3429, %v3427
        %v3446 = vpack.c.b16 %v3430, %v3428
        %v3447 = vpack.c.b16 %v3433, %v3431
        %v3448 = vpack.c.b16 %v3434, %v3432
        %v3449 = vpack.c.b16 %v3437, %v3435
        %v3450 = vpack.c.b16 %v3438, %v3436
        %v3451 = vpack.c.b16 %v3441, %v3439
        %v3452 = vpack.c.b16 %v3442, %v3440
        %v3453 = vpack.c.b16 %v3443, %v3443
        %v3454 = vpack.c.b16 %v3444, %v3444
        %3465 = vmatpush.bf16.msra.mxu0 %v3016
        %3466 = vmatpush.bf16.msra.mxu0 %v3015
        %3467 = vmatpush.bf16.msra.mxu0 %v3014
        %3468 = vmatpush.bf16.msra.mxu0 %v3013
        %3469 = vmatpush.bf16.msra.mxu0 %v3012
        %3470 = vmatpush.bf16.msra.mxu0 %v3011
        %3471 = vmatpush.bf16.msra.mxu0 %v3010
        %3472 = vmatpush.bf16.msra.mxu0 %v3009
        %3473 = vmatmul.bf16.gmra.mxu0 %v3445
        %v3474 = vpop.f32.mrf.mxu0
        %v3475 = vadd.f32 0.0, %v3474
        %v3476 = vpop.f32.mrf.mxu0
        %v3477 = vadd.f32 0.0, %v3476
        %3478 = vmatmul.bf16.gmra.mxu0 %v3447
        %v3479 = vpop.f32.mrf.mxu0
        %v3480 = vadd.f32 0.0, %v3479
        %v3481 = vpop.f32.mrf.mxu0
        %v3482 = vadd.f32 0.0, %v3481
        %3483 = vmatmul.bf16.gmra.mxu0 %v3449
        %v3484 = vpop.f32.mrf.mxu0
        %v3485 = vadd.f32 0.0, %v3484
        %v3486 = vpop.f32.mrf.mxu0
        %v3487 = vadd.f32 0.0, %v3486
        %3488 = vmatmul.bf16.gmra.mxu0 %v3451
        %v3489 = vpop.f32.mrf.mxu0
        %v3490 = vadd.f32 0.0, %v3489
        %v3491 = vpop.f32.mrf.mxu0
        %v3492 = vadd.f32 0.0, %v3491
        %3493 = vmatmul.bf16.gmra.mxu0 %v3453
        %v3494 = vpop.f32.mrf.mxu0
        %v3495 = vadd.f32 0.0, %v3494
        %v3496 = vpop.f32.mrf.mxu0
        %3497 = vdwg.mxu0
        %3498 = vmatpush.bf16.msra.mxu0 %v3024
        %3499 = vmatpush.bf16.msra.mxu0 %v3023
        %3500 = vmatpush.bf16.msra.mxu0 %v3022
        %3501 = vmatpush.bf16.msra.mxu0 %v3021
        %3502 = vmatpush.bf16.msra.mxu0 %v3020
        %3503 = vmatpush.bf16.msra.mxu0 %v3019
        %3504 = vmatpush.bf16.msra.mxu0 %v3018
        %3505 = vmatpush.bf16.msra.mxu0 %v3017
        %3506 = vmatmul.bf16.gmra.mxu0 %v3446
        %v3507 = vpop.f32.mrf.mxu0
        %v3508 = vadd.f32 %v3475, %v3507
        %v3509 = vpop.f32.mrf.mxu0
        %v3510 = vadd.f32 %v3477, %v3509
        %3511 = vmatmul.bf16.gmra.mxu0 %v3448
        %v3512 = vpop.f32.mrf.mxu0
        %v3513 = vadd.f32 %v3480, %v3512
        %v3514 = vpop.f32.mrf.mxu0
        %v3515 = vadd.f32 %v3482, %v3514
        %3516 = vmatmul.bf16.gmra.mxu0 %v3450
        %v3517 = vpop.f32.mrf.mxu0
        %v3518 = vadd.f32 %v3485, %v3517
        %v3519 = vpop.f32.mrf.mxu0
        %v3520 = vadd.f32 %v3487, %v3519
        %3521 = vmatmul.bf16.gmra.mxu0 %v3452
        %v3522 = vpop.f32.mrf.mxu0
        %v3523 = vadd.f32 %v3490, %v3522
        %v3524 = vpop.f32.mrf.mxu0
        %v3525 = vadd.f32 %v3492, %v3524
        %3526 = vmatmul.bf16.gmra.mxu0 %v3454
        %v3527 = vpop.f32.mrf.mxu0
        %v3528 = vadd.f32 %v3495, %v3527
        %v3529 = vpop.f32.mrf.mxu0
        %3530 = vdwg.mxu0
        %v3531 = vmax.f32 %v3400, %v3508
        %v3532 = vmax.f32 %v3401, %v3510
        %v3533 = vmax.f32 %v3402, %v3513
        %v3534 = vmax.f32 %v3403, %v3515
        %v3535 = vmax.f32 %v3404, %v3518
        %v3536 = vmax.f32 %v3405, %v3520
        %v3537 = vmax.f32 %v3406, %v3523
        %v3538 = vmax.f32 %v3407, %v3525
        %v3539 = vmax.f32 %v3408, %v3528
        %v3540 = vmax.f32 %v3531, 0.0
        %v3541 = vmax.f32 %v3532, 0.0
        %v3542 = vmax.f32 %v3533, 0.0
        %v3543 = vmax.f32 %v3534, 0.0
        %v3544 = vmax.f32 %v3535, 0.0
        %v3545 = vmax.f32 %v3536, 0.0
        %v3546 = vmax.f32 %v3537, 0.0
        %v3547 = vmax.f32 %v3538, 0.0
        %v3548 = vmax.f32 %v3539, 0.0
        %v3558 = vrot.slane %v3540, 5
        %v3559 = vrot.slane %v3541, 5
        %v3560 = vsel %vm1406, %v3558, %v3559
        %v3561 = vrot.slane %v3542, 5
        %v3562 = vsel %vm1406, %v3559, %v3561
        %v3563 = vrot.slane %v3543, 5
        %v3564 = vsel %vm1406, %v3561, %v3563
        %v3565 = vrot.slane %v3544, 5
        %v3566 = vsel %vm1406, %v3563, %v3565
        %v3567 = vrot.slane %v3545, 5
        %v3568 = vsel %vm1406, %v3565, %v3567
        %v3569 = vrot.slane %v3546, 5
        %v3570 = vsel %vm1406, %v3567, %v3569
        %v3571 = vrot.slane %v3547, 5
        %v3572 = vsel %vm1406, %v3569, %v3571
        %v3573 = vrot.slane %v3548, 5
        %v3574 = vsel %vm1406, %v3571, %v3573
        %3585 = vst.msk [vmem:[#allocation2 + $0x140] sm:$0xf8] %vm1434, %v3558
        %3586 = vst.msk [vmem:[#allocation2 + $0x150] sm:$0xff] %vm440, %v3560
        %3587 = vst.msk [vmem:[#allocation2 + $0x160] sm:$0xff] %vm440, %v3562
        %3588 = vst.msk [vmem:[#allocation2 + $0x170] sm:$0xff] %vm440, %v3564
        %3589 = vst.msk [vmem:[#allocation2 + $0x180] sm:$0xff] %vm440, %v3566
        %3590 = vst.msk [vmem:[#allocation2 + $0x190] sm:$0xff] %vm440, %v3568
        %3591 = vst.msk [vmem:[#allocation2 + $0x1a0] sm:$0xff] %vm440, %v3570
        %3592 = vst.msk [vmem:[#allocation2 + $0x1b0] sm:$0xff] %vm440, %v3572
        %3593 = vst.msk [vmem:[#allocation2 + $0x1c0] sm:$0xff] %vm440, %v3574
        %3594 = vst.msk [vmem:[#allocation2 + $0x1d0] sm:$0x1] %vm1444, %v3573
        %v3595 = vrot.slane %v3540, 6
        %v3596 = vrot.slane %v3541, 6
        %v3597 = vsel %vm761, %v3595, %v3596
        %v3598 = vrot.slane %v3542, 6
        %v3599 = vsel %vm761, %v3596, %v3598
        %v3600 = vrot.slane %v3543, 6
        %v3601 = vsel %vm761, %v3598, %v3600
        %v3602 = vrot.slane %v3544, 6
        %v3603 = vsel %vm761, %v3600, %v3602
        %v3604 = vrot.slane %v3545, 6
        %v3605 = vsel %vm761, %v3602, %v3604
        %v3606 = vrot.slane %v3546, 6
        %v3607 = vsel %vm761, %v3604, %v3606
        %v3608 = vrot.slane %v3547, 6
        %v3609 = vsel %vm761, %v3606, %v3608
        %v3610 = vrot.slane %v3548, 6
        %v3611 = vsel %vm761, %v3608, %v3610
        %3612 = vrot.lane.b32.xlu0 %v3595, 32
        %v3613 = vpop.permute.xlu0 %3612
        %3614 = vrot.lane.b32.xlu0 %v3597, 32
        %v3615 = vpop.permute.xlu0 %3614
        %3616 = vrot.lane.b32.xlu0 %v3599, 32
        %v3617 = vpop.permute.xlu0 %3616
        %3618 = vrot.lane.b32.xlu0 %v3601, 32
        %v3619 = vpop.permute.xlu0 %3618
        %3620 = vrot.lane.b32.xlu0 %v3603, 32
        %v3621 = vpop.permute.xlu0 %3620
        %3622 = vrot.lane.b32.xlu0 %v3605, 32
        %v3623 = vpop.permute.xlu0 %3622
        %3624 = vrot.lane.b32.xlu0 %v3607, 32
        %v3625 = vpop.permute.xlu0 %3624
        %3626 = vrot.lane.b32.xlu0 %v3609, 32
        %v3627 = vpop.permute.xlu0 %3626
        %3628 = vrot.lane.b32.xlu0 %v3611, 32
        %v3629 = vpop.permute.xlu0 %3628
        %3639 = vst.msk [vmem:[#allocation2 + $0x140] sm:$0xfc] %vm1490, %v3613
        %3640 = vst.msk [vmem:[#allocation2 + $0x150] sm:$0xff] %vm1492, %v3615
        %3641 = vst.msk [vmem:[#allocation2 + $0x160] sm:$0xff] %vm1492, %v3617
        %3642 = vst.msk [vmem:[#allocation2 + $0x170] sm:$0xff] %vm1492, %v3619
        %3643 = vst.msk [vmem:[#allocation2 + $0x180] sm:$0xff] %vm1492, %v3621
        %3644 = vst.msk [vmem:[#allocation2 + $0x190] sm:$0xff] %vm1492, %v3623
        %3645 = vst.msk [vmem:[#allocation2 + $0x1a0] sm:$0xff] %vm1492, %v3625
        %3646 = vst.msk [vmem:[#allocation2 + $0x1b0] sm:$0xff] %vm1492, %v3627
        %3647 = vst.msk [vmem:[#allocation2 + $0x1c0] sm:$0xff] %vm1492, %v3629
        %v3648 = vrot.slane %v3540, 7
        %v3649 = vrot.slane %v3541, 7
        %v3650 = vsel %vm1501, %v3648, %v3649
        %v3651 = vrot.slane %v3542, 7
        %v3652 = vsel %vm1501, %v3649, %v3651
        %v3653 = vrot.slane %v3543, 7
        %v3654 = vsel %vm1501, %v3651, %v3653
        %v3655 = vrot.slane %v3544, 7
        %v3656 = vsel %vm1501, %v3653, %v3655
        %v3657 = vrot.slane %v3545, 7
        %v3658 = vsel %vm1501, %v3655, %v3657
        %v3659 = vrot.slane %v3546, 7
        %v3660 = vsel %vm1501, %v3657, %v3659
        %v3661 = vrot.slane %v3547, 7
        %v3662 = vsel %vm1501, %v3659, %v3661
        %v3663 = vrot.slane %v3548, 7
        %v3664 = vsel %vm1501, %v3661, %v3663
        %3665 = vrot.lane.b32.xlu0 %v3648, 64
        %v3666 = vpop.permute.xlu0 %3665
        %3667 = vrot.lane.b32.xlu0 %v3650, 64
        %v3668 = vpop.permute.xlu0 %3667
        %3669 = vrot.lane.b32.xlu0 %v3652, 64
        %v3670 = vpop.permute.xlu0 %3669
        %3671 = vrot.lane.b32.xlu0 %v3654, 64
        %v3672 = vpop.permute.xlu0 %3671
        %3673 = vrot.lane.b32.xlu0 %v3656, 64
        %v3674 = vpop.permute.xlu0 %3673
        %3675 = vrot.lane.b32.xlu0 %v3658, 64
        %v3676 = vpop.permute.xlu0 %3675
        %3677 = vrot.lane.b32.xlu0 %v3660, 64
        %v3678 = vpop.permute.xlu0 %3677
        %3679 = vrot.lane.b32.xlu0 %v3662, 64
        %v3680 = vpop.permute.xlu0 %3679
        %3681 = vrot.lane.b32.xlu0 %v3664, 64
        %v3682 = vpop.permute.xlu0 %3681
        %3692 = vst.msk [vmem:[#allocation2 + $0x140] sm:$0xfe] %vm1546, %v3666
        %3693 = vst.msk [vmem:[#allocation2 + $0x150] sm:$0xff] %vm1548, %v3668
        %3694 = vst.msk [vmem:[#allocation2 + $0x160] sm:$0xff] %vm1548, %v3670
        %3695 = vst.msk [vmem:[#allocation2 + $0x170] sm:$0xff] %vm1548, %v3672
        %3696 = vst.msk [vmem:[#allocation2 + $0x180] sm:$0xff] %vm1548, %v3674
        %3697 = vst.msk [vmem:[#allocation2 + $0x190] sm:$0xff] %vm1548, %v3676
        %3698 = vst.msk [vmem:[#allocation2 + $0x1a0] sm:$0xff] %vm1548, %v3678
        %3699 = vst.msk [vmem:[#allocation2 + $0x1b0] sm:$0xff] %vm1548, %v3680
        %3700 = vst.msk [vmem:[#allocation2 + $0x1c0] sm:$0x7f] %vm1556, %v3682
        %3701 = vrot.lane.b32.xlu0 %v3540, 96
        %v3702 = vpop.permute.xlu0 %3701
        %3703 = vrot.lane.b32.xlu0 %v3541, 96
        %v3704 = vpop.permute.xlu0 %3703
        %3705 = vrot.lane.b32.xlu0 %v3542, 96
        %v3706 = vpop.permute.xlu0 %3705
        %3707 = vrot.lane.b32.xlu0 %v3543, 96
        %v3708 = vpop.permute.xlu0 %3707
        %3709 = vrot.lane.b32.xlu0 %v3544, 96
        %v3710 = vpop.permute.xlu0 %3709
        %3711 = vrot.lane.b32.xlu0 %v3545, 96
        %v3712 = vpop.permute.xlu0 %3711
        %3713 = vrot.lane.b32.xlu0 %v3546, 96
        %v3714 = vpop.permute.xlu0 %3713
        %3715 = vrot.lane.b32.xlu0 %v3547, 96
        %v3716 = vpop.permute.xlu0 %3715
        %3717 = vrot.lane.b32.xlu0 %v3548, 96
        %v3718 = vpop.permute.xlu0 %3717
        %3728 = vst.msk [vmem:[#allocation2 + $0x140] sm:$0xff] %vm1585, %v3702
        %3729 = vst.msk [vmem:[#allocation2 + $0x150] sm:$0xff] %vm1585, %v3704
        %3730 = vst.msk [vmem:[#allocation2 + $0x160] sm:$0xff] %vm1585, %v3706
        %3731 = vst.msk [vmem:[#allocation2 + $0x170] sm:$0xff] %vm1585, %v3708
        %3732 = vst.msk [vmem:[#allocation2 + $0x180] sm:$0xff] %vm1585, %v3710
        %3733 = vst.msk [vmem:[#allocation2 + $0x190] sm:$0xff] %vm1585, %v3712
        %3734 = vst.msk [vmem:[#allocation2 + $0x1a0] sm:$0xff] %vm1585, %v3714
        %3735 = vst.msk [vmem:[#allocation2 + $0x1b0] sm:$0xff] %vm1585, %v3716
        %3736 = vst.msk [vmem:[#allocation2 + $0x1c0] sm:$0x3f] %vm1594, %v3718
        %v3737 = vrot.slane %v3540, 1
        %v3738 = vrot.slane %v3541, 1
        %v3739 = vsel %vm1596, %v3737, %v3738
        %v3740 = vrot.slane %v3542, 1
        %v3741 = vsel %vm1596, %v3738, %v3740
        %v3742 = vrot.slane %v3543, 1
        %v3743 = vsel %vm1596, %v3740, %v3742
        %v3744 = vrot.slane %v3544, 1
        %v3745 = vsel %vm1596, %v3742, %v3744
        %v3746 = vrot.slane %v3545, 1
        %v3747 = vsel %vm1596, %v3744, %v3746
        %v3748 = vrot.slane %v3546, 1
        %v3749 = vsel %vm1596, %v3746, %v3748
        %v3750 = vrot.slane %v3547, 1
        %v3751 = vsel %vm1596, %v3748, %v3750
        %v3752 = vrot.slane %v3548, 1
        %v3753 = vsel %vm1596, %v3750, %v3752
        %3764 = vst.msk [vmem:[#allocation2 + $0x138] sm:$0x80] %vm1624, %v3737
        %3765 = vst.msk [vmem:[#allocation2 + $0x148] sm:$0xff] %vm440, %v3739
        %3766 = vst.msk [vmem:[#allocation2 + $0x158] sm:$0xff] %vm440, %v3741
        %3767 = vst.msk [vmem:[#allocation2 + $0x168] sm:$0xff] %vm440, %v3743
        %3768 = vst.msk [vmem:[#allocation2 + $0x178] sm:$0xff] %vm440, %v3745
        %3769 = vst.msk [vmem:[#allocation2 + $0x188] sm:$0xff] %vm440, %v3747
        %3770 = vst.msk [vmem:[#allocation2 + $0x198] sm:$0xff] %vm440, %v3749
        %3771 = vst.msk [vmem:[#allocation2 + $0x1a8] sm:$0xff] %vm440, %v3751
        %3772 = vst.msk [vmem:[#allocation2 + $0x1b8] sm:$0xff] %vm440, %v3753
        %3773 = vst.msk [vmem:[#allocation2 + $0x1c8] sm:$0x1f] %vm1634, %v3752
        %v3774 = vld [vmem:[%s437 + $0x180] sm:$0xf]
        %v3775 = vld [vmem:[%s437 + $0x184] sm:$0xf]
        %v3776 = vld [vmem:[%s437 + $0x188] sm:$0xf]
        %v3777 = vld [vmem:[%s437 + $0x18c] sm:$0xf]
        %v3778 = vld [vmem:[%s437 + $0x190] sm:$0xf]
        %v3779 = vld [vmem:[%s437 + $0x194] sm:$0xf]
        %v3780 = vld [vmem:[%s437 + $0x198] sm:$0xf]
        %v3781 = vld [vmem:[%s437 + $0x19c] sm:$0xf]
        %v3782 = vld [vmem:[%s437 + $0x1a0] sm:$0xf]
        %v3783 = vld [vmem:[%s437 + $0x1a4] sm:$0xf]
        %v3784 = vld [vmem:[%s437 + $0x1a8] sm:$0xf]
        %v3785 = vld [vmem:[%s437 + $0x1ac] sm:$0xf]
        %v3786 = vld [vmem:[%s437 + $0x1b0] sm:$0xf]
        %v3787 = vld [vmem:[%s437 + $0x1b4] sm:$0xf]
        %v3788 = vld [vmem:[%s437 + $0x1b8] sm:$0xf]
        %v3789 = vld [vmem:[%s437 + $0x1bc] sm:$0xf]
        %v3790 = vld [vmem:[%s437 + $0x1c0] sm:$0xf]
        %v3791 = vld [vmem:[%s437 + $0x1c4] sm:$0xf]
        %v3792 = vld [vmem:[%s437 + $0x1c8] sm:$0xf]
        %v3793 = vld [vmem:[%s437 + $0x1cc] sm:$0xf]
        %v3794 = vld [vmem:[%s437 + $0x1d0] sm:$0xf]
        %v3795 = vld [vmem:[%s437 + $0x1d4] sm:$0xf]
        %v3796 = vld [vmem:[%s437 + $0x1d8] sm:$0xf]
        %v3797 = vld [vmem:[%s437 + $0x1dc] sm:$0xf]
        %v3798 = vld [vmem:[%s437 + $0x1e0] sm:$0xf]
        %v3799 = vld [vmem:[%s437 + $0x1e4] sm:$0xf]
        %v3800 = vld [vmem:[%s437 + $0x1e8] sm:$0xf]
        %v3801 = vld [vmem:[%s437 + $0x1ec] sm:$0xf]
        %v3802 = vld [vmem:[%s437 + $0x1f0] sm:$0xf]
        %v3803 = vld [vmem:[%s437 + $0x1f4] sm:$0xf]
        %v3804 = vld [vmem:[%s437 + $0x1f8] sm:$0xf]
        %v3805 = vld [vmem:[%s437 + $0x1fc] sm:$0xf]
        %v3806 = vld [vmem:[%s1] sm:$0xf]
        %v3807 = vld [vmem:[%s1 + $0x4] sm:$0xf]
        %v3808 = vld [vmem:[%s1 + $0x8] sm:$0xf]
        %v3809 = vld [vmem:[%s1 + $0xc] sm:$0xf]
        %v3810 = vld [vmem:[%s1 + $0x10] sm:$0xf]
        %v3811 = vld [vmem:[%s1 + $0x14] sm:$0xf]
        %v3812 = vld [vmem:[%s1 + $0x18] sm:$0xf]
        %v3813 = vld [vmem:[%s1 + $0x1c] sm:$0xf]
        %v3814 = vld [vmem:[%s1 + $0x20] sm:$0xf]
        %v3815 = vld [vmem:[%s1 + $0x24] sm:$0xf]
        %v3816 = vld [vmem:[%s1 + $0x28] sm:$0xf]
        %v3817 = vld [vmem:[%s1 + $0x2c] sm:$0xf]
        %v3818 = vld [vmem:[%s1 + $0x30] sm:$0x3]
        %v3851 = vunpack.c.l.b16 %v3774
        %v3852 = vunpack.c.l.b16 %v3775
        %v3853 = vunpack.c.l.b16 %v3776
        %v3854 = vunpack.c.l.b16 %v3777
        %v3855 = vunpack.c.l.b16 %v3778
        %v3856 = vunpack.c.l.b16 %v3779
        %v3857 = vunpack.c.l.b16 %v3780
        %v3858 = vunpack.c.l.b16 %v3781
        %v3859 = vunpack.c.l.b16 %v3782
        %v3860 = vunpack.c.l.b16 %v3783
        %v3861 = vunpack.c.l.b16 %v3784
        %v3862 = vunpack.c.l.b16 %v3785
        %v3863 = vunpack.c.l.b16 %v3786
        %v3864 = vunpack.c.l.b16 %v3787
        %v3865 = vunpack.c.l.b16 %v3788
        %v3866 = vunpack.c.l.b16 %v3789
        %v3867 = vunpack.c.l.b16 %v3790
        %v3868 = vunpack.c.l.b16 %v3791
        %v3869 = vunpack.c.l.b16 %v3792
        %v3870 = vunpack.c.l.b16 %v3793
        %v3871 = vunpack.c.l.b16 %v3794
        %v3872 = vunpack.c.l.b16 %v3795
        %v3873 = vunpack.c.l.b16 %v3796
        %v3874 = vunpack.c.l.b16 %v3797
        %v3875 = vunpack.c.l.b16 %v3798
        %v3876 = vunpack.c.l.b16 %v3799
        %v3877 = vunpack.c.l.b16 %v3800
        %v3878 = vunpack.c.l.b16 %v3801
        %v3879 = vunpack.c.l.b16 %v3802
        %v3880 = vunpack.c.l.b16 %v3803
        %v3881 = vunpack.c.l.b16 %v3804
        %v3882 = vunpack.c.l.b16 %v3805
        %v3883 = vpack.c.b16 %v3852, %v3851
        %v3884 = vpack.c.b16 %v3854, %v3853
        %v3885 = vpack.c.b16 %v3856, %v3855
        %v3886 = vpack.c.b16 %v3858, %v3857
        %v3887 = vpack.c.b16 %v3860, %v3859
        %v3888 = vpack.c.b16 %v3862, %v3861
        %v3889 = vpack.c.b16 %v3864, %v3863
        %v3890 = vpack.c.b16 %v3866, %v3865
        %v3891 = vpack.c.b16 %v3868, %v3867
        %v3892 = vpack.c.b16 %v3870, %v3869
        %v3893 = vpack.c.b16 %v3872, %v3871
        %v3894 = vpack.c.b16 %v3874, %v3873
        %v3895 = vpack.c.b16 %v3876, %v3875
        %v3896 = vpack.c.b16 %v3878, %v3877
        %v3897 = vpack.c.b16 %v3880, %v3879
        %v3898 = vpack.c.b16 %v3882, %v3881
        %v3912 = vunpack.c.l.b16 %v3806
        %v3913 = vunpack.c.l.b16 %v3807
        %v3914 = vunpack.c.l.b16 %v3808
        %v3915 = vunpack.c.l.b16 %v3809
        %v3916 = vunpack.c.l.b16 %v3810
        %v3917 = vunpack.c.l.b16 %v3811
        %v3918 = vunpack.c.l.b16 %v3812
        %v3919 = vunpack.c.l.b16 %v3813
        %v3920 = vunpack.c.l.b16 %v3814
        %v3921 = vunpack.c.l.b16 %v3815
        %v3922 = vunpack.c.l.b16 %v3816
        %v3923 = vunpack.c.l.b16 %v3817
        %v3924 = vunpack.c.l.b16 %v3818
        %v3925 = vpack.c.b16 %v3913, %v3912
        %v3926 = vpack.c.b16 %v3915, %v3914
        %v3927 = vpack.c.b16 %v3917, %v3916
        %v3928 = vpack.c.b16 %v3919, %v3918
        %v3929 = vpack.c.b16 %v3921, %v3920
        %v3930 = vpack.c.b16 %v3923, %v3922
        %v3931 = vpack.c.b16 %v3924, %v3924
        %v3939 = vsel %vm712, %v3883, 0
        %v3942 = vsel %vm712, %v3884, 0
        %v3945 = vsel %vm712, %v3885, 0
        %v3948 = vsel %vm712, %v3886, 0
        %v3951 = vsel %vm712, %v3887, 0
        %v3954 = vsel %vm712, %v3888, 0
        %v3957 = vsel %vm712, %v3889, 0
        %v3960 = vsel %vm712, %v3890, 0
        %v3963 = vsel %vm712, %v3891, 0
        %v3966 = vsel %vm712, %v3892, 0
        %v3969 = vsel %vm712, %v3893, 0
        %v3972 = vsel %vm712, %v3894, 0
        %v3975 = vsel %vm712, %v3895, 0
        %v3978 = vsel %vm712, %v3896, 0
        %v3981 = vsel %vm712, %v3897, 0
        %v3984 = vsel %vm712, %v3898, 0
        %v3987 = vsel %vm761, %v3931, 0
        %3989 = vmatpush.bf16.msra.mxu0 0
        %3990 = vmatpush.bf16.msra.mxu0 %v3987
        %3991 = vmatpush.bf16.msra.mxu0 %v3930
        %3992 = vmatpush.bf16.msra.mxu0 %v3929
        %3993 = vmatpush.bf16.msra.mxu0 %v3928
        %3994 = vmatpush.bf16.msra.mxu0 %v3927
        %3995 = vmatpush.bf16.msra.mxu0 %v3926
        %3996 = vmatpush.bf16.msra.mxu0 %v3925
        %3997 = vmatmul.bf16.gmra.mxu0 %v3939
        %v3998 = vpop.f32.mrf.mxu0
        %v3999 = vadd.f32 %v591, %v3998
        %v4000 = vpop.f32.mrf.mxu0
        %v4001 = vadd.f32 %v591, %v4000
        %4002 = vmatmul.bf16.gmra.mxu0 %v3942
        %v4003 = vpop.f32.mrf.mxu0
        %v4004 = vadd.f32 %v591, %v4003
        %v4005 = vpop.f32.mrf.mxu0
        %v4006 = vadd.f32 %v591, %v4005
        %4007 = vmatmul.bf16.gmra.mxu0 %v3945
        %v4008 = vpop.f32.mrf.mxu0
        %v4009 = vadd.f32 %v591, %v4008
        %v4010 = vpop.f32.mrf.mxu0
        %v4011 = vadd.f32 %v591, %v4010
        %4012 = vmatmul.bf16.gmra.mxu0 %v3948
        %v4013 = vpop.f32.mrf.mxu0
        %v4014 = vadd.f32 %v591, %v4013
        %v4015 = vpop.f32.mrf.mxu0
        %v4016 = vadd.f32 %v591, %v4015
        %4017 = vmatmul.bf16.gmra.mxu0 %v3951
        %v4018 = vpop.f32.mrf.mxu0
        %v4019 = vadd.f32 %v591, %v4018
        %v4020 = vpop.f32.mrf.mxu0
        %v4021 = vadd.f32 %v591, %v4020
        %4022 = vmatmul.bf16.gmra.mxu0 %v3954
        %v4023 = vpop.f32.mrf.mxu0
        %v4024 = vadd.f32 %v591, %v4023
        %v4025 = vpop.f32.mrf.mxu0
        %v4026 = vadd.f32 %v591, %v4025
        %4027 = vmatmul.bf16.gmra.mxu0 %v3957
        %v4028 = vpop.f32.mrf.mxu0
        %v4029 = vadd.f32 %v591, %v4028
        %v4030 = vpop.f32.mrf.mxu0
        %v4031 = vadd.f32 %v591, %v4030
        %4032 = vmatmul.bf16.gmra.mxu0 %v3960
        %v4033 = vpop.f32.mrf.mxu0
        %v4034 = vadd.f32 %v591, %v4033
        %v4035 = vpop.f32.mrf.mxu0
        %v4036 = vadd.f32 %v591, %v4035
        %4037 = vmatmul.bf16.gmra.mxu0 %v3963
        %v4038 = vpop.f32.mrf.mxu0
        %v4039 = vadd.f32 %v591, %v4038
        %v4040 = vpop.f32.mrf.mxu0
        %v4041 = vadd.f32 %v591, %v4040
        %4042 = vmatmul.bf16.gmra.mxu0 %v3966
        %v4043 = vpop.f32.mrf.mxu0
        %v4044 = vadd.f32 %v591, %v4043
        %v4045 = vpop.f32.mrf.mxu0
        %v4046 = vadd.f32 %v591, %v4045
        %4047 = vmatmul.bf16.gmra.mxu0 %v3969
        %v4048 = vpop.f32.mrf.mxu0
        %v4049 = vadd.f32 %v591, %v4048
        %v4050 = vpop.f32.mrf.mxu0
        %v4051 = vadd.f32 %v591, %v4050
        %4052 = vmatmul.bf16.gmra.mxu0 %v3972
        %v4053 = vpop.f32.mrf.mxu0
        %v4054 = vadd.f32 %v591, %v4053
        %v4055 = vpop.f32.mrf.mxu0
        %v4056 = vadd.f32 %v591, %v4055
        %4057 = vmatmul.bf16.gmra.mxu0 %v3975
        %v4058 = vpop.f32.mrf.mxu0
        %v4059 = vadd.f32 %v591, %v4058
        %v4060 = vpop.f32.mrf.mxu0
        %v4061 = vadd.f32 %v591, %v4060
        %4062 = vmatmul.bf16.gmra.mxu0 %v3978
        %v4063 = vpop.f32.mrf.mxu0
        %v4064 = vadd.f32 %v591, %v4063
        %v4065 = vpop.f32.mrf.mxu0
        %v4066 = vadd.f32 %v591, %v4065
        %4067 = vmatmul.bf16.gmra.mxu0 %v3981
        %v4068 = vpop.f32.mrf.mxu0
        %v4069 = vadd.f32 %v591, %v4068
        %v4070 = vpop.f32.mrf.mxu0
        %v4071 = vadd.f32 %v591, %v4070
        %4072 = vmatmul.bf16.gmra.mxu0 %v3984
        %v4073 = vpop.f32.mrf.mxu0
        %v4074 = vadd.f32 %v591, %v4073
        %v4075 = vpop.f32.mrf.mxu0
        %v4076 = vadd.f32 %v591, %v4075
        %4077 = vdwg.mxu0
        %v4078 = vpack.c.bf16 %v4001, %v3999
        %v4079 = vpack.c.bf16 %v4006, %v4004
        %v4080 = vpack.c.bf16 %v4011, %v4009
        %v4081 = vpack.c.bf16 %v4016, %v4014
        %v4082 = vpack.c.bf16 %v4021, %v4019
        %v4083 = vpack.c.bf16 %v4026, %v4024
        %v4084 = vpack.c.bf16 %v4031, %v4029
        %v4085 = vpack.c.bf16 %v4036, %v4034
        %v4086 = vpack.c.bf16 %v4041, %v4039
        %v4087 = vpack.c.bf16 %v4046, %v4044
        %v4088 = vpack.c.bf16 %v4051, %v4049
        %v4089 = vpack.c.bf16 %v4056, %v4054
        %v4090 = vpack.c.bf16 %v4061, %v4059
        %v4091 = vpack.c.bf16 %v4066, %v4064
        %v4092 = vpack.c.bf16 %v4071, %v4069
        %v4093 = vpack.c.bf16 %v4076, %v4074
        %v4094 = vld [vmem:[%s3] sm:$0xff]
        %v4095 = vld [vmem:[%s3 + $0x8] sm:$0xff]
        %v4096 = vld [vmem:[%s3 + $0x10] sm:$0xff]
        %v4097 = vld [vmem:[%s3 + $0x18] sm:$0xff]
        %v4098 = vld [vmem:[%s3 + $0x20] sm:$0xff]
        %v4099 = vld [vmem:[%s3 + $0x28] sm:$0xff]
        %v4100 = vld [vmem:[%s3 + $0x30] sm:$0xff]
        %v4101 = vld [vmem:[%s3 + $0x38] sm:$0xff]
        %v4102 = vld [vmem:[%s3 + $0x40] sm:$0x77]
        %v4112 = vunpack.c.l.b16 %v4094
        %v4113 = vunpack.c.h.b16 %v4094
        %v4114 = vunpack.c.l.b16 %v4095
        %v4115 = vunpack.c.h.b16 %v4095
        %v4116 = vunpack.c.l.b16 %v4096
        %v4117 = vunpack.c.h.b16 %v4096
        %v4118 = vunpack.c.l.b16 %v4097
        %v4119 = vunpack.c.h.b16 %v4097
        %v4120 = vunpack.c.l.b16 %v4098
        %v4121 = vunpack.c.h.b16 %v4098
        %v4122 = vunpack.c.l.b16 %v4099
        %v4123 = vunpack.c.h.b16 %v4099
        %v4124 = vunpack.c.l.b16 %v4100
        %v4125 = vunpack.c.h.b16 %v4100
        %v4126 = vunpack.c.l.b16 %v4101
        %v4127 = vunpack.c.h.b16 %v4101
        %v4128 = vunpack.c.l.b16 %v4102
        %v4129 = vunpack.c.h.b16 %v4102
        %v4130 = vpack.c.b16 %v4114, %v4112
        %v4131 = vpack.c.b16 %v4115, %v4113
        %v4132 = vpack.c.b16 %v4118, %v4116
        %v4133 = vpack.c.b16 %v4119, %v4117
        %v4134 = vpack.c.b16 %v4122, %v4120
        %v4135 = vpack.c.b16 %v4123, %v4121
        %v4136 = vpack.c.b16 %v4126, %v4124
        %v4137 = vpack.c.b16 %v4127, %v4125
        %v4138 = vpack.c.b16 %v4128, %v4128
        %v4139 = vpack.c.b16 %v4129, %v4129
        %4150 = vmatpush.bf16.msra.mxu0 %v4085
        %4151 = vmatpush.bf16.msra.mxu0 %v4084
        %4152 = vmatpush.bf16.msra.mxu0 %v4083
        %4153 = vmatpush.bf16.msra.mxu0 %v4082
        %4154 = vmatpush.bf16.msra.mxu0 %v4081
        %4155 = vmatpush.bf16.msra.mxu0 %v4080
        %4156 = vmatpush.bf16.msra.mxu0 %v4079
        %4157 = vmatpush.bf16.msra.mxu0 %v4078
        %4158 = vmatmul.bf16.gmra.mxu0 %v4130
        %v4159 = vpop.f32.mrf.mxu0
        %v4160 = vadd.f32 0.0, %v4159
        %v4161 = vpop.f32.mrf.mxu0
        %v4162 = vadd.f32 0.0, %v4161
        %4163 = vmatmul.bf16.gmra.mxu0 %v4132
        %v4164 = vpop.f32.mrf.mxu0
        %v4165 = vadd.f32 0.0, %v4164
        %v4166 = vpop.f32.mrf.mxu0
        %v4167 = vadd.f32 0.0, %v4166
        %4168 = vmatmul.bf16.gmra.mxu0 %v4134
        %v4169 = vpop.f32.mrf.mxu0
        %v4170 = vadd.f32 0.0, %v4169
        %v4171 = vpop.f32.mrf.mxu0
        %v4172 = vadd.f32 0.0, %v4171
        %4173 = vmatmul.bf16.gmra.mxu0 %v4136
        %v4174 = vpop.f32.mrf.mxu0
        %v4175 = vadd.f32 0.0, %v4174
        %v4176 = vpop.f32.mrf.mxu0
        %v4177 = vadd.f32 0.0, %v4176
        %4178 = vmatmul.bf16.gmra.mxu0 %v4138
        %v4179 = vpop.f32.mrf.mxu0
        %v4180 = vadd.f32 0.0, %v4179
        %v4181 = vpop.f32.mrf.mxu0
        %4182 = vdwg.mxu0
        %4183 = vmatpush.bf16.msra.mxu0 %v4093
        %4184 = vmatpush.bf16.msra.mxu0 %v4092
        %4185 = vmatpush.bf16.msra.mxu0 %v4091
        %4186 = vmatpush.bf16.msra.mxu0 %v4090
        %4187 = vmatpush.bf16.msra.mxu0 %v4089
        %4188 = vmatpush.bf16.msra.mxu0 %v4088
        %4189 = vmatpush.bf16.msra.mxu0 %v4087
        %4190 = vmatpush.bf16.msra.mxu0 %v4086
        %4191 = vmatmul.bf16.gmra.mxu0 %v4131
        %v4192 = vpop.f32.mrf.mxu0
        %v4193 = vadd.f32 %v4160, %v4192
        %v4194 = vpop.f32.mrf.mxu0
        %v4195 = vadd.f32 %v4162, %v4194
        %4196 = vmatmul.bf16.gmra.mxu0 %v4133
        %v4197 = vpop.f32.mrf.mxu0
        %v4198 = vadd.f32 %v4165, %v4197
        %v4199 = vpop.f32.mrf.mxu0
        %v4200 = vadd.f32 %v4167, %v4199
        %4201 = vmatmul.bf16.gmra.mxu0 %v4135
        %v4202 = vpop.f32.mrf.mxu0
        %v4203 = vadd.f32 %v4170, %v4202
        %v4204 = vpop.f32.mrf.mxu0
        %v4205 = vadd.f32 %v4172, %v4204
        %4206 = vmatmul.bf16.gmra.mxu0 %v4137
        %v4207 = vpop.f32.mrf.mxu0
        %v4208 = vadd.f32 %v4175, %v4207
        %v4209 = vpop.f32.mrf.mxu0
        %v4210 = vadd.f32 %v4177, %v4209
        %4211 = vmatmul.bf16.gmra.mxu0 %v4139
        %v4212 = vpop.f32.mrf.mxu0
        %v4213 = vadd.f32 %v4180, %v4212
        %v4214 = vpop.f32.mrf.mxu0
        %4215 = vdwg.mxu0
        %v4216 = vld [vmem:[%s992] sm:$0xff]
        %v4217 = vld [vmem:[%s992 + $0x8] sm:$0xff]
        %v4218 = vld [vmem:[%s992 + $0x10] sm:$0xff]
        %v4219 = vld [vmem:[%s992 + $0x18] sm:$0xff]
        %v4220 = vld [vmem:[%s992 + $0x20] sm:$0xff]
        %v4221 = vld [vmem:[%s992 + $0x28] sm:$0xff]
        %v4222 = vld [vmem:[%s992 + $0x30] sm:$0xff]
        %v4223 = vld [vmem:[%s992 + $0x38] sm:$0xff]
        %v4224 = vld [vmem:[%s992 + $0x40] sm:$0x77]
        %v4234 = vunpack.c.l.b16 %v4216
        %v4235 = vunpack.c.h.b16 %v4216
        %v4236 = vunpack.c.l.b16 %v4217
        %v4237 = vunpack.c.h.b16 %v4217
        %v4238 = vunpack.c.l.b16 %v4218
        %v4239 = vunpack.c.h.b16 %v4218
        %v4240 = vunpack.c.l.b16 %v4219
        %v4241 = vunpack.c.h.b16 %v4219
        %v4242 = vunpack.c.l.b16 %v4220
        %v4243 = vunpack.c.h.b16 %v4220
        %v4244 = vunpack.c.l.b16 %v4221
        %v4245 = vunpack.c.h.b16 %v4221
        %v4246 = vunpack.c.l.b16 %v4222
        %v4247 = vunpack.c.h.b16 %v4222
        %v4248 = vunpack.c.l.b16 %v4223
        %v4249 = vunpack.c.h.b16 %v4223
        %v4250 = vunpack.c.l.b16 %v4224
        %v4251 = vunpack.c.h.b16 %v4224
        %v4252 = vpack.c.b16 %v4236, %v4234
        %v4253 = vpack.c.b16 %v4237, %v4235
        %v4254 = vpack.c.b16 %v4240, %v4238
        %v4255 = vpack.c.b16 %v4241, %v4239
        %v4256 = vpack.c.b16 %v4244, %v4242
        %v4257 = vpack.c.b16 %v4245, %v4243
        %v4258 = vpack.c.b16 %v4248, %v4246
        %v4259 = vpack.c.b16 %v4249, %v4247
        %v4260 = vpack.c.b16 %v4250, %v4250
        %v4261 = vpack.c.b16 %v4251, %v4251
        %4272 = vmatpush.bf16.msra.mxu0 %v4085
        %4273 = vmatpush.bf16.msra.mxu0 %v4084
        %4274 = vmatpush.bf16.msra.mxu0 %v4083
        %4275 = vmatpush.bf16.msra.mxu0 %v4082
        %4276 = vmatpush.bf16.msra.mxu0 %v4081
        %4277 = vmatpush.bf16.msra.mxu0 %v4080
        %4278 = vmatpush.bf16.msra.mxu0 %v4079
        %4279 = vmatpush.bf16.msra.mxu0 %v4078
        %4280 = vmatmul.bf16.gmra.mxu0 %v4252
        %v4281 = vpop.f32.mrf.mxu0
        %v4282 = vadd.f32 0.0, %v4281
        %v4283 = vpop.f32.mrf.mxu0
        %v4284 = vadd.f32 0.0, %v4283
        %4285 = vmatmul.bf16.gmra.mxu0 %v4254
        %v4286 = vpop.f32.mrf.mxu0
        %v4287 = vadd.f32 0.0, %v4286
        %v4288 = vpop.f32.mrf.mxu0
        %v4289 = vadd.f32 0.0, %v4288
        %4290 = vmatmul.bf16.gmra.mxu0 %v4256
        %v4291 = vpop.f32.mrf.mxu0
        %v4292 = vadd.f32 0.0, %v4291
        %v4293 = vpop.f32.mrf.mxu0
        %v4294 = vadd.f32 0.0, %v4293
        %4295 = vmatmul.bf16.gmra.mxu0 %v4258
        %v4296 = vpop.f32.mrf.mxu0
        %v4297 = vadd.f32 0.0, %v4296
        %v4298 = vpop.f32.mrf.mxu0
        %v4299 = vadd.f32 0.0, %v4298
        %4300 = vmatmul.bf16.gmra.mxu0 %v4260
        %v4301 = vpop.f32.mrf.mxu0
        %v4302 = vadd.f32 0.0, %v4301
        %v4303 = vpop.f32.mrf.mxu0
        %4304 = vdwg.mxu0
        %4305 = vmatpush.bf16.msra.mxu0 %v4093
        %4306 = vmatpush.bf16.msra.mxu0 %v4092
        %4307 = vmatpush.bf16.msra.mxu0 %v4091
        %4308 = vmatpush.bf16.msra.mxu0 %v4090
        %4309 = vmatpush.bf16.msra.mxu0 %v4089
        %4310 = vmatpush.bf16.msra.mxu0 %v4088
        %4311 = vmatpush.bf16.msra.mxu0 %v4087
        %4312 = vmatpush.bf16.msra.mxu0 %v4086
        %4313 = vmatmul.bf16.gmra.mxu0 %v4253
        %v4314 = vpop.f32.mrf.mxu0
        %v4315 = vadd.f32 %v4282, %v4314
        %v4316 = vpop.f32.mrf.mxu0
        %v4317 = vadd.f32 %v4284, %v4316
        %4318 = vmatmul.bf16.gmra.mxu0 %v4255
        %v4319 = vpop.f32.mrf.mxu0
        %v4320 = vadd.f32 %v4287, %v4319
        %v4321 = vpop.f32.mrf.mxu0
        %v4322 = vadd.f32 %v4289, %v4321
        %4323 = vmatmul.bf16.gmra.mxu0 %v4257
        %v4324 = vpop.f32.mrf.mxu0
        %v4325 = vadd.f32 %v4292, %v4324
        %v4326 = vpop.f32.mrf.mxu0
        %v4327 = vadd.f32 %v4294, %v4326
        %4328 = vmatmul.bf16.gmra.mxu0 %v4259
        %v4329 = vpop.f32.mrf.mxu0
        %v4330 = vadd.f32 %v4297, %v4329
        %v4331 = vpop.f32.mrf.mxu0
        %v4332 = vadd.f32 %v4299, %v4331
        %4333 = vmatmul.bf16.gmra.mxu0 %v4261
        %v4334 = vpop.f32.mrf.mxu0
        %v4335 = vadd.f32 %v4302, %v4334
        %v4336 = vpop.f32.mrf.mxu0
        %4337 = vdwg.mxu0
        %v4338 = vmax.f32 %v4193, %v4315
        %v4339 = vmax.f32 %v4195, %v4317
        %v4340 = vmax.f32 %v4198, %v4320
        %v4341 = vmax.f32 %v4200, %v4322
        %v4342 = vmax.f32 %v4203, %v4325
        %v4343 = vmax.f32 %v4205, %v4327
        %v4344 = vmax.f32 %v4208, %v4330
        %v4345 = vmax.f32 %v4210, %v4332
        %v4346 = vmax.f32 %v4213, %v4335
        %v4347 = vld [vmem:[%s1124] sm:$0xff]
        %v4348 = vld [vmem:[%s1124 + $0x8] sm:$0xff]
        %v4349 = vld [vmem:[%s1124 + $0x10] sm:$0xff]
        %v4350 = vld [vmem:[%s1124 + $0x18] sm:$0xff]
        %v4351 = vld [vmem:[%s1124 + $0x20] sm:$0xff]
        %v4352 = vld [vmem:[%s1124 + $0x28] sm:$0xff]
        %v4353 = vld [vmem:[%s1124 + $0x30] sm:$0xff]
        %v4354 = vld [vmem:[%s1124 + $0x38] sm:$0xff]
        %v4355 = vld [vmem:[%s1124 + $0x40] sm:$0x77]
        %v4365 = vunpack.c.l.b16 %v4347
        %v4366 = vunpack.c.h.b16 %v4347
        %v4367 = vunpack.c.l.b16 %v4348
        %v4368 = vunpack.c.h.b16 %v4348
        %v4369 = vunpack.c.l.b16 %v4349
        %v4370 = vunpack.c.h.b16 %v4349
        %v4371 = vunpack.c.l.b16 %v4350
        %v4372 = vunpack.c.h.b16 %v4350
        %v4373 = vunpack.c.l.b16 %v4351
        %v4374 = vunpack.c.h.b16 %v4351
        %v4375 = vunpack.c.l.b16 %v4352
        %v4376 = vunpack.c.h.b16 %v4352
        %v4377 = vunpack.c.l.b16 %v4353
        %v4378 = vunpack.c.h.b16 %v4353
        %v4379 = vunpack.c.l.b16 %v4354
        %v4380 = vunpack.c.h.b16 %v4354
        %v4381 = vunpack.c.l.b16 %v4355
        %v4382 = vunpack.c.h.b16 %v4355
        %v4383 = vpack.c.b16 %v4367, %v4365
        %v4384 = vpack.c.b16 %v4368, %v4366
        %v4385 = vpack.c.b16 %v4371, %v4369
        %v4386 = vpack.c.b16 %v4372, %v4370
        %v4387 = vpack.c.b16 %v4375, %v4373
        %v4388 = vpack.c.b16 %v4376, %v4374
        %v4389 = vpack.c.b16 %v4379, %v4377
        %v4390 = vpack.c.b16 %v4380, %v4378
        %v4391 = vpack.c.b16 %v4381, %v4381
        %v4392 = vpack.c.b16 %v4382, %v4382
        %4403 = vmatpush.bf16.msra.mxu0 %v4085
        %4404 = vmatpush.bf16.msra.mxu0 %v4084
        %4405 = vmatpush.bf16.msra.mxu0 %v4083
        %4406 = vmatpush.bf16.msra.mxu0 %v4082
        %4407 = vmatpush.bf16.msra.mxu0 %v4081
        %4408 = vmatpush.bf16.msra.mxu0 %v4080
        %4409 = vmatpush.bf16.msra.mxu0 %v4079
        %4410 = vmatpush.bf16.msra.mxu0 %v4078
        %4411 = vmatmul.bf16.gmra.mxu0 %v4383
        %v4412 = vpop.f32.mrf.mxu0
        %v4413 = vadd.f32 0.0, %v4412
        %v4414 = vpop.f32.mrf.mxu0
        %v4415 = vadd.f32 0.0, %v4414
        %4416 = vmatmul.bf16.gmra.mxu0 %v4385
        %v4417 = vpop.f32.mrf.mxu0
        %v4418 = vadd.f32 0.0, %v4417
        %v4419 = vpop.f32.mrf.mxu0
        %v4420 = vadd.f32 0.0, %v4419
        %4421 = vmatmul.bf16.gmra.mxu0 %v4387
        %v4422 = vpop.f32.mrf.mxu0
        %v4423 = vadd.f32 0.0, %v4422
        %v4424 = vpop.f32.mrf.mxu0
        %v4425 = vadd.f32 0.0, %v4424
        %4426 = vmatmul.bf16.gmra.mxu0 %v4389
        %v4427 = vpop.f32.mrf.mxu0
        %v4428 = vadd.f32 0.0, %v4427
        %v4429 = vpop.f32.mrf.mxu0
        %v4430 = vadd.f32 0.0, %v4429
        %4431 = vmatmul.bf16.gmra.mxu0 %v4391
        %v4432 = vpop.f32.mrf.mxu0
        %v4433 = vadd.f32 0.0, %v4432
        %v4434 = vpop.f32.mrf.mxu0
        %4435 = vdwg.mxu0
        %4436 = vmatpush.bf16.msra.mxu0 %v4093
        %4437 = vmatpush.bf16.msra.mxu0 %v4092
        %4438 = vmatpush.bf16.msra.mxu0 %v4091
        %4439 = vmatpush.bf16.msra.mxu0 %v4090
        %4440 = vmatpush.bf16.msra.mxu0 %v4089
        %4441 = vmatpush.bf16.msra.mxu0 %v4088
        %4442 = vmatpush.bf16.msra.mxu0 %v4087
        %4443 = vmatpush.bf16.msra.mxu0 %v4086
        %4444 = vmatmul.bf16.gmra.mxu0 %v4384
        %v4445 = vpop.f32.mrf.mxu0
        %v4446 = vadd.f32 %v4413, %v4445
        %v4447 = vpop.f32.mrf.mxu0
        %v4448 = vadd.f32 %v4415, %v4447
        %4449 = vmatmul.bf16.gmra.mxu0 %v4386
        %v4450 = vpop.f32.mrf.mxu0
        %v4451 = vadd.f32 %v4418, %v4450
        %v4452 = vpop.f32.mrf.mxu0
        %v4453 = vadd.f32 %v4420, %v4452
        %4454 = vmatmul.bf16.gmra.mxu0 %v4388
        %v4455 = vpop.f32.mrf.mxu0
        %v4456 = vadd.f32 %v4423, %v4455
        %v4457 = vpop.f32.mrf.mxu0
        %v4458 = vadd.f32 %v4425, %v4457
        %4459 = vmatmul.bf16.gmra.mxu0 %v4390
        %v4460 = vpop.f32.mrf.mxu0
        %v4461 = vadd.f32 %v4428, %v4460
        %v4462 = vpop.f32.mrf.mxu0
        %v4463 = vadd.f32 %v4430, %v4462
        %4464 = vmatmul.bf16.gmra.mxu0 %v4392
        %v4465 = vpop.f32.mrf.mxu0
        %v4466 = vadd.f32 %v4433, %v4465
        %v4467 = vpop.f32.mrf.mxu0
        %4468 = vdwg.mxu0
        %v4469 = vmax.f32 %v4338, %v4446
        %v4470 = vmax.f32 %v4339, %v4448
        %v4471 = vmax.f32 %v4340, %v4451
        %v4472 = vmax.f32 %v4341, %v4453
        %v4473 = vmax.f32 %v4342, %v4456
        %v4474 = vmax.f32 %v4343, %v4458
        %v4475 = vmax.f32 %v4344, %v4461
        %v4476 = vmax.f32 %v4345, %v4463
        %v4477 = vmax.f32 %v4346, %v4466
        %v4478 = vld [vmem:[%s1256] sm:$0xff]
        %v4479 = vld [vmem:[%s1256 + $0x8] sm:$0xff]
        %v4480 = vld [vmem:[%s1256 + $0x10] sm:$0xff]
        %v4481 = vld [vmem:[%s1256 + $0x18] sm:$0xff]
        %v4482 = vld [vmem:[%s1256 + $0x20] sm:$0xff]
        %v4483 = vld [vmem:[%s1256 + $0x28] sm:$0xff]
        %v4484 = vld [vmem:[%s1256 + $0x30] sm:$0xff]
        %v4485 = vld [vmem:[%s1256 + $0x38] sm:$0xff]
        %v4486 = vld [vmem:[%s1256 + $0x40] sm:$0x77]
        %v4496 = vunpack.c.l.b16 %v4478
        %v4497 = vunpack.c.h.b16 %v4478
        %v4498 = vunpack.c.l.b16 %v4479
        %v4499 = vunpack.c.h.b16 %v4479
        %v4500 = vunpack.c.l.b16 %v4480
        %v4501 = vunpack.c.h.b16 %v4480
        %v4502 = vunpack.c.l.b16 %v4481
        %v4503 = vunpack.c.h.b16 %v4481
        %v4504 = vunpack.c.l.b16 %v4482
        %v4505 = vunpack.c.h.b16 %v4482
        %v4506 = vunpack.c.l.b16 %v4483
        %v4507 = vunpack.c.h.b16 %v4483
        %v4508 = vunpack.c.l.b16 %v4484
        %v4509 = vunpack.c.h.b16 %v4484
        %v4510 = vunpack.c.l.b16 %v4485
        %v4511 = vunpack.c.h.b16 %v4485
        %v4512 = vunpack.c.l.b16 %v4486
        %v4513 = vunpack.c.h.b16 %v4486
        %v4514 = vpack.c.b16 %v4498, %v4496
        %v4515 = vpack.c.b16 %v4499, %v4497
        %v4516 = vpack.c.b16 %v4502, %v4500
        %v4517 = vpack.c.b16 %v4503, %v4501
        %v4518 = vpack.c.b16 %v4506, %v4504
        %v4519 = vpack.c.b16 %v4507, %v4505
        %v4520 = vpack.c.b16 %v4510, %v4508
        %v4521 = vpack.c.b16 %v4511, %v4509
        %v4522 = vpack.c.b16 %v4512, %v4512
        %v4523 = vpack.c.b16 %v4513, %v4513
        %4534 = vmatpush.bf16.msra.mxu0 %v4085
        %4535 = vmatpush.bf16.msra.mxu0 %v4084
        %4536 = vmatpush.bf16.msra.mxu0 %v4083
        %4537 = vmatpush.bf16.msra.mxu0 %v4082
        %4538 = vmatpush.bf16.msra.mxu0 %v4081
        %4539 = vmatpush.bf16.msra.mxu0 %v4080
        %4540 = vmatpush.bf16.msra.mxu0 %v4079
        %4541 = vmatpush.bf16.msra.mxu0 %v4078
        %4542 = vmatmul.bf16.gmra.mxu0 %v4514
        %v4543 = vpop.f32.mrf.mxu0
        %v4544 = vadd.f32 0.0, %v4543
        %v4545 = vpop.f32.mrf.mxu0
        %v4546 = vadd.f32 0.0, %v4545
        %4547 = vmatmul.bf16.gmra.mxu0 %v4516
        %v4548 = vpop.f32.mrf.mxu0
        %v4549 = vadd.f32 0.0, %v4548
        %v4550 = vpop.f32.mrf.mxu0
        %v4551 = vadd.f32 0.0, %v4550
        %4552 = vmatmul.bf16.gmra.mxu0 %v4518
        %v4553 = vpop.f32.mrf.mxu0
        %v4554 = vadd.f32 0.0, %v4553
        %v4555 = vpop.f32.mrf.mxu0
        %v4556 = vadd.f32 0.0, %v4555
        %4557 = vmatmul.bf16.gmra.mxu0 %v4520
        %v4558 = vpop.f32.mrf.mxu0
        %v4559 = vadd.f32 0.0, %v4558
        %v4560 = vpop.f32.mrf.mxu0
        %v4561 = vadd.f32 0.0, %v4560
        %4562 = vmatmul.bf16.gmra.mxu0 %v4522
        %v4563 = vpop.f32.mrf.mxu0
        %v4564 = vadd.f32 0.0, %v4563
        %v4565 = vpop.f32.mrf.mxu0
        %4566 = vdwg.mxu0
        %4567 = vmatpush.bf16.msra.mxu0 %v4093
        %4568 = vmatpush.bf16.msra.mxu0 %v4092
        %4569 = vmatpush.bf16.msra.mxu0 %v4091
        %4570 = vmatpush.bf16.msra.mxu0 %v4090
        %4571 = vmatpush.bf16.msra.mxu0 %v4089
        %4572 = vmatpush.bf16.msra.mxu0 %v4088
        %4573 = vmatpush.bf16.msra.mxu0 %v4087
        %4574 = vmatpush.bf16.msra.mxu0 %v4086
        %4575 = vmatmul.bf16.gmra.mxu0 %v4515
        %v4576 = vpop.f32.mrf.mxu0
        %v4577 = vadd.f32 %v4544, %v4576
        %v4578 = vpop.f32.mrf.mxu0
        %v4579 = vadd.f32 %v4546, %v4578
        %4580 = vmatmul.bf16.gmra.mxu0 %v4517
        %v4581 = vpop.f32.mrf.mxu0
        %v4582 = vadd.f32 %v4549, %v4581
        %v4583 = vpop.f32.mrf.mxu0
        %v4584 = vadd.f32 %v4551, %v4583
        %4585 = vmatmul.bf16.gmra.mxu0 %v4519
        %v4586 = vpop.f32.mrf.mxu0
        %v4587 = vadd.f32 %v4554, %v4586
        %v4588 = vpop.f32.mrf.mxu0
        %v4589 = vadd.f32 %v4556, %v4588
        %4590 = vmatmul.bf16.gmra.mxu0 %v4521
        %v4591 = vpop.f32.mrf.mxu0
        %v4592 = vadd.f32 %v4559, %v4591
        %v4593 = vpop.f32.mrf.mxu0
        %v4594 = vadd.f32 %v4561, %v4593
        %4595 = vmatmul.bf16.gmra.mxu0 %v4523
        %v4596 = vpop.f32.mrf.mxu0
        %v4597 = vadd.f32 %v4564, %v4596
        %v4598 = vpop.f32.mrf.mxu0
        %4599 = vdwg.mxu0
        %v4600 = vmax.f32 %v4469, %v4577
        %v4601 = vmax.f32 %v4470, %v4579
        %v4602 = vmax.f32 %v4471, %v4582
        %v4603 = vmax.f32 %v4472, %v4584
        %v4604 = vmax.f32 %v4473, %v4587
        %v4605 = vmax.f32 %v4474, %v4589
        %v4606 = vmax.f32 %v4475, %v4592
        %v4607 = vmax.f32 %v4476, %v4594
        %v4608 = vmax.f32 %v4477, %v4597
        %v4609 = vmax.f32 %v4600, 0.0
        %v4610 = vmax.f32 %v4601, 0.0
        %v4611 = vmax.f32 %v4602, 0.0
        %v4612 = vmax.f32 %v4603, 0.0
        %v4613 = vmax.f32 %v4604, 0.0
        %v4614 = vmax.f32 %v4605, 0.0
        %v4615 = vmax.f32 %v4606, 0.0
        %v4616 = vmax.f32 %v4607, 0.0
        %v4617 = vmax.f32 %v4608, 0.0
        %v4627 = vrot.slane %v4609, 5
        %v4628 = vrot.slane %v4610, 5
        %v4629 = vsel %vm1406, %v4627, %v4628
        %v4630 = vrot.slane %v4611, 5
        %v4631 = vsel %vm1406, %v4628, %v4630
        %v4632 = vrot.slane %v4612, 5
        %v4633 = vsel %vm1406, %v4630, %v4632
        %v4634 = vrot.slane %v4613, 5
        %v4635 = vsel %vm1406, %v4632, %v4634
        %v4636 = vrot.slane %v4614, 5
        %v4637 = vsel %vm1406, %v4634, %v4636
        %v4638 = vrot.slane %v4615, 5
        %v4639 = vsel %vm1406, %v4636, %v4638
        %v4640 = vrot.slane %v4616, 5
        %v4641 = vsel %vm1406, %v4638, %v4640
        %v4642 = vrot.slane %v4617, 5
        %v4643 = vsel %vm1406, %v4640, %v4642
        %4654 = vst.msk [vmem:[#allocation2 + $0x1d0] sm:$0xf8] %vm1434, %v4627
        %4655 = vst.msk [vmem:[#allocation2 + $0x1e0] sm:$0xff] %vm440, %v4629
        %4656 = vst.msk [vmem:[#allocation2 + $0x1f0] sm:$0xff] %vm440, %v4631
        %4657 = vst.msk [vmem:[#allocation2 + $0x200] sm:$0xff] %vm440, %v4633
        %4658 = vst.msk [vmem:[#allocation2 + $0x210] sm:$0xff] %vm440, %v4635
        %4659 = vst.msk [vmem:[#allocation2 + $0x220] sm:$0xff] %vm440, %v4637
        %4660 = vst.msk [vmem:[#allocation2 + $0x230] sm:$0xff] %vm440, %v4639
        %4661 = vst.msk [vmem:[#allocation2 + $0x240] sm:$0xff] %vm440, %v4641
        %4662 = vst.msk [vmem:[#allocation2 + $0x250] sm:$0xff] %vm440, %v4643
        %4663 = vst.msk [vmem:[#allocation2 + $0x260] sm:$0x1] %vm1444, %v4642
        %v4664 = vrot.slane %v4609, 6
        %v4665 = vrot.slane %v4610, 6
        %v4666 = vsel %vm761, %v4664, %v4665
        %v4667 = vrot.slane %v4611, 6
        %v4668 = vsel %vm761, %v4665, %v4667
        %v4669 = vrot.slane %v4612, 6
        %v4670 = vsel %vm761, %v4667, %v4669
        %v4671 = vrot.slane %v4613, 6
        %v4672 = vsel %vm761, %v4669, %v4671
        %v4673 = vrot.slane %v4614, 6
        %v4674 = vsel %vm761, %v4671, %v4673
        %v4675 = vrot.slane %v4615, 6
        %v4676 = vsel %vm761, %v4673, %v4675
        %v4677 = vrot.slane %v4616, 6
        %v4678 = vsel %vm761, %v4675, %v4677
        %v4679 = vrot.slane %v4617, 6
        %v4680 = vsel %vm761, %v4677, %v4679
        %4681 = vrot.lane.b32.xlu0 %v4664, 32
        %v4682 = vpop.permute.xlu0 %4681
        %4683 = vrot.lane.b32.xlu0 %v4666, 32
        %v4684 = vpop.permute.xlu0 %4683
        %4685 = vrot.lane.b32.xlu0 %v4668, 32
        %v4686 = vpop.permute.xlu0 %4685
        %4687 = vrot.lane.b32.xlu0 %v4670, 32
        %v4688 = vpop.permute.xlu0 %4687
        %4689 = vrot.lane.b32.xlu0 %v4672, 32
        %v4690 = vpop.permute.xlu0 %4689
        %4691 = vrot.lane.b32.xlu0 %v4674, 32
        %v4692 = vpop.permute.xlu0 %4691
        %4693 = vrot.lane.b32.xlu0 %v4676, 32
        %v4694 = vpop.permute.xlu0 %4693
        %4695 = vrot.lane.b32.xlu0 %v4678, 32
        %v4696 = vpop.permute.xlu0 %4695
        %4697 = vrot.lane.b32.xlu0 %v4680, 32
        %v4698 = vpop.permute.xlu0 %4697
        %4708 = vst.msk [vmem:[#allocation2 + $0x1d0] sm:$0xfc] %vm1490, %v4682
        %4709 = vst.msk [vmem:[#allocation2 + $0x1e0] sm:$0xff] %vm1492, %v4684
        %4710 = vst.msk [vmem:[#allocation2 + $0x1f0] sm:$0xff] %vm1492, %v4686
        %4711 = vst.msk [vmem:[#allocation2 + $0x200] sm:$0xff] %vm1492, %v4688
        %4712 = vst.msk [vmem:[#allocation2 + $0x210] sm:$0xff] %vm1492, %v4690
        %4713 = vst.msk [vmem:[#allocation2 + $0x220] sm:$0xff] %vm1492, %v4692
        %4714 = vst.msk [vmem:[#allocation2 + $0x230] sm:$0xff] %vm1492, %v4694
        %4715 = vst.msk [vmem:[#allocation2 + $0x240] sm:$0xff] %vm1492, %v4696
        %4716 = vst.msk [vmem:[#allocation2 + $0x250] sm:$0xff] %vm1492, %v4698
        %v4717 = vrot.slane %v4609, 7
        %v4718 = vrot.slane %v4610, 7
        %v4719 = vsel %vm1501, %v4717, %v4718
        %v4720 = vrot.slane %v4611, 7
        %v4721 = vsel %vm1501, %v4718, %v4720
        %v4722 = vrot.slane %v4612, 7
        %v4723 = vsel %vm1501, %v4720, %v4722
        %v4724 = vrot.slane %v4613, 7
        %v4725 = vsel %vm1501, %v4722, %v4724
        %v4726 = vrot.slane %v4614, 7
        %v4727 = vsel %vm1501, %v4724, %v4726
        %v4728 = vrot.slane %v4615, 7
        %v4729 = vsel %vm1501, %v4726, %v4728
        %v4730 = vrot.slane %v4616, 7
        %v4731 = vsel %vm1501, %v4728, %v4730
        %v4732 = vrot.slane %v4617, 7
        %v4733 = vsel %vm1501, %v4730, %v4732
        %4734 = vrot.lane.b32.xlu0 %v4717, 64
        %v4735 = vpop.permute.xlu0 %4734
        %4736 = vrot.lane.b32.xlu0 %v4719, 64
        %v4737 = vpop.permute.xlu0 %4736
        %4738 = vrot.lane.b32.xlu0 %v4721, 64
        %v4739 = vpop.permute.xlu0 %4738
        %4740 = vrot.lane.b32.xlu0 %v4723, 64
        %v4741 = vpop.permute.xlu0 %4740
        %4742 = vrot.lane.b32.xlu0 %v4725, 64
        %v4743 = vpop.permute.xlu0 %4742
        %4744 = vrot.lane.b32.xlu0 %v4727, 64
        %v4745 = vpop.permute.xlu0 %4744
        %4746 = vrot.lane.b32.xlu0 %v4729, 64
        %v4747 = vpop.permute.xlu0 %4746
        %4748 = vrot.lane.b32.xlu0 %v4731, 64
        %v4749 = vpop.permute.xlu0 %4748
        %4750 = vrot.lane.b32.xlu0 %v4733, 64
        %v4751 = vpop.permute.xlu0 %4750
        %4761 = vst.msk [vmem:[#allocation2 + $0x1d0] sm:$0xfe] %vm1546, %v4735
        %4762 = vst.msk [vmem:[#allocation2 + $0x1e0] sm:$0xff] %vm1548, %v4737
        %4763 = vst.msk [vmem:[#allocation2 + $0x1f0] sm:$0xff] %vm1548, %v4739
        %4764 = vst.msk [vmem:[#allocation2 + $0x200] sm:$0xff] %vm1548, %v4741
        %4765 = vst.msk [vmem:[#allocation2 + $0x210] sm:$0xff] %vm1548, %v4743
        %4766 = vst.msk [vmem:[#allocation2 + $0x220] sm:$0xff] %vm1548, %v4745
        %4767 = vst.msk [vmem:[#allocation2 + $0x230] sm:$0xff] %vm1548, %v4747
        %4768 = vst.msk [vmem:[#allocation2 + $0x240] sm:$0xff] %vm1548, %v4749
        %4769 = vst.msk [vmem:[#allocation2 + $0x250] sm:$0x7f] %vm1556, %v4751
        %4770 = vrot.lane.b32.xlu0 %v4609, 96
        %v4771 = vpop.permute.xlu0 %4770
        %4772 = vrot.lane.b32.xlu0 %v4610, 96
        %v4773 = vpop.permute.xlu0 %4772
        %4774 = vrot.lane.b32.xlu0 %v4611, 96
        %v4775 = vpop.permute.xlu0 %4774
        %4776 = vrot.lane.b32.xlu0 %v4612, 96
        %v4777 = vpop.permute.xlu0 %4776
        %4778 = vrot.lane.b32.xlu0 %v4613, 96
        %v4779 = vpop.permute.xlu0 %4778
        %4780 = vrot.lane.b32.xlu0 %v4614, 96
        %v4781 = vpop.permute.xlu0 %4780
        %4782 = vrot.lane.b32.xlu0 %v4615, 96
        %v4783 = vpop.permute.xlu0 %4782
        %4784 = vrot.lane.b32.xlu0 %v4616, 96
        %v4785 = vpop.permute.xlu0 %4784
        %4786 = vrot.lane.b32.xlu0 %v4617, 96
        %v4787 = vpop.permute.xlu0 %4786
        %4797 = vst.msk [vmem:[#allocation2 + $0x1d0] sm:$0xff] %vm1585, %v4771
        %4798 = vst.msk [vmem:[#allocation2 + $0x1e0] sm:$0xff] %vm1585, %v4773
        %4799 = vst.msk [vmem:[#allocation2 + $0x1f0] sm:$0xff] %vm1585, %v4775
        %4800 = vst.msk [vmem:[#allocation2 + $0x200] sm:$0xff] %vm1585, %v4777
        %4801 = vst.msk [vmem:[#allocation2 + $0x210] sm:$0xff] %vm1585, %v4779
        %4802 = vst.msk [vmem:[#allocation2 + $0x220] sm:$0xff] %vm1585, %v4781
        %4803 = vst.msk [vmem:[#allocation2 + $0x230] sm:$0xff] %vm1585, %v4783
        %4804 = vst.msk [vmem:[#allocation2 + $0x240] sm:$0xff] %vm1585, %v4785
        %4805 = vst.msk [vmem:[#allocation2 + $0x250] sm:$0x3f] %vm1594, %v4787
        %v4806 = vrot.slane %v4609, 1
        %v4807 = vrot.slane %v4610, 1
        %v4808 = vsel %vm1596, %v4806, %v4807
        %v4809 = vrot.slane %v4611, 1
        %v4810 = vsel %vm1596, %v4807, %v4809
        %v4811 = vrot.slane %v4612, 1
        %v4812 = vsel %vm1596, %v4809, %v4811
        %v4813 = vrot.slane %v4613, 1
        %v4814 = vsel %vm1596, %v4811, %v4813
        %v4815 = vrot.slane %v4614, 1
        %v4816 = vsel %vm1596, %v4813, %v4815
        %v4817 = vrot.slane %v4615, 1
        %v4818 = vsel %vm1596, %v4815, %v4817
        %v4819 = vrot.slane %v4616, 1
        %v4820 = vsel %vm1596, %v4817, %v4819
        %v4821 = vrot.slane %v4617, 1
        %v4822 = vsel %vm1596, %v4819, %v4821
        %4833 = vst.msk [vmem:[#allocation2 + $0x1c8] sm:$0x80] %vm1624, %v4806
        %4834 = vst.msk [vmem:[#allocation2 + $0x1d8] sm:$0xff] %vm440, %v4808
        %4835 = vst.msk [vmem:[#allocation2 + $0x1e8] sm:$0xff] %vm440, %v4810
        %4836 = vst.msk [vmem:[#allocation2 + $0x1f8] sm:$0xff] %vm440, %v4812
        %4837 = vst.msk [vmem:[#allocation2 + $0x208] sm:$0xff] %vm440, %v4814
        %4838 = vst.msk [vmem:[#allocation2 + $0x218] sm:$0xff] %vm440, %v4816
        %4839 = vst.msk [vmem:[#allocation2 + $0x228] sm:$0xff] %vm440, %v4818
        %4840 = vst.msk [vmem:[#allocation2 + $0x238] sm:$0xff] %vm440, %v4820
        %4841 = vst.msk [vmem:[#allocation2 + $0x248] sm:$0xff] %vm440, %v4822
        %4842 = vst.msk [vmem:[#allocation2 + $0x258] sm:$0x1f] %vm1634, %v4821
        %v4843 = vld [vmem:[%s5] sm:$0x1]
        %v4844 = vld [vmem:[#allocation2] sm:$0xff]
        %v4845 = vld [vmem:[#allocation2 + $0x8] sm:$0xff]
        %v4846 = vld [vmem:[#allocation2 + $0x10] sm:$0xff]
        %v4847 = vld [vmem:[#allocation2 + $0x18] sm:$0xff]
        %v4848 = vld [vmem:[#allocation2 + $0x20] sm:$0xff]
        %v4849 = vld [vmem:[#allocation2 + $0x28] sm:$0xff]
        %v4850 = vld [vmem:[#allocation2 + $0x30] sm:$0xff]
        %v4851 = vld [vmem:[#allocation2 + $0x38] sm:$0xff]
        %v4852 = vld [vmem:[#allocation2 + $0x40] sm:$0xff]
        %v4853 = vld [vmem:[#allocation2 + $0x48] sm:$0xff]
        %v4854 = vld [vmem:[#allocation2 + $0x50] sm:$0xff]
        %v4855 = vld [vmem:[#allocation2 + $0x58] sm:$0xff]
        %v4856 = vld [vmem:[#allocation2 + $0x60] sm:$0xff]
        %v4857 = vld [vmem:[#allocation2 + $0x68] sm:$0xff]
        %v4858 = vld [vmem:[#allocation2 + $0x70] sm:$0xff]
        %v4859 = vld [vmem:[#allocation2 + $0x78] sm:$0xff]
        %v4860 = vld [vmem:[#allocation2 + $0x80] sm:$0xff]
        %v4861 = vld [vmem:[#allocation2 + $0x88] sm:$0xff]
        %v4862 = vld [vmem:[#allocation2 + $0x90] sm:$0xff]
        %v4863 = vld [vmem:[#allocation2 + $0x98] sm:$0xff]
        %v4864 = vld [vmem:[#allocation2 + $0xa0] sm:$0xff]
        %v4865 = vld [vmem:[#allocation2 + $0xa8] sm:$0xff]
        %v4866 = vld [vmem:[#allocation2 + $0xb0] sm:$0xff]
        %v4867 = vld [vmem:[#allocation2 + $0xb8] sm:$0xff]
        %v4868 = vld [vmem:[#allocation2 + $0xc0] sm:$0xff]
        %v4869 = vld [vmem:[#allocation2 + $0xc8] sm:$0xff]
        %v4870 = vld [vmem:[#allocation2 + $0xd0] sm:$0xff]
        %v4871 = vld [vmem:[#allocation2 + $0xd8] sm:$0xff]
        %v4872 = vld [vmem:[#allocation2 + $0xe0] sm:$0xff]
        %v4873 = vld [vmem:[#allocation2 + $0xe8] sm:$0xff]
        %v4874 = vld [vmem:[#allocation2 + $0xf0] sm:$0xff]
        %v4875 = vld [vmem:[#allocation2 + $0xf8] sm:$0xff]
        %v4876 = vld [vmem:[#allocation2 + $0x100] sm:$0xff]
        %v4877 = vld [vmem:[#allocation2 + $0x108] sm:$0xff]
        %v4878 = vld [vmem:[#allocation2 + $0x110] sm:$0xff]
        %v4879 = vld [vmem:[#allocation2 + $0x118] sm:$0xff]
        %v4880 = vld [vmem:[#allocation2 + $0x120] sm:$0xff]
        %v4881 = vld [vmem:[#allocation2 + $0x128] sm:$0xff]
        %v4882 = vld [vmem:[#allocation2 + $0x130] sm:$0xff]
        %v4883 = vld [vmem:[#allocation2 + $0x138] sm:$0xff]
        %v4884 = vld [vmem:[#allocation2 + $0x140] sm:$0xff]
        %v4885 = vld [vmem:[#allocation2 + $0x148] sm:$0xff]
        %v4886 = vld [vmem:[#allocation2 + $0x150] sm:$0xff]
        %v4887 = vld [vmem:[#allocation2 + $0x158] sm:$0xff]
        %v4888 = vld [vmem:[#allocation2 + $0x160] sm:$0xff]
        %v4889 = vld [vmem:[#allocation2 + $0x168] sm:$0xff]
        %v4890 = vld [vmem:[#allocation2 + $0x170] sm:$0xff]
        %v4891 = vld [vmem:[#allocation2 + $0x178] sm:$0xff]
        %v4892 = vld [vmem:[#allocation2 + $0x180] sm:$0xff]
        %v4893 = vld [vmem:[#allocation2 + $0x188] sm:$0xff]
        %v4894 = vld [vmem:[#allocation2 + $0x190] sm:$0xff]
        %v4895 = vld [vmem:[#allocation2 + $0x198] sm:$0xff]
        %v4896 = vld [vmem:[#allocation2 + $0x1a0] sm:$0xff]
        %v4897 = vld [vmem:[#allocation2 + $0x1a8] sm:$0xff]
        %v4898 = vld [vmem:[#allocation2 + $0x1b0] sm:$0xff]
        %v4899 = vld [vmem:[#allocation2 + $0x1b8] sm:$0xff]
        %v4900 = vld [vmem:[#allocation2 + $0x1c0] sm:$0xff]
        %v4901 = vld [vmem:[#allocation2 + $0x1c8] sm:$0xff]
        %v4902 = vld [vmem:[#allocation2 + $0x1d0] sm:$0xff]
        %v4903 = vld [vmem:[#allocation2 + $0x1d8] sm:$0xff]
        %v4904 = vld [vmem:[#allocation2 + $0x1e0] sm:$0xff]
        %v4905 = vld [vmem:[#allocation2 + $0x1e8] sm:$0xff]
        %v4906 = vpack.c.bf16 %v4846, %v4844
        %v4907 = vpack.c.bf16 %v4847, %v4845
        %v4908 = vpack.c.bf16 %v4850, %v4848
        %v4909 = vpack.c.bf16 %v4851, %v4849
        %v4910 = vpack.c.bf16 %v4854, %v4852
        %v4911 = vpack.c.bf16 %v4855, %v4853
        %v4912 = vpack.c.bf16 %v4858, %v4856
        %v4913 = vpack.c.bf16 %v4859, %v4857
        %v4914 = vpack.c.bf16 %v4862, %v4860
        %v4915 = vpack.c.bf16 %v4863, %v4861
        %v4916 = vpack.c.bf16 %v4866, %v4864
        %v4917 = vpack.c.bf16 %v4867, %v4865
        %v4918 = vpack.c.bf16 %v4870, %v4868
        %v4919 = vpack.c.bf16 %v4871, %v4869
        %v4920 = vpack.c.bf16 %v4874, %v4872
        %v4921 = vpack.c.bf16 %v4875, %v4873
        %v4922 = vpack.c.bf16 %v4878, %v4876
        %v4923 = vpack.c.bf16 %v4879, %v4877
        %v4924 = vpack.c.bf16 %v4882, %v4880
        %v4925 = vpack.c.bf16 %v4883, %v4881
        %v4926 = vpack.c.bf16 %v4886, %v4884
        %v4927 = vpack.c.bf16 %v4887, %v4885
        %v4928 = vpack.c.bf16 %v4890, %v4888
        %v4929 = vpack.c.bf16 %v4891, %v4889
        %v4930 = vpack.c.bf16 %v4894, %v4892
        %v4931 = vpack.c.bf16 %v4895, %v4893
        %v4932 = vpack.c.bf16 %v4898, %v4896
        %v4933 = vpack.c.bf16 %v4899, %v4897
        %v4934 = vpack.c.bf16 %v4902, %v4900
        %v4935 = vpack.c.bf16 %v4903, %v4901
        %v4936 = vpack.c.bf16 %v4904, %v4904
        %v4937 = vpack.c.bf16 %v4905, %v4905
        %v4938 = vld [vmem:[%s4] sm:$0xf]
        %v4939 = vld [vmem:[%s4 + $0x4] sm:$0xf]
        %v4940 = vld [vmem:[%s4 + $0x8] sm:$0xf]
        %v4941 = vld [vmem:[%s4 + $0xc] sm:$0xf]
        %v4942 = vld [vmem:[%s4 + $0x10] sm:$0xf]
        %v4943 = vld [vmem:[%s4 + $0x14] sm:$0xf]
        %v4944 = vld [vmem:[%s4 + $0x18] sm:$0xf]
        %v4945 = vld [vmem:[%s4 + $0x1c] sm:$0xf]
        %v4946 = vld [vmem:[%s4 + $0x20] sm:$0xf]
        %v4947 = vld [vmem:[%s4 + $0x24] sm:$0xf]
        %v4948 = vld [vmem:[%s4 + $0x28] sm:$0xf]
        %v4949 = vld [vmem:[%s4 + $0x2c] sm:$0xf]
        %v4950 = vld [vmem:[%s4 + $0x30] sm:$0xf]
        %v4951 = vld [vmem:[%s4 + $0x34] sm:$0xf]
        %v4952 = vld [vmem:[%s4 + $0x38] sm:$0xf]
        %v4953 = vld [vmem:[%s4 + $0x3c] sm:$0xf]
        %v4954 = vld [vmem:[%s4 + $0x40] sm:$0xf]
        %v4955 = vld [vmem:[%s4 + $0x44] sm:$0xf]
        %v4956 = vld [vmem:[%s4 + $0x48] sm:$0xf]
        %v4957 = vld [vmem:[%s4 + $0x4c] sm:$0xf]
        %v4958 = vld [vmem:[#allocation2 + $0x20] sm:$0xfc]
        %v4959 = vld [vmem:[#allocation2 + $0x28] sm:$0xfc]
        %v4960 = vld [vmem:[#allocation2 + $0x1f0] sm:$0xff]
        %v4961 = vld [vmem:[#allocation2 + $0x1f8] sm:$0xff]
        %v4962 = vld [vmem:[#allocation2 + $0x200] sm:$0xff]
        %v4963 = vld [vmem:[#allocation2 + $0x208] sm:$0xff]
        %v4964 = vld [vmem:[#allocation2 + $0x210] sm:$0x3]
        %v4965 = vld [vmem:[#allocation2 + $0x218] sm:$0x3]
        %v4966 = vpack.c.bf16 %v4850, %v4958
        %v4967 = vpack.c.bf16 %v4851, %v4959
        %v4968 = vpack.c.bf16 %v4960, %v4904
        %v4969 = vpack.c.bf16 %v4961, %v4905
        %v4970 = vpack.c.bf16 %v4964, %v4962
        %v4971 = vpack.c.bf16 %v4965, %v4963
        %s4972 = scalar_lea.vmem %s4, 80
        %v4973 = vld [vmem:[%s4972] sm:$0xf]
        %v4974 = vld [vmem:[%s4972 + $0x4] sm:$0xf]
        %v4975 = vld [vmem:[%s4972 + $0x8] sm:$0xf]
        %v4976 = vld [vmem:[%s4972 + $0xc] sm:$0xf]
        %v4977 = vld [vmem:[%s4972 + $0x10] sm:$0xf]
        %v4978 = vld [vmem:[%s4972 + $0x14] sm:$0xf]
        %v4979 = vld [vmem:[%s4972 + $0x18] sm:$0xf]
        %v4980 = vld [vmem:[%s4972 + $0x1c] sm:$0xf]
        %v4981 = vld [vmem:[%s4972 + $0x20] sm:$0xf]
        %v4982 = vld [vmem:[%s4972 + $0x24] sm:$0xf]
        %v4983 = vld [vmem:[%s4972 + $0x28] sm:$0xf]
        %v4984 = vld [vmem:[%s4972 + $0x2c] sm:$0xf]
        %v4985 = vld [vmem:[%s4972 + $0x30] sm:$0xf]
        %v4986 = vld [vmem:[%s4972 + $0x34] sm:$0xf]
        %v4987 = vld [vmem:[%s4972 + $0x38] sm:$0xf]
        %v4988 = vld [vmem:[%s4972 + $0x3c] sm:$0xf]
        %v4989 = vld [vmem:[%s4972 + $0x40] sm:$0xf]
        %v4990 = vld [vmem:[%s4972 + $0x44] sm:$0xf]
        %v4991 = vld [vmem:[%s4972 + $0x48] sm:$0xf]
        %v4992 = vld [vmem:[%s4972 + $0x4c] sm:$0xf]
        %vm5025 = vcmask 1046528
        %v5026 = vrot.slane %v4966, 1
        %v5027 = vrot.slane %v4910, 1
        %v5028 = vsel %vm5025, %v5026, %v5027
        %v5029 = vrot.slane %v4967, 1
        %v5030 = vrot.slane %v4911, 1
        %v5031 = vsel %vm5025, %v5029, %v5030
        %v5032 = vrot.slane %v4912, 1
        %v5033 = vsel %vm5025, %v5027, %v5032
        %v5034 = vrot.slane %v4913, 1
        %v5035 = vsel %vm5025, %v5030, %v5034
        %v5036 = vrot.slane %v4914, 1
        %v5037 = vsel %vm5025, %v5032, %v5036
        %v5038 = vrot.slane %v4915, 1
        %v5039 = vsel %vm5025, %v5034, %v5038
        %v5040 = vrot.slane %v4916, 1
        %v5041 = vsel %vm5025, %v5036, %v5040
        %v5042 = vrot.slane %v4917, 1
        %v5043 = vsel %vm5025, %v5038, %v5042
        %v5044 = vrot.slane %v4918, 1
        %v5045 = vsel %vm5025, %v5040, %v5044
        %v5046 = vrot.slane %v4919, 1
        %v5047 = vsel %vm5025, %v5042, %v5046
        %v5048 = vrot.slane %v4920, 1
        %v5049 = vsel %vm5025, %v5044, %v5048
        %v5050 = vrot.slane %v4921, 1
        %v5051 = vsel %vm5025, %v5046, %v5050
        %v5052 = vrot.slane %v4922, 1
        %v5053 = vsel %vm5025, %v5048, %v5052
        %v5054 = vrot.slane %v4923, 1
        %v5055 = vsel %vm5025, %v5050, %v5054
        %v5056 = vrot.slane %v4924, 1
        %v5057 = vsel %vm5025, %v5052, %v5056
        %v5058 = vrot.slane %v4925, 1
        %v5059 = vsel %vm5025, %v5054, %v5058
        %v5060 = vrot.slane %v4926, 1
        %v5061 = vsel %vm5025, %v5056, %v5060
        %v5062 = vrot.slane %v4927, 1
        %v5063 = vsel %vm5025, %v5058, %v5062
        %v5064 = vrot.slane %v4928, 1
        %v5065 = vsel %vm5025, %v5060, %v5064
        %v5066 = vrot.slane %v4929, 1
        %v5067 = vsel %vm5025, %v5062, %v5066
        %v5068 = vrot.slane %v4930, 1
        %v5069 = vsel %vm5025, %v5064, %v5068
        %v5070 = vrot.slane %v4931, 1
        %v5071 = vsel %vm5025, %v5066, %v5070
        %v5072 = vrot.slane %v4932, 1
        %v5073 = vsel %vm5025, %v5068, %v5072
        %v5074 = vrot.slane %v4933, 1
        %v5075 = vsel %vm5025, %v5070, %v5074
        %v5076 = vrot.slane %v4934, 1
        %v5077 = vsel %vm5025, %v5072, %v5076
        %v5078 = vrot.slane %v4935, 1
        %v5079 = vsel %vm5025, %v5074, %v5078
        %v5080 = vrot.slane %v4968, 1
        %v5081 = vsel %vm5025, %v5076, %v5080
        %v5082 = vrot.slane %v4969, 1
        %v5083 = vsel %vm5025, %v5078, %v5082
        %v5084 = vrot.slane %v4970, 1
        %v5085 = vsel %vm5025, %v5080, %v5084
        %v5086 = vrot.slane %v4971, 1
        %v5087 = vsel %vm5025, %v5082, %v5086
        %v5124 = vunpack.c.l.b16 %v4973
        %v5125 = vunpack.c.l.b16 %v4974
        %v5126 = vunpack.c.l.b16 %v4975
        %v5127 = vunpack.c.l.b16 %v4976
        %v5128 = vunpack.c.l.b16 %v4977
        %v5129 = vunpack.c.l.b16 %v4978
        %v5130 = vunpack.c.l.b16 %v4979
        %v5131 = vunpack.c.l.b16 %v4980
        %v5132 = vunpack.c.l.b16 %v4981
        %v5133 = vunpack.c.l.b16 %v4982
        %v5134 = vunpack.c.l.b16 %v4983
        %v5135 = vunpack.c.l.b16 %v4984
        %v5136 = vunpack.c.l.b16 %v4985
        %v5137 = vunpack.c.l.b16 %v4986
        %v5138 = vunpack.c.l.b16 %v4987
        %v5139 = vunpack.c.l.b16 %v4988
        %v5140 = vunpack.c.l.b16 %v4989
        %v5141 = vunpack.c.l.b16 %v4990
        %v5142 = vunpack.c.l.b16 %v4991
        %v5143 = vunpack.c.l.b16 %v4992
        %v5144 = vpack.c.b16 %v5125, %v5124
        %v5145 = vpack.c.b16 %v5127, %v5126
        %v5146 = vpack.c.b16 %v5129, %v5128
        %v5147 = vpack.c.b16 %v5131, %v5130
        %v5148 = vpack.c.b16 %v5133, %v5132
        %v5149 = vpack.c.b16 %v5135, %v5134
        %v5150 = vpack.c.b16 %v5137, %v5136
        %v5151 = vpack.c.b16 %v5139, %v5138
        %v5152 = vpack.c.b16 %v5141, %v5140
        %v5153 = vpack.c.b16 %v5143, %v5142
        %v5165 = vsel %vm440, %v5031, 0
        %v5168 = vsel %vm440, %v5035, 0
        %v5171 = vsel %vm440, %v5039, 0
        %v5174 = vsel %vm440, %v5043, 0
        %v5177 = vsel %vm440, %v5047, 0
        %v5180 = vsel %vm440, %v5051, 0
        %v5183 = vsel %vm440, %v5055, 0
        %v5186 = vsel %vm440, %v5059, 0
        %v5189 = vsel %vm440, %v5063, 0
        %v5192 = vsel %vm440, %v5067, 0
        %v5195 = vsel %vm440, %v5071, 0
        %v5198 = vsel %vm440, %v5075, 0
        %v5201 = vsel %vm440, %v5079, 0
        %v5204 = vsel %vm440, %v5083, 0
        %v5207 = vsel %vm440, %v5087, 0
        %v5210 = vsel %vm440, %v5086, 0
        %5212 = vmatpush.bf16.msra.mxu0 %v5151
        %5213 = vmatpush.bf16.msra.mxu0 %v5150
        %5214 = vmatpush.bf16.msra.mxu0 %v5149
        %5215 = vmatpush.bf16.msra.mxu0 %v5148
        %5216 = vmatpush.bf16.msra.mxu0 %v5147
        %5217 = vmatpush.bf16.msra.mxu0 %v5146
        %5218 = vmatpush.bf16.msra.mxu0 %v5145
        %5219 = vmatpush.bf16.msra.mxu0 %v5144
        %5220 = vmatmul.bf16.gmra.mxu0 %v5028
        %v5221 = vpop.f32.mrf.mxu0
        %v5222 = vadd.f32 0.0, %v5221
        %v5223 = vpop.f32.mrf.mxu0
        %v5224 = vadd.f32 0.0, %v5223
        %5225 = vmatmul.bf16.gmra.mxu0 %v5033
        %v5226 = vpop.f32.mrf.mxu0
        %v5227 = vadd.f32 0.0, %v5226
        %v5228 = vpop.f32.mrf.mxu0
        %v5229 = vadd.f32 0.0, %v5228
        %5230 = vmatmul.bf16.gmra.mxu0 %v5037
        %v5231 = vpop.f32.mrf.mxu0
        %v5232 = vadd.f32 0.0, %v5231
        %v5233 = vpop.f32.mrf.mxu0
        %v5234 = vadd.f32 0.0, %v5233
        %5235 = vmatmul.bf16.gmra.mxu0 %v5041
        %v5236 = vpop.f32.mrf.mxu0
        %v5237 = vadd.f32 0.0, %v5236
        %v5238 = vpop.f32.mrf.mxu0
        %v5239 = vadd.f32 0.0, %v5238
        %5240 = vmatmul.bf16.gmra.mxu0 %v5045
        %v5241 = vpop.f32.mrf.mxu0
        %v5242 = vadd.f32 0.0, %v5241
        %v5243 = vpop.f32.mrf.mxu0
        %v5244 = vadd.f32 0.0, %v5243
        %5245 = vmatmul.bf16.gmra.mxu0 %v5049
        %v5246 = vpop.f32.mrf.mxu0
        %v5247 = vadd.f32 0.0, %v5246
        %v5248 = vpop.f32.mrf.mxu0
        %v5249 = vadd.f32 0.0, %v5248
        %5250 = vmatmul.bf16.gmra.mxu0 %v5053
        %v5251 = vpop.f32.mrf.mxu0
        %v5252 = vadd.f32 0.0, %v5251
        %v5253 = vpop.f32.mrf.mxu0
        %v5254 = vadd.f32 0.0, %v5253
        %5255 = vmatmul.bf16.gmra.mxu0 %v5057
        %v5256 = vpop.f32.mrf.mxu0
        %v5257 = vadd.f32 0.0, %v5256
        %v5258 = vpop.f32.mrf.mxu0
        %v5259 = vadd.f32 0.0, %v5258
        %5260 = vmatmul.bf16.gmra.mxu0 %v5061
        %v5261 = vpop.f32.mrf.mxu0
        %v5262 = vadd.f32 0.0, %v5261
        %v5263 = vpop.f32.mrf.mxu0
        %v5264 = vadd.f32 0.0, %v5263
        %5265 = vmatmul.bf16.gmra.mxu0 %v5065
        %v5266 = vpop.f32.mrf.mxu0
        %v5267 = vadd.f32 0.0, %v5266
        %v5268 = vpop.f32.mrf.mxu0
        %v5269 = vadd.f32 0.0, %v5268
        %5270 = vmatmul.bf16.gmra.mxu0 %v5069
        %v5271 = vpop.f32.mrf.mxu0
        %v5272 = vadd.f32 0.0, %v5271
        %v5273 = vpop.f32.mrf.mxu0
        %v5274 = vadd.f32 0.0, %v5273
        %5275 = vmatmul.bf16.gmra.mxu0 %v5073
        %v5276 = vpop.f32.mrf.mxu0
        %v5277 = vadd.f32 0.0, %v5276
        %v5278 = vpop.f32.mrf.mxu0
        %v5279 = vadd.f32 0.0, %v5278
        %5280 = vmatmul.bf16.gmra.mxu0 %v5077
        %v5281 = vpop.f32.mrf.mxu0
        %v5282 = vadd.f32 0.0, %v5281
        %v5283 = vpop.f32.mrf.mxu0
        %v5284 = vadd.f32 0.0, %v5283
        %5285 = vmatmul.bf16.gmra.mxu0 %v5081
        %v5286 = vpop.f32.mrf.mxu0
        %v5287 = vadd.f32 0.0, %v5286
        %v5288 = vpop.f32.mrf.mxu0
        %v5289 = vadd.f32 0.0, %v5288
        %5290 = vmatmul.bf16.gmra.mxu0 %v5085
        %v5291 = vpop.f32.mrf.mxu0
        %v5292 = vadd.f32 0.0, %v5291
        %v5293 = vpop.f32.mrf.mxu0
        %v5294 = vadd.f32 0.0, %v5293
        %5295 = vmatmul.bf16.gmra.mxu0 %v5084
        %v5296 = vpop.f32.mrf.mxu0
        %v5297 = vadd.f32 0.0, %v5296
        %v5298 = vpop.f32.mrf.mxu0
        %5299 = vdwg.mxu0
        %5300 = vmatpush.bf16.msra.mxu0 0
        %5301 = vmatpush.bf16.msra.mxu0 0
        %5302 = vmatpush.bf16.msra.mxu0 0
        %5303 = vmatpush.bf16.msra.mxu0 0
        %5304 = vmatpush.bf16.msra.mxu0 0
        %5305 = vmatpush.bf16.msra.mxu0 0
        %5306 = vmatpush.bf16.msra.mxu0 %v5153
        %5307 = vmatpush.bf16.msra.mxu0 %v5152
        %5308 = vmatmul.bf16.gmra.mxu0 %v5165
        %v5309 = vpop.f32.mrf.mxu0
        %v5310 = vadd.f32 %v5222, %v5309
        %v5311 = vpop.f32.mrf.mxu0
        %v5312 = vadd.f32 %v5224, %v5311
        %5313 = vmatmul.bf16.gmra.mxu0 %v5168
        %v5314 = vpop.f32.mrf.mxu0
        %v5315 = vadd.f32 %v5227, %v5314
        %v5316 = vpop.f32.mrf.mxu0
        %v5317 = vadd.f32 %v5229, %v5316
        %5318 = vmatmul.bf16.gmra.mxu0 %v5171
        %v5319 = vpop.f32.mrf.mxu0
        %v5320 = vadd.f32 %v5232, %v5319
        %v5321 = vpop.f32.mrf.mxu0
        %v5322 = vadd.f32 %v5234, %v5321
        %5323 = vmatmul.bf16.gmra.mxu0 %v5174
        %v5324 = vpop.f32.mrf.mxu0
        %v5325 = vadd.f32 %v5237, %v5324
        %v5326 = vpop.f32.mrf.mxu0
        %v5327 = vadd.f32 %v5239, %v5326
        %5328 = vmatmul.bf16.gmra.mxu0 %v5177
        %v5329 = vpop.f32.mrf.mxu0
        %v5330 = vadd.f32 %v5242, %v5329
        %v5331 = vpop.f32.mrf.mxu0
        %v5332 = vadd.f32 %v5244, %v5331
        %5333 = vmatmul.bf16.gmra.mxu0 %v5180
        %v5334 = vpop.f32.mrf.mxu0
        %v5335 = vadd.f32 %v5247, %v5334
        %v5336 = vpop.f32.mrf.mxu0
        %v5337 = vadd.f32 %v5249, %v5336
        %5338 = vmatmul.bf16.gmra.mxu0 %v5183
        %v5339 = vpop.f32.mrf.mxu0
        %v5340 = vadd.f32 %v5252, %v5339
        %v5341 = vpop.f32.mrf.mxu0
        %v5342 = vadd.f32 %v5254, %v5341
        %5343 = vmatmul.bf16.gmra.mxu0 %v5186
        %v5344 = vpop.f32.mrf.mxu0
        %v5345 = vadd.f32 %v5257, %v5344
        %v5346 = vpop.f32.mrf.mxu0
        %v5347 = vadd.f32 %v5259, %v5346
        %5348 = vmatmul.bf16.gmra.mxu0 %v5189
        %v5349 = vpop.f32.mrf.mxu0
        %v5350 = vadd.f32 %v5262, %v5349
        %v5351 = vpop.f32.mrf.mxu0
        %v5352 = vadd.f32 %v5264, %v5351
        %5353 = vmatmul.bf16.gmra.mxu0 %v5192
        %v5354 = vpop.f32.mrf.mxu0
        %v5355 = vadd.f32 %v5267, %v5354
        %v5356 = vpop.f32.mrf.mxu0
        %v5357 = vadd.f32 %v5269, %v5356
        %5358 = vmatmul.bf16.gmra.mxu0 %v5195
        %v5359 = vpop.f32.mrf.mxu0
        %v5360 = vadd.f32 %v5272, %v5359
        %v5361 = vpop.f32.mrf.mxu0
        %v5362 = vadd.f32 %v5274, %v5361
        %5363 = vmatmul.bf16.gmra.mxu0 %v5198
        %v5364 = vpop.f32.mrf.mxu0
        %v5365 = vadd.f32 %v5277, %v5364
        %v5366 = vpop.f32.mrf.mxu0
        %v5367 = vadd.f32 %v5279, %v5366
        %5368 = vmatmul.bf16.gmra.mxu0 %v5201
        %v5369 = vpop.f32.mrf.mxu0
        %v5370 = vadd.f32 %v5282, %v5369
        %v5371 = vpop.f32.mrf.mxu0
        %v5372 = vadd.f32 %v5284, %v5371
        %5373 = vmatmul.bf16.gmra.mxu0 %v5204
        %v5374 = vpop.f32.mrf.mxu0
        %v5375 = vadd.f32 %v5287, %v5374
        %v5376 = vpop.f32.mrf.mxu0
        %v5377 = vadd.f32 %v5289, %v5376
        %5378 = vmatmul.bf16.gmra.mxu0 %v5207
        %v5379 = vpop.f32.mrf.mxu0
        %v5380 = vadd.f32 %v5292, %v5379
        %v5381 = vpop.f32.mrf.mxu0
        %v5382 = vadd.f32 %v5294, %v5381
        %5383 = vmatmul.bf16.gmra.mxu0 %v5210
        %v5384 = vpop.f32.mrf.mxu0
        %v5385 = vadd.f32 %v5297, %v5384
        %v5386 = vpop.f32.mrf.mxu0
        %5387 = vdwg.mxu0
        %v5408 = vunpack.c.l.b16 %v4938
        %v5409 = vunpack.c.l.b16 %v4939
        %v5410 = vunpack.c.l.b16 %v4940
        %v5411 = vunpack.c.l.b16 %v4941
        %v5412 = vunpack.c.l.b16 %v4942
        %v5413 = vunpack.c.l.b16 %v4943
        %v5414 = vunpack.c.l.b16 %v4944
        %v5415 = vunpack.c.l.b16 %v4945
        %v5416 = vunpack.c.l.b16 %v4946
        %v5417 = vunpack.c.l.b16 %v4947
        %v5418 = vunpack.c.l.b16 %v4948
        %v5419 = vunpack.c.l.b16 %v4949
        %v5420 = vunpack.c.l.b16 %v4950
        %v5421 = vunpack.c.l.b16 %v4951
        %v5422 = vunpack.c.l.b16 %v4952
        %v5423 = vunpack.c.l.b16 %v4953
        %v5424 = vunpack.c.l.b16 %v4954
        %v5425 = vunpack.c.l.b16 %v4955
        %v5426 = vunpack.c.l.b16 %v4956
        %v5427 = vunpack.c.l.b16 %v4957
        %v5428 = vpack.c.b16 %v5409, %v5408
        %v5429 = vpack.c.b16 %v5411, %v5410
        %v5430 = vpack.c.b16 %v5413, %v5412
        %v5431 = vpack.c.b16 %v5415, %v5414
        %v5432 = vpack.c.b16 %v5417, %v5416
        %v5433 = vpack.c.b16 %v5419, %v5418
        %v5434 = vpack.c.b16 %v5421, %v5420
        %v5435 = vpack.c.b16 %v5423, %v5422
        %v5436 = vpack.c.b16 %v5425, %v5424
        %v5437 = vpack.c.b16 %v5427, %v5426
        %v5449 = vsel %vm440, %v4907, 0
        %v5452 = vsel %vm440, %v4909, 0
        %v5455 = vsel %vm440, %v4911, 0
        %v5458 = vsel %vm440, %v4913, 0
        %v5461 = vsel %vm440, %v4915, 0
        %v5464 = vsel %vm440, %v4917, 0
        %v5467 = vsel %vm440, %v4919, 0
        %v5470 = vsel %vm440, %v4921, 0
        %v5473 = vsel %vm440, %v4923, 0
        %v5476 = vsel %vm440, %v4925, 0
        %v5479 = vsel %vm440, %v4927, 0
        %v5482 = vsel %vm440, %v4929, 0
        %v5485 = vsel %vm440, %v4931, 0
        %v5488 = vsel %vm440, %v4933, 0
        %v5491 = vsel %vm440, %v4935, 0
        %v5494 = vsel %vm440, %v4937, 0
        %5496 = vmatpush.bf16.msra.mxu0 %v5435
        %5497 = vmatpush.bf16.msra.mxu0 %v5434
        %5498 = vmatpush.bf16.msra.mxu0 %v5433
        %5499 = vmatpush.bf16.msra.mxu0 %v5432
        %5500 = vmatpush.bf16.msra.mxu0 %v5431
        %5501 = vmatpush.bf16.msra.mxu0 %v5430
        %5502 = vmatpush.bf16.msra.mxu0 %v5429
        %5503 = vmatpush.bf16.msra.mxu0 %v5428
        %5504 = vmatmul.bf16.gmra.mxu0 %v4906
        %v5505 = vpop.f32.mrf.mxu0
        %v5506 = vadd.f32 %v5310, %v5505
        %v5507 = vpop.f32.mrf.mxu0
        %v5508 = vadd.f32 %v5312, %v5507
        %5509 = vmatmul.bf16.gmra.mxu0 %v4908
        %v5510 = vpop.f32.mrf.mxu0
        %v5511 = vadd.f32 %v5315, %v5510
        %v5512 = vpop.f32.mrf.mxu0
        %v5513 = vadd.f32 %v5317, %v5512
        %5514 = vmatmul.bf16.gmra.mxu0 %v4910
        %v5515 = vpop.f32.mrf.mxu0
        %v5516 = vadd.f32 %v5320, %v5515
        %v5517 = vpop.f32.mrf.mxu0
        %v5518 = vadd.f32 %v5322, %v5517
        %5519 = vmatmul.bf16.gmra.mxu0 %v4912
        %v5520 = vpop.f32.mrf.mxu0
        %v5521 = vadd.f32 %v5325, %v5520
        %v5522 = vpop.f32.mrf.mxu0
        %v5523 = vadd.f32 %v5327, %v5522
        %5524 = vmatmul.bf16.gmra.mxu0 %v4914
        %v5525 = vpop.f32.mrf.mxu0
        %v5526 = vadd.f32 %v5330, %v5525
        %v5527 = vpop.f32.mrf.mxu0
        %v5528 = vadd.f32 %v5332, %v5527
        %5529 = vmatmul.bf16.gmra.mxu0 %v4916
        %v5530 = vpop.f32.mrf.mxu0
        %v5531 = vadd.f32 %v5335, %v5530
        %v5532 = vpop.f32.mrf.mxu0
        %v5533 = vadd.f32 %v5337, %v5532
        %5534 = vmatmul.bf16.gmra.mxu0 %v4918
        %v5535 = vpop.f32.mrf.mxu0
        %v5536 = vadd.f32 %v5340, %v5535
        %v5537 = vpop.f32.mrf.mxu0
        %v5538 = vadd.f32 %v5342, %v5537
        %5539 = vmatmul.bf16.gmra.mxu0 %v4920
        %v5540 = vpop.f32.mrf.mxu0
        %v5541 = vadd.f32 %v5345, %v5540
        %v5542 = vpop.f32.mrf.mxu0
        %v5543 = vadd.f32 %v5347, %v5542
        %5544 = vmatmul.bf16.gmra.mxu0 %v4922
        %v5545 = vpop.f32.mrf.mxu0
        %v5546 = vadd.f32 %v5350, %v5545
        %v5547 = vpop.f32.mrf.mxu0
        %v5548 = vadd.f32 %v5352, %v5547
        %5549 = vmatmul.bf16.gmra.mxu0 %v4924
        %v5550 = vpop.f32.mrf.mxu0
        %v5551 = vadd.f32 %v5355, %v5550
        %v5552 = vpop.f32.mrf.mxu0
        %v5553 = vadd.f32 %v5357, %v5552
        %5554 = vmatmul.bf16.gmra.mxu0 %v4926
        %v5555 = vpop.f32.mrf.mxu0
        %v5556 = vadd.f32 %v5360, %v5555
        %v5557 = vpop.f32.mrf.mxu0
        %v5558 = vadd.f32 %v5362, %v5557
        %5559 = vmatmul.bf16.gmra.mxu0 %v4928
        %v5560 = vpop.f32.mrf.mxu0
        %v5561 = vadd.f32 %v5365, %v5560
        %v5562 = vpop.f32.mrf.mxu0
        %v5563 = vadd.f32 %v5367, %v5562
        %5564 = vmatmul.bf16.gmra.mxu0 %v4930
        %v5565 = vpop.f32.mrf.mxu0
        %v5566 = vadd.f32 %v5370, %v5565
        %v5567 = vpop.f32.mrf.mxu0
        %v5568 = vadd.f32 %v5372, %v5567
        %5569 = vmatmul.bf16.gmra.mxu0 %v4932
        %v5570 = vpop.f32.mrf.mxu0
        %v5571 = vadd.f32 %v5375, %v5570
        %v5572 = vpop.f32.mrf.mxu0
        %v5573 = vadd.f32 %v5377, %v5572
        %5574 = vmatmul.bf16.gmra.mxu0 %v4934
        %v5575 = vpop.f32.mrf.mxu0
        %v5576 = vadd.f32 %v5380, %v5575
        %v5577 = vpop.f32.mrf.mxu0
        %v5578 = vadd.f32 %v5382, %v5577
        %5579 = vmatmul.bf16.gmra.mxu0 %v4936
        %v5580 = vpop.f32.mrf.mxu0
        %v5581 = vadd.f32 %v5385, %v5580
        %v5582 = vpop.f32.mrf.mxu0
        %5583 = vdwg.mxu0
        %5584 = vmatpush.bf16.msra.mxu0 0
        %5585 = vmatpush.bf16.msra.mxu0 0
        %5586 = vmatpush.bf16.msra.mxu0 0
        %5587 = vmatpush.bf16.msra.mxu0 0
        %5588 = vmatpush.bf16.msra.mxu0 0
        %5589 = vmatpush.bf16.msra.mxu0 0
        %5590 = vmatpush.bf16.msra.mxu0 %v5437
        %5591 = vmatpush.bf16.msra.mxu0 %v5436
        %5592 = vmatmul.bf16.gmra.mxu0 %v5449
        %v5593 = vpop.f32.mrf.mxu0
        %v5594 = vadd.f32 %v5506, %v5593
        %v5595 = vpop.f32.mrf.mxu0
        %v5596 = vadd.f32 %v5508, %v5595
        %5597 = vmatmul.bf16.gmra.mxu0 %v5452
        %v5598 = vpop.f32.mrf.mxu0
        %v5599 = vadd.f32 %v5511, %v5598
        %v5600 = vpop.f32.mrf.mxu0
        %v5601 = vadd.f32 %v5513, %v5600
        %5602 = vmatmul.bf16.gmra.mxu0 %v5455
        %v5603 = vpop.f32.mrf.mxu0
        %v5604 = vadd.f32 %v5516, %v5603
        %v5605 = vpop.f32.mrf.mxu0
        %v5606 = vadd.f32 %v5518, %v5605
        %5607 = vmatmul.bf16.gmra.mxu0 %v5458
        %v5608 = vpop.f32.mrf.mxu0
        %v5609 = vadd.f32 %v5521, %v5608
        %v5610 = vpop.f32.mrf.mxu0
        %v5611 = vadd.f32 %v5523, %v5610
        %5612 = vmatmul.bf16.gmra.mxu0 %v5461
        %v5613 = vpop.f32.mrf.mxu0
        %v5614 = vadd.f32 %v5526, %v5613
        %v5615 = vpop.f32.mrf.mxu0
        %v5616 = vadd.f32 %v5528, %v5615
        %5617 = vmatmul.bf16.gmra.mxu0 %v5464
        %v5618 = vpop.f32.mrf.mxu0
        %v5619 = vadd.f32 %v5531, %v5618
        %v5620 = vpop.f32.mrf.mxu0
        %v5621 = vadd.f32 %v5533, %v5620
        %5622 = vmatmul.bf16.gmra.mxu0 %v5467
        %v5623 = vpop.f32.mrf.mxu0
        %v5624 = vadd.f32 %v5536, %v5623
        %v5625 = vpop.f32.mrf.mxu0
        %v5626 = vadd.f32 %v5538, %v5625
        %5627 = vmatmul.bf16.gmra.mxu0 %v5470
        %v5628 = vpop.f32.mrf.mxu0
        %v5629 = vadd.f32 %v5541, %v5628
        %v5630 = vpop.f32.mrf.mxu0
        %v5631 = vadd.f32 %v5543, %v5630
        %5632 = vmatmul.bf16.gmra.mxu0 %v5473
        %v5633 = vpop.f32.mrf.mxu0
        %v5634 = vadd.f32 %v5546, %v5633
        %v5635 = vpop.f32.mrf.mxu0
        %v5636 = vadd.f32 %v5548, %v5635
        %5637 = vmatmul.bf16.gmra.mxu0 %v5476
        %v5638 = vpop.f32.mrf.mxu0
        %v5639 = vadd.f32 %v5551, %v5638
        %v5640 = vpop.f32.mrf.mxu0
        %v5641 = vadd.f32 %v5553, %v5640
        %5642 = vmatmul.bf16.gmra.mxu0 %v5479
        %v5643 = vpop.f32.mrf.mxu0
        %v5644 = vadd.f32 %v5556, %v5643
        %v5645 = vpop.f32.mrf.mxu0
        %v5646 = vadd.f32 %v5558, %v5645
        %5647 = vmatmul.bf16.gmra.mxu0 %v5482
        %v5648 = vpop.f32.mrf.mxu0
        %v5649 = vadd.f32 %v5561, %v5648
        %v5650 = vpop.f32.mrf.mxu0
        %v5651 = vadd.f32 %v5563, %v5650
        %5652 = vmatmul.bf16.gmra.mxu0 %v5485
        %v5653 = vpop.f32.mrf.mxu0
        %v5654 = vadd.f32 %v5566, %v5653
        %v5655 = vpop.f32.mrf.mxu0
        %v5656 = vadd.f32 %v5568, %v5655
        %5657 = vmatmul.bf16.gmra.mxu0 %v5488
        %v5658 = vpop.f32.mrf.mxu0
        %v5659 = vadd.f32 %v5571, %v5658
        %v5660 = vpop.f32.mrf.mxu0
        %v5661 = vadd.f32 %v5573, %v5660
        %5662 = vmatmul.bf16.gmra.mxu0 %v5491
        %v5663 = vpop.f32.mrf.mxu0
        %v5664 = vadd.f32 %v5576, %v5663
        %v5665 = vpop.f32.mrf.mxu0
        %v5666 = vadd.f32 %v5578, %v5665
        %5667 = vmatmul.bf16.gmra.mxu0 %v5494
        %v5668 = vpop.f32.mrf.mxu0
        %v5669 = vadd.f32 %v5581, %v5668
        %v5670 = vpop.f32.mrf.mxu0
        %5671 = vdwg.mxu0
        %v5672 = vld [vmem:[#allocation2 + $0x40] sm:$0xf0]
        %v5673 = vld [vmem:[#allocation2 + $0x48] sm:$0xf0]
        %v5674 = vld [vmem:[#allocation2 + $0x50] sm:$0xff]
        %v5675 = vld [vmem:[#allocation2 + $0x58] sm:$0xff]
        %v5676 = vld [vmem:[#allocation2 + $0x60] sm:$0xff]
        %v5677 = vld [vmem:[#allocation2 + $0x68] sm:$0xff]
        %v5678 = vld [vmem:[#allocation2 + $0x70] sm:$0xff]
        %v5679 = vld [vmem:[#allocation2 + $0x78] sm:$0xff]
        %v5680 = vld [vmem:[#allocation2 + $0x80] sm:$0xff]
        %v5681 = vld [vmem:[#allocation2 + $0x88] sm:$0xff]
        %v5682 = vld [vmem:[#allocation2 + $0x90] sm:$0xff]
        %v5683 = vld [vmem:[#allocation2 + $0x98] sm:$0xff]
        %v5684 = vld [vmem:[#allocation2 + $0xa0] sm:$0xff]
        %v5685 = vld [vmem:[#allocation2 + $0xa8] sm:$0xff]
        %v5686 = vld [vmem:[#allocation2 + $0xb0] sm:$0xff]
        %v5687 = vld [vmem:[#allocation2 + $0xb8] sm:$0xff]
        %v5688 = vld [vmem:[#allocation2 + $0xc0] sm:$0xff]
        %v5689 = vld [vmem:[#allocation2 + $0xc8] sm:$0xff]
        %v5690 = vld [vmem:[#allocation2 + $0xd0] sm:$0xff]
        %v5691 = vld [vmem:[#allocation2 + $0xd8] sm:$0xff]
        %v5692 = vld [vmem:[#allocation2 + $0xe0] sm:$0xff]
        %v5693 = vld [vmem:[#allocation2 + $0xe8] sm:$0xff]
        %v5694 = vld [vmem:[#allocation2 + $0xf0] sm:$0xff]
        %v5695 = vld [vmem:[#allocation2 + $0xf8] sm:$0xff]
        %v5696 = vld [vmem:[#allocation2 + $0x100] sm:$0xff]
        %v5697 = vld [vmem:[#allocation2 + $0x108] sm:$0xff]
        %v5698 = vld [vmem:[#allocation2 + $0x110] sm:$0xff]
        %v5699 = vld [vmem:[#allocation2 + $0x118] sm:$0xff]
        %v5700 = vld [vmem:[#allocation2 + $0x120] sm:$0xff]
        %v5701 = vld [vmem:[#allocation2 + $0x128] sm:$0xff]
        %v5702 = vld [vmem:[#allocation2 + $0x130] sm:$0xff]
        %v5703 = vld [vmem:[#allocation2 + $0x138] sm:$0xff]
        %v5704 = vld [vmem:[#allocation2 + $0x140] sm:$0xff]
        %v5705 = vld [vmem:[#allocation2 + $0x148] sm:$0xff]
        %v5706 = vld [vmem:[#allocation2 + $0x150] sm:$0xff]
        %v5707 = vld [vmem:[#allocation2 + $0x158] sm:$0xff]
        %v5708 = vld [vmem:[#allocation2 + $0x160] sm:$0xff]
        %v5709 = vld [vmem:[#allocation2 + $0x168] sm:$0xff]
        %v5710 = vld [vmem:[#allocation2 + $0x170] sm:$0xff]
        %v5711 = vld [vmem:[#allocation2 + $0x178] sm:$0xff]
        %v5712 = vld [vmem:[#allocation2 + $0x180] sm:$0xff]
        %v5713 = vld [vmem:[#allocation2 + $0x188] sm:$0xff]
        %v5714 = vld [vmem:[#allocation2 + $0x190] sm:$0xff]
        %v5715 = vld [vmem:[#allocation2 + $0x198] sm:$0xff]
        %v5716 = vld [vmem:[#allocation2 + $0x1a0] sm:$0xff]
        %v5717 = vld [vmem:[#allocation2 + $0x1a8] sm:$0xff]
        %v5718 = vld [vmem:[#allocation2 + $0x1b0] sm:$0xff]
        %v5719 = vld [vmem:[#allocation2 + $0x1b8] sm:$0xff]
        %v5720 = vld [vmem:[#allocation2 + $0x1c0] sm:$0xff]
        %v5721 = vld [vmem:[#allocation2 + $0x1c8] sm:$0xff]
        %v5722 = vld [vmem:[#allocation2 + $0x1d0] sm:$0xff]
        %v5723 = vld [vmem:[#allocation2 + $0x1d8] sm:$0xff]
        %v5724 = vld [vmem:[#allocation2 + $0x1e0] sm:$0xff]
        %v5725 = vld [vmem:[#allocation2 + $0x1e8] sm:$0xff]
        %v5726 = vld [vmem:[#allocation2 + $0x1f0] sm:$0xff]
        %v5727 = vld [vmem:[#allocation2 + $0x1f8] sm:$0xff]
        %v5728 = vld [vmem:[#allocation2 + $0x200] sm:$0xff]
        %v5729 = vld [vmem:[#allocation2 + $0x208] sm:$0xff]
        %v5730 = vld [vmem:[#allocation2 + $0x210] sm:$0xff]
        %v5731 = vld [vmem:[#allocation2 + $0x218] sm:$0xff]
        %v5732 = vld [vmem:[#allocation2 + $0x220] sm:$0xff]
        %v5733 = vld [vmem:[#allocation2 + $0x228] sm:$0xff]
        %v5734 = vld [vmem:[#allocation2 + $0x230] sm:$0xf]
        %v5735 = vld [vmem:[#allocation2 + $0x238] sm:$0xf]
        %v5736 = vpack.c.bf16 %v5674, %v5672
        %v5737 = vpack.c.bf16 %v5675, %v5673
        %v5738 = vpack.c.bf16 %v5678, %v5676
        %v5739 = vpack.c.bf16 %v5679, %v5677
        %v5740 = vpack.c.bf16 %v5682, %v5680
        %v5741 = vpack.c.bf16 %v5683, %v5681
        %v5742 = vpack.c.bf16 %v5686, %v5684
        %v5743 = vpack.c.bf16 %v5687, %v5685
        %v5744 = vpack.c.bf16 %v5690, %v5688
        %v5745 = vpack.c.bf16 %v5691, %v5689
        %v5746 = vpack.c.bf16 %v5694, %v5692
        %v5747 = vpack.c.bf16 %v5695, %v5693
        %v5748 = vpack.c.bf16 %v5698, %v5696
        %v5749 = vpack.c.bf16 %v5699, %v5697
        %v5750 = vpack.c.bf16 %v5702, %v5700
        %v5751 = vpack.c.bf16 %v5703, %v5701
        %v5752 = vpack.c.bf16 %v5706, %v5704
        %v5753 = vpack.c.bf16 %v5707, %v5705
        %v5754 = vpack.c.bf16 %v5710, %v5708
        %v5755 = vpack.c.bf16 %v5711, %v5709
        %v5756 = vpack.c.bf16 %v5714, %v5712
        %v5757 = vpack.c.bf16 %v5715, %v5713
        %v5758 = vpack.c.bf16 %v5718, %v5716
        %v5759 = vpack.c.bf16 %v5719, %v5717
        %v5760 = vpack.c.bf16 %v5722, %v5720
        %v5761 = vpack.c.bf16 %v5723, %v5721
        %v5762 = vpack.c.bf16 %v5726, %v5724
        %v5763 = vpack.c.bf16 %v5727, %v5725
        %v5764 = vpack.c.bf16 %v5730, %v5728
        %v5765 = vpack.c.bf16 %v5731, %v5729
        %v5766 = vpack.c.bf16 %v5734, %v5732
        %v5767 = vpack.c.bf16 %v5735, %v5733
        %s5768 = scalar_lea.vmem %s4, 160
        %v5769 = vld [vmem:[%s5768] sm:$0xf]
        %v5770 = vld [vmem:[%s5768 + $0x4] sm:$0xf]
        %v5771 = vld [vmem:[%s5768 + $0x8] sm:$0xf]
        %v5772 = vld [vmem:[%s5768 + $0xc] sm:$0xf]
        %v5773 = vld [vmem:[%s5768 + $0x10] sm:$0xf]
        %v5774 = vld [vmem:[%s5768 + $0x14] sm:$0xf]
        %v5775 = vld [vmem:[%s5768 + $0x18] sm:$0xf]
        %v5776 = vld [vmem:[%s5768 + $0x1c] sm:$0xf]
        %v5777 = vld [vmem:[%s5768 + $0x20] sm:$0xf]
        %v5778 = vld [vmem:[%s5768 + $0x24] sm:$0xf]
        %v5779 = vld [vmem:[%s5768 + $0x28] sm:$0xf]
        %v5780 = vld [vmem:[%s5768 + $0x2c] sm:$0xf]
        %v5781 = vld [vmem:[%s5768 + $0x30] sm:$0xf]
        %v5782 = vld [vmem:[%s5768 + $0x34] sm:$0xf]
        %v5783 = vld [vmem:[%s5768 + $0x38] sm:$0xf]
        %v5784 = vld [vmem:[%s5768 + $0x3c] sm:$0xf]
        %v5785 = vld [vmem:[%s5768 + $0x40] sm:$0xf]
        %v5786 = vld [vmem:[%s5768 + $0x44] sm:$0xf]
        %v5787 = vld [vmem:[%s5768 + $0x48] sm:$0xf]
        %v5788 = vld [vmem:[%s5768 + $0x4c] sm:$0xf]
        %vm5821 = vcmask 1045504
        %v5822 = vrot.slane %v5736, 2
        %v5823 = vrot.slane %v5738, 2
        %v5824 = vsel %vm5821, %v5822, %v5823
        %v5825 = vrot.slane %v5737, 2
        %v5826 = vrot.slane %v5739, 2
        %v5827 = vsel %vm5821, %v5825, %v5826
        %v5828 = vrot.slane %v5740, 2
        %v5829 = vsel %vm5821, %v5823, %v5828
        %v5830 = vrot.slane %v5741, 2
        %v5831 = vsel %vm5821, %v5826, %v5830
        %v5832 = vrot.slane %v5742, 2
        %v5833 = vsel %vm5821, %v5828, %v5832
        %v5834 = vrot.slane %v5743, 2
        %v5835 = vsel %vm5821, %v5830, %v5834
        %v5836 = vrot.slane %v5744, 2
        %v5837 = vsel %vm5821, %v5832, %v5836
        %v5838 = vrot.slane %v5745, 2
        %v5839 = vsel %vm5821, %v5834, %v5838
        %v5840 = vrot.slane %v5746, 2
        %v5841 = vsel %vm5821, %v5836, %v5840
        %v5842 = vrot.slane %v5747, 2
        %v5843 = vsel %vm5821, %v5838, %v5842
        %v5844 = vrot.slane %v5748, 2
        %v5845 = vsel %vm5821, %v5840, %v5844
        %v5846 = vrot.slane %v5749, 2
        %v5847 = vsel %vm5821, %v5842, %v5846
        %v5848 = vrot.slane %v5750, 2
        %v5849 = vsel %vm5821, %v5844, %v5848
        %v5850 = vrot.slane %v5751, 2
        %v5851 = vsel %vm5821, %v5846, %v5850
        %v5852 = vrot.slane %v5752, 2
        %v5853 = vsel %vm5821, %v5848, %v5852
        %v5854 = vrot.slane %v5753, 2
        %v5855 = vsel %vm5821, %v5850, %v5854
        %v5856 = vrot.slane %v5754, 2
        %v5857 = vsel %vm5821, %v5852, %v5856
        %v5858 = vrot.slane %v5755, 2
        %v5859 = vsel %vm5821, %v5854, %v5858
        %v5860 = vrot.slane %v5756, 2
        %v5861 = vsel %vm5821, %v5856, %v5860
        %v5862 = vrot.slane %v5757, 2
        %v5863 = vsel %vm5821, %v5858, %v5862
        %v5864 = vrot.slane %v5758, 2
        %v5865 = vsel %vm5821, %v5860, %v5864
        %v5866 = vrot.slane %v5759, 2
        %v5867 = vsel %vm5821, %v5862, %v5866
        %v5868 = vrot.slane %v5760, 2
        %v5869 = vsel %vm5821, %v5864, %v5868
        %v5870 = vrot.slane %v5761, 2
        %v5871 = vsel %vm5821, %v5866, %v5870
        %v5872 = vrot.slane %v5762, 2
        %v5873 = vsel %vm5821, %v5868, %v5872
        %v5874 = vrot.slane %v5763, 2
        %v5875 = vsel %vm5821, %v5870, %v5874
        %v5876 = vrot.slane %v5764, 2
        %v5877 = vsel %vm5821, %v5872, %v5876
        %v5878 = vrot.slane %v5765, 2
        %v5879 = vsel %vm5821, %v5874, %v5878
        %v5880 = vrot.slane %v5766, 2
        %v5881 = vsel %vm5821, %v5876, %v5880
        %v5882 = vrot.slane %v5767, 2
        %v5883 = vsel %vm5821, %v5878, %v5882
        %v5920 = vunpack.c.l.b16 %v5769
        %v5921 = vunpack.c.l.b16 %v5770
        %v5922 = vunpack.c.l.b16 %v5771
        %v5923 = vunpack.c.l.b16 %v5772
        %v5924 = vunpack.c.l.b16 %v5773
        %v5925 = vunpack.c.l.b16 %v5774
        %v5926 = vunpack.c.l.b16 %v5775
        %v5927 = vunpack.c.l.b16 %v5776
        %v5928 = vunpack.c.l.b16 %v5777
        %v5929 = vunpack.c.l.b16 %v5778
        %v5930 = vunpack.c.l.b16 %v5779
        %v5931 = vunpack.c.l.b16 %v5780
        %v5932 = vunpack.c.l.b16 %v5781
        %v5933 = vunpack.c.l.b16 %v5782
        %v5934 = vunpack.c.l.b16 %v5783
        %v5935 = vunpack.c.l.b16 %v5784
        %v5936 = vunpack.c.l.b16 %v5785
        %v5937 = vunpack.c.l.b16 %v5786
        %v5938 = vunpack.c.l.b16 %v5787
        %v5939 = vunpack.c.l.b16 %v5788
        %v5940 = vpack.c.b16 %v5921, %v5920
        %v5941 = vpack.c.b16 %v5923, %v5922
        %v5942 = vpack.c.b16 %v5925, %v5924
        %v5943 = vpack.c.b16 %v5927, %v5926
        %v5944 = vpack.c.b16 %v5929, %v5928
        %v5945 = vpack.c.b16 %v5931, %v5930
        %v5946 = vpack.c.b16 %v5933, %v5932
        %v5947 = vpack.c.b16 %v5935, %v5934
        %v5948 = vpack.c.b16 %v5937, %v5936
        %v5949 = vpack.c.b16 %v5939, %v5938
        %v5961 = vsel %vm440, %v5827, 0
        %v5964 = vsel %vm440, %v5831, 0
        %v5967 = vsel %vm440, %v5835, 0
        %v5970 = vsel %vm440, %v5839, 0
        %v5973 = vsel %vm440, %v5843, 0
        %v5976 = vsel %vm440, %v5847, 0
        %v5979 = vsel %vm440, %v5851, 0
        %v5982 = vsel %vm440, %v5855, 0
        %v5985 = vsel %vm440, %v5859, 0
        %v5988 = vsel %vm440, %v5863, 0
        %v5991 = vsel %vm440, %v5867, 0
        %v5994 = vsel %vm440, %v5871, 0
        %v5997 = vsel %vm440, %v5875, 0
        %v6000 = vsel %vm440, %v5879, 0
        %v6003 = vsel %vm440, %v5883, 0
        %v6006 = vsel %vm440, %v5882, 0
        %6008 = vmatpush.bf16.msra.mxu0 %v5947
        %6009 = vmatpush.bf16.msra.mxu0 %v5946
        %6010 = vmatpush.bf16.msra.mxu0 %v5945
        %6011 = vmatpush.bf16.msra.mxu0 %v5944
        %6012 = vmatpush.bf16.msra.mxu0 %v5943
        %6013 = vmatpush.bf16.msra.mxu0 %v5942
        %6014 = vmatpush.bf16.msra.mxu0 %v5941
        %6015 = vmatpush.bf16.msra.mxu0 %v5940
        %6016 = vmatmul.bf16.gmra.mxu0 %v5824
        %v6017 = vpop.f32.mrf.mxu0
        %v6018 = vadd.f32 0.0, %v6017
        %v6019 = vpop.f32.mrf.mxu0
        %v6020 = vadd.f32 0.0, %v6019
        %6021 = vmatmul.bf16.gmra.mxu0 %v5829
        %v6022 = vpop.f32.mrf.mxu0
        %v6023 = vadd.f32 0.0, %v6022
        %v6024 = vpop.f32.mrf.mxu0
        %v6025 = vadd.f32 0.0, %v6024
        %6026 = vmatmul.bf16.gmra.mxu0 %v5833
        %v6027 = vpop.f32.mrf.mxu0
        %v6028 = vadd.f32 0.0, %v6027
        %v6029 = vpop.f32.mrf.mxu0
        %v6030 = vadd.f32 0.0, %v6029
        %6031 = vmatmul.bf16.gmra.mxu0 %v5837
        %v6032 = vpop.f32.mrf.mxu0
        %v6033 = vadd.f32 0.0, %v6032
        %v6034 = vpop.f32.mrf.mxu0
        %v6035 = vadd.f32 0.0, %v6034
        %6036 = vmatmul.bf16.gmra.mxu0 %v5841
        %v6037 = vpop.f32.mrf.mxu0
        %v6038 = vadd.f32 0.0, %v6037
        %v6039 = vpop.f32.mrf.mxu0
        %v6040 = vadd.f32 0.0, %v6039
        %6041 = vmatmul.bf16.gmra.mxu0 %v5845
        %v6042 = vpop.f32.mrf.mxu0
        %v6043 = vadd.f32 0.0, %v6042
        %v6044 = vpop.f32.mrf.mxu0
        %v6045 = vadd.f32 0.0, %v6044
        %6046 = vmatmul.bf16.gmra.mxu0 %v5849
        %v6047 = vpop.f32.mrf.mxu0
        %v6048 = vadd.f32 0.0, %v6047
        %v6049 = vpop.f32.mrf.mxu0
        %v6050 = vadd.f32 0.0, %v6049
        %6051 = vmatmul.bf16.gmra.mxu0 %v5853
        %v6052 = vpop.f32.mrf.mxu0
        %v6053 = vadd.f32 0.0, %v6052
        %v6054 = vpop.f32.mrf.mxu0
        %v6055 = vadd.f32 0.0, %v6054
        %6056 = vmatmul.bf16.gmra.mxu0 %v5857
        %v6057 = vpop.f32.mrf.mxu0
        %v6058 = vadd.f32 0.0, %v6057
        %v6059 = vpop.f32.mrf.mxu0
        %v6060 = vadd.f32 0.0, %v6059
        %6061 = vmatmul.bf16.gmra.mxu0 %v5861
        %v6062 = vpop.f32.mrf.mxu0
        %v6063 = vadd.f32 0.0, %v6062
        %v6064 = vpop.f32.mrf.mxu0
        %v6065 = vadd.f32 0.0, %v6064
        %6066 = vmatmul.bf16.gmra.mxu0 %v5865
        %v6067 = vpop.f32.mrf.mxu0
        %v6068 = vadd.f32 0.0, %v6067
        %v6069 = vpop.f32.mrf.mxu0
        %v6070 = vadd.f32 0.0, %v6069
        %6071 = vmatmul.bf16.gmra.mxu0 %v5869
        %v6072 = vpop.f32.mrf.mxu0
        %v6073 = vadd.f32 0.0, %v6072
        %v6074 = vpop.f32.mrf.mxu0
        %v6075 = vadd.f32 0.0, %v6074
        %6076 = vmatmul.bf16.gmra.mxu0 %v5873
        %v6077 = vpop.f32.mrf.mxu0
        %v6078 = vadd.f32 0.0, %v6077
        %v6079 = vpop.f32.mrf.mxu0
        %v6080 = vadd.f32 0.0, %v6079
        %6081 = vmatmul.bf16.gmra.mxu0 %v5877
        %v6082 = vpop.f32.mrf.mxu0
        %v6083 = vadd.f32 0.0, %v6082
        %v6084 = vpop.f32.mrf.mxu0
        %v6085 = vadd.f32 0.0, %v6084
        %6086 = vmatmul.bf16.gmra.mxu0 %v5881
        %v6087 = vpop.f32.mrf.mxu0
        %v6088 = vadd.f32 0.0, %v6087
        %v6089 = vpop.f32.mrf.mxu0
        %v6090 = vadd.f32 0.0, %v6089
        %6091 = vmatmul.bf16.gmra.mxu0 %v5880
        %v6092 = vpop.f32.mrf.mxu0
        %v6093 = vadd.f32 0.0, %v6092
        %v6094 = vpop.f32.mrf.mxu0
        %6095 = vdwg.mxu0
        %6096 = vmatpush.bf16.msra.mxu0 0
        %6097 = vmatpush.bf16.msra.mxu0 0
        %6098 = vmatpush.bf16.msra.mxu0 0
        %6099 = vmatpush.bf16.msra.mxu0 0
        %6100 = vmatpush.bf16.msra.mxu0 0
        %6101 = vmatpush.bf16.msra.mxu0 0
        %6102 = vmatpush.bf16.msra.mxu0 %v5949
        %6103 = vmatpush.bf16.msra.mxu0 %v5948
        %6104 = vmatmul.bf16.gmra.mxu0 %v5961
        %v6105 = vpop.f32.mrf.mxu0
        %v6106 = vadd.f32 %v6018, %v6105
        %v6107 = vpop.f32.mrf.mxu0
        %v6108 = vadd.f32 %v6020, %v6107
        %6109 = vmatmul.bf16.gmra.mxu0 %v5964
        %v6110 = vpop.f32.mrf.mxu0
        %v6111 = vadd.f32 %v6023, %v6110
        %v6112 = vpop.f32.mrf.mxu0
        %v6113 = vadd.f32 %v6025, %v6112
        %6114 = vmatmul.bf16.gmra.mxu0 %v5967
        %v6115 = vpop.f32.mrf.mxu0
        %v6116 = vadd.f32 %v6028, %v6115
        %v6117 = vpop.f32.mrf.mxu0
        %v6118 = vadd.f32 %v6030, %v6117
        %6119 = vmatmul.bf16.gmra.mxu0 %v5970
        %v6120 = vpop.f32.mrf.mxu0
        %v6121 = vadd.f32 %v6033, %v6120
        %v6122 = vpop.f32.mrf.mxu0
        %v6123 = vadd.f32 %v6035, %v6122
        %6124 = vmatmul.bf16.gmra.mxu0 %v5973
        %v6125 = vpop.f32.mrf.mxu0
        %v6126 = vadd.f32 %v6038, %v6125
        %v6127 = vpop.f32.mrf.mxu0
        %v6128 = vadd.f32 %v6040, %v6127
        %6129 = vmatmul.bf16.gmra.mxu0 %v5976
        %v6130 = vpop.f32.mrf.mxu0
        %v6131 = vadd.f32 %v6043, %v6130
        %v6132 = vpop.f32.mrf.mxu0
        %v6133 = vadd.f32 %v6045, %v6132
        %6134 = vmatmul.bf16.gmra.mxu0 %v5979
        %v6135 = vpop.f32.mrf.mxu0
        %v6136 = vadd.f32 %v6048, %v6135
        %v6137 = vpop.f32.mrf.mxu0
        %v6138 = vadd.f32 %v6050, %v6137
        %6139 = vmatmul.bf16.gmra.mxu0 %v5982
        %v6140 = vpop.f32.mrf.mxu0
        %v6141 = vadd.f32 %v6053, %v6140
        %v6142 = vpop.f32.mrf.mxu0
        %v6143 = vadd.f32 %v6055, %v6142
        %6144 = vmatmul.bf16.gmra.mxu0 %v5985
        %v6145 = vpop.f32.mrf.mxu0
        %v6146 = vadd.f32 %v6058, %v6145
        %v6147 = vpop.f32.mrf.mxu0
        %v6148 = vadd.f32 %v6060, %v6147
        %6149 = vmatmul.bf16.gmra.mxu0 %v5988
        %v6150 = vpop.f32.mrf.mxu0
        %v6151 = vadd.f32 %v6063, %v6150
        %v6152 = vpop.f32.mrf.mxu0
        %v6153 = vadd.f32 %v6065, %v6152
        %6154 = vmatmul.bf16.gmra.mxu0 %v5991
        %v6155 = vpop.f32.mrf.mxu0
        %v6156 = vadd.f32 %v6068, %v6155
        %v6157 = vpop.f32.mrf.mxu0
        %v6158 = vadd.f32 %v6070, %v6157
        %6159 = vmatmul.bf16.gmra.mxu0 %v5994
        %v6160 = vpop.f32.mrf.mxu0
        %v6161 = vadd.f32 %v6073, %v6160
        %v6162 = vpop.f32.mrf.mxu0
        %v6163 = vadd.f32 %v6075, %v6162
        %6164 = vmatmul.bf16.gmra.mxu0 %v5997
        %v6165 = vpop.f32.mrf.mxu0
        %v6166 = vadd.f32 %v6078, %v6165
        %v6167 = vpop.f32.mrf.mxu0
        %v6168 = vadd.f32 %v6080, %v6167
        %6169 = vmatmul.bf16.gmra.mxu0 %v6000
        %v6170 = vpop.f32.mrf.mxu0
        %v6171 = vadd.f32 %v6083, %v6170
        %v6172 = vpop.f32.mrf.mxu0
        %v6173 = vadd.f32 %v6085, %v6172
        %6174 = vmatmul.bf16.gmra.mxu0 %v6003
        %v6175 = vpop.f32.mrf.mxu0
        %v6176 = vadd.f32 %v6088, %v6175
        %v6177 = vpop.f32.mrf.mxu0
        %v6178 = vadd.f32 %v6090, %v6177
        %6179 = vmatmul.bf16.gmra.mxu0 %v6006
        %v6180 = vpop.f32.mrf.mxu0
        %v6181 = vadd.f32 %v6093, %v6180
        %v6182 = vpop.f32.mrf.mxu0
        %6183 = vdwg.mxu0
        %v6184 = vadd.f32 %v5594, %v6106
        %v6185 = vadd.f32 %v5596, %v6108
        %v6186 = vadd.f32 %v5599, %v6111
        %v6187 = vadd.f32 %v5601, %v6113
        %v6188 = vadd.f32 %v5604, %v6116
        %v6189 = vadd.f32 %v5606, %v6118
        %v6190 = vadd.f32 %v5609, %v6121
        %v6191 = vadd.f32 %v5611, %v6123
        %v6192 = vadd.f32 %v5614, %v6126
        %v6193 = vadd.f32 %v5616, %v6128
        %v6194 = vadd.f32 %v5619, %v6131
        %v6195 = vadd.f32 %v5621, %v6133
        %v6196 = vadd.f32 %v5624, %v6136
        %v6197 = vadd.f32 %v5626, %v6138
        %v6198 = vadd.f32 %v5629, %v6141
        %v6199 = vadd.f32 %v5631, %v6143
        %v6200 = vadd.f32 %v5634, %v6146
        %v6201 = vadd.f32 %v5636, %v6148
        %v6202 = vadd.f32 %v5639, %v6151
        %v6203 = vadd.f32 %v5641, %v6153
        %v6204 = vadd.f32 %v5644, %v6156
        %v6205 = vadd.f32 %v5646, %v6158
        %v6206 = vadd.f32 %v5649, %v6161
        %v6207 = vadd.f32 %v5651, %v6163
        %v6208 = vadd.f32 %v5654, %v6166
        %v6209 = vadd.f32 %v5656, %v6168
        %v6210 = vadd.f32 %v5659, %v6171
        %v6211 = vadd.f32 %v5661, %v6173
        %v6212 = vadd.f32 %v5664, %v6176
        %v6213 = vadd.f32 %v5666, %v6178
        %v6214 = vadd.f32 %v5669, %v6181
        %v6215 = vld [vmem:[#allocation2 + $0x60] sm:$0xc0]
        %v6216 = vld [vmem:[#allocation2 + $0x68] sm:$0xc0]
        %v6217 = vld [vmem:[#allocation2 + $0x70] sm:$0xff]
        %v6218 = vld [vmem:[#allocation2 + $0x78] sm:$0xff]
        %v6219 = vld [vmem:[#allocation2 + $0x80] sm:$0xff]
        %v6220 = vld [vmem:[#allocation2 + $0x88] sm:$0xff]
        %v6221 = vld [vmem:[#allocation2 + $0x90] sm:$0xff]
        %v6222 = vld [vmem:[#allocation2 + $0x98] sm:$0xff]
        %v6223 = vld [vmem:[#allocation2 + $0xa0] sm:$0xff]
        %v6224 = vld [vmem:[#allocation2 + $0xa8] sm:$0xff]
        %v6225 = vld [vmem:[#allocation2 + $0xb0] sm:$0xff]
        %v6226 = vld [vmem:[#allocation2 + $0xb8] sm:$0xff]
        %v6227 = vld [vmem:[#allocation2 + $0xc0] sm:$0xff]
        %v6228 = vld [vmem:[#allocation2 + $0xc8] sm:$0xff]
        %v6229 = vld [vmem:[#allocation2 + $0xd0] sm:$0xff]
        %v6230 = vld [vmem:[#allocation2 + $0xd8] sm:$0xff]
        %v6231 = vld [vmem:[#allocation2 + $0xe0] sm:$0xff]
        %v6232 = vld [vmem:[#allocation2 + $0xe8] sm:$0xff]
        %v6233 = vld [vmem:[#allocation2 + $0xf0] sm:$0xff]
        %v6234 = vld [vmem:[#allocation2 + $0xf8] sm:$0xff]
        %v6235 = vld [vmem:[#allocation2 + $0x100] sm:$0xff]
        %v6236 = vld [vmem:[#allocation2 + $0x108] sm:$0xff]
        %v6237 = vld [vmem:[#allocation2 + $0x110] sm:$0xff]
        %v6238 = vld [vmem:[#allocation2 + $0x118] sm:$0xff]
        %v6239 = vld [vmem:[#allocation2 + $0x120] sm:$0xff]
        %v6240 = vld [vmem:[#allocation2 + $0x128] sm:$0xff]
        %v6241 = vld [vmem:[#allocation2 + $0x130] sm:$0xff]
        %v6242 = vld [vmem:[#allocation2 + $0x138] sm:$0xff]
        %v6243 = vld [vmem:[#allocation2 + $0x140] sm:$0xff]
        %v6244 = vld [vmem:[#allocation2 + $0x148] sm:$0xff]
        %v6245 = vld [vmem:[#allocation2 + $0x150] sm:$0xff]
        %v6246 = vld [vmem:[#allocation2 + $0x158] sm:$0xff]
        %v6247 = vld [vmem:[#allocation2 + $0x160] sm:$0xff]
        %v6248 = vld [vmem:[#allocation2 + $0x168] sm:$0xff]
        %v6249 = vld [vmem:[#allocation2 + $0x170] sm:$0xff]
        %v6250 = vld [vmem:[#allocation2 + $0x178] sm:$0xff]
        %v6251 = vld [vmem:[#allocation2 + $0x180] sm:$0xff]
        %v6252 = vld [vmem:[#allocation2 + $0x188] sm:$0xff]
        %v6253 = vld [vmem:[#allocation2 + $0x190] sm:$0xff]
        %v6254 = vld [vmem:[#allocation2 + $0x198] sm:$0xff]
        %v6255 = vld [vmem:[#allocation2 + $0x1a0] sm:$0xff]
        %v6256 = vld [vmem:[#allocation2 + $0x1a8] sm:$0xff]
        %v6257 = vld [vmem:[#allocation2 + $0x1b0] sm:$0xff]
        %v6258 = vld [vmem:[#allocation2 + $0x1b8] sm:$0xff]
        %v6259 = vld [vmem:[#allocation2 + $0x1c0] sm:$0xff]
        %v6260 = vld [vmem:[#allocation2 + $0x1c8] sm:$0xff]
        %v6261 = vld [vmem:[#allocation2 + $0x1d0] sm:$0xff]
        %v6262 = vld [vmem:[#allocation2 + $0x1d8] sm:$0xff]
        %v6263 = vld [vmem:[#allocation2 + $0x1e0] sm:$0xff]
        %v6264 = vld [vmem:[#allocation2 + $0x1e8] sm:$0xff]
        %v6265 = vld [vmem:[#allocation2 + $0x1f0] sm:$0xff]
        %v6266 = vld [vmem:[#allocation2 + $0x1f8] sm:$0xff]
        %v6267 = vld [vmem:[#allocation2 + $0x200] sm:$0xff]
        %v6268 = vld [vmem:[#allocation2 + $0x208] sm:$0xff]
        %v6269 = vld [vmem:[#allocation2 + $0x210] sm:$0xff]
        %v6270 = vld [vmem:[#allocation2 + $0x218] sm:$0xff]
        %v6271 = vld [vmem:[#allocation2 + $0x220] sm:$0xff]
        %v6272 = vld [vmem:[#allocation2 + $0x228] sm:$0xff]
        %v6273 = vld [vmem:[#allocation2 + $0x230] sm:$0xff]
        %v6274 = vld [vmem:[#allocation2 + $0x238] sm:$0xff]
        %v6275 = vld [vmem:[#allocation2 + $0x240] sm:$0xff]
        %v6276 = vld [vmem:[#allocation2 + $0x248] sm:$0xff]
        %v6277 = vld [vmem:[#allocation2 + $0x250] sm:$0x3f]
        %v6278 = vld [vmem:[#allocation2 + $0x258] sm:$0x3f]
        %v6279 = vpack.c.bf16 %v6217, %v6215
        %v6280 = vpack.c.bf16 %v6218, %v6216
        %v6281 = vpack.c.bf16 %v6221, %v6219
        %v6282 = vpack.c.bf16 %v6222, %v6220
        %v6283 = vpack.c.bf16 %v6225, %v6223
        %v6284 = vpack.c.bf16 %v6226, %v6224
        %v6285 = vpack.c.bf16 %v6229, %v6227
        %v6286 = vpack.c.bf16 %v6230, %v6228
        %v6287 = vpack.c.bf16 %v6233, %v6231
        %v6288 = vpack.c.bf16 %v6234, %v6232
        %v6289 = vpack.c.bf16 %v6237, %v6235
        %v6290 = vpack.c.bf16 %v6238, %v6236
        %v6291 = vpack.c.bf16 %v6241, %v6239
        %v6292 = vpack.c.bf16 %v6242, %v6240
        %v6293 = vpack.c.bf16 %v6245, %v6243
        %v6294 = vpack.c.bf16 %v6246, %v6244
        %v6295 = vpack.c.bf16 %v6249, %v6247
        %v6296 = vpack.c.bf16 %v6250, %v6248
        %v6297 = vpack.c.bf16 %v6253, %v6251
        %v6298 = vpack.c.bf16 %v6254, %v6252
        %v6299 = vpack.c.bf16 %v6257, %v6255
        %v6300 = vpack.c.bf16 %v6258, %v6256
        %v6301 = vpack.c.bf16 %v6261, %v6259
        %v6302 = vpack.c.bf16 %v6262, %v6260
        %v6303 = vpack.c.bf16 %v6265, %v6263
        %v6304 = vpack.c.bf16 %v6266, %v6264
        %v6305 = vpack.c.bf16 %v6269, %v6267
        %v6306 = vpack.c.bf16 %v6270, %v6268
        %v6307 = vpack.c.bf16 %v6273, %v6271
        %v6308 = vpack.c.bf16 %v6274, %v6272
        %v6309 = vpack.c.bf16 %v6277, %v6275
        %v6310 = vpack.c.bf16 %v6278, %v6276
        %s6311 = scalar_lea.vmem %s4, 240
        %v6312 = vld [vmem:[%s6311] sm:$0xf]
        %v6313 = vld [vmem:[%s6311 + $0x4] sm:$0xf]
        %v6314 = vld [vmem:[%s6311 + $0x8] sm:$0xf]
        %v6315 = vld [vmem:[%s6311 + $0xc] sm:$0xf]
        %v6316 = vld [vmem:[%s6311 + $0x10] sm:$0xf]
        %v6317 = vld [vmem:[%s6311 + $0x14] sm:$0xf]
        %v6318 = vld [vmem:[%s6311 + $0x18] sm:$0xf]
        %v6319 = vld [vmem:[%s6311 + $0x1c] sm:$0xf]
        %v6320 = vld [vmem:[%s6311 + $0x20] sm:$0xf]
        %v6321 = vld [vmem:[%s6311 + $0x24] sm:$0xf]
        %v6322 = vld [vmem:[%s6311 + $0x28] sm:$0xf]
        %v6323 = vld [vmem:[%s6311 + $0x2c] sm:$0xf]
        %v6324 = vld [vmem:[%s6311 + $0x30] sm:$0xf]
        %v6325 = vld [vmem:[%s6311 + $0x34] sm:$0xf]
        %v6326 = vld [vmem:[%s6311 + $0x38] sm:$0xf]
        %v6327 = vld [vmem:[%s6311 + $0x3c] sm:$0xf]
        %v6328 = vld [vmem:[%s6311 + $0x40] sm:$0xf]
        %v6329 = vld [vmem:[%s6311 + $0x44] sm:$0xf]
        %v6330 = vld [vmem:[%s6311 + $0x48] sm:$0xf]
        %v6331 = vld [vmem:[%s6311 + $0x4c] sm:$0xf]
        %vm6364 = vcmask 1044480
        %v6365 = vrot.slane %v6279, 3
        %v6366 = vrot.slane %v6281, 3
        %v6367 = vsel %vm6364, %v6365, %v6366
        %v6368 = vrot.slane %v6280, 3
        %v6369 = vrot.slane %v6282, 3
        %v6370 = vsel %vm6364, %v6368, %v6369
        %v6371 = vrot.slane %v6283, 3
        %v6372 = vsel %vm6364, %v6366, %v6371
        %v6373 = vrot.slane %v6284, 3
        %v6374 = vsel %vm6364, %v6369, %v6373
        %v6375 = vrot.slane %v6285, 3
        %v6376 = vsel %vm6364, %v6371, %v6375
        %v6377 = vrot.slane %v6286, 3
        %v6378 = vsel %vm6364, %v6373, %v6377
        %v6379 = vrot.slane %v6287, 3
        %v6380 = vsel %vm6364, %v6375, %v6379
        %v6381 = vrot.slane %v6288, 3
        %v6382 = vsel %vm6364, %v6377, %v6381
        %v6383 = vrot.slane %v6289, 3
        %v6384 = vsel %vm6364, %v6379, %v6383
        %v6385 = vrot.slane %v6290, 3
        %v6386 = vsel %vm6364, %v6381, %v6385
        %v6387 = vrot.slane %v6291, 3
        %v6388 = vsel %vm6364, %v6383, %v6387
        %v6389 = vrot.slane %v6292, 3
        %v6390 = vsel %vm6364, %v6385, %v6389
        %v6391 = vrot.slane %v6293, 3
        %v6392 = vsel %vm6364, %v6387, %v6391
        %v6393 = vrot.slane %v6294, 3
        %v6394 = vsel %vm6364, %v6389, %v6393
        %v6395 = vrot.slane %v6295, 3
        %v6396 = vsel %vm6364, %v6391, %v6395
        %v6397 = vrot.slane %v6296, 3
        %v6398 = vsel %vm6364, %v6393, %v6397
        %v6399 = vrot.slane %v6297, 3
        %v6400 = vsel %vm6364, %v6395, %v6399
        %v6401 = vrot.slane %v6298, 3
        %v6402 = vsel %vm6364, %v6397, %v6401
        %v6403 = vrot.slane %v6299, 3
        %v6404 = vsel %vm6364, %v6399, %v6403
        %v6405 = vrot.slane %v6300, 3
        %v6406 = vsel %vm6364, %v6401, %v6405
        %v6407 = vrot.slane %v6301, 3
        %v6408 = vsel %vm6364, %v6403, %v6407
        %v6409 = vrot.slane %v6302, 3
        %v6410 = vsel %vm6364, %v6405, %v6409
        %v6411 = vrot.slane %v6303, 3
        %v6412 = vsel %vm6364, %v6407, %v6411
        %v6413 = vrot.slane %v6304, 3
        %v6414 = vsel %vm6364, %v6409, %v6413
        %v6415 = vrot.slane %v6305, 3
        %v6416 = vsel %vm6364, %v6411, %v6415
        %v6417 = vrot.slane %v6306, 3
        %v6418 = vsel %vm6364, %v6413, %v6417
        %v6419 = vrot.slane %v6307, 3
        %v6420 = vsel %vm6364, %v6415, %v6419
        %v6421 = vrot.slane %v6308, 3
        %v6422 = vsel %vm6364, %v6417, %v6421
        %v6423 = vrot.slane %v6309, 3
        %v6424 = vsel %vm6364, %v6419, %v6423
        %v6425 = vrot.slane %v6310, 3
        %v6426 = vsel %vm6364, %v6421, %v6425
        %v6463 = vunpack.c.l.b16 %v6312
        %v6464 = vunpack.c.l.b16 %v6313
        %v6465 = vunpack.c.l.b16 %v6314
        %v6466 = vunpack.c.l.b16 %v6315
        %v6467 = vunpack.c.l.b16 %v6316
        %v6468 = vunpack.c.l.b16 %v6317
        %v6469 = vunpack.c.l.b16 %v6318
        %v6470 = vunpack.c.l.b16 %v6319
        %v6471 = vunpack.c.l.b16 %v6320
        %v6472 = vunpack.c.l.b16 %v6321
        %v6473 = vunpack.c.l.b16 %v6322
        %v6474 = vunpack.c.l.b16 %v6323
        %v6475 = vunpack.c.l.b16 %v6324
        %v6476 = vunpack.c.l.b16 %v6325
        %v6477 = vunpack.c.l.b16 %v6326
        %v6478 = vunpack.c.l.b16 %v6327
        %v6479 = vunpack.c.l.b16 %v6328
        %v6480 = vunpack.c.l.b16 %v6329
        %v6481 = vunpack.c.l.b16 %v6330
        %v6482 = vunpack.c.l.b16 %v6331
        %v6483 = vpack.c.b16 %v6464, %v6463
        %v6484 = vpack.c.b16 %v6466, %v6465
        %v6485 = vpack.c.b16 %v6468, %v6467
        %v6486 = vpack.c.b16 %v6470, %v6469
        %v6487 = vpack.c.b16 %v6472, %v6471
        %v6488 = vpack.c.b16 %v6474, %v6473
        %v6489 = vpack.c.b16 %v6476, %v6475
        %v6490 = vpack.c.b16 %v6478, %v6477
        %v6491 = vpack.c.b16 %v6480, %v6479
        %v6492 = vpack.c.b16 %v6482, %v6481
        %v6504 = vsel %vm440, %v6370, 0
        %v6507 = vsel %vm440, %v6374, 0
        %v6510 = vsel %vm440, %v6378, 0
        %v6513 = vsel %vm440, %v6382, 0
        %v6516 = vsel %vm440, %v6386, 0
        %v6519 = vsel %vm440, %v6390, 0
        %v6522 = vsel %vm440, %v6394, 0
        %v6525 = vsel %vm440, %v6398, 0
        %v6528 = vsel %vm440, %v6402, 0
        %v6531 = vsel %vm440, %v6406, 0
        %v6534 = vsel %vm440, %v6410, 0
        %v6537 = vsel %vm440, %v6414, 0
        %v6540 = vsel %vm440, %v6418, 0
        %v6543 = vsel %vm440, %v6422, 0
        %v6546 = vsel %vm440, %v6426, 0
        %v6549 = vsel %vm440, %v6425, 0
        %6551 = vmatpush.bf16.msra.mxu0 %v6490
        %6552 = vmatpush.bf16.msra.mxu0 %v6489
        %6553 = vmatpush.bf16.msra.mxu0 %v6488
        %6554 = vmatpush.bf16.msra.mxu0 %v6487
        %6555 = vmatpush.bf16.msra.mxu0 %v6486
        %6556 = vmatpush.bf16.msra.mxu0 %v6485
        %6557 = vmatpush.bf16.msra.mxu0 %v6484
        %6558 = vmatpush.bf16.msra.mxu0 %v6483
        %6559 = vmatmul.bf16.gmra.mxu0 %v6367
        %v6560 = vpop.f32.mrf.mxu0
        %v6561 = vadd.f32 0.0, %v6560
        %v6562 = vpop.f32.mrf.mxu0
        %v6563 = vadd.f32 0.0, %v6562
        %6564 = vmatmul.bf16.gmra.mxu0 %v6372
        %v6565 = vpop.f32.mrf.mxu0
        %v6566 = vadd.f32 0.0, %v6565
        %v6567 = vpop.f32.mrf.mxu0
        %v6568 = vadd.f32 0.0, %v6567
        %6569 = vmatmul.bf16.gmra.mxu0 %v6376
        %v6570 = vpop.f32.mrf.mxu0
        %v6571 = vadd.f32 0.0, %v6570
        %v6572 = vpop.f32.mrf.mxu0
        %v6573 = vadd.f32 0.0, %v6572
        %6574 = vmatmul.bf16.gmra.mxu0 %v6380
        %v6575 = vpop.f32.mrf.mxu0
        %v6576 = vadd.f32 0.0, %v6575
        %v6577 = vpop.f32.mrf.mxu0
        %v6578 = vadd.f32 0.0, %v6577
        %6579 = vmatmul.bf16.gmra.mxu0 %v6384
        %v6580 = vpop.f32.mrf.mxu0
        %v6581 = vadd.f32 0.0, %v6580
        %v6582 = vpop.f32.mrf.mxu0
        %v6583 = vadd.f32 0.0, %v6582
        %6584 = vmatmul.bf16.gmra.mxu0 %v6388
        %v6585 = vpop.f32.mrf.mxu0
        %v6586 = vadd.f32 0.0, %v6585
        %v6587 = vpop.f32.mrf.mxu0
        %v6588 = vadd.f32 0.0, %v6587
        %6589 = vmatmul.bf16.gmra.mxu0 %v6392
        %v6590 = vpop.f32.mrf.mxu0
        %v6591 = vadd.f32 0.0, %v6590
        %v6592 = vpop.f32.mrf.mxu0
        %v6593 = vadd.f32 0.0, %v6592
        %6594 = vmatmul.bf16.gmra.mxu0 %v6396
        %v6595 = vpop.f32.mrf.mxu0
        %v6596 = vadd.f32 0.0, %v6595
        %v6597 = vpop.f32.mrf.mxu0
        %v6598 = vadd.f32 0.0, %v6597
        %6599 = vmatmul.bf16.gmra.mxu0 %v6400
        %v6600 = vpop.f32.mrf.mxu0
        %v6601 = vadd.f32 0.0, %v6600
        %v6602 = vpop.f32.mrf.mxu0
        %v6603 = vadd.f32 0.0, %v6602
        %6604 = vmatmul.bf16.gmra.mxu0 %v6404
        %v6605 = vpop.f32.mrf.mxu0
        %v6606 = vadd.f32 0.0, %v6605
        %v6607 = vpop.f32.mrf.mxu0
        %v6608 = vadd.f32 0.0, %v6607
        %6609 = vmatmul.bf16.gmra.mxu0 %v6408
        %v6610 = vpop.f32.mrf.mxu0
        %v6611 = vadd.f32 0.0, %v6610
        %v6612 = vpop.f32.mrf.mxu0
        %v6613 = vadd.f32 0.0, %v6612
        %6614 = vmatmul.bf16.gmra.mxu0 %v6412
        %v6615 = vpop.f32.mrf.mxu0
        %v6616 = vadd.f32 0.0, %v6615
        %v6617 = vpop.f32.mrf.mxu0
        %v6618 = vadd.f32 0.0, %v6617
        %6619 = vmatmul.bf16.gmra.mxu0 %v6416
        %v6620 = vpop.f32.mrf.mxu0
        %v6621 = vadd.f32 0.0, %v6620
        %v6622 = vpop.f32.mrf.mxu0
        %v6623 = vadd.f32 0.0, %v6622
        %6624 = vmatmul.bf16.gmra.mxu0 %v6420
        %v6625 = vpop.f32.mrf.mxu0
        %v6626 = vadd.f32 0.0, %v6625
        %v6627 = vpop.f32.mrf.mxu0
        %v6628 = vadd.f32 0.0, %v6627
        %6629 = vmatmul.bf16.gmra.mxu0 %v6424
        %v6630 = vpop.f32.mrf.mxu0
        %v6631 = vadd.f32 0.0, %v6630
        %v6632 = vpop.f32.mrf.mxu0
        %v6633 = vadd.f32 0.0, %v6632
        %6634 = vmatmul.bf16.gmra.mxu0 %v6423
        %v6635 = vpop.f32.mrf.mxu0
        %v6636 = vadd.f32 0.0, %v6635
        %v6637 = vpop.f32.mrf.mxu0
        %6638 = vdwg.mxu0
        %6639 = vmatpush.bf16.msra.mxu0 0
        %6640 = vmatpush.bf16.msra.mxu0 0
        %6641 = vmatpush.bf16.msra.mxu0 0
        %6642 = vmatpush.bf16.msra.mxu0 0
        %6643 = vmatpush.bf16.msra.mxu0 0
        %6644 = vmatpush.bf16.msra.mxu0 0
        %6645 = vmatpush.bf16.msra.mxu0 %v6492
        %6646 = vmatpush.bf16.msra.mxu0 %v6491
        %6647 = vmatmul.bf16.gmra.mxu0 %v6504
        %v6648 = vpop.f32.mrf.mxu0
        %v6649 = vadd.f32 %v6561, %v6648
        %v6650 = vpop.f32.mrf.mxu0
        %v6651 = vadd.f32 %v6563, %v6650
        %6652 = vmatmul.bf16.gmra.mxu0 %v6507
        %v6653 = vpop.f32.mrf.mxu0
        %v6654 = vadd.f32 %v6566, %v6653
        %v6655 = vpop.f32.mrf.mxu0
        %v6656 = vadd.f32 %v6568, %v6655
        %6657 = vmatmul.bf16.gmra.mxu0 %v6510
        %v6658 = vpop.f32.mrf.mxu0
        %v6659 = vadd.f32 %v6571, %v6658
        %v6660 = vpop.f32.mrf.mxu0
        %v6661 = vadd.f32 %v6573, %v6660
        %6662 = vmatmul.bf16.gmra.mxu0 %v6513
        %v6663 = vpop.f32.mrf.mxu0
        %v6664 = vadd.f32 %v6576, %v6663
        %v6665 = vpop.f32.mrf.mxu0
        %v6666 = vadd.f32 %v6578, %v6665
        %6667 = vmatmul.bf16.gmra.mxu0 %v6516
        %v6668 = vpop.f32.mrf.mxu0
        %v6669 = vadd.f32 %v6581, %v6668
        %v6670 = vpop.f32.mrf.mxu0
        %v6671 = vadd.f32 %v6583, %v6670
        %6672 = vmatmul.bf16.gmra.mxu0 %v6519
        %v6673 = vpop.f32.mrf.mxu0
        %v6674 = vadd.f32 %v6586, %v6673
        %v6675 = vpop.f32.mrf.mxu0
        %v6676 = vadd.f32 %v6588, %v6675
        %6677 = vmatmul.bf16.gmra.mxu0 %v6522
        %v6678 = vpop.f32.mrf.mxu0
        %v6679 = vadd.f32 %v6591, %v6678
        %v6680 = vpop.f32.mrf.mxu0
        %v6681 = vadd.f32 %v6593, %v6680
        %6682 = vmatmul.bf16.gmra.mxu0 %v6525
        %v6683 = vpop.f32.mrf.mxu0
        %v6684 = vadd.f32 %v6596, %v6683
        %v6685 = vpop.f32.mrf.mxu0
        %v6686 = vadd.f32 %v6598, %v6685
        %6687 = vmatmul.bf16.gmra.mxu0 %v6528
        %v6688 = vpop.f32.mrf.mxu0
        %v6689 = vadd.f32 %v6601, %v6688
        %v6690 = vpop.f32.mrf.mxu0
        %v6691 = vadd.f32 %v6603, %v6690
        %6692 = vmatmul.bf16.gmra.mxu0 %v6531
        %v6693 = vpop.f32.mrf.mxu0
        %v6694 = vadd.f32 %v6606, %v6693
        %v6695 = vpop.f32.mrf.mxu0
        %v6696 = vadd.f32 %v6608, %v6695
        %6697 = vmatmul.bf16.gmra.mxu0 %v6534
        %v6698 = vpop.f32.mrf.mxu0
        %v6699 = vadd.f32 %v6611, %v6698
        %v6700 = vpop.f32.mrf.mxu0
        %v6701 = vadd.f32 %v6613, %v6700
        %6702 = vmatmul.bf16.gmra.mxu0 %v6537
        %v6703 = vpop.f32.mrf.mxu0
        %v6704 = vadd.f32 %v6616, %v6703
        %v6705 = vpop.f32.mrf.mxu0
        %v6706 = vadd.f32 %v6618, %v6705
        %6707 = vmatmul.bf16.gmra.mxu0 %v6540
        %v6708 = vpop.f32.mrf.mxu0
        %v6709 = vadd.f32 %v6621, %v6708
        %v6710 = vpop.f32.mrf.mxu0
        %v6711 = vadd.f32 %v6623, %v6710
        %6712 = vmatmul.bf16.gmra.mxu0 %v6543
        %v6713 = vpop.f32.mrf.mxu0
        %v6714 = vadd.f32 %v6626, %v6713
        %v6715 = vpop.f32.mrf.mxu0
        %v6716 = vadd.f32 %v6628, %v6715
        %6717 = vmatmul.bf16.gmra.mxu0 %v6546
        %v6718 = vpop.f32.mrf.mxu0
        %v6719 = vadd.f32 %v6631, %v6718
        %v6720 = vpop.f32.mrf.mxu0
        %v6721 = vadd.f32 %v6633, %v6720
        %6722 = vmatmul.bf16.gmra.mxu0 %v6549
        %v6723 = vpop.f32.mrf.mxu0
        %v6724 = vadd.f32 %v6636, %v6723
        %v6725 = vpop.f32.mrf.mxu0
        %6726 = vdwg.mxu0
        %v6727 = vadd.f32 %v6184, %v6649
        %v6728 = vadd.f32 %v6185, %v6651
        %v6729 = vadd.f32 %v6186, %v6654
        %v6730 = vadd.f32 %v6187, %v6656
        %v6731 = vadd.f32 %v6188, %v6659
        %v6732 = vadd.f32 %v6189, %v6661
        %v6733 = vadd.f32 %v6190, %v6664
        %v6734 = vadd.f32 %v6191, %v6666
        %v6735 = vadd.f32 %v6192, %v6669
        %v6736 = vadd.f32 %v6193, %v6671
        %v6737 = vadd.f32 %v6194, %v6674
        %v6738 = vadd.f32 %v6195, %v6676
        %v6739 = vadd.f32 %v6196, %v6679
        %v6740 = vadd.f32 %v6197, %v6681
        %v6741 = vadd.f32 %v6198, %v6684
        %v6742 = vadd.f32 %v6199, %v6686
        %v6743 = vadd.f32 %v6200, %v6689
        %v6744 = vadd.f32 %v6201, %v6691
        %v6745 = vadd.f32 %v6202, %v6694
        %v6746 = vadd.f32 %v6203, %v6696
        %v6747 = vadd.f32 %v6204, %v6699
        %v6748 = vadd.f32 %v6205, %v6701
        %v6749 = vadd.f32 %v6206, %v6704
        %v6750 = vadd.f32 %v6207, %v6706
        %v6751 = vadd.f32 %v6208, %v6709
        %v6752 = vadd.f32 %v6209, %v6711
        %v6753 = vadd.f32 %v6210, %v6714
        %v6754 = vadd.f32 %v6211, %v6716
        %v6755 = vadd.f32 %v6212, %v6719
        %v6756 = vadd.f32 %v6213, %v6721
        %v6757 = vadd.f32 %v6214, %v6724
        %v6758 = vld [vmem:[#allocation2 + $0x90] sm:$0xff]
        %v6759 = vld [vmem:[#allocation2 + $0x98] sm:$0xff]
        %v6760 = vld [vmem:[#allocation2 + $0xa0] sm:$0xff]
        %v6761 = vld [vmem:[#allocation2 + $0xa8] sm:$0xff]
        %v6762 = vld [vmem:[#allocation2 + $0xb0] sm:$0xff]
        %v6763 = vld [vmem:[#allocation2 + $0xb8] sm:$0xff]
        %v6764 = vld [vmem:[#allocation2 + $0xc0] sm:$0xff]
        %v6765 = vld [vmem:[#allocation2 + $0xc8] sm:$0xff]
        %v6766 = vld [vmem:[#allocation2 + $0xd0] sm:$0xff]
        %v6767 = vld [vmem:[#allocation2 + $0xd8] sm:$0xff]
        %v6768 = vld [vmem:[#allocation2 + $0xe0] sm:$0xff]
        %v6769 = vld [vmem:[#allocation2 + $0xe8] sm:$0xff]
        %v6770 = vld [vmem:[#allocation2 + $0xf0] sm:$0xff]
        %v6771 = vld [vmem:[#allocation2 + $0xf8] sm:$0xff]
        %v6772 = vld [vmem:[#allocation2 + $0x100] sm:$0xff]
        %v6773 = vld [vmem:[#allocation2 + $0x108] sm:$0xff]
        %v6774 = vld [vmem:[#allocation2 + $0x110] sm:$0xff]
        %v6775 = vld [vmem:[#allocation2 + $0x118] sm:$0xff]
        %v6776 = vld [vmem:[#allocation2 + $0x120] sm:$0xff]
        %v6777 = vld [vmem:[#allocation2 + $0x128] sm:$0xff]
        %v6778 = vld [vmem:[#allocation2 + $0x130] sm:$0xff]
        %v6779 = vld [vmem:[#allocation2 + $0x138] sm:$0xff]
        %v6780 = vld [vmem:[#allocation2 + $0x140] sm:$0xff]
        %v6781 = vld [vmem:[#allocation2 + $0x148] sm:$0xff]
        %v6782 = vld [vmem:[#allocation2 + $0x150] sm:$0xff]
        %v6783 = vld [vmem:[#allocation2 + $0x158] sm:$0xff]
        %v6784 = vld [vmem:[#allocation2 + $0x160] sm:$0xff]
        %v6785 = vld [vmem:[#allocation2 + $0x168] sm:$0xff]
        %v6786 = vld [vmem:[#allocation2 + $0x170] sm:$0xff]
        %v6787 = vld [vmem:[#allocation2 + $0x178] sm:$0xff]
        %v6788 = vld [vmem:[#allocation2 + $0x180] sm:$0xff]
        %v6789 = vld [vmem:[#allocation2 + $0x188] sm:$0xff]
        %v6790 = vld [vmem:[#allocation2 + $0x190] sm:$0xff]
        %v6791 = vld [vmem:[#allocation2 + $0x198] sm:$0xff]
        %v6792 = vld [vmem:[#allocation2 + $0x1a0] sm:$0xff]
        %v6793 = vld [vmem:[#allocation2 + $0x1a8] sm:$0xff]
        %v6794 = vld [vmem:[#allocation2 + $0x1b0] sm:$0xff]
        %v6795 = vld [vmem:[#allocation2 + $0x1b8] sm:$0xff]
        %v6796 = vld [vmem:[#allocation2 + $0x1c0] sm:$0xff]
        %v6797 = vld [vmem:[#allocation2 + $0x1c8] sm:$0xff]
        %v6798 = vld [vmem:[#allocation2 + $0x1d0] sm:$0xff]
        %v6799 = vld [vmem:[#allocation2 + $0x1d8] sm:$0xff]
        %v6800 = vld [vmem:[#allocation2 + $0x1e0] sm:$0xff]
        %v6801 = vld [vmem:[#allocation2 + $0x1e8] sm:$0xff]
        %v6802 = vld [vmem:[#allocation2 + $0x1f0] sm:$0xff]
        %v6803 = vld [vmem:[#allocation2 + $0x1f8] sm:$0xff]
        %v6804 = vld [vmem:[#allocation2 + $0x200] sm:$0xff]
        %v6805 = vld [vmem:[#allocation2 + $0x208] sm:$0xff]
        %v6806 = vld [vmem:[#allocation2 + $0x210] sm:$0xff]
        %v6807 = vld [vmem:[#allocation2 + $0x218] sm:$0xff]
        %v6808 = vld [vmem:[#allocation2 + $0x220] sm:$0xff]
        %v6809 = vld [vmem:[#allocation2 + $0x228] sm:$0xff]
        %v6810 = vld [vmem:[#allocation2 + $0x230] sm:$0xff]
        %v6811 = vld [vmem:[#allocation2 + $0x238] sm:$0xff]
        %v6812 = vld [vmem:[#allocation2 + $0x240] sm:$0xff]
        %v6813 = vld [vmem:[#allocation2 + $0x248] sm:$0xff]
        %v6814 = vld [vmem:[#allocation2 + $0x250] sm:$0xff]
        %v6815 = vld [vmem:[#allocation2 + $0x258] sm:$0xff]
        %v6816 = vld [vmem:[#allocation2 + $0x260] sm:$0xff]
        %v6817 = vld [vmem:[#allocation2 + $0x268] sm:$0xff]
        %v6818 = vld [vmem:[#allocation2 + $0x270] sm:$0xff]
        %v6819 = vld [vmem:[#allocation2 + $0x278] sm:$0xff]
        %v6820 = vpack.c.bf16 %v6760, %v6758
        %v6821 = vpack.c.bf16 %v6761, %v6759
        %v6822 = vpack.c.bf16 %v6764, %v6762
        %v6823 = vpack.c.bf16 %v6765, %v6763
        %v6824 = vpack.c.bf16 %v6768, %v6766
        %v6825 = vpack.c.bf16 %v6769, %v6767
        %v6826 = vpack.c.bf16 %v6772, %v6770
        %v6827 = vpack.c.bf16 %v6773, %v6771
        %v6828 = vpack.c.bf16 %v6776, %v6774
        %v6829 = vpack.c.bf16 %v6777, %v6775
        %v6830 = vpack.c.bf16 %v6780, %v6778
        %v6831 = vpack.c.bf16 %v6781, %v6779
        %v6832 = vpack.c.bf16 %v6784, %v6782
        %v6833 = vpack.c.bf16 %v6785, %v6783
        %v6834 = vpack.c.bf16 %v6788, %v6786
        %v6835 = vpack.c.bf16 %v6789, %v6787
        %v6836 = vpack.c.bf16 %v6792, %v6790
        %v6837 = vpack.c.bf16 %v6793, %v6791
        %v6838 = vpack.c.bf16 %v6796, %v6794
        %v6839 = vpack.c.bf16 %v6797, %v6795
        %v6840 = vpack.c.bf16 %v6800, %v6798
        %v6841 = vpack.c.bf16 %v6801, %v6799
        %v6842 = vpack.c.bf16 %v6804, %v6802
        %v6843 = vpack.c.bf16 %v6805, %v6803
        %v6844 = vpack.c.bf16 %v6808, %v6806
        %v6845 = vpack.c.bf16 %v6809, %v6807
        %v6846 = vpack.c.bf16 %v6812, %v6810
        %v6847 = vpack.c.bf16 %v6813, %v6811
        %v6848 = vpack.c.bf16 %v6816, %v6814
        %v6849 = vpack.c.bf16 %v6817, %v6815
        %v6850 = vpack.c.bf16 %v6818, %v6818
        %v6851 = vpack.c.bf16 %v6819, %v6819
        %s6852 = scalar_lea.vmem %s4, 320
        %v6853 = vld [vmem:[%s6852] sm:$0xf]
        %v6854 = vld [vmem:[%s6852 + $0x4] sm:$0xf]
        %v6855 = vld [vmem:[%s6852 + $0x8] sm:$0xf]
        %v6856 = vld [vmem:[%s6852 + $0xc] sm:$0xf]
        %v6857 = vld [vmem:[%s6852 + $0x10] sm:$0xf]
        %v6858 = vld [vmem:[%s6852 + $0x14] sm:$0xf]
        %v6859 = vld [vmem:[%s6852 + $0x18] sm:$0xf]
        %v6860 = vld [vmem:[%s6852 + $0x1c] sm:$0xf]
        %v6861 = vld [vmem:[%s6852 + $0x20] sm:$0xf]
        %v6862 = vld [vmem:[%s6852 + $0x24] sm:$0xf]
        %v6863 = vld [vmem:[%s6852 + $0x28] sm:$0xf]
        %v6864 = vld [vmem:[%s6852 + $0x2c] sm:$0xf]
        %v6865 = vld [vmem:[%s6852 + $0x30] sm:$0xf]
        %v6866 = vld [vmem:[%s6852 + $0x34] sm:$0xf]
        %v6867 = vld [vmem:[%s6852 + $0x38] sm:$0xf]
        %v6868 = vld [vmem:[%s6852 + $0x3c] sm:$0xf]
        %v6869 = vld [vmem:[%s6852 + $0x40] sm:$0xf]
        %v6870 = vld [vmem:[%s6852 + $0x44] sm:$0xf]
        %v6871 = vld [vmem:[%s6852 + $0x48] sm:$0xf]
        %v6872 = vld [vmem:[%s6852 + $0x4c] sm:$0xf]
        %v6893 = vunpack.c.l.b16 %v6853
        %v6894 = vunpack.c.l.b16 %v6854
        %v6895 = vunpack.c.l.b16 %v6855
        %v6896 = vunpack.c.l.b16 %v6856
        %v6897 = vunpack.c.l.b16 %v6857
        %v6898 = vunpack.c.l.b16 %v6858
        %v6899 = vunpack.c.l.b16 %v6859
        %v6900 = vunpack.c.l.b16 %v6860
        %v6901 = vunpack.c.l.b16 %v6861
        %v6902 = vunpack.c.l.b16 %v6862
        %v6903 = vunpack.c.l.b16 %v6863
        %v6904 = vunpack.c.l.b16 %v6864
        %v6905 = vunpack.c.l.b16 %v6865
        %v6906 = vunpack.c.l.b16 %v6866
        %v6907 = vunpack.c.l.b16 %v6867
        %v6908 = vunpack.c.l.b16 %v6868
        %v6909 = vunpack.c.l.b16 %v6869
        %v6910 = vunpack.c.l.b16 %v6870
        %v6911 = vunpack.c.l.b16 %v6871
        %v6912 = vunpack.c.l.b16 %v6872
        %v6913 = vpack.c.b16 %v6894, %v6893
        %v6914 = vpack.c.b16 %v6896, %v6895
        %v6915 = vpack.c.b16 %v6898, %v6897
        %v6916 = vpack.c.b16 %v6900, %v6899
        %v6917 = vpack.c.b16 %v6902, %v6901
        %v6918 = vpack.c.b16 %v6904, %v6903
        %v6919 = vpack.c.b16 %v6906, %v6905
        %v6920 = vpack.c.b16 %v6908, %v6907
        %v6921 = vpack.c.b16 %v6910, %v6909
        %v6922 = vpack.c.b16 %v6912, %v6911
        %v6934 = vsel %vm440, %v6821, 0
        %v6937 = vsel %vm440, %v6823, 0
        %v6940 = vsel %vm440, %v6825, 0
        %v6943 = vsel %vm440, %v6827, 0
        %v6946 = vsel %vm440, %v6829, 0
        %v6949 = vsel %vm440, %v6831, 0
        %v6952 = vsel %vm440, %v6833, 0
        %v6955 = vsel %vm440, %v6835, 0
        %v6958 = vsel %vm440, %v6837, 0
        %v6961 = vsel %vm440, %v6839, 0
        %v6964 = vsel %vm440, %v6841, 0
        %v6967 = vsel %vm440, %v6843, 0
        %v6970 = vsel %vm440, %v6845, 0
        %v6973 = vsel %vm440, %v6847, 0
        %v6976 = vsel %vm440, %v6849, 0
        %v6979 = vsel %vm440, %v6851, 0
        %6981 = vmatpush.bf16.msra.mxu0 %v6920
        %6982 = vmatpush.bf16.msra.mxu0 %v6919
        %6983 = vmatpush.bf16.msra.mxu0 %v6918
        %6984 = vmatpush.bf16.msra.mxu0 %v6917
        %6985 = vmatpush.bf16.msra.mxu0 %v6916
        %6986 = vmatpush.bf16.msra.mxu0 %v6915
        %6987 = vmatpush.bf16.msra.mxu0 %v6914
        %6988 = vmatpush.bf16.msra.mxu0 %v6913
        %6989 = vmatmul.bf16.gmra.mxu0 %v6820
        %v6990 = vpop.f32.mrf.mxu0
        %v6991 = vadd.f32 0.0, %v6990
        %v6992 = vpop.f32.mrf.mxu0
        %v6993 = vadd.f32 0.0, %v6992
        %6994 = vmatmul.bf16.gmra.mxu0 %v6822
        %v6995 = vpop.f32.mrf.mxu0
        %v6996 = vadd.f32 0.0, %v6995
        %v6997 = vpop.f32.mrf.mxu0
        %v6998 = vadd.f32 0.0, %v6997
        %6999 = vmatmul.bf16.gmra.mxu0 %v6824
        %v7000 = vpop.f32.mrf.mxu0
        %v7001 = vadd.f32 0.0, %v7000
        %v7002 = vpop.f32.mrf.mxu0
        %v7003 = vadd.f32 0.0, %v7002
        %7004 = vmatmul.bf16.gmra.mxu0 %v6826
        %v7005 = vpop.f32.mrf.mxu0
        %v7006 = vadd.f32 0.0, %v7005
        %v7007 = vpop.f32.mrf.mxu0
        %v7008 = vadd.f32 0.0, %v7007
        %7009 = vmatmul.bf16.gmra.mxu0 %v6828
        %v7010 = vpop.f32.mrf.mxu0
        %v7011 = vadd.f32 0.0, %v7010
        %v7012 = vpop.f32.mrf.mxu0
        %v7013 = vadd.f32 0.0, %v7012
        %7014 = vmatmul.bf16.gmra.mxu0 %v6830
        %v7015 = vpop.f32.mrf.mxu0
        %v7016 = vadd.f32 0.0, %v7015
        %v7017 = vpop.f32.mrf.mxu0
        %v7018 = vadd.f32 0.0, %v7017
        %7019 = vmatmul.bf16.gmra.mxu0 %v6832
        %v7020 = vpop.f32.mrf.mxu0
        %v7021 = vadd.f32 0.0, %v7020
        %v7022 = vpop.f32.mrf.mxu0
        %v7023 = vadd.f32 0.0, %v7022
        %7024 = vmatmul.bf16.gmra.mxu0 %v6834
        %v7025 = vpop.f32.mrf.mxu0
        %v7026 = vadd.f32 0.0, %v7025
        %v7027 = vpop.f32.mrf.mxu0
        %v7028 = vadd.f32 0.0, %v7027
        %7029 = vmatmul.bf16.gmra.mxu0 %v6836
        %v7030 = vpop.f32.mrf.mxu0
        %v7031 = vadd.f32 0.0, %v7030
        %v7032 = vpop.f32.mrf.mxu0
        %v7033 = vadd.f32 0.0, %v7032
        %7034 = vmatmul.bf16.gmra.mxu0 %v6838
        %v7035 = vpop.f32.mrf.mxu0
        %v7036 = vadd.f32 0.0, %v7035
        %v7037 = vpop.f32.mrf.mxu0
        %v7038 = vadd.f32 0.0, %v7037
        %7039 = vmatmul.bf16.gmra.mxu0 %v6840
        %v7040 = vpop.f32.mrf.mxu0
        %v7041 = vadd.f32 0.0, %v7040
        %v7042 = vpop.f32.mrf.mxu0
        %v7043 = vadd.f32 0.0, %v7042
        %7044 = vmatmul.bf16.gmra.mxu0 %v6842
        %v7045 = vpop.f32.mrf.mxu0
        %v7046 = vadd.f32 0.0, %v7045
        %v7047 = vpop.f32.mrf.mxu0
        %v7048 = vadd.f32 0.0, %v7047
        %7049 = vmatmul.bf16.gmra.mxu0 %v6844
        %v7050 = vpop.f32.mrf.mxu0
        %v7051 = vadd.f32 0.0, %v7050
        %v7052 = vpop.f32.mrf.mxu0
        %v7053 = vadd.f32 0.0, %v7052
        %7054 = vmatmul.bf16.gmra.mxu0 %v6846
        %v7055 = vpop.f32.mrf.mxu0
        %v7056 = vadd.f32 0.0, %v7055
        %v7057 = vpop.f32.mrf.mxu0
        %v7058 = vadd.f32 0.0, %v7057
        %7059 = vmatmul.bf16.gmra.mxu0 %v6848
        %v7060 = vpop.f32.mrf.mxu0
        %v7061 = vadd.f32 0.0, %v7060
        %v7062 = vpop.f32.mrf.mxu0
        %v7063 = vadd.f32 0.0, %v7062
        %7064 = vmatmul.bf16.gmra.mxu0 %v6850
        %v7065 = vpop.f32.mrf.mxu0
        %v7066 = vadd.f32 0.0, %v7065
        %v7067 = vpop.f32.mrf.mxu0
        %7068 = vdwg.mxu0
        %7069 = vmatpush.bf16.msra.mxu0 0
        %7070 = vmatpush.bf16.msra.mxu0 0
        %7071 = vmatpush.bf16.msra.mxu0 0
        %7072 = vmatpush.bf16.msra.mxu0 0
        %7073 = vmatpush.bf16.msra.mxu0 0
        %7074 = vmatpush.bf16.msra.mxu0 0
        %7075 = vmatpush.bf16.msra.mxu0 %v6922
        %7076 = vmatpush.bf16.msra.mxu0 %v6921
        %7077 = vmatmul.bf16.gmra.mxu0 %v6934
        %v7078 = vpop.f32.mrf.mxu0
        %v7079 = vadd.f32 %v6991, %v7078
        %v7080 = vpop.f32.mrf.mxu0
        %v7081 = vadd.f32 %v6993, %v7080
        %7082 = vmatmul.bf16.gmra.mxu0 %v6937
        %v7083 = vpop.f32.mrf.mxu0
        %v7084 = vadd.f32 %v6996, %v7083
        %v7085 = vpop.f32.mrf.mxu0
        %v7086 = vadd.f32 %v6998, %v7085
        %7087 = vmatmul.bf16.gmra.mxu0 %v6940
        %v7088 = vpop.f32.mrf.mxu0
        %v7089 = vadd.f32 %v7001, %v7088
        %v7090 = vpop.f32.mrf.mxu0
        %v7091 = vadd.f32 %v7003, %v7090
        %7092 = vmatmul.bf16.gmra.mxu0 %v6943
        %v7093 = vpop.f32.mrf.mxu0
        %v7094 = vadd.f32 %v7006, %v7093
        %v7095 = vpop.f32.mrf.mxu0
        %v7096 = vadd.f32 %v7008, %v7095
        %7097 = vmatmul.bf16.gmra.mxu0 %v6946
        %v7098 = vpop.f32.mrf.mxu0
        %v7099 = vadd.f32 %v7011, %v7098
        %v7100 = vpop.f32.mrf.mxu0
        %v7101 = vadd.f32 %v7013, %v7100
        %7102 = vmatmul.bf16.gmra.mxu0 %v6949
        %v7103 = vpop.f32.mrf.mxu0
        %v7104 = vadd.f32 %v7016, %v7103
        %v7105 = vpop.f32.mrf.mxu0
        %v7106 = vadd.f32 %v7018, %v7105
        %7107 = vmatmul.bf16.gmra.mxu0 %v6952
        %v7108 = vpop.f32.mrf.mxu0
        %v7109 = vadd.f32 %v7021, %v7108
        %v7110 = vpop.f32.mrf.mxu0
        %v7111 = vadd.f32 %v7023, %v7110
        %7112 = vmatmul.bf16.gmra.mxu0 %v6955
        %v7113 = vpop.f32.mrf.mxu0
        %v7114 = vadd.f32 %v7026, %v7113
        %v7115 = vpop.f32.mrf.mxu0
        %v7116 = vadd.f32 %v7028, %v7115
        %7117 = vmatmul.bf16.gmra.mxu0 %v6958
        %v7118 = vpop.f32.mrf.mxu0
        %v7119 = vadd.f32 %v7031, %v7118
        %v7120 = vpop.f32.mrf.mxu0
        %v7121 = vadd.f32 %v7033, %v7120
        %7122 = vmatmul.bf16.gmra.mxu0 %v6961
        %v7123 = vpop.f32.mrf.mxu0
        %v7124 = vadd.f32 %v7036, %v7123
        %v7125 = vpop.f32.mrf.mxu0
        %v7126 = vadd.f32 %v7038, %v7125
        %7127 = vmatmul.bf16.gmra.mxu0 %v6964
        %v7128 = vpop.f32.mrf.mxu0
        %v7129 = vadd.f32 %v7041, %v7128
        %v7130 = vpop.f32.mrf.mxu0
        %v7131 = vadd.f32 %v7043, %v7130
        %7132 = vmatmul.bf16.gmra.mxu0 %v6967
        %v7133 = vpop.f32.mrf.mxu0
        %v7134 = vadd.f32 %v7046, %v7133
        %v7135 = vpop.f32.mrf.mxu0
        %v7136 = vadd.f32 %v7048, %v7135
        %7137 = vmatmul.bf16.gmra.mxu0 %v6970
        %v7138 = vpop.f32.mrf.mxu0
        %v7139 = vadd.f32 %v7051, %v7138
        %v7140 = vpop.f32.mrf.mxu0
        %v7141 = vadd.f32 %v7053, %v7140
        %7142 = vmatmul.bf16.gmra.mxu0 %v6973
        %v7143 = vpop.f32.mrf.mxu0
        %v7144 = vadd.f32 %v7056, %v7143
        %v7145 = vpop.f32.mrf.mxu0
        %v7146 = vadd.f32 %v7058, %v7145
        %7147 = vmatmul.bf16.gmra.mxu0 %v6976
        %v7148 = vpop.f32.mrf.mxu0
        %v7149 = vadd.f32 %v7061, %v7148
        %v7150 = vpop.f32.mrf.mxu0
        %v7151 = vadd.f32 %v7063, %v7150
        %7152 = vmatmul.bf16.gmra.mxu0 %v6979
        %v7153 = vpop.f32.mrf.mxu0
        %v7154 = vadd.f32 %v7066, %v7153
        %v7155 = vpop.f32.mrf.mxu0
        %7156 = vdwg.mxu0
        %v7157 = vadd.f32 %v6727, %v7079
        %v7158 = vadd.f32 %v6728, %v7081
        %v7159 = vadd.f32 %v6729, %v7084
        %v7160 = vadd.f32 %v6730, %v7086
        %v7161 = vadd.f32 %v6731, %v7089
        %v7162 = vadd.f32 %v6732, %v7091
        %v7163 = vadd.f32 %v6733, %v7094
        %v7164 = vadd.f32 %v6734, %v7096
        %v7165 = vadd.f32 %v6735, %v7099
        %v7166 = vadd.f32 %v6736, %v7101
        %v7167 = vadd.f32 %v6737, %v7104
        %v7168 = vadd.f32 %v6738, %v7106
        %v7169 = vadd.f32 %v6739, %v7109
        %v7170 = vadd.f32 %v6740, %v7111
        %v7171 = vadd.f32 %v6741, %v7114
        %v7172 = vadd.f32 %v6742, %v7116
        %v7173 = vadd.f32 %v6743, %v7119
        %v7174 = vadd.f32 %v6744, %v7121
        %v7175 = vadd.f32 %v6745, %v7124
        %v7176 = vadd.f32 %v6746, %v7126
        %v7177 = vadd.f32 %v6747, %v7129
        %v7178 = vadd.f32 %v6748, %v7131
        %v7179 = vadd.f32 %v6749, %v7134
        %v7180 = vadd.f32 %v6750, %v7136
        %v7181 = vadd.f32 %v6751, %v7139
        %v7182 = vadd.f32 %v6752, %v7141
        %v7183 = vadd.f32 %v6753, %v7144
        %v7184 = vadd.f32 %v6754, %v7146
        %v7185 = vadd.f32 %v6755, %v7149
        %v7186 = vadd.f32 %v6756, %v7151
        %v7187 = vadd.f32 %v6757, %v7154
        %v7189 = vperm.slane %v4843, 0
        %v7191 = vadd.f32 %v7157, %v7189
        %v7192 = vadd.f32 %v7158, %v7189
        %v7193 = vadd.f32 %v7159, %v7189
        %v7194 = vadd.f32 %v7160, %v7189
        %v7195 = vadd.f32 %v7161, %v7189
        %v7196 = vadd.f32 %v7162, %v7189
        %v7197 = vadd.f32 %v7163, %v7189
        %v7198 = vadd.f32 %v7164, %v7189
        %v7199 = vadd.f32 %v7165, %v7189
        %v7200 = vadd.f32 %v7166, %v7189
        %v7201 = vadd.f32 %v7167, %v7189
        %v7202 = vadd.f32 %v7168, %v7189
        %v7203 = vadd.f32 %v7169, %v7189
        %v7204 = vadd.f32 %v7170, %v7189
        %v7205 = vadd.f32 %v7171, %v7189
        %v7206 = vadd.f32 %v7172, %v7189
        %v7207 = vadd.f32 %v7173, %v7189
        %v7208 = vadd.f32 %v7174, %v7189
        %v7209 = vadd.f32 %v7175, %v7189
        %v7210 = vadd.f32 %v7176, %v7189
        %v7211 = vadd.f32 %v7177, %v7189
        %v7212 = vadd.f32 %v7178, %v7189
        %v7213 = vadd.f32 %v7179, %v7189
        %v7214 = vadd.f32 %v7180, %v7189
        %v7215 = vadd.f32 %v7181, %v7189
        %v7216 = vadd.f32 %v7182, %v7189
        %v7217 = vadd.f32 %v7183, %v7189
        %v7218 = vadd.f32 %v7184, %v7189
        %v7219 = vadd.f32 %v7185, %v7189
        %v7220 = vadd.f32 %v7186, %v7189
        %v7221 = vadd.f32 %v7187, %v7189
        %v7222 = vpack.c.bf16 %v7192, %v7191
        %v7223 = vpack.c.bf16 %v7194, %v7193
        %v7224 = vpack.c.bf16 %v7196, %v7195
        %v7225 = vpack.c.bf16 %v7198, %v7197
        %v7226 = vpack.c.bf16 %v7200, %v7199
        %v7227 = vpack.c.bf16 %v7202, %v7201
        %v7228 = vpack.c.bf16 %v7204, %v7203
        %v7229 = vpack.c.bf16 %v7206, %v7205
        %v7230 = vpack.c.bf16 %v7208, %v7207
        %v7231 = vpack.c.bf16 %v7210, %v7209
        %v7232 = vpack.c.bf16 %v7212, %v7211
        %v7233 = vpack.c.bf16 %v7214, %v7213
        %v7234 = vpack.c.bf16 %v7216, %v7215
        %v7235 = vpack.c.bf16 %v7218, %v7217
        %v7236 = vpack.c.bf16 %v7220, %v7219
        %v7237 = vpack.c.bf16 %v7221, %v7221
        %v7238 = vld [vmem:[%s6] sm:$0xff]
        %v7239 = vld [vmem:[%s6 + $0x8] sm:$0xff]
        %v7240 = vld [vmem:[%s6 + $0x10] sm:$0xff]
        %v7241 = vld [vmem:[%s6 + $0x18] sm:$0xff]
        %v7242 = vld [vmem:[%s6 + $0x20] sm:$0xff]
        %v7243 = vld [vmem:[%s6 + $0x28] sm:$0xff]
        %v7244 = vld [vmem:[%s6 + $0x30] sm:$0xff]
        %v7245 = vld [vmem:[%s6 + $0x38] sm:$0x77]
        %v7254 = vunpack.c.l.b16 %v7238
        %v7255 = vunpack.c.h.b16 %v7238
        %v7256 = vunpack.c.l.b16 %v7239
        %v7257 = vunpack.c.h.b16 %v7239
        %v7258 = vunpack.c.l.b16 %v7240
        %v7259 = vunpack.c.h.b16 %v7240
        %v7260 = vunpack.c.l.b16 %v7241
        %v7261 = vunpack.c.h.b16 %v7241
        %v7262 = vunpack.c.l.b16 %v7242
        %v7263 = vunpack.c.h.b16 %v7242
        %v7264 = vunpack.c.l.b16 %v7243
        %v7265 = vunpack.c.h.b16 %v7243
        %v7266 = vunpack.c.l.b16 %v7244
        %v7267 = vunpack.c.h.b16 %v7244
        %v7268 = vunpack.c.l.b16 %v7245
        %v7269 = vunpack.c.h.b16 %v7245
        %v7270 = vpack.c.b16 %v7256, %v7254
        %v7271 = vpack.c.b16 %v7257, %v7255
        %v7272 = vpack.c.b16 %v7260, %v7258
        %v7273 = vpack.c.b16 %v7261, %v7259
        %v7274 = vpack.c.b16 %v7264, %v7262
        %v7275 = vpack.c.b16 %v7265, %v7263
        %v7276 = vpack.c.b16 %v7268, %v7266
        %v7277 = vpack.c.b16 %v7269, %v7267
        %vm7282 = vcmask 982016
        %v7284 = vsel %vm7282, %v7271, 0
        %v7287 = vsel %vm7282, %v7273, 0
        %v7290 = vsel %vm7282, %v7275, 0
        %v7293 = vsel %vm7282, %v7277, 0
        %vm7295 = vcmask 1043456
        %v7297 = vsel %vm7295, %v7237, 0
        %7299 = vmatpush.bf16.msra.mxu0 %v7229
        %7300 = vmatpush.bf16.msra.mxu0 %v7228
        %7301 = vmatpush.bf16.msra.mxu0 %v7227
        %7302 = vmatpush.bf16.msra.mxu0 %v7226
        %7303 = vmatpush.bf16.msra.mxu0 %v7225
        %7304 = vmatpush.bf16.msra.mxu0 %v7224
        %7305 = vmatpush.bf16.msra.mxu0 %v7223
        %7306 = vmatpush.bf16.msra.mxu0 %v7222
        %7307 = vmatmul.bf16.gmra.mxu0 %v7270
        %v7308 = vpop.f32.mrf.mxu0
        %v7309 = vadd.f32 0.0, %v7308
        %v7310 = vpop.f32.mrf.mxu0
        %v7311 = vadd.f32 0.0, %v7310
        %7312 = vmatmul.bf16.gmra.mxu0 %v7272
        %v7313 = vpop.f32.mrf.mxu0
        %v7314 = vadd.f32 0.0, %v7313
        %v7315 = vpop.f32.mrf.mxu0
        %v7316 = vadd.f32 0.0, %v7315
        %7317 = vmatmul.bf16.gmra.mxu0 %v7274
        %v7318 = vpop.f32.mrf.mxu0
        %v7319 = vadd.f32 0.0, %v7318
        %v7320 = vpop.f32.mrf.mxu0
        %v7321 = vadd.f32 0.0, %v7320
        %7322 = vmatmul.bf16.gmra.mxu0 %v7276
        %v7323 = vpop.f32.mrf.mxu0
        %v7324 = vadd.f32 0.0, %v7323
        %v7325 = vpop.f32.mrf.mxu0
        %v7326 = vadd.f32 0.0, %v7325
        %7327 = vdwg.mxu0
        %7328 = vmatpush.bf16.msra.mxu0 %v7297
        %7329 = vmatpush.bf16.msra.mxu0 %v7236
        %7330 = vmatpush.bf16.msra.mxu0 %v7235
        %7331 = vmatpush.bf16.msra.mxu0 %v7234
        %7332 = vmatpush.bf16.msra.mxu0 %v7233
        %7333 = vmatpush.bf16.msra.mxu0 %v7232
        %7334 = vmatpush.bf16.msra.mxu0 %v7231
        %7335 = vmatpush.bf16.msra.mxu0 %v7230
        %7336 = vmatmul.bf16.gmra.mxu0 %v7284
        %v7337 = vpop.f32.mrf.mxu0
        %v7338 = vadd.f32 %v7309, %v7337
        %v7339 = vpop.f32.mrf.mxu0
        %v7340 = vadd.f32 %v7311, %v7339
        %7341 = vmatmul.bf16.gmra.mxu0 %v7287
        %v7342 = vpop.f32.mrf.mxu0
        %v7343 = vadd.f32 %v7314, %v7342
        %v7344 = vpop.f32.mrf.mxu0
        %v7345 = vadd.f32 %v7316, %v7344
        %7346 = vmatmul.bf16.gmra.mxu0 %v7290
        %v7347 = vpop.f32.mrf.mxu0
        %v7348 = vadd.f32 %v7319, %v7347
        %v7349 = vpop.f32.mrf.mxu0
        %v7350 = vadd.f32 %v7321, %v7349
        %7351 = vmatmul.bf16.gmra.mxu0 %v7293
        %v7352 = vpop.f32.mrf.mxu0
        %v7353 = vadd.f32 %v7324, %v7352
        %v7354 = vpop.f32.mrf.mxu0
        %v7355 = vadd.f32 %v7326, %v7354
        %7356 = vdwg.mxu0
        %s7357 = scalar_lea.vmem %s6, 64
        %v7358 = vld [vmem:[%s7357] sm:$0xff]
        %v7359 = vld [vmem:[%s7357 + $0x8] sm:$0xff]
        %v7360 = vld [vmem:[%s7357 + $0x10] sm:$0xff]
        %v7361 = vld [vmem:[%s7357 + $0x18] sm:$0xff]
        %v7362 = vld [vmem:[%s7357 + $0x20] sm:$0xff]
        %v7363 = vld [vmem:[%s7357 + $0x28] sm:$0xff]
        %v7364 = vld [vmem:[%s7357 + $0x30] sm:$0xff]
        %v7365 = vld [vmem:[%s7357 + $0x38] sm:$0x77]
        %v7374 = vunpack.c.l.b16 %v7358
        %v7375 = vunpack.c.h.b16 %v7358
        %v7376 = vunpack.c.l.b16 %v7359
        %v7377 = vunpack.c.h.b16 %v7359
        %v7378 = vunpack.c.l.b16 %v7360
        %v7379 = vunpack.c.h.b16 %v7360
        %v7380 = vunpack.c.l.b16 %v7361
        %v7381 = vunpack.c.h.b16 %v7361
        %v7382 = vunpack.c.l.b16 %v7362
        %v7383 = vunpack.c.h.b16 %v7362
        %v7384 = vunpack.c.l.b16 %v7363
        %v7385 = vunpack.c.h.b16 %v7363
        %v7386 = vunpack.c.l.b16 %v7364
        %v7387 = vunpack.c.h.b16 %v7364
        %v7388 = vunpack.c.l.b16 %v7365
        %v7389 = vunpack.c.h.b16 %v7365
        %v7390 = vpack.c.b16 %v7376, %v7374
        %v7391 = vpack.c.b16 %v7377, %v7375
        %v7392 = vpack.c.b16 %v7380, %v7378
        %v7393 = vpack.c.b16 %v7381, %v7379
        %v7394 = vpack.c.b16 %v7384, %v7382
        %v7395 = vpack.c.b16 %v7385, %v7383
        %v7396 = vpack.c.b16 %v7388, %v7386
        %v7397 = vpack.c.b16 %v7389, %v7387
        %v7403 = vsel %vm7282, %v7391, 0
        %v7406 = vsel %vm7282, %v7393, 0
        %v7409 = vsel %vm7282, %v7395, 0
        %v7412 = vsel %vm7282, %v7397, 0
        %7414 = vmatpush.bf16.msra.mxu0 %v7229
        %7415 = vmatpush.bf16.msra.mxu0 %v7228
        %7416 = vmatpush.bf16.msra.mxu0 %v7227
        %7417 = vmatpush.bf16.msra.mxu0 %v7226
        %7418 = vmatpush.bf16.msra.mxu0 %v7225
        %7419 = vmatpush.bf16.msra.mxu0 %v7224
        %7420 = vmatpush.bf16.msra.mxu0 %v7223
        %7421 = vmatpush.bf16.msra.mxu0 %v7222
        %7422 = vmatmul.bf16.gmra.mxu0 %v7390
        %v7423 = vpop.f32.mrf.mxu0
        %v7424 = vadd.f32 0.0, %v7423
        %v7425 = vpop.f32.mrf.mxu0
        %v7426 = vadd.f32 0.0, %v7425
        %7427 = vmatmul.bf16.gmra.mxu0 %v7392
        %v7428 = vpop.f32.mrf.mxu0
        %v7429 = vadd.f32 0.0, %v7428
        %v7430 = vpop.f32.mrf.mxu0
        %v7431 = vadd.f32 0.0, %v7430
        %7432 = vmatmul.bf16.gmra.mxu0 %v7394
        %v7433 = vpop.f32.mrf.mxu0
        %v7434 = vadd.f32 0.0, %v7433
        %v7435 = vpop.f32.mrf.mxu0
        %v7436 = vadd.f32 0.0, %v7435
        %7437 = vmatmul.bf16.gmra.mxu0 %v7396
        %v7438 = vpop.f32.mrf.mxu0
        %v7439 = vadd.f32 0.0, %v7438
        %v7440 = vpop.f32.mrf.mxu0
        %v7441 = vadd.f32 0.0, %v7440
        %7442 = vdwg.mxu0
        %7443 = vmatpush.bf16.msra.mxu0 %v7297
        %7444 = vmatpush.bf16.msra.mxu0 %v7236
        %7445 = vmatpush.bf16.msra.mxu0 %v7235
        %7446 = vmatpush.bf16.msra.mxu0 %v7234
        %7447 = vmatpush.bf16.msra.mxu0 %v7233
        %7448 = vmatpush.bf16.msra.mxu0 %v7232
        %7449 = vmatpush.bf16.msra.mxu0 %v7231
        %7450 = vmatpush.bf16.msra.mxu0 %v7230
        %7451 = vmatmul.bf16.gmra.mxu0 %v7403
        %v7452 = vpop.f32.mrf.mxu0
        %v7453 = vadd.f32 %v7424, %v7452
        %v7454 = vpop.f32.mrf.mxu0
        %v7455 = vadd.f32 %v7426, %v7454
        %7456 = vmatmul.bf16.gmra.mxu0 %v7406
        %v7457 = vpop.f32.mrf.mxu0
        %v7458 = vadd.f32 %v7429, %v7457
        %v7459 = vpop.f32.mrf.mxu0
        %v7460 = vadd.f32 %v7431, %v7459
        %7461 = vmatmul.bf16.gmra.mxu0 %v7409
        %v7462 = vpop.f32.mrf.mxu0
        %v7463 = vadd.f32 %v7434, %v7462
        %v7464 = vpop.f32.mrf.mxu0
        %v7465 = vadd.f32 %v7436, %v7464
        %7466 = vmatmul.bf16.gmra.mxu0 %v7412
        %v7467 = vpop.f32.mrf.mxu0
        %v7468 = vadd.f32 %v7439, %v7467
        %v7469 = vpop.f32.mrf.mxu0
        %v7470 = vadd.f32 %v7441, %v7469
        %7471 = vdwg.mxu0
        %v7472 = vmax.f32 %v7338, %v7453
        %v7473 = vmax.f32 %v7340, %v7455
        %v7474 = vmax.f32 %v7343, %v7458
        %v7475 = vmax.f32 %v7345, %v7460
        %v7476 = vmax.f32 %v7348, %v7463
        %v7477 = vmax.f32 %v7350, %v7465
        %v7478 = vmax.f32 %v7353, %v7468
        %v7479 = vmax.f32 %v7355, %v7470
        %s7480 = scalar_lea.vmem %s6, 128
        %v7481 = vld [vmem:[%s7480] sm:$0xff]
        %v7482 = vld [vmem:[%s7480 + $0x8] sm:$0xff]
        %v7483 = vld [vmem:[%s7480 + $0x10] sm:$0xff]
        %v7484 = vld [vmem:[%s7480 + $0x18] sm:$0xff]
        %v7485 = vld [vmem:[%s7480 + $0x20] sm:$0xff]
        %v7486 = vld [vmem:[%s7480 + $0x28] sm:$0xff]
        %v7487 = vld [vmem:[%s7480 + $0x30] sm:$0xff]
        %v7488 = vld [vmem:[%s7480 + $0x38] sm:$0x77]
        %v7497 = vunpack.c.l.b16 %v7481
        %v7498 = vunpack.c.h.b16 %v7481
        %v7499 = vunpack.c.l.b16 %v7482
        %v7500 = vunpack.c.h.b16 %v7482
        %v7501 = vunpack.c.l.b16 %v7483
        %v7502 = vunpack.c.h.b16 %v7483
        %v7503 = vunpack.c.l.b16 %v7484
        %v7504 = vunpack.c.h.b16 %v7484
        %v7505 = vunpack.c.l.b16 %v7485
        %v7506 = vunpack.c.h.b16 %v7485
        %v7507 = vunpack.c.l.b16 %v7486
        %v7508 = vunpack.c.h.b16 %v7486
        %v7509 = vunpack.c.l.b16 %v7487
        %v7510 = vunpack.c.h.b16 %v7487
        %v7511 = vunpack.c.l.b16 %v7488
        %v7512 = vunpack.c.h.b16 %v7488
        %v7513 = vpack.c.b16 %v7499, %v7497
        %v7514 = vpack.c.b16 %v7500, %v7498
        %v7515 = vpack.c.b16 %v7503, %v7501
        %v7516 = vpack.c.b16 %v7504, %v7502
        %v7517 = vpack.c.b16 %v7507, %v7505
        %v7518 = vpack.c.b16 %v7508, %v7506
        %v7519 = vpack.c.b16 %v7511, %v7509
        %v7520 = vpack.c.b16 %v7512, %v7510
        %v7526 = vsel %vm7282, %v7514, 0
        %v7529 = vsel %vm7282, %v7516, 0
        %v7532 = vsel %vm7282, %v7518, 0
        %v7535 = vsel %vm7282, %v7520, 0
        %7537 = vmatpush.bf16.msra.mxu0 %v7229
        %7538 = vmatpush.bf16.msra.mxu0 %v7228
        %7539 = vmatpush.bf16.msra.mxu0 %v7227
        %7540 = vmatpush.bf16.msra.mxu0 %v7226
        %7541 = vmatpush.bf16.msra.mxu0 %v7225
        %7542 = vmatpush.bf16.msra.mxu0 %v7224
        %7543 = vmatpush.bf16.msra.mxu0 %v7223
        %7544 = vmatpush.bf16.msra.mxu0 %v7222
        %7545 = vmatmul.bf16.gmra.mxu0 %v7513
        %v7546 = vpop.f32.mrf.mxu0
        %v7547 = vadd.f32 0.0, %v7546
        %v7548 = vpop.f32.mrf.mxu0
        %v7549 = vadd.f32 0.0, %v7548
        %7550 = vmatmul.bf16.gmra.mxu0 %v7515
        %v7551 = vpop.f32.mrf.mxu0
        %v7552 = vadd.f32 0.0, %v7551
        %v7553 = vpop.f32.mrf.mxu0
        %v7554 = vadd.f32 0.0, %v7553
        %7555 = vmatmul.bf16.gmra.mxu0 %v7517
        %v7556 = vpop.f32.mrf.mxu0
        %v7557 = vadd.f32 0.0, %v7556
        %v7558 = vpop.f32.mrf.mxu0
        %v7559 = vadd.f32 0.0, %v7558
        %7560 = vmatmul.bf16.gmra.mxu0 %v7519
        %v7561 = vpop.f32.mrf.mxu0
        %v7562 = vadd.f32 0.0, %v7561
        %v7563 = vpop.f32.mrf.mxu0
        %v7564 = vadd.f32 0.0, %v7563
        %7565 = vdwg.mxu0
        %7566 = vmatpush.bf16.msra.mxu0 %v7297
        %7567 = vmatpush.bf16.msra.mxu0 %v7236
        %7568 = vmatpush.bf16.msra.mxu0 %v7235
        %7569 = vmatpush.bf16.msra.mxu0 %v7234
        %7570 = vmatpush.bf16.msra.mxu0 %v7233
        %7571 = vmatpush.bf16.msra.mxu0 %v7232
        %7572 = vmatpush.bf16.msra.mxu0 %v7231
        %7573 = vmatpush.bf16.msra.mxu0 %v7230
        %7574 = vmatmul.bf16.gmra.mxu0 %v7526
        %v7575 = vpop.f32.mrf.mxu0
        %v7576 = vadd.f32 %v7547, %v7575
        %v7577 = vpop.f32.mrf.mxu0
        %v7578 = vadd.f32 %v7549, %v7577
        %7579 = vmatmul.bf16.gmra.mxu0 %v7529
        %v7580 = vpop.f32.mrf.mxu0
        %v7581 = vadd.f32 %v7552, %v7580
        %v7582 = vpop.f32.mrf.mxu0
        %v7583 = vadd.f32 %v7554, %v7582
        %7584 = vmatmul.bf16.gmra.mxu0 %v7532
        %v7585 = vpop.f32.mrf.mxu0
        %v7586 = vadd.f32 %v7557, %v7585
        %v7587 = vpop.f32.mrf.mxu0
        %v7588 = vadd.f32 %v7559, %v7587
        %7589 = vmatmul.bf16.gmra.mxu0 %v7535
        %v7590 = vpop.f32.mrf.mxu0
        %v7591 = vadd.f32 %v7562, %v7590
        %v7592 = vpop.f32.mrf.mxu0
        %v7593 = vadd.f32 %v7564, %v7592
        %7594 = vdwg.mxu0
        %v7595 = vmax.f32 %v7472, %v7576
        %v7596 = vmax.f32 %v7473, %v7578
        %v7597 = vmax.f32 %v7474, %v7581
        %v7598 = vmax.f32 %v7475, %v7583
        %v7599 = vmax.f32 %v7476, %v7586
        %v7600 = vmax.f32 %v7477, %v7588
        %v7601 = vmax.f32 %v7478, %v7591
        %v7602 = vmax.f32 %v7479, %v7593
        %s7603 = scalar_lea.vmem %s6, 192
        %v7604 = vld [vmem:[%s7603] sm:$0xff]
        %v7605 = vld [vmem:[%s7603 + $0x8] sm:$0xff]
        %v7606 = vld [vmem:[%s7603 + $0x10] sm:$0xff]
        %v7607 = vld [vmem:[%s7603 + $0x18] sm:$0xff]
        %v7608 = vld [vmem:[%s7603 + $0x20] sm:$0xff]
        %v7609 = vld [vmem:[%s7603 + $0x28] sm:$0xff]
        %v7610 = vld [vmem:[%s7603 + $0x30] sm:$0xff]
        %v7611 = vld [vmem:[%s7603 + $0x38] sm:$0x77]
        %v7620 = vunpack.c.l.b16 %v7604
        %v7621 = vunpack.c.h.b16 %v7604
        %v7622 = vunpack.c.l.b16 %v7605
        %v7623 = vunpack.c.h.b16 %v7605
        %v7624 = vunpack.c.l.b16 %v7606
        %v7625 = vunpack.c.h.b16 %v7606
        %v7626 = vunpack.c.l.b16 %v7607
        %v7627 = vunpack.c.h.b16 %v7607
        %v7628 = vunpack.c.l.b16 %v7608
        %v7629 = vunpack.c.h.b16 %v7608
        %v7630 = vunpack.c.l.b16 %v7609
        %v7631 = vunpack.c.h.b16 %v7609
        %v7632 = vunpack.c.l.b16 %v7610
        %v7633 = vunpack.c.h.b16 %v7610
        %v7634 = vunpack.c.l.b16 %v7611
        %v7635 = vunpack.c.h.b16 %v7611
        %v7636 = vpack.c.b16 %v7622, %v7620
        %v7637 = vpack.c.b16 %v7623, %v7621
        %v7638 = vpack.c.b16 %v7626, %v7624
        %v7639 = vpack.c.b16 %v7627, %v7625
        %v7640 = vpack.c.b16 %v7630, %v7628
        %v7641 = vpack.c.b16 %v7631, %v7629
        %v7642 = vpack.c.b16 %v7634, %v7632
        %v7643 = vpack.c.b16 %v7635, %v7633
        %v7649 = vsel %vm7282, %v7637, 0
        %v7652 = vsel %vm7282, %v7639, 0
        %v7655 = vsel %vm7282, %v7641, 0
        %v7658 = vsel %vm7282, %v7643, 0
        %7660 = vmatpush.bf16.msra.mxu0 %v7229
        %7661 = vmatpush.bf16.msra.mxu0 %v7228
        %7662 = vmatpush.bf16.msra.mxu0 %v7227
        %7663 = vmatpush.bf16.msra.mxu0 %v7226
        %7664 = vmatpush.bf16.msra.mxu0 %v7225
        %7665 = vmatpush.bf16.msra.mxu0 %v7224
        %7666 = vmatpush.bf16.msra.mxu0 %v7223
        %7667 = vmatpush.bf16.msra.mxu0 %v7222
        %7668 = vmatmul.bf16.gmra.mxu0 %v7636
        %v7669 = vpop.f32.mrf.mxu0
        %v7670 = vadd.f32 0.0, %v7669
        %v7671 = vpop.f32.mrf.mxu0
        %v7672 = vadd.f32 0.0, %v7671
        %7673 = vmatmul.bf16.gmra.mxu0 %v7638
        %v7674 = vpop.f32.mrf.mxu0
        %v7675 = vadd.f32 0.0, %v7674
        %v7676 = vpop.f32.mrf.mxu0
        %v7677 = vadd.f32 0.0, %v7676
        %7678 = vmatmul.bf16.gmra.mxu0 %v7640
        %v7679 = vpop.f32.mrf.mxu0
        %v7680 = vadd.f32 0.0, %v7679
        %v7681 = vpop.f32.mrf.mxu0
        %v7682 = vadd.f32 0.0, %v7681
        %7683 = vmatmul.bf16.gmra.mxu0 %v7642
        %v7684 = vpop.f32.mrf.mxu0
        %v7685 = vadd.f32 0.0, %v7684
        %v7686 = vpop.f32.mrf.mxu0
        %v7687 = vadd.f32 0.0, %v7686
        %7688 = vdwg.mxu0
        %7689 = vmatpush.bf16.msra.mxu0 %v7297
        %7690 = vmatpush.bf16.msra.mxu0 %v7236
        %7691 = vmatpush.bf16.msra.mxu0 %v7235
        %7692 = vmatpush.bf16.msra.mxu0 %v7234
        %7693 = vmatpush.bf16.msra.mxu0 %v7233
        %7694 = vmatpush.bf16.msra.mxu0 %v7232
        %7695 = vmatpush.bf16.msra.mxu0 %v7231
        %7696 = vmatpush.bf16.msra.mxu0 %v7230
        %7697 = vmatmul.bf16.gmra.mxu0 %v7649
        %v7698 = vpop.f32.mrf.mxu0
        %v7699 = vadd.f32 %v7670, %v7698
        %v7700 = vpop.f32.mrf.mxu0
        %v7701 = vadd.f32 %v7672, %v7700
        %7702 = vmatmul.bf16.gmra.mxu0 %v7652
        %v7703 = vpop.f32.mrf.mxu0
        %v7704 = vadd.f32 %v7675, %v7703
        %v7705 = vpop.f32.mrf.mxu0
        %v7706 = vadd.f32 %v7677, %v7705
        %7707 = vmatmul.bf16.gmra.mxu0 %v7655
        %v7708 = vpop.f32.mrf.mxu0
        %v7709 = vadd.f32 %v7680, %v7708
        %v7710 = vpop.f32.mrf.mxu0
        %v7711 = vadd.f32 %v7682, %v7710
        %7712 = vmatmul.bf16.gmra.mxu0 %v7658
        %v7713 = vpop.f32.mrf.mxu0
        %v7714 = vadd.f32 %v7685, %v7713
        %v7715 = vpop.f32.mrf.mxu0
        %v7716 = vadd.f32 %v7687, %v7715
        %7717 = vdwg.mxu0
        %v7718 = vmax.f32 %v7595, %v7699
        %v7719 = vmax.f32 %v7596, %v7701
        %v7720 = vmax.f32 %v7597, %v7704
        %v7721 = vmax.f32 %v7598, %v7706
        %v7722 = vmax.f32 %v7599, %v7709
        %v7723 = vmax.f32 %v7600, %v7711
        %v7724 = vmax.f32 %v7601, %v7714
        %v7725 = vmax.f32 %v7602, %v7716
        %v7726 = vmax.f32 %v7718, 0.0
        %v7727 = vmax.f32 %v7719, 0.0
        %v7728 = vmax.f32 %v7720, 0.0
        %v7729 = vmax.f32 %v7721, 0.0
        %v7730 = vmax.f32 %v7722, 0.0
        %v7731 = vmax.f32 %v7723, 0.0
        %v7732 = vmax.f32 %v7724, 0.0
        %v7733 = vmax.f32 %v7725, 0.0
        %7734 = vst.msk [vmem:[#allocation3 + $0xa] sm:$0xff] %vm440, %v7726
        %7735 = vst.msk [vmem:[#allocation3 + $0x12] sm:$0xff] %vm440, %v7727
        %7736 = vst.msk [vmem:[#allocation3 + $0x1a] sm:$0xff] %vm440, %v7728
        %7737 = vst.msk [vmem:[#allocation3 + $0x22] sm:$0xff] %vm440, %v7729
        %7738 = vst.msk [vmem:[#allocation3 + $0x2a] sm:$0xff] %vm440, %v7730
        %7739 = vst.msk [vmem:[#allocation3 + $0x32] sm:$0xff] %vm440, %v7731
        %7740 = vst.msk [vmem:[#allocation3 + $0x3a] sm:$0xff] %vm440, %v7732
        %7741 = vst.msk [vmem:[#allocation3 + $0x42] sm:$0x1f] %vm1634, %v7733
        %7750 = vrot.lane.b32.xlu0 %v7726, 32
        %v7751 = vpop.permute.xlu0 %7750
        %7752 = vrot.lane.b32.xlu0 %v7727, 32
        %v7753 = vpop.permute.xlu0 %7752
        %7754 = vrot.lane.b32.xlu0 %v7728, 32
        %v7755 = vpop.permute.xlu0 %7754
        %7756 = vrot.lane.b32.xlu0 %v7729, 32
        %v7757 = vpop.permute.xlu0 %7756
        %7758 = vrot.lane.b32.xlu0 %v7730, 32
        %v7759 = vpop.permute.xlu0 %7758
        %7760 = vrot.lane.b32.xlu0 %v7731, 32
        %v7761 = vpop.permute.xlu0 %7760
        %7762 = vrot.lane.b32.xlu0 %v7732, 32
        %v7763 = vpop.permute.xlu0 %7762
        %7764 = vrot.lane.b32.xlu0 %v7733, 32
        %v7765 = vpop.permute.xlu0 %7764
        %7774 = vst.msk [vmem:[#allocation3 + $0x9] sm:$0xff] %vm1492, %v7751
        %7775 = vst.msk [vmem:[#allocation3 + $0x11] sm:$0xff] %vm1492, %v7753
        %7776 = vst.msk [vmem:[#allocation3 + $0x19] sm:$0xff] %vm1492, %v7755
        %7777 = vst.msk [vmem:[#allocation3 + $0x21] sm:$0xff] %vm1492, %v7757
        %7778 = vst.msk [vmem:[#allocation3 + $0x29] sm:$0xff] %vm1492, %v7759
        %7779 = vst.msk [vmem:[#allocation3 + $0x31] sm:$0xff] %vm1492, %v7761
        %7780 = vst.msk [vmem:[#allocation3 + $0x39] sm:$0xff] %vm1492, %v7763
        %vm7781 = vcmask 520448
        %7782 = vst.msk [vmem:[#allocation3 + $0x41] sm:$0x1f] %vm7781, %v7765
        %7783 = vrot.lane.b32.xlu0 %v7726, 64
        %v7784 = vpop.permute.xlu0 %7783
        %7785 = vrot.lane.b32.xlu0 %v7727, 64
        %v7786 = vpop.permute.xlu0 %7785
        %7787 = vrot.lane.b32.xlu0 %v7728, 64
        %v7788 = vpop.permute.xlu0 %7787
        %7789 = vrot.lane.b32.xlu0 %v7729, 64
        %v7790 = vpop.permute.xlu0 %7789
        %7791 = vrot.lane.b32.xlu0 %v7730, 64
        %v7792 = vpop.permute.xlu0 %7791
        %7793 = vrot.lane.b32.xlu0 %v7731, 64
        %v7794 = vpop.permute.xlu0 %7793
        %7795 = vrot.lane.b32.xlu0 %v7732, 64
        %v7796 = vpop.permute.xlu0 %7795
        %7797 = vrot.lane.b32.xlu0 %v7733, 64
        %v7798 = vpop.permute.xlu0 %7797
        %7807 = vst.msk [vmem:[#allocation3 + $0x8] sm:$0xff] %vm1548, %v7784
        %7808 = vst.msk [vmem:[#allocation3 + $0x10] sm:$0xff] %vm1548, %v7786
        %7809 = vst.msk [vmem:[#allocation3 + $0x18] sm:$0xff] %vm1548, %v7788
        %7810 = vst.msk [vmem:[#allocation3 + $0x20] sm:$0xff] %vm1548, %v7790
        %7811 = vst.msk [vmem:[#allocation3 + $0x28] sm:$0xff] %vm1548, %v7792
        %7812 = vst.msk [vmem:[#allocation3 + $0x30] sm:$0xff] %vm1548, %v7794
        %7813 = vst.msk [vmem:[#allocation3 + $0x38] sm:$0xff] %vm1548, %v7796
        %vm7814 = vcmask 782848
        %7815 = vst.msk [vmem:[#allocation3 + $0x40] sm:$0x1f] %vm7814, %v7798
        %7816 = vrot.lane.b32.xlu0 %v7726, 96
        %v7817 = vpop.permute.xlu0 %7816
        %7818 = vrot.lane.b32.xlu0 %v7727, 96
        %v7819 = vpop.permute.xlu0 %7818
        %7820 = vrot.lane.b32.xlu0 %v7728, 96
        %v7821 = vpop.permute.xlu0 %7820
        %7822 = vrot.lane.b32.xlu0 %v7729, 96
        %v7823 = vpop.permute.xlu0 %7822
        %7824 = vrot.lane.b32.xlu0 %v7730, 96
        %v7825 = vpop.permute.xlu0 %7824
        %7826 = vrot.lane.b32.xlu0 %v7731, 96
        %v7827 = vpop.permute.xlu0 %7826
        %7828 = vrot.lane.b32.xlu0 %v7732, 96
        %v7829 = vpop.permute.xlu0 %7828
        %7830 = vrot.lane.b32.xlu0 %v7733, 96
        %v7831 = vpop.permute.xlu0 %7830
        %7840 = vst.msk [vmem:[#allocation3 + $0x7] sm:$0xff] %vm1585, %v7817
        %7841 = vst.msk [vmem:[#allocation3 + $0xf] sm:$0xff] %vm1585, %v7819
        %7842 = vst.msk [vmem:[#allocation3 + $0x17] sm:$0xff] %vm1585, %v7821
        %7843 = vst.msk [vmem:[#allocation3 + $0x1f] sm:$0xff] %vm1585, %v7823
        %7844 = vst.msk [vmem:[#allocation3 + $0x27] sm:$0xff] %vm1585, %v7825
        %7845 = vst.msk [vmem:[#allocation3 + $0x2f] sm:$0xff] %vm1585, %v7827
        %7846 = vst.msk [vmem:[#allocation3 + $0x37] sm:$0xff] %vm1585, %v7829
        %vm7847 = vcmask 1045248
        %7848 = vst.msk [vmem:[#allocation3 + $0x3f] sm:$0x1f] %vm7847, %v7831
        %v7849 = vld [vmem:[%s8] sm:$0x1]
        %v7850 = vld [vmem:[#allocation3] sm:$0xff]
        %v7851 = vld [vmem:[#allocation3 + $0x8] sm:$0xff]
        %v7852 = vld [vmem:[#allocation3 + $0x10] sm:$0xff]
        %v7853 = vld [vmem:[#allocation3 + $0x18] sm:$0xff]
        %v7854 = vld [vmem:[#allocation3 + $0x20] sm:$0xff]
        %v7855 = vld [vmem:[#allocation3 + $0x28] sm:$0xff]
        %v7856 = vld [vmem:[#allocation3 + $0x30] sm:$0x7]
        %v7857 = vpack.c.bf16 %v7851, %v7850
        %v7858 = vpack.c.bf16 %v7853, %v7852
        %v7859 = vpack.c.bf16 %v7855, %v7854
        %v7860 = vpack.c.bf16 %v7856, %v7856
        %v7861 = vld [vmem:[%s7] sm:$0xf]
        %v7862 = vld [vmem:[%s7 + $0x4] sm:$0xf]
        %v7863 = vld [vmem:[%s7 + $0x8] sm:$0xf]
        %v7864 = vld [vmem:[%s7 + $0xc] sm:$0xf]
        %v7865 = vld [vmem:[%s7 + $0x10] sm:$0xf]
        %v7866 = vld [vmem:[%s7 + $0x14] sm:$0xf]
        %v7867 = vld [vmem:[%s7 + $0x18] sm:$0xf]
        %v7868 = vld [vmem:[%s7 + $0x1c] sm:$0xf]
        %v7869 = vld [vmem:[%s7 + $0x20] sm:$0xf]
        %v7870 = vld [vmem:[%s7 + $0x24] sm:$0xf]
        %v7871 = vld [vmem:[%s7 + $0x28] sm:$0xf]
        %v7872 = vld [vmem:[%s7 + $0x2c] sm:$0xf]
        %v7873 = vld [vmem:[%s7 + $0x30] sm:$0xf]
        %v7874 = vld [vmem:[%s7 + $0x34] sm:$0xf]
        %v7875 = vld [vmem:[%s7 + $0x38] sm:$0xf]
        %v7876 = vld [vmem:[%s7 + $0x3c] sm:$0xf]
        %v7877 = vld [vmem:[#allocation3 + $0x9] sm:$0xff]
        %v7878 = vld [vmem:[#allocation3 + $0x11] sm:$0xff]
        %v7879 = vld [vmem:[#allocation3 + $0x19] sm:$0xff]
        %v7880 = vld [vmem:[#allocation3 + $0x21] sm:$0xff]
        %v7881 = vld [vmem:[#allocation3 + $0x29] sm:$0xff]
        %v7882 = vld [vmem:[#allocation3 + $0x31] sm:$0xff]
        %v7883 = vld [vmem:[#allocation3 + $0x39] sm:$0x7]
        %v7884 = vpack.c.bf16 %v7878, %v7877
        %v7885 = vpack.c.bf16 %v7880, %v7879
        %v7886 = vpack.c.bf16 %v7882, %v7881
        %v7887 = vpack.c.bf16 %v7883, %v7883
        %s7888 = scalar_lea.vmem %s7, 64
        %v7889 = vld [vmem:[%s7888] sm:$0xf]
        %v7890 = vld [vmem:[%s7888 + $0x4] sm:$0xf]
        %v7891 = vld [vmem:[%s7888 + $0x8] sm:$0xf]
        %v7892 = vld [vmem:[%s7888 + $0xc] sm:$0xf]
        %v7893 = vld [vmem:[%s7888 + $0x10] sm:$0xf]
        %v7894 = vld [vmem:[%s7888 + $0x14] sm:$0xf]
        %v7895 = vld [vmem:[%s7888 + $0x18] sm:$0xf]
        %v7896 = vld [vmem:[%s7888 + $0x1c] sm:$0xf]
        %v7897 = vld [vmem:[%s7888 + $0x20] sm:$0xf]
        %v7898 = vld [vmem:[%s7888 + $0x24] sm:$0xf]
        %v7899 = vld [vmem:[%s7888 + $0x28] sm:$0xf]
        %v7900 = vld [vmem:[%s7888 + $0x2c] sm:$0xf]
        %v7901 = vld [vmem:[%s7888 + $0x30] sm:$0xf]
        %v7902 = vld [vmem:[%s7888 + $0x34] sm:$0xf]
        %v7903 = vld [vmem:[%s7888 + $0x38] sm:$0xf]
        %v7904 = vld [vmem:[%s7888 + $0x3c] sm:$0xf]
        %v7921 = vunpack.c.l.b16 %v7889
        %v7922 = vunpack.c.l.b16 %v7890
        %v7923 = vunpack.c.l.b16 %v7891
        %v7924 = vunpack.c.l.b16 %v7892
        %v7925 = vunpack.c.l.b16 %v7893
        %v7926 = vunpack.c.l.b16 %v7894
        %v7927 = vunpack.c.l.b16 %v7895
        %v7928 = vunpack.c.l.b16 %v7896
        %v7929 = vunpack.c.l.b16 %v7897
        %v7930 = vunpack.c.l.b16 %v7898
        %v7931 = vunpack.c.l.b16 %v7899
        %v7932 = vunpack.c.l.b16 %v7900
        %v7933 = vunpack.c.l.b16 %v7901
        %v7934 = vunpack.c.l.b16 %v7902
        %v7935 = vunpack.c.l.b16 %v7903
        %v7936 = vunpack.c.l.b16 %v7904
        %v7937 = vpack.c.b16 %v7922, %v7921
        %v7938 = vpack.c.b16 %v7924, %v7923
        %v7939 = vpack.c.b16 %v7926, %v7925
        %v7940 = vpack.c.b16 %v7928, %v7927
        %v7941 = vpack.c.b16 %v7930, %v7929
        %v7942 = vpack.c.b16 %v7932, %v7931
        %v7943 = vpack.c.b16 %v7934, %v7933
        %v7944 = vpack.c.b16 %v7936, %v7935
        %7953 = vmatpush.bf16.msra.mxu0 %v7944
        %7954 = vmatpush.bf16.msra.mxu0 %v7943
        %7955 = vmatpush.bf16.msra.mxu0 %v7942
        %7956 = vmatpush.bf16.msra.mxu0 %v7941
        %7957 = vmatpush.bf16.msra.mxu0 %v7940
        %7958 = vmatpush.bf16.msra.mxu0 %v7939
        %7959 = vmatpush.bf16.msra.mxu0 %v7938
        %7960 = vmatpush.bf16.msra.mxu0 %v7937
        %7961 = vmatmul.bf16.gmra.mxu0 %v7884
        %v7962 = vpop.f32.mrf.mxu0
        %v7963 = vadd.f32 0.0, %v7962
        %v7964 = vpop.f32.mrf.mxu0
        %v7965 = vadd.f32 0.0, %v7964
        %7966 = vmatmul.bf16.gmra.mxu0 %v7885
        %v7967 = vpop.f32.mrf.mxu0
        %v7968 = vadd.f32 0.0, %v7967
        %v7969 = vpop.f32.mrf.mxu0
        %v7970 = vadd.f32 0.0, %v7969
        %7971 = vmatmul.bf16.gmra.mxu0 %v7886
        %v7972 = vpop.f32.mrf.mxu0
        %v7973 = vadd.f32 0.0, %v7972
        %v7974 = vpop.f32.mrf.mxu0
        %v7975 = vadd.f32 0.0, %v7974
        %7976 = vmatmul.bf16.gmra.mxu0 %v7887
        %v7977 = vpop.f32.mrf.mxu0
        %v7978 = vadd.f32 0.0, %v7977
        %v7979 = vpop.f32.mrf.mxu0
        %7980 = vdwg.mxu0
        %v7997 = vunpack.c.l.b16 %v7861
        %v7998 = vunpack.c.l.b16 %v7862
        %v7999 = vunpack.c.l.b16 %v7863
        %v8000 = vunpack.c.l.b16 %v7864
        %v8001 = vunpack.c.l.b16 %v7865
        %v8002 = vunpack.c.l.b16 %v7866
        %v8003 = vunpack.c.l.b16 %v7867
        %v8004 = vunpack.c.l.b16 %v7868
        %v8005 = vunpack.c.l.b16 %v7869
        %v8006 = vunpack.c.l.b16 %v7870
        %v8007 = vunpack.c.l.b16 %v7871
        %v8008 = vunpack.c.l.b16 %v7872
        %v8009 = vunpack.c.l.b16 %v7873
        %v8010 = vunpack.c.l.b16 %v7874
        %v8011 = vunpack.c.l.b16 %v7875
        %v8012 = vunpack.c.l.b16 %v7876
        %v8013 = vpack.c.b16 %v7998, %v7997
        %v8014 = vpack.c.b16 %v8000, %v7999
        %v8015 = vpack.c.b16 %v8002, %v8001
        %v8016 = vpack.c.b16 %v8004, %v8003
        %v8017 = vpack.c.b16 %v8006, %v8005
        %v8018 = vpack.c.b16 %v8008, %v8007
        %v8019 = vpack.c.b16 %v8010, %v8009
        %v8020 = vpack.c.b16 %v8012, %v8011
        %8029 = vmatpush.bf16.msra.mxu0 %v8020
        %8030 = vmatpush.bf16.msra.mxu0 %v8019
        %8031 = vmatpush.bf16.msra.mxu0 %v8018
        %8032 = vmatpush.bf16.msra.mxu0 %v8017
        %8033 = vmatpush.bf16.msra.mxu0 %v8016
        %8034 = vmatpush.bf16.msra.mxu0 %v8015
        %8035 = vmatpush.bf16.msra.mxu0 %v8014
        %8036 = vmatpush.bf16.msra.mxu0 %v8013
        %8037 = vmatmul.bf16.gmra.mxu0 %v7857
        %v8038 = vpop.f32.mrf.mxu0
        %v8039 = vadd.f32 %v7963, %v8038
        %v8040 = vpop.f32.mrf.mxu0
        %v8041 = vadd.f32 %v7965, %v8040
        %8042 = vmatmul.bf16.gmra.mxu0 %v7858
        %v8043 = vpop.f32.mrf.mxu0
        %v8044 = vadd.f32 %v7968, %v8043
        %v8045 = vpop.f32.mrf.mxu0
        %v8046 = vadd.f32 %v7970, %v8045
        %8047 = vmatmul.bf16.gmra.mxu0 %v7859
        %v8048 = vpop.f32.mrf.mxu0
        %v8049 = vadd.f32 %v7973, %v8048
        %v8050 = vpop.f32.mrf.mxu0
        %v8051 = vadd.f32 %v7975, %v8050
        %8052 = vmatmul.bf16.gmra.mxu0 %v7860
        %v8053 = vpop.f32.mrf.mxu0
        %v8054 = vadd.f32 %v7978, %v8053
        %v8055 = vpop.f32.mrf.mxu0
        %8056 = vdwg.mxu0
        %v8057 = vld [vmem:[#allocation3 + $0x12] sm:$0xff]
        %v8058 = vld [vmem:[#allocation3 + $0x1a] sm:$0xff]
        %v8059 = vld [vmem:[#allocation3 + $0x22] sm:$0xff]
        %v8060 = vld [vmem:[#allocation3 + $0x2a] sm:$0xff]
        %v8061 = vld [vmem:[#allocation3 + $0x32] sm:$0xff]
        %v8062 = vld [vmem:[#allocation3 + $0x3a] sm:$0xff]
        %v8063 = vld [vmem:[#allocation3 + $0x42] sm:$0x7]
        %v8064 = vpack.c.bf16 %v8058, %v8057
        %v8065 = vpack.c.bf16 %v8060, %v8059
        %v8066 = vpack.c.bf16 %v8062, %v8061
        %v8067 = vpack.c.bf16 %v8063, %v8063
        %s8068 = scalar_lea.vmem %s7, 128
        %v8069 = vld [vmem:[%s8068] sm:$0xf]
        %v8070 = vld [vmem:[%s8068 + $0x4] sm:$0xf]
        %v8071 = vld [vmem:[%s8068 + $0x8] sm:$0xf]
        %v8072 = vld [vmem:[%s8068 + $0xc] sm:$0xf]
        %v8073 = vld [vmem:[%s8068 + $0x10] sm:$0xf]
        %v8074 = vld [vmem:[%s8068 + $0x14] sm:$0xf]
        %v8075 = vld [vmem:[%s8068 + $0x18] sm:$0xf]
        %v8076 = vld [vmem:[%s8068 + $0x1c] sm:$0xf]
        %v8077 = vld [vmem:[%s8068 + $0x20] sm:$0xf]
        %v8078 = vld [vmem:[%s8068 + $0x24] sm:$0xf]
        %v8079 = vld [vmem:[%s8068 + $0x28] sm:$0xf]
        %v8080 = vld [vmem:[%s8068 + $0x2c] sm:$0xf]
        %v8081 = vld [vmem:[%s8068 + $0x30] sm:$0xf]
        %v8082 = vld [vmem:[%s8068 + $0x34] sm:$0xf]
        %v8083 = vld [vmem:[%s8068 + $0x38] sm:$0xf]
        %v8084 = vld [vmem:[%s8068 + $0x3c] sm:$0xf]
        %v8101 = vunpack.c.l.b16 %v8069
        %v8102 = vunpack.c.l.b16 %v8070
        %v8103 = vunpack.c.l.b16 %v8071
        %v8104 = vunpack.c.l.b16 %v8072
        %v8105 = vunpack.c.l.b16 %v8073
        %v8106 = vunpack.c.l.b16 %v8074
        %v8107 = vunpack.c.l.b16 %v8075
        %v8108 = vunpack.c.l.b16 %v8076
        %v8109 = vunpack.c.l.b16 %v8077
        %v8110 = vunpack.c.l.b16 %v8078
        %v8111 = vunpack.c.l.b16 %v8079
        %v8112 = vunpack.c.l.b16 %v8080
        %v8113 = vunpack.c.l.b16 %v8081
        %v8114 = vunpack.c.l.b16 %v8082
        %v8115 = vunpack.c.l.b16 %v8083
        %v8116 = vunpack.c.l.b16 %v8084
        %v8117 = vpack.c.b16 %v8102, %v8101
        %v8118 = vpack.c.b16 %v8104, %v8103
        %v8119 = vpack.c.b16 %v8106, %v8105
        %v8120 = vpack.c.b16 %v8108, %v8107
        %v8121 = vpack.c.b16 %v8110, %v8109
        %v8122 = vpack.c.b16 %v8112, %v8111
        %v8123 = vpack.c.b16 %v8114, %v8113
        %v8124 = vpack.c.b16 %v8116, %v8115
        %8133 = vmatpush.bf16.msra.mxu0 %v8124
        %8134 = vmatpush.bf16.msra.mxu0 %v8123
        %8135 = vmatpush.bf16.msra.mxu0 %v8122
        %8136 = vmatpush.bf16.msra.mxu0 %v8121
        %8137 = vmatpush.bf16.msra.mxu0 %v8120
        %8138 = vmatpush.bf16.msra.mxu0 %v8119
        %8139 = vmatpush.bf16.msra.mxu0 %v8118
        %8140 = vmatpush.bf16.msra.mxu0 %v8117
        %8141 = vmatmul.bf16.gmra.mxu0 %v8064
        %v8142 = vpop.f32.mrf.mxu0
        %v8143 = vadd.f32 0.0, %v8142
        %v8144 = vpop.f32.mrf.mxu0
        %v8145 = vadd.f32 0.0, %v8144
        %8146 = vmatmul.bf16.gmra.mxu0 %v8065
        %v8147 = vpop.f32.mrf.mxu0
        %v8148 = vadd.f32 0.0, %v8147
        %v8149 = vpop.f32.mrf.mxu0
        %v8150 = vadd.f32 0.0, %v8149
        %8151 = vmatmul.bf16.gmra.mxu0 %v8066
        %v8152 = vpop.f32.mrf.mxu0
        %v8153 = vadd.f32 0.0, %v8152
        %v8154 = vpop.f32.mrf.mxu0
        %v8155 = vadd.f32 0.0, %v8154
        %8156 = vmatmul.bf16.gmra.mxu0 %v8067
        %v8157 = vpop.f32.mrf.mxu0
        %v8158 = vadd.f32 0.0, %v8157
        %v8159 = vpop.f32.mrf.mxu0
        %8160 = vdwg.mxu0
        %v8161 = vadd.f32 %v8039, %v8143
        %v8162 = vadd.f32 %v8041, %v8145
        %v8163 = vadd.f32 %v8044, %v8148
        %v8164 = vadd.f32 %v8046, %v8150
        %v8165 = vadd.f32 %v8049, %v8153
        %v8166 = vadd.f32 %v8051, %v8155
        %v8167 = vadd.f32 %v8054, %v8158
        %v8168 = vld [vmem:[#allocation3 + $0x1b] sm:$0xff]
        %v8169 = vld [vmem:[#allocation3 + $0x23] sm:$0xff]
        %v8170 = vld [vmem:[#allocation3 + $0x2b] sm:$0xff]
        %v8171 = vld [vmem:[#allocation3 + $0x33] sm:$0xff]
        %v8172 = vld [vmem:[#allocation3 + $0x3b] sm:$0xff]
        %v8173 = vld [vmem:[#allocation3 + $0x43] sm:$0xff]
        %v8174 = vld [vmem:[#allocation3 + $0x4b] sm:$0x7]
        %v8175 = vpack.c.bf16 %v8169, %v8168
        %v8176 = vpack.c.bf16 %v8171, %v8170
        %v8177 = vpack.c.bf16 %v8173, %v8172
        %v8178 = vpack.c.bf16 %v8174, %v8174
        %s8179 = scalar_lea.vmem %s7, 192
        %v8180 = vld [vmem:[%s8179] sm:$0xf]
        %v8181 = vld [vmem:[%s8179 + $0x4] sm:$0xf]
        %v8182 = vld [vmem:[%s8179 + $0x8] sm:$0xf]
        %v8183 = vld [vmem:[%s8179 + $0xc] sm:$0xf]
        %v8184 = vld [vmem:[%s8179 + $0x10] sm:$0xf]
        %v8185 = vld [vmem:[%s8179 + $0x14] sm:$0xf]
        %v8186 = vld [vmem:[%s8179 + $0x18] sm:$0xf]
        %v8187 = vld [vmem:[%s8179 + $0x1c] sm:$0xf]
        %v8188 = vld [vmem:[%s8179 + $0x20] sm:$0xf]
        %v8189 = vld [vmem:[%s8179 + $0x24] sm:$0xf]
        %v8190 = vld [vmem:[%s8179 + $0x28] sm:$0xf]
        %v8191 = vld [vmem:[%s8179 + $0x2c] sm:$0xf]
        %v8192 = vld [vmem:[%s8179 + $0x30] sm:$0xf]
        %v8193 = vld [vmem:[%s8179 + $0x34] sm:$0xf]
        %v8194 = vld [vmem:[%s8179 + $0x38] sm:$0xf]
        %v8195 = vld [vmem:[%s8179 + $0x3c] sm:$0xf]
        %v8212 = vunpack.c.l.b16 %v8180
        %v8213 = vunpack.c.l.b16 %v8181
        %v8214 = vunpack.c.l.b16 %v8182
        %v8215 = vunpack.c.l.b16 %v8183
        %v8216 = vunpack.c.l.b16 %v8184
        %v8217 = vunpack.c.l.b16 %v8185
        %v8218 = vunpack.c.l.b16 %v8186
        %v8219 = vunpack.c.l.b16 %v8187
        %v8220 = vunpack.c.l.b16 %v8188
        %v8221 = vunpack.c.l.b16 %v8189
        %v8222 = vunpack.c.l.b16 %v8190
        %v8223 = vunpack.c.l.b16 %v8191
        %v8224 = vunpack.c.l.b16 %v8192
        %v8225 = vunpack.c.l.b16 %v8193
        %v8226 = vunpack.c.l.b16 %v8194
        %v8227 = vunpack.c.l.b16 %v8195
        %v8228 = vpack.c.b16 %v8213, %v8212
        %v8229 = vpack.c.b16 %v8215, %v8214
        %v8230 = vpack.c.b16 %v8217, %v8216
        %v8231 = vpack.c.b16 %v8219, %v8218
        %v8232 = vpack.c.b16 %v8221, %v8220
        %v8233 = vpack.c.b16 %v8223, %v8222
        %v8234 = vpack.c.b16 %v8225, %v8224
        %v8235 = vpack.c.b16 %v8227, %v8226
        %8244 = vmatpush.bf16.msra.mxu0 %v8235
        %8245 = vmatpush.bf16.msra.mxu0 %v8234
        %8246 = vmatpush.bf16.msra.mxu0 %v8233
        %8247 = vmatpush.bf16.msra.mxu0 %v8232
        %8248 = vmatpush.bf16.msra.mxu0 %v8231
        %8249 = vmatpush.bf16.msra.mxu0 %v8230
        %8250 = vmatpush.bf16.msra.mxu0 %v8229
        %8251 = vmatpush.bf16.msra.mxu0 %v8228
        %8252 = vmatmul.bf16.gmra.mxu0 %v8175
        %v8253 = vpop.f32.mrf.mxu0
        %v8254 = vadd.f32 0.0, %v8253
        %v8255 = vpop.f32.mrf.mxu0
        %v8256 = vadd.f32 0.0, %v8255
        %8257 = vmatmul.bf16.gmra.mxu0 %v8176
        %v8258 = vpop.f32.mrf.mxu0
        %v8259 = vadd.f32 0.0, %v8258
        %v8260 = vpop.f32.mrf.mxu0
        %v8261 = vadd.f32 0.0, %v8260
        %8262 = vmatmul.bf16.gmra.mxu0 %v8177
        %v8263 = vpop.f32.mrf.mxu0
        %v8264 = vadd.f32 0.0, %v8263
        %v8265 = vpop.f32.mrf.mxu0
        %v8266 = vadd.f32 0.0, %v8265
        %8267 = vmatmul.bf16.gmra.mxu0 %v8178
        %v8268 = vpop.f32.mrf.mxu0
        %v8269 = vadd.f32 0.0, %v8268
        %v8270 = vpop.f32.mrf.mxu0
        %8271 = vdwg.mxu0
        %v8272 = vadd.f32 %v8161, %v8254
        %v8273 = vadd.f32 %v8162, %v8256
        %v8274 = vadd.f32 %v8163, %v8259
        %v8275 = vadd.f32 %v8164, %v8261
        %v8276 = vadd.f32 %v8165, %v8264
        %v8277 = vadd.f32 %v8166, %v8266
        %v8278 = vadd.f32 %v8167, %v8269
        %v8280 = vperm.slane %v7849, 0
        %v8282 = vadd.f32 %v8272, %v8280
        %v8283 = vadd.f32 %v8273, %v8280
        %v8284 = vadd.f32 %v8274, %v8280
        %v8285 = vadd.f32 %v8275, %v8280
        %v8286 = vadd.f32 %v8276, %v8280
        %v8287 = vadd.f32 %v8277, %v8280
        %v8288 = vadd.f32 %v8278, %v8280
        %v8289 = vpack.c.bf16 %v8283, %v8282
        %v8290 = vpack.c.bf16 %v8285, %v8284
        %v8291 = vpack.c.bf16 %v8287, %v8286
        %v8292 = vpack.c.bf16 %v8288, %v8288
        %v8293 = vld [vmem:[%s9] sm:$0xf]
        %v8294 = vld [vmem:[%s9 + $0x4] sm:$0x7]
        %v8297 = vunpack.c.l.b16 %v8293
        %v8298 = vunpack.c.l.b16 %v8294
        %v8299 = vpack.c.b16 %v8298, %v8297
        %vm8300 = vcmask 416768
        %v8302 = vsel %vm8300, %v8299, 0
        %v8304 = vsel %vm1501, 4294967295, 65535
        %v8305 = vsel %vm761, %v8304, 0
        %v8307 = vand.u32 %v8292, %v8305
        %8309 = vmatpush.bf16.msra.mxu0 0
        %8310 = vmatpush.bf16.msra.mxu0 0
        %8311 = vmatpush.bf16.msra.mxu0 0
        %8312 = vmatpush.bf16.msra.mxu0 0
        %8313 = vmatpush.bf16.msra.mxu0 %v8307
        %8314 = vmatpush.bf16.msra.mxu0 %v8291
        %8315 = vmatpush.bf16.msra.mxu0 %v8290
        %8316 = vmatpush.bf16.msra.mxu0 %v8289
        %8317 = vmatmul.bf16.gmra.mxu0 %v8302
        %v8318 = vpop.f32.mrf.mxu0
        %v8319 = vadd.f32 0.0, %v8318
        %v8320 = vpop.f32.mrf.mxu0
        %v8321 = vadd.f32 0.0, %v8320
        %8322 = vdwg.mxu0
        %s8323 = scalar_lea.vmem %s9, 8
        %v8324 = vld [vmem:[%s8323] sm:$0xf]
        %v8325 = vld [vmem:[%s8323 + $0x4] sm:$0x7]
        %v8328 = vunpack.c.l.b16 %v8324
        %v8329 = vunpack.c.l.b16 %v8325
        %v8330 = vpack.c.b16 %v8329, %v8328
        %v8332 = vsel %vm8300, %v8330, 0
        %8334 = vmatpush.bf16.msra.mxu0 0
        %8335 = vmatpush.bf16.msra.mxu0 0
        %8336 = vmatpush.bf16.msra.mxu0 0
        %8337 = vmatpush.bf16.msra.mxu0 0
        %8338 = vmatpush.bf16.msra.mxu0 %v8307
        %8339 = vmatpush.bf16.msra.mxu0 %v8291
        %8340 = vmatpush.bf16.msra.mxu0 %v8290
        %8341 = vmatpush.bf16.msra.mxu0 %v8289
        %8342 = vmatmul.bf16.gmra.mxu0 %v8332
        %v8343 = vpop.f32.mrf.mxu0
        %v8344 = vadd.f32 0.0, %v8343
        %v8345 = vpop.f32.mrf.mxu0
        %v8346 = vadd.f32 0.0, %v8345
        %8347 = vdwg.mxu0
        %v8348 = vmax.f32 %v8319, %v8344
        %v8349 = vmax.f32 %v8321, %v8346
        %s8350 = scalar_lea.vmem %s9, 16
        %v8351 = vld [vmem:[%s8350] sm:$0xf]
        %v8352 = vld [vmem:[%s8350 + $0x4] sm:$0x7]
        %v8355 = vunpack.c.l.b16 %v8351
        %v8356 = vunpack.c.l.b16 %v8352
        %v8357 = vpack.c.b16 %v8356, %v8355
        %v8359 = vsel %vm8300, %v8357, 0
        %8361 = vmatpush.bf16.msra.mxu0 0
        %8362 = vmatpush.bf16.msra.mxu0 0
        %8363 = vmatpush.bf16.msra.mxu0 0
        %8364 = vmatpush.bf16.msra.mxu0 0
        %8365 = vmatpush.bf16.msra.mxu0 %v8307
        %8366 = vmatpush.bf16.msra.mxu0 %v8291
        %8367 = vmatpush.bf16.msra.mxu0 %v8290
        %8368 = vmatpush.bf16.msra.mxu0 %v8289
        %8369 = vmatmul.bf16.gmra.mxu0 %v8359
        %v8370 = vpop.f32.mrf.mxu0
        %v8371 = vadd.f32 0.0, %v8370
        %v8372 = vpop.f32.mrf.mxu0
        %v8373 = vadd.f32 0.0, %v8372
        %8374 = vdwg.mxu0
        %v8375 = vmax.f32 %v8348, %v8371
        %v8376 = vmax.f32 %v8349, %v8373
        %s8377 = scalar_lea.vmem %s9, 24
        %v8378 = vld [vmem:[%s8377] sm:$0xf]
        %v8379 = vld [vmem:[%s8377 + $0x4] sm:$0x7]
        %v8382 = vunpack.c.l.b16 %v8378
        %v8383 = vunpack.c.l.b16 %v8379
        %v8384 = vpack.c.b16 %v8383, %v8382
        %v8386 = vsel %vm8300, %v8384, 0
        %8388 = vmatpush.bf16.msra.mxu0 0
        %8389 = vmatpush.bf16.msra.mxu0 0
        %8390 = vmatpush.bf16.msra.mxu0 0
        %8391 = vmatpush.bf16.msra.mxu0 0
        %8392 = vmatpush.bf16.msra.mxu0 %v8307
        %8393 = vmatpush.bf16.msra.mxu0 %v8291
        %8394 = vmatpush.bf16.msra.mxu0 %v8290
        %8395 = vmatpush.bf16.msra.mxu0 %v8289
        %8396 = vmatmul.bf16.gmra.mxu0 %v8386
        %v8397 = vpop.f32.mrf.mxu0
        %v8398 = vadd.f32 0.0, %v8397
        %v8399 = vpop.f32.mrf.mxu0
        %v8400 = vadd.f32 0.0, %v8399
        %8401 = vdwg.mxu0
        %v8402 = vmax.f32 %v8375, %v8398
        %v8403 = vmax.f32 %v8376, %v8400
        %v8404 = vmax.f32 %v8402, 0.0
        %v8405 = vmax.f32 %v8403, 0.0
        %vm8408 = vcmask 1045504
        %v8409 = vrot.slane %v8404, 2
        %v8410 = vrot.slane %v8405, 2
        %v8411 = vsel %vm8408, %v8409, %v8410
        %vm8415 = vcmask 523270
        %8416 = vst.msk [vmem:[#allocation4] sm:$0xc0] %vm8415, %v8409
        %8417 = vst.msk [vmem:[#allocation4 + $0x10] sm:$0xff] %vm535, %v8411
        %vm8418 = vcmask 518144
        %8419 = vst.msk [vmem:[#allocation4 + $0x20] sm:$0x7] %vm8418, %v8410
        %vm8420 = vcmask 1044480
        %v8421 = vrot.slane %v8404, 3
        %v8422 = vrot.slane %v8405, 3
        %v8423 = vsel %vm8420, %v8421, %v8422
        %8424 = vrot.lane.b32.xlu0 %v8421, 64
        %v8425 = vpop.permute.xlu0 %8424
        %8426 = vrot.lane.b32.xlu0 %v8423, 64
        %v8427 = vpop.permute.xlu0 %8426
        %8428 = vrot.lane.b32.xlu0 %v8422, 64
        %v8429 = vpop.permute.xlu0 %8428
        %vm8433 = vcmask 1048069
        %8434 = vst.msk [vmem:[#allocation4] sm:$0xe0] %vm8433, %v8425
        %vm8435 = vcmask 1048064
        %8436 = vst.msk [vmem:[#allocation4 + $0x10] sm:$0xff] %vm8435, %v8427
        %vm8437 = vcmask 1041920
        %8438 = vst.msk [vmem:[#allocation4 + $0x20] sm:$0x3] %vm8437, %v8429
        %v8439 = vrot.slane %v8404, 4
        %v8440 = vrot.slane %v8405, 4
        %v8441 = vsel %vm7295, %v8439, %v8440
        %vm8445 = vcmask 523268
        %8446 = vst.msk [vmem:[#allocation4 + $0x8] sm:$0xf0] %vm8445, %v8439
        %8447 = vst.msk [vmem:[#allocation4 + $0x18] sm:$0xff] %vm535, %v8441
        %8448 = vst.msk [vmem:[#allocation4 + $0x28] sm:$0x1] %vm542, %v8440
        %v8449 = vld [vmem:[%s11] sm:$0x1]
        %v8450 = vld [vmem:[#allocation4] sm:$0xff]
        %v8451 = vld [vmem:[#allocation4 + $0x8] sm:$0xff]
        %v8452 = vpack.c.bf16 %v8450, %v8450
        %v8453 = vpack.c.bf16 %v8451, %v8451
        %v8454 = vld [vmem:[%s10] sm:$0xf]
        %v8455 = vld [vmem:[%s10 + $0x4] sm:$0xf]
        %v8456 = vld [vmem:[%s10 + $0x8] sm:$0xf]
        %v8457 = vld [vmem:[%s10 + $0xc] sm:$0xf]
        %v8458 = vld [vmem:[%s10 + $0x10] sm:$0xf]
        %v8459 = vld [vmem:[%s10 + $0x14] sm:$0xf]
        %v8460 = vld [vmem:[%s10 + $0x18] sm:$0xf]
        %v8461 = vld [vmem:[%s10 + $0x1c] sm:$0xf]
        %v8462 = vld [vmem:[%s10 + $0x20] sm:$0xf]
        %v8463 = vld [vmem:[%s10 + $0x24] sm:$0xf]
        %v8464 = vld [vmem:[%s10 + $0x28] sm:$0xf]
        %v8465 = vld [vmem:[%s10 + $0x2c] sm:$0xf]
        %v8466 = vld [vmem:[%s10 + $0x30] sm:$0xf]
        %v8467 = vld [vmem:[%s10 + $0x34] sm:$0xf]
        %v8468 = vld [vmem:[%s10 + $0x38] sm:$0xf]
        %v8469 = vld [vmem:[%s10 + $0x3c] sm:$0xf]
        %v8470 = vld [vmem:[%s10 + $0x40] sm:$0xf]
        %v8471 = vld [vmem:[%s10 + $0x44] sm:$0xf]
        %v8472 = vld [vmem:[%s10 + $0x48] sm:$0xf]
        %v8473 = vld [vmem:[%s10 + $0x4c] sm:$0xf]
        %v8474 = vld [vmem:[%s10 + $0x50] sm:$0xf]
        %v8475 = vld [vmem:[%s10 + $0x54] sm:$0xf]
        %v8476 = vld [vmem:[%s10 + $0x58] sm:$0xf]
        %v8477 = vld [vmem:[%s10 + $0x5c] sm:$0xf]
        %v8478 = vld [vmem:[#allocation4] sm:$0xe0]
        %v8479 = vld [vmem:[#allocation4 + $0x8] sm:$0xe0]
        %v8480 = vld [vmem:[#allocation4 + $0x10] sm:$0x1f]
        %v8481 = vld [vmem:[#allocation4 + $0x18] sm:$0x1f]
        %v8482 = vpack.c.bf16 %v8480, %v8478
        %v8483 = vpack.c.bf16 %v8481, %v8479
        %s8484 = scalar_lea.vmem %s10, 96
        %v8485 = vld [vmem:[%s8484] sm:$0xf]
        %v8486 = vld [vmem:[%s8484 + $0x4] sm:$0xf]
        %v8487 = vld [vmem:[%s8484 + $0x8] sm:$0xf]
        %v8488 = vld [vmem:[%s8484 + $0xc] sm:$0xf]
        %v8489 = vld [vmem:[%s8484 + $0x10] sm:$0xf]
        %v8490 = vld [vmem:[%s8484 + $0x14] sm:$0xf]
        %v8491 = vld [vmem:[%s8484 + $0x18] sm:$0xf]
        %v8492 = vld [vmem:[%s8484 + $0x1c] sm:$0xf]
        %v8493 = vld [vmem:[%s8484 + $0x20] sm:$0xf]
        %v8494 = vld [vmem:[%s8484 + $0x24] sm:$0xf]
        %v8495 = vld [vmem:[%s8484 + $0x28] sm:$0xf]
        %v8496 = vld [vmem:[%s8484 + $0x2c] sm:$0xf]
        %v8497 = vld [vmem:[%s8484 + $0x30] sm:$0xf]
        %v8498 = vld [vmem:[%s8484 + $0x34] sm:$0xf]
        %v8499 = vld [vmem:[%s8484 + $0x38] sm:$0xf]
        %v8500 = vld [vmem:[%s8484 + $0x3c] sm:$0xf]
        %v8501 = vld [vmem:[%s8484 + $0x40] sm:$0xf]
        %v8502 = vld [vmem:[%s8484 + $0x44] sm:$0xf]
        %v8503 = vld [vmem:[%s8484 + $0x48] sm:$0xf]
        %v8504 = vld [vmem:[%s8484 + $0x4c] sm:$0xf]
        %v8505 = vld [vmem:[%s8484 + $0x50] sm:$0xf]
        %v8506 = vld [vmem:[%s8484 + $0x54] sm:$0xf]
        %v8507 = vld [vmem:[%s8484 + $0x58] sm:$0xf]
        %v8508 = vld [vmem:[%s8484 + $0x5c] sm:$0xf]
        %v8510 = vshrl.u32 %v8482, 16
        %v8512 = vrot.slane %v8510, 2
        %v8513 = vshll.u32 %v8482, 16
        %v8515 = vrot.slane %v8513, 3
        %v8516 = vor.u32 %v8512, %v8515
        %v8518 = vshrl.u32 %v8483, 16
        %v8520 = vrot.slane %v8518, 2
        %v8521 = vshll.u32 %v8483, 16
        %v8523 = vrot.slane %v8521, 3
        %v8524 = vor.u32 %v8520, %v8523
        %v8550 = vunpack.c.l.b16 %v8485
        %v8551 = vunpack.c.l.b16 %v8486
        %v8552 = vunpack.c.l.b16 %v8487
        %v8553 = vunpack.c.l.b16 %v8488
        %v8554 = vunpack.c.l.b16 %v8489
        %v8555 = vunpack.c.l.b16 %v8490
        %v8556 = vunpack.c.l.b16 %v8491
        %v8557 = vunpack.c.l.b16 %v8492
        %v8558 = vunpack.c.l.b16 %v8493
        %v8559 = vunpack.c.l.b16 %v8494
        %v8560 = vunpack.c.l.b16 %v8495
        %v8561 = vunpack.c.l.b16 %v8496
        %v8562 = vunpack.c.l.b16 %v8497
        %v8563 = vunpack.c.l.b16 %v8498
        %v8564 = vunpack.c.l.b16 %v8499
        %v8565 = vunpack.c.l.b16 %v8500
        %v8566 = vunpack.c.l.b16 %v8501
        %v8567 = vunpack.c.l.b16 %v8502
        %v8568 = vunpack.c.l.b16 %v8503
        %v8569 = vunpack.c.l.b16 %v8504
        %v8570 = vunpack.c.l.b16 %v8505
        %v8571 = vunpack.c.l.b16 %v8506
        %v8572 = vunpack.c.l.b16 %v8507
        %v8573 = vunpack.c.l.b16 %v8508
        %v8574 = vpack.c.b16 %v8551, %v8550
        %v8575 = vpack.c.b16 %v8553, %v8552
        %v8576 = vpack.c.b16 %v8555, %v8554
        %v8577 = vpack.c.b16 %v8557, %v8556
        %v8578 = vpack.c.b16 %v8559, %v8558
        %v8579 = vpack.c.b16 %v8561, %v8560
        %v8580 = vpack.c.b16 %v8563, %v8562
        %v8581 = vpack.c.b16 %v8565, %v8564
        %v8582 = vpack.c.b16 %v8567, %v8566
        %v8583 = vpack.c.b16 %v8569, %v8568
        %v8584 = vpack.c.b16 %v8571, %v8570
        %v8585 = vpack.c.b16 %v8573, %v8572
        %v8599 = vsel %vm535, %v8524, 0
        %8601 = vmatpush.bf16.msra.mxu0 %v8581
        %8602 = vmatpush.bf16.msra.mxu0 %v8580
        %8603 = vmatpush.bf16.msra.mxu0 %v8579
        %8604 = vmatpush.bf16.msra.mxu0 %v8578
        %8605 = vmatpush.bf16.msra.mxu0 %v8577
        %8606 = vmatpush.bf16.msra.mxu0 %v8576
        %8607 = vmatpush.bf16.msra.mxu0 %v8575
        %8608 = vmatpush.bf16.msra.mxu0 %v8574
        %8609 = vmatmul.bf16.gmra.mxu0 %v8516
        %v8610 = vpop.f32.mrf.mxu0
        %v8611 = vadd.f32 0.0, %v8610
        %v8612 = vpop.f32.mrf.mxu0
        %8613 = vdwg.mxu0
        %8614 = vmatpush.bf16.msra.mxu0 0
        %8615 = vmatpush.bf16.msra.mxu0 0
        %8616 = vmatpush.bf16.msra.mxu0 0
        %8617 = vmatpush.bf16.msra.mxu0 0
        %8618 = vmatpush.bf16.msra.mxu0 %v8585
        %8619 = vmatpush.bf16.msra.mxu0 %v8584
        %8620 = vmatpush.bf16.msra.mxu0 %v8583
        %8621 = vmatpush.bf16.msra.mxu0 %v8582
        %8622 = vmatmul.bf16.gmra.mxu0 %v8599
        %v8623 = vpop.f32.mrf.mxu0
        %v8624 = vadd.f32 %v8611, %v8623
        %v8625 = vpop.f32.mrf.mxu0
        %8626 = vdwg.mxu0
        %v8651 = vunpack.c.l.b16 %v8454
        %v8652 = vunpack.c.l.b16 %v8455
        %v8653 = vunpack.c.l.b16 %v8456
        %v8654 = vunpack.c.l.b16 %v8457
        %v8655 = vunpack.c.l.b16 %v8458
        %v8656 = vunpack.c.l.b16 %v8459
        %v8657 = vunpack.c.l.b16 %v8460
        %v8658 = vunpack.c.l.b16 %v8461
        %v8659 = vunpack.c.l.b16 %v8462
        %v8660 = vunpack.c.l.b16 %v8463
        %v8661 = vunpack.c.l.b16 %v8464
        %v8662 = vunpack.c.l.b16 %v8465
        %v8663 = vunpack.c.l.b16 %v8466
        %v8664 = vunpack.c.l.b16 %v8467
        %v8665 = vunpack.c.l.b16 %v8468
        %v8666 = vunpack.c.l.b16 %v8469
        %v8667 = vunpack.c.l.b16 %v8470
        %v8668 = vunpack.c.l.b16 %v8471
        %v8669 = vunpack.c.l.b16 %v8472
        %v8670 = vunpack.c.l.b16 %v8473
        %v8671 = vunpack.c.l.b16 %v8474
        %v8672 = vunpack.c.l.b16 %v8475
        %v8673 = vunpack.c.l.b16 %v8476
        %v8674 = vunpack.c.l.b16 %v8477
        %v8675 = vpack.c.b16 %v8652, %v8651
        %v8676 = vpack.c.b16 %v8654, %v8653
        %v8677 = vpack.c.b16 %v8656, %v8655
        %v8678 = vpack.c.b16 %v8658, %v8657
        %v8679 = vpack.c.b16 %v8660, %v8659
        %v8680 = vpack.c.b16 %v8662, %v8661
        %v8681 = vpack.c.b16 %v8664, %v8663
        %v8682 = vpack.c.b16 %v8666, %v8665
        %v8683 = vpack.c.b16 %v8668, %v8667
        %v8684 = vpack.c.b16 %v8670, %v8669
        %v8685 = vpack.c.b16 %v8672, %v8671
        %v8686 = vpack.c.b16 %v8674, %v8673
        %v8700 = vsel %vm535, %v8453, 0
        %8702 = vmatpush.bf16.msra.mxu0 %v8682
        %8703 = vmatpush.bf16.msra.mxu0 %v8681
        %8704 = vmatpush.bf16.msra.mxu0 %v8680
        %8705 = vmatpush.bf16.msra.mxu0 %v8679
        %8706 = vmatpush.bf16.msra.mxu0 %v8678
        %8707 = vmatpush.bf16.msra.mxu0 %v8677
        %8708 = vmatpush.bf16.msra.mxu0 %v8676
        %8709 = vmatpush.bf16.msra.mxu0 %v8675
        %8710 = vmatmul.bf16.gmra.mxu0 %v8452
        %v8711 = vpop.f32.mrf.mxu0
        %v8712 = vadd.f32 %v8624, %v8711
        %v8713 = vpop.f32.mrf.mxu0
        %8714 = vdwg.mxu0
        %8715 = vmatpush.bf16.msra.mxu0 0
        %8716 = vmatpush.bf16.msra.mxu0 0
        %8717 = vmatpush.bf16.msra.mxu0 0
        %8718 = vmatpush.bf16.msra.mxu0 0
        %8719 = vmatpush.bf16.msra.mxu0 %v8686
        %8720 = vmatpush.bf16.msra.mxu0 %v8685
        %8721 = vmatpush.bf16.msra.mxu0 %v8684
        %8722 = vmatpush.bf16.msra.mxu0 %v8683
        %8723 = vmatmul.bf16.gmra.mxu0 %v8700
        %v8724 = vpop.f32.mrf.mxu0
        %v8725 = vadd.f32 %v8712, %v8724
        %v8726 = vpop.f32.mrf.mxu0
        %8727 = vdwg.mxu0
        %v8728 = vld [vmem:[#allocation4 + $0x10] sm:$0xfc]
        %v8729 = vld [vmem:[#allocation4 + $0x18] sm:$0xfc]
        %v8730 = vld [vmem:[#allocation4 + $0x20] sm:$0x3]
        %v8731 = vld [vmem:[#allocation4 + $0x28] sm:$0x3]
        %v8732 = vpack.c.bf16 %v8730, %v8728
        %v8733 = vpack.c.bf16 %v8731, %v8729
        %s8734 = scalar_lea.vmem %s10, 192
        %v8735 = vld [vmem:[%s8734] sm:$0xf]
        %v8736 = vld [vmem:[%s8734 + $0x4] sm:$0xf]
        %v8737 = vld [vmem:[%s8734 + $0x8] sm:$0xf]
        %v8738 = vld [vmem:[%s8734 + $0xc] sm:$0xf]
        %v8739 = vld [vmem:[%s8734 + $0x10] sm:$0xf]
        %v8740 = vld [vmem:[%s8734 + $0x14] sm:$0xf]
        %v8741 = vld [vmem:[%s8734 + $0x18] sm:$0xf]
        %v8742 = vld [vmem:[%s8734 + $0x1c] sm:$0xf]
        %v8743 = vld [vmem:[%s8734 + $0x20] sm:$0xf]
        %v8744 = vld [vmem:[%s8734 + $0x24] sm:$0xf]
        %v8745 = vld [vmem:[%s8734 + $0x28] sm:$0xf]
        %v8746 = vld [vmem:[%s8734 + $0x2c] sm:$0xf]
        %v8747 = vld [vmem:[%s8734 + $0x30] sm:$0xf]
        %v8748 = vld [vmem:[%s8734 + $0x34] sm:$0xf]
        %v8749 = vld [vmem:[%s8734 + $0x38] sm:$0xf]
        %v8750 = vld [vmem:[%s8734 + $0x3c] sm:$0xf]
        %v8751 = vld [vmem:[%s8734 + $0x40] sm:$0xf]
        %v8752 = vld [vmem:[%s8734 + $0x44] sm:$0xf]
        %v8753 = vld [vmem:[%s8734 + $0x48] sm:$0xf]
        %v8754 = vld [vmem:[%s8734 + $0x4c] sm:$0xf]
        %v8755 = vld [vmem:[%s8734 + $0x50] sm:$0xf]
        %v8756 = vld [vmem:[%s8734 + $0x54] sm:$0xf]
        %v8757 = vld [vmem:[%s8734 + $0x58] sm:$0xf]
        %v8758 = vld [vmem:[%s8734 + $0x5c] sm:$0xf]
        %v8761 = vrot.slane %v8732, 1
        %v8762 = vrot.slane %v8733, 1
        %v8788 = vunpack.c.l.b16 %v8735
        %v8789 = vunpack.c.l.b16 %v8736
        %v8790 = vunpack.c.l.b16 %v8737
        %v8791 = vunpack.c.l.b16 %v8738
        %v8792 = vunpack.c.l.b16 %v8739
        %v8793 = vunpack.c.l.b16 %v8740
        %v8794 = vunpack.c.l.b16 %v8741
        %v8795 = vunpack.c.l.b16 %v8742
        %v8796 = vunpack.c.l.b16 %v8743
        %v8797 = vunpack.c.l.b16 %v8744
        %v8798 = vunpack.c.l.b16 %v8745
        %v8799 = vunpack.c.l.b16 %v8746
        %v8800 = vunpack.c.l.b16 %v8747
        %v8801 = vunpack.c.l.b16 %v8748
        %v8802 = vunpack.c.l.b16 %v8749
        %v8803 = vunpack.c.l.b16 %v8750
        %v8804 = vunpack.c.l.b16 %v8751
        %v8805 = vunpack.c.l.b16 %v8752
        %v8806 = vunpack.c.l.b16 %v8753
        %v8807 = vunpack.c.l.b16 %v8754
        %v8808 = vunpack.c.l.b16 %v8755
        %v8809 = vunpack.c.l.b16 %v8756
        %v8810 = vunpack.c.l.b16 %v8757
        %v8811 = vunpack.c.l.b16 %v8758
        %v8812 = vpack.c.b16 %v8789, %v8788
        %v8813 = vpack.c.b16 %v8791, %v8790
        %v8814 = vpack.c.b16 %v8793, %v8792
        %v8815 = vpack.c.b16 %v8795, %v8794
        %v8816 = vpack.c.b16 %v8797, %v8796
        %v8817 = vpack.c.b16 %v8799, %v8798
        %v8818 = vpack.c.b16 %v8801, %v8800
        %v8819 = vpack.c.b16 %v8803, %v8802
        %v8820 = vpack.c.b16 %v8805, %v8804
        %v8821 = vpack.c.b16 %v8807, %v8806
        %v8822 = vpack.c.b16 %v8809, %v8808
        %v8823 = vpack.c.b16 %v8811, %v8810
        %v8837 = vsel %vm535, %v8762, 0
        %8839 = vmatpush.bf16.msra.mxu0 %v8819
        %8840 = vmatpush.bf16.msra.mxu0 %v8818
        %8841 = vmatpush.bf16.msra.mxu0 %v8817
        %8842 = vmatpush.bf16.msra.mxu0 %v8816
        %8843 = vmatpush.bf16.msra.mxu0 %v8815
        %8844 = vmatpush.bf16.msra.mxu0 %v8814
        %8845 = vmatpush.bf16.msra.mxu0 %v8813
        %8846 = vmatpush.bf16.msra.mxu0 %v8812
        %8847 = vmatmul.bf16.gmra.mxu0 %v8761
        %v8848 = vpop.f32.mrf.mxu0
        %v8849 = vadd.f32 0.0, %v8848
        %v8850 = vpop.f32.mrf.mxu0
        %8851 = vdwg.mxu0
        %8852 = vmatpush.bf16.msra.mxu0 0
        %8853 = vmatpush.bf16.msra.mxu0 0
        %8854 = vmatpush.bf16.msra.mxu0 0
        %8855 = vmatpush.bf16.msra.mxu0 0
        %8856 = vmatpush.bf16.msra.mxu0 %v8823
        %8857 = vmatpush.bf16.msra.mxu0 %v8822
        %8858 = vmatpush.bf16.msra.mxu0 %v8821
        %8859 = vmatpush.bf16.msra.mxu0 %v8820
        %8860 = vmatmul.bf16.gmra.mxu0 %v8837
        %v8861 = vpop.f32.mrf.mxu0
        %v8862 = vadd.f32 %v8849, %v8861
        %v8863 = vpop.f32.mrf.mxu0
        %8864 = vdwg.mxu0
        %v8865 = vadd.f32 %v8725, %v8862
        %v8867 = vperm.slane %v8449, 0
        %v8869 = vadd.f32 %v8865, %v8867
        %v8870 = vpack.c.bf16 %v8869, %v8869
        %v8871 = vld [vmem:[%s12] sm:$0x1]
        %vm8872 = vcmask 64512
        %v8874 = vsel %vm8872, %v8871, 0
        %v8877 = vsel %vm7295, %v8870, 0
        %8879 = vmatpush.bf16.msra.mxu0 0
        %8880 = vmatpush.bf16.msra.mxu0 0
        %8881 = vmatpush.bf16.msra.mxu0 0
        %8882 = vmatpush.bf16.msra.mxu0 0
        %8883 = vmatpush.bf16.msra.mxu0 0
        %8884 = vmatpush.bf16.msra.mxu0 0
        %8885 = vmatpush.bf16.msra.mxu0 0
        %8886 = vmatpush.bf16.msra.mxu0 %v8877
        %8887 = vmatmul.bf16.gmra.mxu0 %v8874
        %v8888 = vpop.f32.mrf.mxu0
        %v8889 = vadd.f32 0.0, %v8888
        %v8890 = vpop.f32.mrf.mxu0
        %8891 = vdwg.mxu0
        %s8892 = scalar_lea.vmem %s12, 1
        %v8893 = vld [vmem:[%s8892] sm:$0x1]
        %v8895 = vsel %vm8872, %v8893, 0
        %8897 = vmatpush.bf16.msra.mxu0 0
        %8898 = vmatpush.bf16.msra.mxu0 0
        %8899 = vmatpush.bf16.msra.mxu0 0
        %8900 = vmatpush.bf16.msra.mxu0 0
        %8901 = vmatpush.bf16.msra.mxu0 0
        %8902 = vmatpush.bf16.msra.mxu0 0
        %8903 = vmatpush.bf16.msra.mxu0 0
        %8904 = vmatpush.bf16.msra.mxu0 %v8877
        %8905 = vmatmul.bf16.gmra.mxu0 %v8895
        %v8906 = vpop.f32.mrf.mxu0
        %v8907 = vadd.f32 0.0, %v8906
        %v8908 = vpop.f32.mrf.mxu0
        %8909 = vdwg.mxu0
        %v8910 = vmax.f32 %v8889, %v8907
        %s8911 = scalar_lea.vmem %s12, 2
        %v8912 = vld [vmem:[%s8911] sm:$0x1]
        %v8914 = vsel %vm8872, %v8912, 0
        %8916 = vmatpush.bf16.msra.mxu0 0
        %8917 = vmatpush.bf16.msra.mxu0 0
        %8918 = vmatpush.bf16.msra.mxu0 0
        %8919 = vmatpush.bf16.msra.mxu0 0
        %8920 = vmatpush.bf16.msra.mxu0 0
        %8921 = vmatpush.bf16.msra.mxu0 0
        %8922 = vmatpush.bf16.msra.mxu0 0
        %8923 = vmatpush.bf16.msra.mxu0 %v8877
        %8924 = vmatmul.bf16.gmra.mxu0 %v8914
        %v8925 = vpop.f32.mrf.mxu0
        %v8926 = vadd.f32 0.0, %v8925
        %v8927 = vpop.f32.mrf.mxu0
        %8928 = vdwg.mxu0
        %v8929 = vmax.f32 %v8910, %v8926
        %s8930 = scalar_lea.vmem %s12, 3
        %v8931 = vld [vmem:[%s8930] sm:$0x1]
        %v8933 = vsel %vm8872, %v8931, 0
        %8935 = vmatpush.bf16.msra.mxu0 0
        %8936 = vmatpush.bf16.msra.mxu0 0
        %8937 = vmatpush.bf16.msra.mxu0 0
        %8938 = vmatpush.bf16.msra.mxu0 0
        %8939 = vmatpush.bf16.msra.mxu0 0
        %8940 = vmatpush.bf16.msra.mxu0 0
        %8941 = vmatpush.bf16.msra.mxu0 0
        %8942 = vmatpush.bf16.msra.mxu0 %v8877
        %8943 = vmatmul.bf16.gmra.mxu0 %v8933
        %v8944 = vpop.f32.mrf.mxu0
        %v8945 = vadd.f32 0.0, %v8944
        %v8946 = vpop.f32.mrf.mxu0
        %8947 = vdwg.mxu0
        %v8948 = vmax.f32 %v8929, %v8945
        %v8949 = vmax.f32 %v8948, 0.0
        %8950 = vst.msk [vmem:[%s432] sm:$0x1] %vm542, %v8949
        %s8951 = sand.u32 %s313, 1
        %s8952 = scalar_lea.sflag [#allocation6], %s8951
        %s8953 = sand.u32 %s313, 1
        %s8954 = scalar_lea.vmem [#allocation5], %s8953
        // Predicated region
        $region73: #{forward.1} parent=71 // pred_check
          %p8955 = pneg %p323
        $region74: #{forward.1} parent=71 // pred_check_branch
          %8957 = sbr.rel (%p8955) target = $region76
        $region75: #{forward.1} parent=71 // pred_region
          %8959 = vsyncadd %s8952, 0
          %s8960 = scalar_lea.hbm %s13, %s27
          %s8962 = sshll.u32 %s8954, 4
          %s8963 = int_to_ptr.vmem [resolvable:$true] %s8962
          %s8964 = sshll.u32 %s8960, 4
          %s8965 = int_to_ptr.hbm [resolvable:$true] %s8964
          %8967 = dma.vmem_to_hbm [thread:$0]  %s8963, 16, %s8965, %s8952
        $region76: #{forward.1} parent=71 // pred_fallthru
          _
      $region72: #{forward.1} parent=5 // pred_fallthru
        _
      %p8968 = scmp.le.s32.totalorder 2, %s22
      // Predicated region
      $region77: #{forward.1} parent=5 // pred_check
        %p8969 = pneg %p8968
      $region78: #{forward.1} parent=5 // pred_check_branch
        %8971 = sbr.rel (%p8969) target = $region80
      $region79: #{forward.1} parent=5 // pred_region
        %s8972 = ssub.s32 %s22, 2
        // Predicated region
        $region81: #{forward.1} parent=79 // pred_check
          %p8973 = pneg %p329
        $region82: #{forward.1} parent=79 // pred_check_branch
          %8975 = sbr.rel (%p8973) target = $region84
        $region83: #{forward.1} parent=79 // pred_region
          %s8976 = sand.u32 %s314, 1
          %s8977 = scalar_lea.sflag [#allocation6], %s8976
          %s8978 = sand.u32 %s314, 1
          %s8979 = scalar_lea.vmem [#allocation5], %s8978
          %8981 = dma.done %s8977, 16
        $region84: #{forward.1} parent=79 // pred_fallthru
          _
      $region80: #{forward.1} parent=5 // pred_fallthru
        _
    $region6: #{forward.1} parent=1 // loop_footer
      %s26 = sadd.s32 1, %s22
    $region7: #{forward.1} parent=1 // loop_footer_branch
      %21 = sbr.rel target = $region3
    $region8: #{forward.1} parent=1 // loop_exit
      _
    %8982 = vsyncpa [#allocation6], 1
    %s8983 = scalar_lea.sflag [#allocation6], 1
    %8984 = vsyncpa %s8983, 1

</llo_original>
